<compile_context>
chip_gen: v7x
topology: tpu7x:2x2x1
jax: 0.10.0
libtpu: 0.0.40
codegen_flags: <defaults>
</compile_context>

<pallas_src>
import functools

import jax
import jax.numpy as jnp
from jax import lax
from jax.experimental import pallas as pl
from jax.experimental.pallas import tpu as pltpu


# ----------------------------------------------------------------------------
# Conv block kernel: Conv2d(3x3, pad=1) + BatchNorm2d (folded) + ReLU + MaxPool2d(2)
#   p_ref : (1, 4, K, TS)   4 pooling phases of transposed im2col patches (bf16)
#   w_ref : (Cout, K)       conv weight with BN scale folded in (bf16)
#   b_ref : (Cout, 1)       folded (conv bias + BN) bias (f32)
#   o_ref : (1, Cout, TS)   bf16 output tile (channel-major, spatial on lanes)
# ----------------------------------------------------------------------------
def conv_block_kernel(p_ref, w_ref, b_ref, o_ref):
    w = w_ref[...]

    def phase(p):
        return jnp.dot(w, p_ref[0, p], preferred_element_type=jnp.float32)

    # bias is per-channel (identical for all 4 pooling phases) so it can be
    # added once after the phase max; ReLU commutes with max.
    y = jnp.maximum(jnp.maximum(phase(0), phase(1)),
                    jnp.maximum(phase(2), phase(3)))
    o_ref[0] = jnp.maximum(y + b_ref[...], 0.0).astype(o_ref.dtype)


def _pick_spatial_tile(S, max_tile=2048):
    """Largest multiple of 128 that divides S and is <= max_tile (or S itself)."""
    if S <= max_tile:
        return S
    for ts in range(max_tile, 127, -128):
        if S % ts == 0:
            return ts
    return S


def conv_bn_relu_pool(x_nchw, w_mat, bias):
    """x: (B, Cin, H, W) bf16 (H, W even). w_mat: (Cout, 9*Cin) bf16 (BN folded).
    bias: (Cout, 1) f32. Returns (B, Cout, H//2, W//2) bf16."""
    B, Cin, H, W = x_nchw.shape
    Cout = w_mat.shape[0]
    Hh, Wh = H // 2, W // 2
    S = Hh * Wh
    K = 9 * Cin

    # --- glue: pad + phase-ordered, transposed im2col (plain JAX) ---
    # K order is (cin, dy, dx) cin-major, matching w_oihw.reshape(Cout, Cin*9).
    xp = jnp.pad(x_nchw, ((0, 0), (0, 0), (1, 1), (1, 1)))
    phases = []
    for py in range(2):
        for px in range(2):
            taps = [
                xp[:, :, py + dy: py + dy + H: 2, px + dx: px + dx + W: 2]
                for dy in range(3)
                for dx in range(3)
            ]
            t = jnp.stack(taps, axis=2)              # (B, Cin, 9, Hh, Wh)
            phases.append(t.reshape(B, K, S))
    patches = jnp.stack(phases, axis=1)              # (B, 4, K, S)

    TS = _pick_spatial_tile(S)
    grid = (B, S // TS)

    out = pl.pallas_call(
        conv_block_kernel,
        out_shape=jax.ShapeDtypeStruct((B, Cout, S), jnp.bfloat16),
        grid=grid,
        in_specs=[
            pl.BlockSpec((1, 4, K, TS), lambda b, s: (b, 0, 0, s)),
            pl.BlockSpec((Cout, K), lambda b, s: (0, 0)),     # weight resident
            pl.BlockSpec((Cout, 1), lambda b, s: (0, 0)),     # bias resident
        ],
        out_specs=pl.BlockSpec((1, Cout, TS), lambda b, s: (b, 0, s)),
        compiler_params=pltpu.CompilerParams(
            dimension_semantics=("parallel", "parallel"),
            vmem_limit_bytes=32 * 1024 * 1024,   # per-step live ~<=10 MiB, v7x-safe
        ),
    )(patches, w_mat, bias)
    return out.reshape(B, Cout, Hh, Wh)


# ----------------------------------------------------------------------------
# Heads kernel: fc_embedding + ReLU (+dropout=identity), regressor head,
# classifier head (+dropout=identity). Weights pre-transposed (in, out) f32,
# biases (1, out) f32. Batch-tiled; weights stay resident (constant index map).
# ----------------------------------------------------------------------------
def heads_kernel(
    x_ref, we, be,
    rw1, rb1, rw2, rb2, rw3, rb3, rw4, rb4,
    cw1, cb1, cw2, cb2,
    pcs_ref, lab_ref, emb_ref,
):
    def dense(h, w_ref, b_ref):
        return jnp.dot(h, w_ref[...], preferred_element_type=jnp.float32) + b_ref[...]

    x = x_ref[...].astype(jnp.float32)
    emb = jnp.maximum(dense(x, we, be), 0.0)     # fc_embedding + ReLU
    emb_ref[...] = emb                           # dropout_embedding: identity (eval)

    h = jnp.maximum(dense(emb, rw1, rb1), 0.0)
    h = jnp.maximum(dense(h, rw2, rb2), 0.0)
    h = jnp.maximum(dense(h, rw3, rb3), 0.0)
    pcs_ref[...] = dense(h, rw4, rb4)

    c = jnp.maximum(dense(emb, cw1, cb1), 0.0)   # classifier dropout: identity (eval)
    lab_ref[...] = dense(c, cw2, cb2)


def heads_forward(feat, mlp, n_classes):
    B, F = feat.shape
    TB = 128 if (B >= 128 and B % 128 == 0) else B
    grid = (B // TB,)

    def full_spec(arr):
        return pl.BlockSpec(arr.shape, lambda i: (0,) * arr.ndim)

    in_specs = [pl.BlockSpec((TB, F), lambda i: (i, 0))] + [full_spec(a) for a in mlp]
    out_specs = (
        pl.BlockSpec((TB, 2), lambda i: (i, 0)),
        pl.BlockSpec((TB, n_classes), lambda i: (i, 0)),
        pl.BlockSpec((TB, 256), lambda i: (i, 0)),
    )
    return pl.pallas_call(
        heads_kernel,
        out_shape=(
            jax.ShapeDtypeStruct((B, 2), jnp.float32),
            jax.ShapeDtypeStruct((B, n_classes), jnp.float32),
            jax.ShapeDtypeStruct((B, 256), jnp.float32),
        ),
        grid=grid,
        in_specs=in_specs,
        out_specs=out_specs,
        compiler_params=pltpu.CompilerParams(
            dimension_semantics=("parallel",),
            vmem_limit_bytes=32 * 1024 * 1024,
        ),
    )(feat, *mlp)


# ----------------------------------------------------------------------------
# Parameter init (deterministic, synthetic — mirrors shapes in __init__)
# ----------------------------------------------------------------------------
def init_params(key, n_classes, resolution):
    conv_cfg = [(1, 16), (16, 32), (32, 64), (64, 128)]
    eps = 1e-5
    params = {"conv": []}

    keys = iter(jax.random.split(key, 64))
    for cin, cout in conv_cfg:
        w_oihw = jax.random.normal(next(keys), (cout, cin, 3, 3), jnp.float32)
        w_oihw = w_oihw / jnp.sqrt(9.0 * cin)
        b_conv = 0.01 * jax.random.normal(next(keys), (cout,), jnp.float32)
        gamma = jax.random.uniform(next(keys), (cout,), jnp.float32, 0.8, 1.2)
        beta = 0.05 * jax.random.normal(next(keys), (cout,), jnp.float32)
        r_mean = 0.05 * jax.random.normal(next(keys), (cout,), jnp.float32)
        r_var = jax.random.uniform(next(keys), (cout,), jnp.float32, 0.8, 1.2)
        scale = gamma / jnp.sqrt(r_var + eps)
        bias = (b_conv - r_mean) * scale + beta
        # Fold BN scale into the conv weight; flatten OIHW -> (Cout, Cin*3*3).
        w_eff = (w_oihw * scale[:, None, None, None]).reshape(cout, 9 * cin)
        params["conv"].append({
            "w_mat": w_eff.astype(jnp.bfloat16),                 # (Cout, 9*Cin)
            "bias": bias.reshape(cout, 1).astype(jnp.float32),   # (Cout, 1)
        })

    def linear(key_w, key_b, fan_in, fan_out):
        w = jax.random.normal(key_w, (fan_out, fan_in), jnp.float32) / jnp.sqrt(fan_in)
        b = 0.01 * jax.random.normal(key_b, (fan_out,), jnp.float32)
        return jnp.transpose(w), b.reshape(1, fan_out)   # (in, out), (1, out)

    fsz = 128 * (resolution // 16) * (resolution // 16)
    dims = [
        (fsz, 256),                                  # fc_embedding
        (256, 128), (128, 64), (64, 32), (32, 2),    # regressor head
        (256, 128), (128, n_classes),                # classifier head
    ]
    mlp = []
    for din, dout in dims:
        w, b = linear(next(keys), next(keys), din, dout)
        mlp.extend([w, b])
    params["mlp"] = tuple(mlp)
    return params


# ----------------------------------------------------------------------------
# Full forward pass (Pallas)
# ----------------------------------------------------------------------------
def cnn_multitask_forward(x_nchw, params, *, n_classes, resolution):
    x = x_nchw.astype(jnp.bfloat16)          # channel-major (NCHW) throughout
    for lp in params["conv"]:
        x = conv_bn_relu_pool(x, lp["w_mat"], lp["bias"])

    B = x.shape[0]
    flattened_size = 128 * (resolution // 16) * (resolution // 16)
    feat = x.reshape(B, -1)                  # == PyTorch nn.Flatten on NCHW
    if feat.shape[1] != flattened_size:      # static Python ints -> jit-safe
        raise ValueError("Flattened feature size mismatch.")
    return heads_forward(feat, params["mlp"], n_classes)


# ----------------------------------------------------------------------------
# Pure-JAX reference (same bf16 casting points, f32 accumulation)
# ----------------------------------------------------------------------------
def reference_forward(x_nchw, params, n_classes):
    x = x_nchw.astype(jnp.bfloat16)
    for lp in params["conv"]:
        cout, K = lp["w_mat"].shape
        cin = K // 9
        w_oihw = lp["w_mat"].reshape(cout, cin, 3, 3)
        y = lax.conv_general_dilated(
            x, w_oihw, (1, 1), "SAME",
            dimension_numbers=("NCHW", "OIHW", "NCHW"),
            preferred_element_type=jnp.float32,
        )
        y = jnp.maximum(y + lp["bias"].reshape(1, cout, 1, 1), 0.0)
        y = lax.reduce_window(y, -jnp.inf, lax.max, (1, 1, 2, 2), (1, 1, 2, 2), "VALID")
        x = y.astype(jnp.bfloat16)
    feat = x.reshape(x.shape[0], -1).astype(jnp.float32)

    def dense(h, w, b):
        return h @ w + b

    (we, be, rw1, rb1, rw2, rb2, rw3, rb3, rw4, rb4, cw1, cb1, cw2, cb2) = params["mlp"]
    emb = jnp.maximum(dense(feat, we, be), 0.0)
    h = jnp.maximum(dense(emb, rw1, rb1), 0.0)
    h = jnp.maximum(dense(h, rw2, rb2), 0.0)
    h = jnp.maximum(dense(h, rw3, rb3), 0.0)
    pcs = dense(h, rw4, rb4)
    c = jnp.maximum(dense(emb, cw1, cb1), 0.0)
    labels = dense(c, cw2, cb2)
    return pcs, labels, emb


if __name__ == "__main__":
    B = 2
    RESOLUTION = 32        # small, divisible by 16 (PyTorch default was 512)
    N_CLASSES = 5

    key = jax.random.PRNGKey(0)
    k_params, k_x = jax.random.split(key)
    params = init_params(k_params, N_CLASSES, RESOLUTION)

    x = jax.random.normal(k_x, (B, 1, RESOLUTION, RESOLUTION), jnp.float32)  # NCHW

    fwd = jax.jit(functools.partial(cnn_multitask_forward,
                                    n_classes=N_CLASSES, resolution=RESOLUTION))
    pred_pcs, pred_labels, embeddings = fwd(x, params)
    jax.block_until_ready((pred_pcs, pred_labels, embeddings))

    assert pred_pcs.shape == (B, 2)
    assert pred_labels.shape == (B, N_CLASSES)
    assert embeddings.shape == (B, 256)

    # numerical sanity check against a plain-JAX reference (bf16-matched)
    ref_pcs, ref_labels, ref_emb = reference_forward(x, params, N_CLASSES)
    for name, got, ref in (("pcs", pred_pcs, ref_pcs),
                           ("labels", pred_labels, ref_labels),
                           ("emb", embeddings, ref_emb)):
        err = float(jnp.max(jnp.abs(got.astype(jnp.float32) - ref.astype(jnp.float32))))
        scale = float(jnp.max(jnp.abs(ref.astype(jnp.float32)))) + 1e-6
        assert err / scale < 3e-2, f"{name} mismatch vs reference: rel err {err/scale:.3e}"

    print("KERNEL_OK")
</pallas_src>

<mosaic_0001>
module attributes {stable_mosaic.version = 11 : i64} {
  func.func @conv_block_kernel(%arg0: i32, %arg1: i32, %arg2: memref<1x4x9x256xbf16, #tpu.memory_space<vmem>>, %arg3: memref<16x9xbf16, #tpu.memory_space<vmem>>, %arg4: memref<16x1xf32, #tpu.memory_space<vmem>>, %arg5: memref<1x16x256xbf16, #tpu.memory_space<vmem>>) attributes {dimension_semantics = [#tpu.dimension_semantics<parallel>, #tpu.dimension_semantics<parallel>], iteration_bounds = array<i64: 2, 1>, scalar_prefetch = 0 : i64, scratch_operands = 0 : i64, tpu.core_type = #tpu.core_type<tc>, window_params = [{transform_indices = @transform_0, window_bounds = array<i64: 1, 4, 9, 256>}, {pipeline_mode = #tpu.pipeline_mode<synchronous>, transform_indices = @transform_1, window_bounds = array<i64: 16, 9>}, {pipeline_mode = #tpu.pipeline_mode<synchronous>, transform_indices = @transform_2, window_bounds = array<i64: 16, 1>}, {transform_indices = @transform_3, window_bounds = array<i64: 1, 16, 256>}]} {
    %c0 = arith.constant 0 : index
    %c0_0 = arith.constant 0 : index
    %0 = vector.load %arg3[%c0, %c0_0] : memref<16x9xbf16, #tpu.memory_space<vmem>>, vector<16x9xbf16>
    %c0_1 = arith.constant 0 : index
    %c0_2 = arith.constant 0 : index
    %c0_3 = arith.constant 0 : index
    %c0_4 = arith.constant 0 : index
    %1 = vector.load %arg2[%c0_1, %c0_2, %c0_3, %c0_4] : memref<1x4x9x256xbf16, #tpu.memory_space<vmem>>, vector<1x1x9x256xbf16>
    %2 = vector.shape_cast %1 : vector<1x1x9x256xbf16> to vector<9x256xbf16>
    %cst = arith.constant dense<0.000000e+00> : vector<16x256xf32>
    %3 = tpu.matmul %0, %2, %cst {dimension_numbers = #tpu.dot_dimension_numbers<[1], [0], [0], [1], [0, 0, 1, 1], [], []>} : vector<16x9xbf16>, vector<9x256xbf16>, vector<16x256xf32> -> vector<16x256xf32>
    %c0_5 = arith.constant 0 : index
    %c1 = arith.constant 1 : index
    %c0_6 = arith.constant 0 : index
    %c0_7 = arith.constant 0 : index
    %4 = vector.load %arg2[%c0_5, %c1, %c0_6, %c0_7] : memref<1x4x9x256xbf16, #tpu.memory_space<vmem>>, vector<1x1x9x256xbf16>
    %5 = vector.shape_cast %4 : vector<1x1x9x256xbf16> to vector<9x256xbf16>
    %cst_8 = arith.constant dense<0.000000e+00> : vector<16x256xf32>
    %6 = tpu.matmul %0, %5, %cst_8 {dimension_numbers = #tpu.dot_dimension_numbers<[1], [0], [0], [1], [0, 0, 1, 1], [], []>} : vector<16x9xbf16>, vector<9x256xbf16>, vector<16x256xf32> -> vector<16x256xf32>
    %7 = arith.maximumf %3, %6 : vector<16x256xf32>
    %c0_9 = arith.constant 0 : index
    %c2 = arith.constant 2 : index
    %c0_10 = arith.constant 0 : index
    %c0_11 = arith.constant 0 : index
    %8 = vector.load %arg2[%c0_9, %c2, %c0_10, %c0_11] : memref<1x4x9x256xbf16, #tpu.memory_space<vmem>>, vector<1x1x9x256xbf16>
    %9 = vector.shape_cast %8 : vector<1x1x9x256xbf16> to vector<9x256xbf16>
    %cst_12 = arith.constant dense<0.000000e+00> : vector<16x256xf32>
    %10 = tpu.matmul %0, %9, %cst_12 {dimension_numbers = #tpu.dot_dimension_numbers<[1], [0], [0], [1], [0, 0, 1, 1], [], []>} : vector<16x9xbf16>, vector<9x256xbf16>, vector<16x256xf32> -> vector<16x256xf32>
    %c0_13 = arith.constant 0 : index
    %c3 = arith.constant 3 : index
    %c0_14 = arith.constant 0 : index
    %c0_15 = arith.constant 0 : index
    %11 = vector.load %arg2[%c0_13, %c3, %c0_14, %c0_15] : memref<1x4x9x256xbf16, #tpu.memory_space<vmem>>, vector<1x1x9x256xbf16>
    %12 = vector.shape_cast %11 : vector<1x1x9x256xbf16> to vector<9x256xbf16>
    %cst_16 = arith.constant dense<0.000000e+00> : vector<16x256xf32>
    %13 = tpu.matmul %0, %12, %cst_16 {dimension_numbers = #tpu.dot_dimension_numbers<[1], [0], [0], [1], [0, 0, 1, 1], [], []>} : vector<16x9xbf16>, vector<9x256xbf16>, vector<16x256xf32> -> vector<16x256xf32>
    %14 = arith.maximumf %10, %13 : vector<16x256xf32>
    %15 = arith.maximumf %7, %14 : vector<16x256xf32>
    %c0_17 = arith.constant 0 : index
    %c0_18 = arith.constant 0 : index
    %16 = vector.load %arg4[%c0_17, %c0_18] : memref<16x1xf32, #tpu.memory_space<vmem>>, vector<16x1xf32>
    %17 = vector.broadcast %16 : vector<16x1xf32> to vector<16x256xf32>
    %18 = arith.addf %15, %17 : vector<16x256xf32>
    %cst_19 = arith.constant 0.000000e+00 : f32
    %19 = vector.broadcast %cst_19 : f32 to vector<16x256xf32>
    %20 = arith.maximumf %18, %19 : vector<16x256xf32>
    %21 = arith.truncf %20 : vector<16x256xf32> to vector<16x256xbf16>
    %c0_20 = arith.constant 0 : index
    %c0_21 = arith.constant 0 : index
    %c0_22 = arith.constant 0 : index
    %22 = vector.load %arg5[%c0_20, %c0_21, %c0_22] : memref<1x16x256xbf16, #tpu.memory_space<vmem>>, vector<1x16x256xbf16>
    %23 = vector.shape_cast %22 : vector<1x16x256xbf16> to vector<16x256xbf16>
    %24 = vector.shape_cast %21 : vector<16x256xbf16> to vector<1x16x256xbf16>
    tpu.vector_store %arg5[%c0_20, %c0_21, %c0_22], %24 {strides = array<i32>} : memref<1x16x256xbf16, #tpu.memory_space<vmem>>, vector<1x16x256xbf16>,
    return
  }
  func.func @transform_0(%arg0: i32, %arg1: i32) -> (i32, i32, i32, i32) {
    %c0_i32 = arith.constant 0 : i32
    %c0_i32_0 = arith.constant 0 : i32
    %c0_i32_1 = arith.constant 0 : i32
    return %arg0, %c0_i32, %c0_i32_0, %arg1 : i32, i32, i32, i32
  }
  func.func @transform_1(%arg0: i32, %arg1: i32) -> (i32, i32) {
    %c0_i32 = arith.constant 0 : i32
    %c0_i32_0 = arith.constant 0 : i32
    %c0_i32_1 = arith.constant 0 : i32
    return %c0_i32, %c0_i32_0 : i32, i32
  }
  func.func @transform_2(%arg0: i32, %arg1: i32) -> (i32, i32) {
    %c0_i32 = arith.constant 0 : i32
    %c0_i32_0 = arith.constant 0 : i32
    %c0_i32_1 = arith.constant 0 : i32
    return %c0_i32, %c0_i32_0 : i32, i32
  }
  func.func @transform_3(%arg0: i32, %arg1: i32) -> (i32, i32, i32) {
    %c0_i32 = arith.constant 0 : i32
    %c0_i32_0 = arith.constant 0 : i32
    return %arg0, %c0_i32, %arg1 : i32, i32, i32
  }
}

module attributes {stable_mosaic.version = 11 : i64} {
  func.func @conv_block_kernel(%arg0: i32, %arg1: i32, %arg2: memref<1x4x144x64xbf16, #tpu.memory_space<vmem>>, %arg3: memref<32x144xbf16, #tpu.memory_space<vmem>>, %arg4: memref<32x1xf32, #tpu.memory_space<vmem>>, %arg5: memref<1x32x64xbf16, #tpu.memory_space<vmem>>) attributes {dimension_semantics = [#tpu.dimension_semantics<parallel>, #tpu.dimension_semantics<parallel>], iteration_bounds = array<i64: 2, 1>, scalar_prefetch = 0 : i64, scratch_operands = 0 : i64, tpu.core_type = #tpu.core_type<tc>, window_params = [{transform_indices = @transform_0, window_bounds = array<i64: 1, 4, 144, 64>}, {pipeline_mode = #tpu.pipeline_mode<synchronous>, transform_indices = @transform_1, window_bounds = array<i64: 32, 144>}, {pipeline_mode = #tpu.pipeline_mode<synchronous>, transform_indices = @transform_2, window_bounds = array<i64: 32, 1>}, {transform_indices = @transform_3, window_bounds = array<i64: 1, 32, 64>}]} {
    %c0 = arith.constant 0 : index
    %c0_0 = arith.constant 0 : index
    %0 = vector.load %arg3[%c0, %c0_0] : memref<32x144xbf16, #tpu.memory_space<vmem>>, vector<32x144xbf16>
    %c0_1 = arith.constant 0 : index
    %c0_2 = arith.constant 0 : index
    %c0_3 = arith.constant 0 : index
    %c0_4 = arith.constant 0 : index
    %1 = vector.load %arg2[%c0_1, %c0_2, %c0_3, %c0_4] : memref<1x4x144x64xbf16, #tpu.memory_space<vmem>>, vector<1x1x144x64xbf16>
    %2 = vector.shape_cast %1 : vector<1x1x144x64xbf16> to vector<144x64xbf16>
    %cst = arith.constant dense<0.000000e+00> : vector<32x64xf32>
    %3 = tpu.matmul %0, %2, %cst {dimension_numbers = #tpu.dot_dimension_numbers<[1], [0], [0], [1], [0, 0, 1, 1], [], []>} : vector<32x144xbf16>, vector<144x64xbf16>, vector<32x64xf32> -> vector<32x64xf32>
    %c0_5 = arith.constant 0 : index
    %c1 = arith.constant 1 : index
    %c0_6 = arith.constant 0 : index
    %c0_7 = arith.constant 0 : index
    %4 = vector.load %arg2[%c0_5, %c1, %c0_6, %c0_7] : memref<1x4x144x64xbf16, #tpu.memory_space<vmem>>, vector<1x1x144x64xbf16>
    %5 = vector.shape_cast %4 : vector<1x1x144x64xbf16> to vector<144x64xbf16>
    %cst_8 = arith.constant dense<0.000000e+00> : vector<32x64xf32>
    %6 = tpu.matmul %0, %5, %cst_8 {dimension_numbers = #tpu.dot_dimension_numbers<[1], [0], [0], [1], [0, 0, 1, 1], [], []>} : vector<32x144xbf16>, vector<144x64xbf16>, vector<32x64xf32> -> vector<32x64xf32>
    %7 = arith.maximumf %3, %6 : vector<32x64xf32>
    %c0_9 = arith.constant 0 : index
    %c2 = arith.constant 2 : index
    %c0_10 = arith.constant 0 : index
    %c0_11 = arith.constant 0 : index
    %8 = vector.load %arg2[%c0_9, %c2, %c0_10, %c0_11] : memref<1x4x144x64xbf16, #tpu.memory_space<vmem>>, vector<1x1x144x64xbf16>
    %9 = vector.shape_cast %8 : vector<1x1x144x64xbf16> to vector<144x64xbf16>
    %cst_12 = arith.constant dense<0.000000e+00> : vector<32x64xf32>
    %10 = tpu.matmul %0, %9, %cst_12 {dimension_numbers = #tpu.dot_dimension_numbers<[1], [0], [0], [1], [0, 0, 1, 1], [], []>} : vector<32x144xbf16>, vector<144x64xbf16>, vector<32x64xf32> -> vector<32x64xf32>
    %c0_13 = arith.constant 0 : index
    %c3 = arith.constant 3 : index
    %c0_14 = arith.constant 0 : index
    %c0_15 = arith.constant 0 : index
    %11 = vector.load %arg2[%c0_13, %c3, %c0_14, %c0_15] : memref<1x4x144x64xbf16, #tpu.memory_space<vmem>>, vector<1x1x144x64xbf16>
    %12 = vector.shape_cast %11 : vector<1x1x144x64xbf16> to vector<144x64xbf16>
    %cst_16 = arith.constant dense<0.000000e+00> : vector<32x64xf32>
    %13 = tpu.matmul %0, %12, %cst_16 {dimension_numbers = #tpu.dot_dimension_numbers<[1], [0], [0], [1], [0, 0, 1, 1], [], []>} : vector<32x144xbf16>, vector<144x64xbf16>, vector<32x64xf32> -> vector<32x64xf32>
    %14 = arith.maximumf %10, %13 : vector<32x64xf32>
    %15 = arith.maximumf %7, %14 : vector<32x64xf32>
    %c0_17 = arith.constant 0 : index
    %c0_18 = arith.constant 0 : index
    %16 = vector.load %arg4[%c0_17, %c0_18] : memref<32x1xf32, #tpu.memory_space<vmem>>, vector<32x1xf32>
    %17 = vector.broadcast %16 : vector<32x1xf32> to vector<32x64xf32>
    %18 = arith.addf %15, %17 : vector<32x64xf32>
    %cst_19 = arith.constant 0.000000e+00 : f32
    %19 = vector.broadcast %cst_19 : f32 to vector<32x64xf32>
    %20 = arith.maximumf %18, %19 : vector<32x64xf32>
    %21 = arith.truncf %20 : vector<32x64xf32> to vector<32x64xbf16>
    %c0_20 = arith.constant 0 : index
    %c0_21 = arith.constant 0 : index
    %c0_22 = arith.constant 0 : index
    %22 = vector.load %arg5[%c0_20, %c0_21, %c0_22] : memref<1x32x64xbf16, #tpu.memory_space<vmem>>, vector<1x32x64xbf16>
    %23 = vector.shape_cast %22 : vector<1x32x64xbf16> to vector<32x64xbf16>
    %24 = vector.shape_cast %21 : vector<32x64xbf16> to vector<1x32x64xbf16>
    tpu.vector_store %arg5[%c0_20, %c0_21, %c0_22], %24 {strides = array<i32>} : memref<1x32x64xbf16, #tpu.memory_space<vmem>>, vector<1x32x64xbf16>,
    return
  }
  func.func @transform_0(%arg0: i32, %arg1: i32) -> (i32, i32, i32, i32) {
    %c0_i32 = arith.constant 0 : i32
    %c0_i32_0 = arith.constant 0 : i32
    %c0_i32_1 = arith.constant 0 : i32
    return %arg0, %c0_i32, %c0_i32_0, %arg1 : i32, i32, i32, i32
  }
  func.func @transform_1(%arg0: i32, %arg1: i32) -> (i32, i32) {
    %c0_i32 = arith.constant 0 : i32
    %c0_i32_0 = arith.constant 0 : i32
    %c0_i32_1 = arith.constant 0 : i32
    return %c0_i32, %c0_i32_0 : i32, i32
  }
  func.func @transform_2(%arg0: i32, %arg1: i32) -> (i32, i32) {
    %c0_i32 = arith.constant 0 : i32
    %c0_i32_0 = arith.constant 0 : i32
    %c0_i32_1 = arith.constant 0 : i32
    return %c0_i32, %c0_i32_0 : i32, i32
  }
  func.func @transform_3(%arg0: i32, %arg1: i32) -> (i32, i32, i32) {
    %c0_i32 = arith.constant 0 : i32
    %c0_i32_0 = arith.constant 0 : i32
    return %arg0, %c0_i32, %arg1 : i32, i32, i32
  }
}

module attributes {stable_mosaic.version = 11 : i64} {
  func.func @conv_block_kernel(%arg0: i32, %arg1: i32, %arg2: memref<1x4x288x16xbf16, #tpu.memory_space<vmem>>, %arg3: memref<64x288xbf16, #tpu.memory_space<vmem>>, %arg4: memref<64x1xf32, #tpu.memory_space<vmem>>, %arg5: memref<1x64x16xbf16, #tpu.memory_space<vmem>>) attributes {dimension_semantics = [#tpu.dimension_semantics<parallel>, #tpu.dimension_semantics<parallel>], iteration_bounds = array<i64: 2, 1>, scalar_prefetch = 0 : i64, scratch_operands = 0 : i64, tpu.core_type = #tpu.core_type<tc>, window_params = [{transform_indices = @transform_0, window_bounds = array<i64: 1, 4, 288, 16>}, {pipeline_mode = #tpu.pipeline_mode<synchronous>, transform_indices = @transform_1, window_bounds = array<i64: 64, 288>}, {pipeline_mode = #tpu.pipeline_mode<synchronous>, transform_indices = @transform_2, window_bounds = array<i64: 64, 1>}, {transform_indices = @transform_3, window_bounds = array<i64: 1, 64, 16>}]} {
    %c0 = arith.constant 0 : index
    %c0_0 = arith.constant 0 : index
    %0 = vector.load %arg3[%c0, %c0_0] : memref<64x288xbf16, #tpu.memory_space<vmem>>, vector<64x288xbf16>
    %c0_1 = arith.constant 0 : index
    %c0_2 = arith.constant 0 : index
    %c0_3 = arith.constant 0 : index
    %c0_4 = arith.constant 0 : index
    %1 = vector.load %arg2[%c0_1, %c0_2, %c0_3, %c0_4] : memref<1x4x288x16xbf16, #tpu.memory_space<vmem>>, vector<1x1x288x16xbf16>
    %2 = vector.shape_cast %1 : vector<1x1x288x16xbf16> to vector<288x16xbf16>
    %cst = arith.constant dense<0.000000e+00> : vector<64x16xf32>
    %3 = tpu.matmul %0, %2, %cst {dimension_numbers = #tpu.dot_dimension_numbers<[1], [0], [0], [1], [0, 0, 1, 1], [], []>} : vector<64x288xbf16>, vector<288x16xbf16>, vector<64x16xf32> -> vector<64x16xf32>
    %c0_5 = arith.constant 0 : index
    %c1 = arith.constant 1 : index
    %c0_6 = arith.constant 0 : index
    %c0_7 = arith.constant 0 : index
    %4 = vector.load %arg2[%c0_5, %c1, %c0_6, %c0_7] : memref<1x4x288x16xbf16, #tpu.memory_space<vmem>>, vector<1x1x288x16xbf16>
    %5 = vector.shape_cast %4 : vector<1x1x288x16xbf16> to vector<288x16xbf16>
    %cst_8 = arith.constant dense<0.000000e+00> : vector<64x16xf32>
    %6 = tpu.matmul %0, %5, %cst_8 {dimension_numbers = #tpu.dot_dimension_numbers<[1], [0], [0], [1], [0, 0, 1, 1], [], []>} : vector<64x288xbf16>, vector<288x16xbf16>, vector<64x16xf32> -> vector<64x16xf32>
    %7 = arith.maximumf %3, %6 : vector<64x16xf32>
    %c0_9 = arith.constant 0 : index
    %c2 = arith.constant 2 : index
    %c0_10 = arith.constant 0 : index
    %c0_11 = arith.constant 0 : index
    %8 = vector.load %arg2[%c0_9, %c2, %c0_10, %c0_11] : memref<1x4x288x16xbf16, #tpu.memory_space<vmem>>, vector<1x1x288x16xbf16>
    %9 = vector.shape_cast %8 : vector<1x1x288x16xbf16> to vector<288x16xbf16>
    %cst_12 = arith.constant dense<0.000000e+00> : vector<64x16xf32>
    %10 = tpu.matmul %0, %9, %cst_12 {dimension_numbers = #tpu.dot_dimension_numbers<[1], [0], [0], [1], [0, 0, 1, 1], [], []>} : vector<64x288xbf16>, vector<288x16xbf16>, vector<64x16xf32> -> vector<64x16xf32>
    %c0_13 = arith.constant 0 : index
    %c3 = arith.constant 3 : index
    %c0_14 = arith.constant 0 : index
    %c0_15 = arith.constant 0 : index
    %11 = vector.load %arg2[%c0_13, %c3, %c0_14, %c0_15] : memref<1x4x288x16xbf16, #tpu.memory_space<vmem>>, vector<1x1x288x16xbf16>
    %12 = vector.shape_cast %11 : vector<1x1x288x16xbf16> to vector<288x16xbf16>
    %cst_16 = arith.constant dense<0.000000e+00> : vector<64x16xf32>
    %13 = tpu.matmul %0, %12, %cst_16 {dimension_numbers = #tpu.dot_dimension_numbers<[1], [0], [0], [1], [0, 0, 1, 1], [], []>} : vector<64x288xbf16>, vector<288x16xbf16>, vector<64x16xf32> -> vector<64x16xf32>
    %14 = arith.maximumf %10, %13 : vector<64x16xf32>
    %15 = arith.maximumf %7, %14 : vector<64x16xf32>
    %c0_17 = arith.constant 0 : index
    %c0_18 = arith.constant 0 : index
    %16 = vector.load %arg4[%c0_17, %c0_18] : memref<64x1xf32, #tpu.memory_space<vmem>>, vector<64x1xf32>
    %17 = vector.broadcast %16 : vector<64x1xf32> to vector<64x16xf32>
    %18 = arith.addf %15, %17 : vector<64x16xf32>
    %cst_19 = arith.constant 0.000000e+00 : f32
    %19 = vector.broadcast %cst_19 : f32 to vector<64x16xf32>
    %20 = arith.maximumf %18, %19 : vector<64x16xf32>
    %21 = arith.truncf %20 : vector<64x16xf32> to vector<64x16xbf16>
    %c0_20 = arith.constant 0 : index
    %c0_21 = arith.constant 0 : index
    %c0_22 = arith.constant 0 : index
    %22 = vector.load %arg5[%c0_20, %c0_21, %c0_22] : memref<1x64x16xbf16, #tpu.memory_space<vmem>>, vector<1x64x16xbf16>
    %23 = vector.shape_cast %22 : vector<1x64x16xbf16> to vector<64x16xbf16>
    %24 = vector.shape_cast %21 : vector<64x16xbf16> to vector<1x64x16xbf16>
    tpu.vector_store %arg5[%c0_20, %c0_21, %c0_22], %24 {strides = array<i32>} : memref<1x64x16xbf16, #tpu.memory_space<vmem>>, vector<1x64x16xbf16>,
    return
  }
  func.func @transform_0(%arg0: i32, %arg1: i32) -> (i32, i32, i32, i32) {
    %c0_i32 = arith.constant 0 : i32
    %c0_i32_0 = arith.constant 0 : i32
    %c0_i32_1 = arith.constant 0 : i32
    return %arg0, %c0_i32, %c0_i32_0, %arg1 : i32, i32, i32, i32
  }
  func.func @transform_1(%arg0: i32, %arg1: i32) -> (i32, i32) {
    %c0_i32 = arith.constant 0 : i32
    %c0_i32_0 = arith.constant 0 : i32
    %c0_i32_1 = arith.constant 0 : i32
    return %c0_i32, %c0_i32_0 : i32, i32
  }
  func.func @transform_2(%arg0: i32, %arg1: i32) -> (i32, i32) {
    %c0_i32 = arith.constant 0 : i32
    %c0_i32_0 = arith.constant 0 : i32
    %c0_i32_1 = arith.constant 0 : i32
    return %c0_i32, %c0_i32_0 : i32, i32
  }
  func.func @transform_3(%arg0: i32, %arg1: i32) -> (i32, i32, i32) {
    %c0_i32 = arith.constant 0 : i32
    %c0_i32_0 = arith.constant 0 : i32
    return %arg0, %c0_i32, %arg1 : i32, i32, i32
  }
}

module attributes {stable_mosaic.version = 11 : i64} {
  func.func @conv_block_kernel(%arg0: i32, %arg1: i32, %arg2: memref<1x4x576x4xbf16, #tpu.memory_space<vmem>>, %arg3: memref<128x576xbf16, #tpu.memory_space<vmem>>, %arg4: memref<128x1xf32, #tpu.memory_space<vmem>>, %arg5: memref<1x128x4xbf16, #tpu.memory_space<vmem>>) attributes {dimension_semantics = [#tpu.dimension_semantics<parallel>, #tpu.dimension_semantics<parallel>], iteration_bounds = array<i64: 2, 1>, scalar_prefetch = 0 : i64, scratch_operands = 0 : i64, tpu.core_type = #tpu.core_type<tc>, window_params = [{transform_indices = @transform_0, window_bounds = array<i64: 1, 4, 576, 4>}, {pipeline_mode = #tpu.pipeline_mode<synchronous>, transform_indices = @transform_1, window_bounds = array<i64: 128, 576>}, {pipeline_mode = #tpu.pipeline_mode<synchronous>, transform_indices = @transform_2, window_bounds = array<i64: 128, 1>}, {transform_indices = @transform_3, window_bounds = array<i64: 1, 128, 4>}]} {
    %c0 = arith.constant 0 : index
    %c0_0 = arith.constant 0 : index
    %0 = vector.load %arg3[%c0, %c0_0] : memref<128x576xbf16, #tpu.memory_space<vmem>>, vector<128x576xbf16>
    %c0_1 = arith.constant 0 : index
    %c0_2 = arith.constant 0 : index
    %c0_3 = arith.constant 0 : index
    %c0_4 = arith.constant 0 : index
    %1 = vector.load %arg2[%c0_1, %c0_2, %c0_3, %c0_4] : memref<1x4x576x4xbf16, #tpu.memory_space<vmem>>, vector<1x1x576x4xbf16>
    %2 = vector.shape_cast %1 : vector<1x1x576x4xbf16> to vector<576x4xbf16>
    %cst = arith.constant dense<0.000000e+00> : vector<128x4xf32>
    %3 = tpu.matmul %0, %2, %cst {dimension_numbers = #tpu.dot_dimension_numbers<[1], [0], [0], [1], [0, 0, 1, 1], [], []>} : vector<128x576xbf16>, vector<576x4xbf16>, vector<128x4xf32> -> vector<128x4xf32>
    %c0_5 = arith.constant 0 : index
    %c1 = arith.constant 1 : index
    %c0_6 = arith.constant 0 : index
    %c0_7 = arith.constant 0 : index
    %4 = vector.load %arg2[%c0_5, %c1, %c0_6, %c0_7] : memref<1x4x576x4xbf16, #tpu.memory_space<vmem>>, vector<1x1x576x4xbf16>
    %5 = vector.shape_cast %4 : vector<1x1x576x4xbf16> to vector<576x4xbf16>
    %cst_8 = arith.constant dense<0.000000e+00> : vector<128x4xf32>
    %6 = tpu.matmul %0, %5, %cst_8 {dimension_numbers = #tpu.dot_dimension_numbers<[1], [0], [0], [1], [0, 0, 1, 1], [], []>} : vector<128x576xbf16>, vector<576x4xbf16>, vector<128x4xf32> -> vector<128x4xf32>
    %7 = arith.maximumf %3, %6 : vector<128x4xf32>
    %c0_9 = arith.constant 0 : index
    %c2 = arith.constant 2 : index
    %c0_10 = arith.constant 0 : index
    %c0_11 = arith.constant 0 : index
    %8 = vector.load %arg2[%c0_9, %c2, %c0_10, %c0_11] : memref<1x4x576x4xbf16, #tpu.memory_space<vmem>>, vector<1x1x576x4xbf16>
    %9 = vector.shape_cast %8 : vector<1x1x576x4xbf16> to vector<576x4xbf16>
    %cst_12 = arith.constant dense<0.000000e+00> : vector<128x4xf32>
    %10 = tpu.matmul %0, %9, %cst_12 {dimension_numbers = #tpu.dot_dimension_numbers<[1], [0], [0], [1], [0, 0, 1, 1], [], []>} : vector<128x576xbf16>, vector<576x4xbf16>, vector<128x4xf32> -> vector<128x4xf32>
    %c0_13 = arith.constant 0 : index
    %c3 = arith.constant 3 : index
    %c0_14 = arith.constant 0 : index
    %c0_15 = arith.constant 0 : index
    %11 = vector.load %arg2[%c0_13, %c3, %c0_14, %c0_15] : memref<1x4x576x4xbf16, #tpu.memory_space<vmem>>, vector<1x1x576x4xbf16>
    %12 = vector.shape_cast %11 : vector<1x1x576x4xbf16> to vector<576x4xbf16>
    %cst_16 = arith.constant dense<0.000000e+00> : vector<128x4xf32>
    %13 = tpu.matmul %0, %12, %cst_16 {dimension_numbers = #tpu.dot_dimension_numbers<[1], [0], [0], [1], [0, 0, 1, 1], [], []>} : vector<128x576xbf16>, vector<576x4xbf16>, vector<128x4xf32> -> vector<128x4xf32>
    %14 = arith.maximumf %10, %13 : vector<128x4xf32>
    %15 = arith.maximumf %7, %14 : vector<128x4xf32>
    %c0_17 = arith.constant 0 : index
    %c0_18 = arith.constant 0 : index
    %16 = vector.load %arg4[%c0_17, %c0_18] : memref<128x1xf32, #tpu.memory_space<vmem>>, vector<128x1xf32>
    %17 = vector.broadcast %16 : vector<128x1xf32> to vector<128x4xf32>
    %18 = arith.addf %15, %17 : vector<128x4xf32>
    %cst_19 = arith.constant 0.000000e+00 : f32
    %19 = vector.broadcast %cst_19 : f32 to vector<128x4xf32>
    %20 = arith.maximumf %18, %19 : vector<128x4xf32>
    %21 = arith.truncf %20 : vector<128x4xf32> to vector<128x4xbf16>
    %c0_20 = arith.constant 0 : index
    %c0_21 = arith.constant 0 : index
    %c0_22 = arith.constant 0 : index
    %22 = vector.load %arg5[%c0_20, %c0_21, %c0_22] : memref<1x128x4xbf16, #tpu.memory_space<vmem>>, vector<1x128x4xbf16>
    %23 = vector.shape_cast %22 : vector<1x128x4xbf16> to vector<128x4xbf16>
    %24 = vector.shape_cast %21 : vector<128x4xbf16> to vector<1x128x4xbf16>
    tpu.vector_store %arg5[%c0_20, %c0_21, %c0_22], %24 {strides = array<i32>} : memref<1x128x4xbf16, #tpu.memory_space<vmem>>, vector<1x128x4xbf16>,
    return
  }
  func.func @transform_0(%arg0: i32, %arg1: i32) -> (i32, i32, i32, i32) {
    %c0_i32 = arith.constant 0 : i32
    %c0_i32_0 = arith.constant 0 : i32
    %c0_i32_1 = arith.constant 0 : i32
    return %arg0, %c0_i32, %c0_i32_0, %arg1 : i32, i32, i32, i32
  }
  func.func @transform_1(%arg0: i32, %arg1: i32) -> (i32, i32) {
    %c0_i32 = arith.constant 0 : i32
    %c0_i32_0 = arith.constant 0 : i32
    %c0_i32_1 = arith.constant 0 : i32
    return %c0_i32, %c0_i32_0 : i32, i32
  }
  func.func @transform_2(%arg0: i32, %arg1: i32) -> (i32, i32) {
    %c0_i32 = arith.constant 0 : i32
    %c0_i32_0 = arith.constant 0 : i32
    %c0_i32_1 = arith.constant 0 : i32
    return %c0_i32, %c0_i32_0 : i32, i32
  }
  func.func @transform_3(%arg0: i32, %arg1: i32) -> (i32, i32, i32) {
    %c0_i32 = arith.constant 0 : i32
    %c0_i32_0 = arith.constant 0 : i32
    return %arg0, %c0_i32, %arg1 : i32, i32, i32
  }
}

module attributes {stable_mosaic.version = 11 : i64} {
  func.func @heads_kernel(%arg0: i32, %arg1: memref<2x512xbf16, #tpu.memory_space<vmem>>, %arg2: memref<512x256xf32, #tpu.memory_space<vmem>>, %arg3: memref<1x256xf32, #tpu.memory_space<vmem>>, %arg4: memref<256x128xf32, #tpu.memory_space<vmem>>, %arg5: memref<1x128xf32, #tpu.memory_space<vmem>>, %arg6: memref<128x64xf32, #tpu.memory_space<vmem>>, %arg7: memref<1x64xf32, #tpu.memory_space<vmem>>, %arg8: memref<64x32xf32, #tpu.memory_space<vmem>>, %arg9: memref<1x32xf32, #tpu.memory_space<vmem>>, %arg10: memref<32x2xf32, #tpu.memory_space<vmem>>, %arg11: memref<1x2xf32, #tpu.memory_space<vmem>>, %arg12: memref<256x128xf32, #tpu.memory_space<vmem>>, %arg13: memref<1x128xf32, #tpu.memory_space<vmem>>, %arg14: memref<128x5xf32, #tpu.memory_space<vmem>>, %arg15: memref<1x5xf32, #tpu.memory_space<vmem>>, %arg16: memref<2x2xf32, #tpu.memory_space<vmem>>, %arg17: memref<2x5xf32, #tpu.memory_space<vmem>>, %arg18: memref<2x256xf32, #tpu.memory_space<vmem>>) attributes {dimension_semantics = [#tpu.dimension_semantics<parallel>], iteration_bounds = array<i64: 1>, scalar_prefetch = 0 : i64, scratch_operands = 0 : i64, tpu.core_type = #tpu.core_type<tc>, window_params = [{transform_indices = @transform_0, window_bounds = array<i64: 2, 512>}, {pipeline_mode = #tpu.pipeline_mode<synchronous>, transform_indices = @transform_1, window_bounds = array<i64: 512, 256>}, {pipeline_mode = #tpu.pipeline_mode<synchronous>, transform_indices = @transform_2, window_bounds = array<i64: 1, 256>}, {pipeline_mode = #tpu.pipeline_mode<synchronous>, transform_indices = @transform_3, window_bounds = array<i64: 256, 128>}, {pipeline_mode = #tpu.pipeline_mode<synchronous>, transform_indices = @transform_4, window_bounds = array<i64: 1, 128>}, {pipeline_mode = #tpu.pipeline_mode<synchronous>, transform_indices = @transform_5, window_bounds = array<i64: 128, 64>}, {pipeline_mode = #tpu.pipeline_mode<synchronous>, transform_indices = @transform_6, window_bounds = array<i64: 1, 64>}, {pipeline_mode = #tpu.pipeline_mode<synchronous>, transform_indices = @transform_7, window_bounds = array<i64: 64, 32>}, {pipeline_mode = #tpu.pipeline_mode<synchronous>, transform_indices = @transform_8, window_bounds = array<i64: 1, 32>}, {pipeline_mode = #tpu.pipeline_mode<synchronous>, transform_indices = @transform_9, window_bounds = array<i64: 32, 2>}, {pipeline_mode = #tpu.pipeline_mode<synchronous>, transform_indices = @transform_10, window_bounds = array<i64: 1, 2>}, {pipeline_mode = #tpu.pipeline_mode<synchronous>, transform_indices = @transform_11, window_bounds = array<i64: 256, 128>}, {pipeline_mode = #tpu.pipeline_mode<synchronous>, transform_indices = @transform_12, window_bounds = array<i64: 1, 128>}, {pipeline_mode = #tpu.pipeline_mode<synchronous>, transform_indices = @transform_13, window_bounds = array<i64: 128, 5>}, {pipeline_mode = #tpu.pipeline_mode<synchronous>, transform_indices = @transform_14, window_bounds = array<i64: 1, 5>}, {transform_indices = @transform_15, window_bounds = array<i64: 2, 2>}, {transform_indices = @transform_16, window_bounds = array<i64: 2, 5>}, {transform_indices = @transform_17, window_bounds = array<i64: 2, 256>}]} {
    %c0 = arith.constant 0 : index
    %c0_0 = arith.constant 0 : index
    %0 = vector.load %arg1[%c0, %c0_0] : memref<2x512xbf16, #tpu.memory_space<vmem>>, vector<2x512xbf16>
    %1 = arith.extf %0 : vector<2x512xbf16> to vector<2x512xf32>
    %c0_1 = arith.constant 0 : index
    %c0_2 = arith.constant 0 : index
    %2 = vector.load %arg2[%c0_1, %c0_2] : memref<512x256xf32, #tpu.memory_space<vmem>>, vector<512x256xf32>
    %cst = arith.constant dense<0.000000e+00> : vector<2x256xf32>
    %3 = tpu.matmul %1, %2, %cst {dimension_numbers = #tpu.dot_dimension_numbers<[1], [0], [0], [1], [0, 0, 1, 1], [], []>} : vector<2x512xf32>, vector<512x256xf32>, vector<2x256xf32> -> vector<2x256xf32>
    %c0_3 = arith.constant 0 : index
    %c0_4 = arith.constant 0 : index
    %4 = vector.load %arg3[%c0_3, %c0_4] : memref<1x256xf32, #tpu.memory_space<vmem>>, vector<1x256xf32>
    %5 = vector.broadcast %4 : vector<1x256xf32> to vector<2x256xf32>
    %6 = arith.addf %3, %5 : vector<2x256xf32>
    %cst_5 = arith.constant 0.000000e+00 : f32
    %7 = vector.broadcast %cst_5 : f32 to vector<2x256xf32>
    %8 = arith.maximumf %6, %7 : vector<2x256xf32>
    %c0_6 = arith.constant 0 : index
    %c0_7 = arith.constant 0 : index
    %9 = vector.load %arg18[%c0_6, %c0_7] : memref<2x256xf32, #tpu.memory_space<vmem>>, vector<2x256xf32>
    tpu.vector_store %arg18[%c0_6, %c0_7], %8 {strides = array<i32>} : memref<2x256xf32, #tpu.memory_space<vmem>>, vector<2x256xf32>,
    %c0_8 = arith.constant 0 : index
    %c0_9 = arith.constant 0 : index
    %10 = vector.load %arg4[%c0_8, %c0_9] : memref<256x128xf32, #tpu.memory_space<vmem>>, vector<256x128xf32>
    %cst_10 = arith.constant dense<0.000000e+00> : vector<2x128xf32>
    %11 = tpu.matmul %8, %10, %cst_10 {dimension_numbers = #tpu.dot_dimension_numbers<[1], [0], [0], [1], [0, 0, 1, 1], [], []>} : vector<2x256xf32>, vector<256x128xf32>, vector<2x128xf32> -> vector<2x128xf32>
    %c0_11 = arith.constant 0 : index
    %c0_12 = arith.constant 0 : index
    %12 = vector.load %arg5[%c0_11, %c0_12] : memref<1x128xf32, #tpu.memory_space<vmem>>, vector<1x128xf32>
    %13 = vector.broadcast %12 : vector<1x128xf32> to vector<2x128xf32>
    %14 = arith.addf %11, %13 : vector<2x128xf32>
    %cst_13 = arith.constant 0.000000e+00 : f32
    %15 = vector.broadcast %cst_13 : f32 to vector<2x128xf32>
    %16 = arith.maximumf %14, %15 : vector<2x128xf32>
    %c0_14 = arith.constant 0 : index
    %c0_15 = arith.constant 0 : index
    %17 = vector.load %arg6[%c0_14, %c0_15] : memref<128x64xf32, #tpu.memory_space<vmem>>, vector<128x64xf32>
    %cst_16 = arith.constant dense<0.000000e+00> : vector<2x64xf32>
    %18 = tpu.matmul %16, %17, %cst_16 {dimension_numbers = #tpu.dot_dimension_numbers<[1], [0], [0], [1], [0, 0, 1, 1], [], []>} : vector<2x128xf32>, vector<128x64xf32>, vector<2x64xf32> -> vector<2x64xf32>
    %c0_17 = arith.constant 0 : index
    %c0_18 = arith.constant 0 : index
    %19 = vector.load %arg7[%c0_17, %c0_18] : memref<1x64xf32, #tpu.memory_space<vmem>>, vector<1x64xf32>
    %20 = vector.broadcast %19 : vector<1x64xf32> to vector<2x64xf32>
    %21 = arith.addf %18, %20 : vector<2x64xf32>
    %cst_19 = arith.constant 0.000000e+00 : f32
    %22 = vector.broadcast %cst_19 : f32 to vector<2x64xf32>
    %23 = arith.maximumf %21, %22 : vector<2x64xf32>
    %c0_20 = arith.constant 0 : index
    %c0_21 = arith.constant 0 : index
    %24 = vector.load %arg8[%c0_20, %c0_21] : memref<64x32xf32, #tpu.memory_space<vmem>>, vector<64x32xf32>
    %cst_22 = arith.constant dense<0.000000e+00> : vector<2x32xf32>
    %25 = tpu.matmul %23, %24, %cst_22 {dimension_numbers = #tpu.dot_dimension_numbers<[1], [0], [0], [1], [0, 0, 1, 1], [], []>} : vector<2x64xf32>, vector<64x32xf32>, vector<2x32xf32> -> vector<2x32xf32>
    %c0_23 = arith.constant 0 : index
    %c0_24 = arith.constant 0 : index
    %26 = vector.load %arg9[%c0_23, %c0_24] : memref<1x32xf32, #tpu.memory_space<vmem>>, vector<1x32xf32>
    %27 = vector.broadcast %26 : vector<1x32xf32> to vector<2x32xf32>
    %28 = arith.addf %25, %27 : vector<2x32xf32>
    %cst_25 = arith.constant 0.000000e+00 : f32
    %29 = vector.broadcast %cst_25 : f32 to vector<2x32xf32>
    %30 = arith.maximumf %28, %29 : vector<2x32xf32>
    %c0_26 = arith.constant 0 : index
    %c0_27 = arith.constant 0 : index
    %31 = vector.load %arg10[%c0_26, %c0_27] : memref<32x2xf32, #tpu.memory_space<vmem>>, vector<32x2xf32>
    %cst_28 = arith.constant dense<0.000000e+00> : vector<2x2xf32>
    %32 = tpu.matmul %30, %31, %cst_28 {dimension_numbers = #tpu.dot_dimension_numbers<[1], [0], [0], [1], [0, 0, 1, 1], [], []>} : vector<2x32xf32>, vector<32x2xf32>, vector<2x2xf32> -> vector<2x2xf32>
    %c0_29 = arith.constant 0 : index
    %c0_30 = arith.constant 0 : index
    %33 = vector.load %arg11[%c0_29, %c0_30] : memref<1x2xf32, #tpu.memory_space<vmem>>, vector<1x2xf32>
    %34 = vector.broadcast %33 : vector<1x2xf32> to vector<2x2xf32>
    %35 = arith.addf %32, %34 : vector<2x2xf32>
    %c0_31 = arith.constant 0 : index
    %c0_32 = arith.constant 0 : index
    %36 = vector.load %arg16[%c0_31, %c0_32] : memref<2x2xf32, #tpu.memory_space<vmem>>, vector<2x2xf32>
    tpu.vector_store %arg16[%c0_31, %c0_32], %35 {strides = array<i32>} : memref<2x2xf32, #tpu.memory_space<vmem>>, vector<2x2xf32>,
    %c0_33 = arith.constant 0 : index
    %c0_34 = arith.constant 0 : index
    %37 = vector.load %arg12[%c0_33, %c0_34] : memref<256x128xf32, #tpu.memory_space<vmem>>, vector<256x128xf32>
    %cst_35 = arith.constant dense<0.000000e+00> : vector<2x128xf32>
    %38 = tpu.matmul %8, %37, %cst_35 {dimension_numbers = #tpu.dot_dimension_numbers<[1], [0], [0], [1], [0, 0, 1, 1], [], []>} : vector<2x256xf32>, vector<256x128xf32>, vector<2x128xf32> -> vector<2x128xf32>
    %c0_36 = arith.constant 0 : index
    %c0_37 = arith.constant 0 : index
    %39 = vector.load %arg13[%c0_36, %c0_37] : memref<1x128xf32, #tpu.memory_space<vmem>>, vector<1x128xf32>
    %40 = vector.broadcast %39 : vector<1x128xf32> to vector<2x128xf32>
    %41 = arith.addf %38, %40 : vector<2x128xf32>
    %cst_38 = arith.constant 0.000000e+00 : f32
    %42 = vector.broadcast %cst_38 : f32 to vector<2x128xf32>
    %43 = arith.maximumf %41, %42 : vector<2x128xf32>
    %c0_39 = arith.constant 0 : index
    %c0_40 = arith.constant 0 : index
    %44 = vector.load %arg14[%c0_39, %c0_40] : memref<128x5xf32, #tpu.memory_space<vmem>>, vector<128x5xf32>
    %cst_41 = arith.constant dense<0.000000e+00> : vector<2x5xf32>
    %45 = tpu.matmul %43, %44, %cst_41 {dimension_numbers = #tpu.dot_dimension_numbers<[1], [0], [0], [1], [0, 0, 1, 1], [], []>} : vector<2x128xf32>, vector<128x5xf32>, vector<2x5xf32> -> vector<2x5xf32>
    %c0_42 = arith.constant 0 : index
    %c0_43 = arith.constant 0 : index
    %46 = vector.load %arg15[%c0_42, %c0_43] : memref<1x5xf32, #tpu.memory_space<vmem>>, vector<1x5xf32>
    %47 = vector.broadcast %46 : vector<1x5xf32> to vector<2x5xf32>
    %48 = arith.addf %45, %47 : vector<2x5xf32>
    %c0_44 = arith.constant 0 : index
    %c0_45 = arith.constant 0 : index
    %49 = vector.load %arg17[%c0_44, %c0_45] : memref<2x5xf32, #tpu.memory_space<vmem>>, vector<2x5xf32>
    tpu.vector_store %arg17[%c0_44, %c0_45], %48 {strides = array<i32>} : memref<2x5xf32, #tpu.memory_space<vmem>>, vector<2x5xf32>,
    return
  }
  func.func @transform_0(%arg0: i32) -> (i32, i32) {
    %c0_i32 = arith.constant 0 : i32
    %c0_i32_0 = arith.constant 0 : i32
    return %arg0, %c0_i32 : i32, i32
  }
  func.func @transform_1(%arg0: i32) -> (i32, i32) {
    %c0_i32 = arith.constant 0 : i32
    %c0_i32_0 = arith.constant 0 : i32
    %c0_i32_1 = arith.constant 0 : i32
    return %c0_i32, %c0_i32_0 : i32, i32
  }
  func.func @transform_2(%arg0: i32) -> (i32, i32) {
    %c0_i32 = arith.constant 0 : i32
    %c0_i32_0 = arith.constant 0 : i32
    %c0_i32_1 = arith.constant 0 : i32
    return %c0_i32, %c0_i32_0 : i32, i32
  }
  func.func @transform_3(%arg0: i32) -> (i32, i32) {
    %c0_i32 = arith.constant 0 : i32
    %c0_i32_0 = arith.constant 0 : i32
    %c0_i32_1 = arith.constant 0 : i32
    return %c0_i32, %c0_i32_0 : i32, i32
  }
  func.func @transform_4(%arg0: i32) -> (i32, i32) {
    %c0_i32 = arith.constant 0 : i32
    %c0_i32_0 = arith.constant 0 : i32
    %c0_i32_1 = arith.constant 0 : i32
    return %c0_i32, %c0_i32_0 : i32, i32
  }
  func.func @transform_5(%arg0: i32) -> (i32, i32) {
    %c0_i32 = arith.constant 0 : i32
    %c0_i32_0 = arith.constant 0 : i32
    %c0_i32_1 = arith.constant 0 : i32
    return %c0_i32, %c0_i32_0 : i32, i32
  }
  func.func @transform_6(%arg0: i32) -> (i32, i32) {
    %c0_i32 = arith.constant 0 : i32
    %c0_i32_0 = arith.constant 0 : i32
    %c0_i32_1 = arith.constant 0 : i32
    return %c0_i32, %c0_i32_0 : i32, i32
  }
  func.func @transform_7(%arg0: i32) -> (i32, i32) {
    %c0_i32 = arith.constant 0 : i32
    %c0_i32_0 = arith.constant 0 : i32
    %c0_i32_1 = arith.constant 0 : i32
    return %c0_i32, %c0_i32_0 : i32, i32
  }
  func.func @transform_8(%arg0: i32) -> (i32, i32) {
    %c0_i32 = arith.constant 0 : i32
    %c0_i32_0 = arith.constant 0 : i32
    %c0_i32_1 = arith.constant 0 : i32
    return %c0_i32, %c0_i32_0 : i32, i32
  }
  func.func @transform_9(%arg0: i32) -> (i32, i32) {
    %c0_i32 = arith.constant 0 : i32
    %c0_i32_0 = arith.constant 0 : i32
    %c0_i32_1 = arith.constant 0 : i32
    return %c0_i32, %c0_i32_0 : i32, i32
  }
  func.func @transform_10(%arg0: i32) -> (i32, i32) {
    %c0_i32 = arith.constant 0 : i32
    %c0_i32_0 = arith.constant 0 : i32
    %c0_i32_1 = arith.constant 0 : i32
    return %c0_i32, %c0_i32_0 : i32, i32
  }
  func.func @transform_11(%arg0: i32) -> (i32, i32) {
    %c0_i32 = arith.constant 0 : i32
    %c0_i32_0 = arith.constant 0 : i32
    %c0_i32_1 = arith.constant 0 : i32
    return %c0_i32, %c0_i32_0 : i32, i32
  }
  func.func @transform_12(%arg0: i32) -> (i32, i32) {
    %c0_i32 = arith.constant 0 : i32
    %c0_i32_0 = arith.constant 0 : i32
    %c0_i32_1 = arith.constant 0 : i32
    return %c0_i32, %c0_i32_0 : i32, i32
  }
  func.func @transform_13(%arg0: i32) -> (i32, i32) {
    %c0_i32 = arith.constant 0 : i32
    %c0_i32_0 = arith.constant 0 : i32
    %c0_i32_1 = arith.constant 0 : i32
    return %c0_i32, %c0_i32_0 : i32, i32
  }
  func.func @transform_14(%arg0: i32) -> (i32, i32) {
    %c0_i32 = arith.constant 0 : i32
    %c0_i32_0 = arith.constant 0 : i32
    %c0_i32_1 = arith.constant 0 : i32
    return %c0_i32, %c0_i32_0 : i32, i32
  }
  func.func @transform_15(%arg0: i32) -> (i32, i32) {
    %c0_i32 = arith.constant 0 : i32
    %c0_i32_0 = arith.constant 0 : i32
    return %arg0, %c0_i32 : i32, i32
  }
  func.func @transform_16(%arg0: i32) -> (i32, i32) {
    %c0_i32 = arith.constant 0 : i32
    %c0_i32_0 = arith.constant 0 : i32
    return %arg0, %c0_i32 : i32, i32
  }
  func.func @transform_17(%arg0: i32) -> (i32, i32) {
    %c0_i32 = arith.constant 0 : i32
    %c0_i32_0 = arith.constant 0 : i32
    return %arg0, %c0_i32 : i32, i32
  }
}

</mosaic_0001>

<llo_original>
// kernel: cnn_multitask_forward.5
$region0: #{cnn_multitask_forward.5}
  #allocation0 [shape = 'u32[]', space=smem, size = 0x4, offset = 0x4, fixed_abs, tag = 'smem constant byte address 0x4 - core index']
  #allocation1 [shape = 'u32[144,128]{1,0:T(1,128)}', space=vmem, size = 0x12000, scoped, tag = 'internal scratch']
  %s0 = inlined_call_operand.vmem [shape: bf16[2,4,9,256], index: 0, kind: input, shape index: {}]
  %s1 = inlined_call_operand.hbm [shape: bf16[16,9], index: 1, kind: input, shape index: {}]
  %s2 = inlined_call_operand.vmem [shape: f32[16,1], index: 2, kind: input, shape index: {}]
  %s3 = inlined_call_operand.vmem [shape: bf16[2,16,256], index: 3, kind: output, shape index: {}]
  %s4 = sld [smem:[#allocation0]]
  $region49: #{cnn_multitask_forward.5} parent=0
    _
  %s6 = ssub.s32 1, %s4
  %s7 = scalar_select 0, %s6, %s4
  $region1: #{cnn_multitask_forward.5} parent=0
    #allocation2 [shape = 'u8[4096]{0}', space=vmem, size = 0x1000, scoped, tag = 'input window, operand 1, single buffered']
    #allocation3 [shape = 's32[2]{0}', space=sflag, size = 0x8, scoped, tag = 'scoped memory for cnn_multitask_forward.5']
    %8 = vsyncpa [#allocation3], 0
    loop: start=0, step=1, limit=4
    $region2: #{cnn_multitask_forward.5} parent=1 // loop_pre_header
      _
    $region3: #{cnn_multitask_forward.5} parent=1 // loop_header
      %s10 = sphi 0, %s14
      %p11 = scmp.ge.s32.totalorder %s10, 4
      %s17 = sphi 0, %s29
      %s18 = sphi 0, %s25
      %s19 = sphi 0, %s17
      %s20 = sphi 0, %s18
      %s21 = sphi 0, %s19
      %s22 = sphi 0, %s20
      %s34 = sphi 0, %s36
      %s37 = sphi 0, %s34
      %s38 = sphi 0, %s37
      %s54 = sphi 0, %s38
      %s58 = sphi 0, %s58
      %s60 = sphi 0, %s58
      %s61 = sphi 0, %s60
      %s75 = sphi 0, %s61
      %s79 = sphi 0, %s79
      %s81 = sphi 0, %s79
      %s82 = sphi 0, %s81
      %s96 = sphi 0, %s82
      %s104 = sphi 0, %s106
      %s107 = sphi 0, %s104
      %s108 = sphi 0, %s107
      %s124 = sphi 0, %s108
    $region4: #{cnn_multitask_forward.5} parent=1 // loop_header_branch
      %13 = sbr.rel (%p11) target = $region8
    $region5: #{cnn_multitask_forward.5} parent=1 // loop_body
      %s15 = ssub.s32 %s10, 1
      %s16 = ssub.s32 %s10, 2
      %s23 = sadd.s32 1, %s18
      %p24 = scmp.ge.s32.totalorder %s23, 1
      %s25 = scalar_select %p24, 0, %s23
      %s26 = sadd.s32 1, %s17
      %s27 = scalar_select %p24, %s26, %s17
      %p28 = scmp.ge.s32.totalorder %s27, 2
      %s29 = scalar_select %p28, 0, %s27
      %s30 = ssub.s32 %s17, %s29
      %s31 = ssub.s32 %s18, %s25
      %s32 = sor.u32 %s30, %s31
      %p33 = scmp.eq.s32.totalorder %s32, 0
      %s35 = sadd.s32 %s34, 1
      %s36 = scalar_select %p33, %s34, %s35
      %p39 = pneg %p33
      %p40 = scmp.eq.s32.totalorder %s10, 1
      %p41 = por %p39, %p40
      %p42 = scmp.ne.s32.totalorder %s34, %s37
      %p43 = scmp.eq.s32.totalorder %s10, 0
      %p44 = por %p42, %p43
      %p45 = scmp.ne.s32.totalorder %s34, %s37
      %p46 = scmp.eq.s32.totalorder %s15, 1
      %p47 = por %p45, %p46
      %p48 = scmp.ne.s32.totalorder %s37, %s38
      %p49 = scmp.eq.s32.totalorder %s15, 0
      %p50 = por %p48, %p49
      %p51 = scmp.ne.s32.totalorder %s37, %s38
      %p52 = scmp.eq.s32.totalorder %s16, 1
      %p53 = por %p51, %p52
      %p55 = scmp.ne.s32.totalorder %s38, %s54
      %p56 = scmp.eq.s32.totalorder %s16, 0
      %p57 = por %p55, %p56
      %s59 = sadd.s32 %s58, 1
      %p62 = scmp.eq.s32.totalorder %s10, 1
      %p63 = scmp.ne.s32.totalorder %s58, %s60
      %p64 = scmp.eq.s32.totalorder %s10, 0
      %p65 = por %p63, %p64
      %p66 = scmp.ne.s32.totalorder %s58, %s60
      %p67 = scmp.eq.s32.totalorder %s15, 1
      %p68 = por %p66, %p67
      %p69 = scmp.ne.s32.totalorder %s60, %s61
      %p70 = scmp.eq.s32.totalorder %s15, 0
      %p71 = por %p69, %p70
      %p72 = scmp.ne.s32.totalorder %s60, %s61
      %p73 = scmp.eq.s32.totalorder %s16, 1
      %p74 = por %p72, %p73
      %p76 = scmp.ne.s32.totalorder %s61, %s75
      %p77 = scmp.eq.s32.totalorder %s16, 0
      %p78 = por %p76, %p77
      %s80 = sadd.s32 %s79, 1
      %p83 = scmp.eq.s32.totalorder %s10, 1
      %p84 = scmp.ne.s32.totalorder %s79, %s81
      %p85 = scmp.eq.s32.totalorder %s10, 0
      %p86 = por %p84, %p85
      %p87 = scmp.ne.s32.totalorder %s79, %s81
      %p88 = scmp.eq.s32.totalorder %s15, 1
      %p89 = por %p87, %p88
      %p90 = scmp.ne.s32.totalorder %s81, %s82
      %p91 = scmp.eq.s32.totalorder %s15, 0
      %p92 = por %p90, %p91
      %p93 = scmp.ne.s32.totalorder %s81, %s82
      %p94 = scmp.eq.s32.totalorder %s16, 1
      %p95 = por %p93, %p94
      %p97 = scmp.ne.s32.totalorder %s82, %s96
      %p98 = scmp.eq.s32.totalorder %s16, 0
      %p99 = por %p97, %p98
      %s100 = ssub.s32 %s17, %s29
      %s101 = ssub.s32 %s18, %s25
      %s102 = sor.u32 %s100, %s101
      %p103 = scmp.eq.s32.totalorder %s102, 0
      %s105 = sadd.s32 %s104, 1
      %s106 = scalar_select %p103, %s104, %s105
      %p109 = pneg %p103
      %p110 = scmp.eq.s32.totalorder %s10, 1
      %p111 = por %p109, %p110
      %p112 = scmp.ne.s32.totalorder %s104, %s107
      %p113 = scmp.eq.s32.totalorder %s10, 0
      %p114 = por %p112, %p113
      %p115 = scmp.ne.s32.totalorder %s104, %s107
      %p116 = scmp.eq.s32.totalorder %s15, 1
      %p117 = por %p115, %p116
      %p118 = scmp.ne.s32.totalorder %s107, %s108
      %p119 = scmp.eq.s32.totalorder %s15, 0
      %p120 = por %p118, %p119
      %p121 = scmp.ne.s32.totalorder %s107, %s108
      %p122 = scmp.eq.s32.totalorder %s16, 1
      %p123 = por %p121, %p122
      %p125 = scmp.ne.s32.totalorder %s108, %s124
      %p126 = scmp.eq.s32.totalorder %s16, 0
      %p127 = por %p125, %p126
      %p128 = scmp.le.s32.totalorder 1, %s10
      %p129 = scmp.lt.s32.totalorder %s10, 3
      %p130 = pnand %p128, %p129
      %p131 = pneg %p130
      // Predicated region
      $region9: #{cnn_multitask_forward.5} parent=5 // pred_check
        _
      $region10: #{cnn_multitask_forward.5} parent=5 // pred_check_branch
        %133 = sbr.rel (%p130) target = $region12
      $region11: #{cnn_multitask_forward.5} parent=5 // pred_region
        %s134 = ssub.s32 %s10, 1
        // Predicated region
        $region13: #{cnn_multitask_forward.5} parent=11 // pred_check
          %p135 = pneg %p71
        $region14: #{cnn_multitask_forward.5} parent=11 // pred_check_branch
          %137 = sbr.rel (%p135) target = $region16
        $region15: #{cnn_multitask_forward.5} parent=11 // pred_region
          %s139 = ssub.s32 128, 128
          %140 = vsyncadd [#allocation3], %s139
          %s141 = sshll.u32 [#allocation2], 4
          %s142 = int_to_ptr.vmem [resolvable:$true] %s141
          %147 = dma.hbm_to_vmem [thread:$0]  %s1, 128, %s142, [#allocation3], 64, 64, 4
        $region16: #{cnn_multitask_forward.5} parent=11 // pred_fallthru
          _
        // Predicated region
        $region17: #{cnn_multitask_forward.5} parent=11 // pred_check
          %p148 = pneg %p92
        $region18: #{cnn_multitask_forward.5} parent=11 // pred_check_branch
          %150 = sbr.rel (%p148) target = $region20
        $region19: #{cnn_multitask_forward.5} parent=11 // pred_region
          _
        $region20: #{cnn_multitask_forward.5} parent=11 // pred_fallthru
          _
      $region12: #{cnn_multitask_forward.5} parent=5 // pred_fallthru
        _
      %p151 = scmp.lt.s32.totalorder %s10, 2
      // Predicated region
      $region21: #{cnn_multitask_forward.5} parent=5 // pred_check
        %p152 = pneg %p151
      $region22: #{cnn_multitask_forward.5} parent=5 // pred_check_branch
        %154 = sbr.rel (%p152) target = $region24
      $region23: #{cnn_multitask_forward.5} parent=5 // pred_region
        // Predicated region
        $region25: #{cnn_multitask_forward.5} parent=23 // pred_check
          %p155 = pneg %p44
        $region26: #{cnn_multitask_forward.5} parent=23 // pred_check_branch
          %157 = sbr.rel (%p155) target = $region28
        $region27: #{cnn_multitask_forward.5} parent=23 // pred_region
          %s158 = smul.u32 2, %s18
          %p159 = scmp.lt.s32.totalorder %s17, 1
          %s160 = scalar_select %p159, %s17, 1
          %p161 = scmp.lt.s32.totalorder %s158, 1
          %s162 = scalar_select %p161, %s158, 1
          %s163 = smul.addr %s160, 16
          %s164 = sadd.s32 %s162, %s163
          %s165 = smul.addr %s164, 4
          %s166 = scalar_lea.vmem %s0, %s165
          %s167 = smul.u32 2, %s18
        $region28: #{cnn_multitask_forward.5} parent=23 // pred_fallthru
          _
      $region24: #{cnn_multitask_forward.5} parent=5 // pred_fallthru
        _
      %p168 = scmp.le.s32.totalorder 1, %s10
      %p169 = scmp.lt.s32.totalorder %s10, 3
      %p170 = pnand %p168, %p169
      %p171 = pneg %p170
      // Predicated region
      $region29: #{cnn_multitask_forward.5} parent=5 // pred_check
        _
      $region30: #{cnn_multitask_forward.5} parent=5 // pred_check_branch
        %173 = sbr.rel (%p170) target = $region32
      $region31: #{cnn_multitask_forward.5} parent=5 // pred_region
        %s174 = ssub.s32 %s10, 1
        // Predicated region
        $region33: #{cnn_multitask_forward.5} parent=31 // pred_check
          %p175 = pneg %p71
        $region34: #{cnn_multitask_forward.5} parent=31 // pred_check_branch
          %177 = sbr.rel (%p175) target = $region36
        $region35: #{cnn_multitask_forward.5} parent=31 // pred_region
          %178 = dma.done [#allocation3], 128
        $region36: #{cnn_multitask_forward.5} parent=31 // pred_fallthru
          _
        %s179 = smul.u32 2, %s20
        %p180 = scmp.lt.s32.totalorder %s19, 1
        %s181 = scalar_select %p180, %s19, 1
        %p182 = scmp.lt.s32.totalorder %s179, 1
        %s183 = scalar_select %p182, %s179, 1
        %s184 = smul.addr %s181, 16
        %s185 = sadd.s32 %s183, %s184
        %s186 = smul.addr %s185, 4
        %s187 = scalar_lea.vmem %s0, %s186
        %p188 = pneg %p50
        %p189 = pneg %p47
        %p190 = pneg %p71
        %p191 = pneg %p68
        %p192 = pneg %p92
        %p193 = pneg %p89
        %p194 = pneg %p120
        %p195 = pneg %p117
        %s196 = smul.u32 2, %s20
        %p197 = scmp.lt.s32.totalorder %s19, 1
        %s198 = scalar_select %p197, %s19, 1
        %p199 = scmp.lt.s32.totalorder %s196, 1
        %s200 = scalar_select %p199, %s196, 1
        %s201 = smul.addr %s198, 4
        %s202 = sadd.s32 %s200, %s201
        %s203 = smul.addr %s202, 4
        %s204 = scalar_lea.vmem %s3, %s203
        %s205 = smul.u32 2, %s20
        %p206 = scmp.lt.s32.totalorder %s19, 1
        %s207 = scalar_select %p206, %s19, 1
        %p208 = scmp.lt.s32.totalorder %s205, 1
        %s209 = scalar_select %p208, %s205, 1
        %s210 = smul.addr %s207, 16
        %s211 = sadd.s32 %s209, %s210
        %s212 = smul.addr %s211, 4
        %s213 = scalar_lea.vmem %s0, %s212
        %s214 = smul.u32 2, %s20
        %s215 = smul.u32 2, %s20
        %p216 = scmp.lt.s32.totalorder %s19, 1
        %s217 = scalar_select %p216, %s19, 1
        %p218 = scmp.lt.s32.totalorder %s215, 1
        %s219 = scalar_select %p218, %s215, 1
        %s220 = smul.addr %s217, 4
        %s221 = sadd.s32 %s219, %s220
        %s222 = smul.addr %s221, 4
        %s223 = scalar_lea.vmem %s3, %s222
        %s224 = smul.u32 2, %s20
        %v226 = vld [vmem:[#allocation2] sm:$0xf]
        %v227 = vld [vmem:[#allocation2 + $0x4] sm:$0xf]
        %v228 = vld [vmem:[%s213] sm:$0xff]
        %v229 = vld [vmem:[%s213 + $0x8] sm:$0x11]
        %v232 = vunpack.c.l.b16 %v226
        %v233 = vunpack.c.l.b16 %v227
        %v234 = vpack.c.b16 %v233, %v232
        %v237 = vunpack.c.l.b16 %v228
        %v238 = vunpack.c.h.b16 %v228
        %v239 = vunpack.c.l.b16 %v229
        %v240 = vunpack.c.h.b16 %v229
        %v241 = vpack.c.b16 %v239, %v237
        %v242 = vpack.c.b16 %v240, %v238
        %vm243 = vcmask 72704
        %v245 = vsel %vm243, %v234, 0
        %vm247 = vcmask 1043456
        %vm248 = vcmask 1044480
        %v249 = vsel %vm247, 4294967295, 65535
        %v250 = vsel %vm248, %v249, 0
        %v252 = vand.u32 %v241, %v250
        %v255 = vand.u32 %v242, %v250
        %257 = vmatprep.subr.bf16.mxu0 %v255
        %258 = vmatpush1.bf16.msra.mxu0 %v252
        %259 = vmatprep.subr.bf16.mxu0 0
        %260 = vmatpush1.bf16.msra.mxu0 0
        %261 = vmatprep.subr.bf16.mxu0 0
        %262 = vmatpush1.bf16.msra.mxu0 0
        %263 = vmatprep.subr.bf16.mxu0 0
        %264 = vmatpush1.bf16.msra.mxu0 0
        %265 = vmatprep.subr.bf16.mxu0 0
        %266 = vmatpush1.bf16.msra.mxu0 0
        %267 = vmatprep.subr.bf16.mxu0 0
        %268 = vmatpush1.bf16.msra.mxu0 0
        %269 = vmatprep.subr.bf16.mxu0 0
        %270 = vmatpush1.bf16.msra.mxu0 0
        %271 = vmatprep.subr.bf16.mxu0 0
        %272 = vmatpush1.bf16.msra.mxu0 0
        %273 = vmatprep.subr.bf16.mxu0 0
        %274 = vmatpush1.bf16.msra.mxu0 0
        %275 = vmatprep.subr.bf16.mxu0 0
        %276 = vmatpush1.bf16.msra.mxu0 0
        %277 = vmatprep.subr.bf16.mxu0 0
        %278 = vmatpush1.bf16.msra.mxu0 0
        %279 = vmatprep.subr.bf16.mxu0 0
        %280 = vmatpush1.bf16.msra.mxu0 0
        %281 = vmatprep.subr.bf16.mxu0 0
        %282 = vmatpush1.bf16.msra.mxu0 0
        %283 = vmatprep.subr.bf16.mxu0 0
        %284 = vmatpush1.bf16.msra.mxu0 0
        %285 = vmatprep.subr.bf16.mxu0 0
        %286 = vmatpush1.bf16.msra.mxu0 0
        %287 = vmatprep.subr.bf16.mxu0 0
        %288 = vmatpush1.bf16.msra.mxu0 0
        %289 = vmatprep.mubr.bf16.mxu0 0
        %290 = vmatmul.mubr.bf16.gmra.mrb[0].mxu0 %v245
        %v291 = vpop.f32.mrb[0].mxu0
        %v292 = vadd.f32 0.0, %v291
        %v293 = vpop.f32.mrb[0].mxu0
        %v294 = vadd.f32 0.0, %v293
        %v295 = vpop.f32.mrb[0].mxu0
        %v296 = vadd.f32 0.0, %v295
        %v297 = vpop.f32.mrb[0].mxu0
        %v298 = vadd.f32 0.0, %v297
        %299 = vdwg.mxu0
        %s300 = scalar_lea.vmem %s213, 16
        %v301 = vld [vmem:[%s300] sm:$0xff]
        %v302 = vld [vmem:[%s300 + $0x8] sm:$0x11]
        %v305 = vunpack.c.l.b16 %v301
        %v306 = vunpack.c.h.b16 %v301
        %v307 = vunpack.c.l.b16 %v302
        %v308 = vunpack.c.h.b16 %v302
        %v309 = vpack.c.b16 %v307, %v305
        %v310 = vpack.c.b16 %v308, %v306
        %v312 = vand.u32 %v309, %v250
        %v315 = vand.u32 %v310, %v250
        %317 = vmatprep.subr.bf16.mxu0 %v315
        %318 = vmatpush1.bf16.msra.mxu0 %v312
        %319 = vmatprep.subr.bf16.mxu0 0
        %320 = vmatpush1.bf16.msra.mxu0 0
        %321 = vmatprep.subr.bf16.mxu0 0
        %322 = vmatpush1.bf16.msra.mxu0 0
        %323 = vmatprep.subr.bf16.mxu0 0
        %324 = vmatpush1.bf16.msra.mxu0 0
        %325 = vmatprep.subr.bf16.mxu0 0
        %326 = vmatpush1.bf16.msra.mxu0 0
        %327 = vmatprep.subr.bf16.mxu0 0
        %328 = vmatpush1.bf16.msra.mxu0 0
        %329 = vmatprep.subr.bf16.mxu0 0
        %330 = vmatpush1.bf16.msra.mxu0 0
        %331 = vmatprep.subr.bf16.mxu0 0
        %332 = vmatpush1.bf16.msra.mxu0 0
        %333 = vmatprep.subr.bf16.mxu0 0
        %334 = vmatpush1.bf16.msra.mxu0 0
        %335 = vmatprep.subr.bf16.mxu0 0
        %336 = vmatpush1.bf16.msra.mxu0 0
        %337 = vmatprep.subr.bf16.mxu0 0
        %338 = vmatpush1.bf16.msra.mxu0 0
        %339 = vmatprep.subr.bf16.mxu0 0
        %340 = vmatpush1.bf16.msra.mxu0 0
        %341 = vmatprep.subr.bf16.mxu0 0
        %342 = vmatpush1.bf16.msra.mxu0 0
        %343 = vmatprep.subr.bf16.mxu0 0
        %344 = vmatpush1.bf16.msra.mxu0 0
        %345 = vmatprep.subr.bf16.mxu0 0
        %346 = vmatpush1.bf16.msra.mxu0 0
        %347 = vmatprep.subr.bf16.mxu0 0
        %348 = vmatpush1.bf16.msra.mxu0 0
        %349 = vmatprep.mubr.bf16.mxu0 0
        %350 = vmatmul.mubr.bf16.gmra.mrb[0].mxu0 %v245
        %v351 = vpop.f32.mrb[0].mxu0
        %v352 = vadd.f32 0.0, %v351
        %v353 = vpop.f32.mrb[0].mxu0
        %v354 = vadd.f32 0.0, %v353
        %v355 = vpop.f32.mrb[0].mxu0
        %v356 = vadd.f32 0.0, %v355
        %v357 = vpop.f32.mrb[0].mxu0
        %v358 = vadd.f32 0.0, %v357
        %359 = vdwg.mxu0
        %v360 = vmax.f32 %v292, %v352
        %v361 = vmax.f32 %v294, %v354
        %v362 = vmax.f32 %v296, %v356
        %v363 = vmax.f32 %v298, %v358
        %s364 = scalar_lea.vmem %s213, 32
        %v365 = vld [vmem:[%s364] sm:$0xff]
        %v366 = vld [vmem:[%s364 + $0x8] sm:$0x11]
        %v369 = vunpack.c.l.b16 %v365
        %v370 = vunpack.c.h.b16 %v365
        %v371 = vunpack.c.l.b16 %v366
        %v372 = vunpack.c.h.b16 %v366
        %v373 = vpack.c.b16 %v371, %v369
        %v374 = vpack.c.b16 %v372, %v370
        %v376 = vand.u32 %v373, %v250
        %v379 = vand.u32 %v374, %v250
        %381 = vmatprep.subr.bf16.mxu0 %v379
        %382 = vmatpush1.bf16.msra.mxu0 %v376
        %383 = vmatprep.subr.bf16.mxu0 0
        %384 = vmatpush1.bf16.msra.mxu0 0
        %385 = vmatprep.subr.bf16.mxu0 0
        %386 = vmatpush1.bf16.msra.mxu0 0
        %387 = vmatprep.subr.bf16.mxu0 0
        %388 = vmatpush1.bf16.msra.mxu0 0
        %389 = vmatprep.subr.bf16.mxu0 0
        %390 = vmatpush1.bf16.msra.mxu0 0
        %391 = vmatprep.subr.bf16.mxu0 0
        %392 = vmatpush1.bf16.msra.mxu0 0
        %393 = vmatprep.subr.bf16.mxu0 0
        %394 = vmatpush1.bf16.msra.mxu0 0
        %395 = vmatprep.subr.bf16.mxu0 0
        %396 = vmatpush1.bf16.msra.mxu0 0
        %397 = vmatprep.subr.bf16.mxu0 0
        %398 = vmatpush1.bf16.msra.mxu0 0
        %399 = vmatprep.subr.bf16.mxu0 0
        %400 = vmatpush1.bf16.msra.mxu0 0
        %401 = vmatprep.subr.bf16.mxu0 0
        %402 = vmatpush1.bf16.msra.mxu0 0
        %403 = vmatprep.subr.bf16.mxu0 0
        %404 = vmatpush1.bf16.msra.mxu0 0
        %405 = vmatprep.subr.bf16.mxu0 0
        %406 = vmatpush1.bf16.msra.mxu0 0
        %407 = vmatprep.subr.bf16.mxu0 0
        %408 = vmatpush1.bf16.msra.mxu0 0
        %409 = vmatprep.subr.bf16.mxu0 0
        %410 = vmatpush1.bf16.msra.mxu0 0
        %411 = vmatprep.subr.bf16.mxu0 0
        %412 = vmatpush1.bf16.msra.mxu0 0
        %413 = vmatprep.mubr.bf16.mxu0 0
        %414 = vmatmul.mubr.bf16.gmra.mrb[0].mxu0 %v245
        %v415 = vpop.f32.mrb[0].mxu0
        %v416 = vadd.f32 0.0, %v415
        %v417 = vpop.f32.mrb[0].mxu0
        %v418 = vadd.f32 0.0, %v417
        %v419 = vpop.f32.mrb[0].mxu0
        %v420 = vadd.f32 0.0, %v419
        %v421 = vpop.f32.mrb[0].mxu0
        %v422 = vadd.f32 0.0, %v421
        %423 = vdwg.mxu0
        %s424 = scalar_lea.vmem %s213, 48
        %v425 = vld [vmem:[%s424] sm:$0xff]
        %v426 = vld [vmem:[%s424 + $0x8] sm:$0x11]
        %v429 = vunpack.c.l.b16 %v425
        %v430 = vunpack.c.h.b16 %v425
        %v431 = vunpack.c.l.b16 %v426
        %v432 = vunpack.c.h.b16 %v426
        %v433 = vpack.c.b16 %v431, %v429
        %v434 = vpack.c.b16 %v432, %v430
        %v436 = vand.u32 %v433, %v250
        %v439 = vand.u32 %v434, %v250
        %441 = vmatprep.subr.bf16.mxu0 %v439
        %442 = vmatpush1.bf16.msra.mxu0 %v436
        %443 = vmatprep.subr.bf16.mxu0 0
        %444 = vmatpush1.bf16.msra.mxu0 0
        %445 = vmatprep.subr.bf16.mxu0 0
        %446 = vmatpush1.bf16.msra.mxu0 0
        %447 = vmatprep.subr.bf16.mxu0 0
        %448 = vmatpush1.bf16.msra.mxu0 0
        %449 = vmatprep.subr.bf16.mxu0 0
        %450 = vmatpush1.bf16.msra.mxu0 0
        %451 = vmatprep.subr.bf16.mxu0 0
        %452 = vmatpush1.bf16.msra.mxu0 0
        %453 = vmatprep.subr.bf16.mxu0 0
        %454 = vmatpush1.bf16.msra.mxu0 0
        %455 = vmatprep.subr.bf16.mxu0 0
        %456 = vmatpush1.bf16.msra.mxu0 0
        %457 = vmatprep.subr.bf16.mxu0 0
        %458 = vmatpush1.bf16.msra.mxu0 0
        %459 = vmatprep.subr.bf16.mxu0 0
        %460 = vmatpush1.bf16.msra.mxu0 0
        %461 = vmatprep.subr.bf16.mxu0 0
        %462 = vmatpush1.bf16.msra.mxu0 0
        %463 = vmatprep.subr.bf16.mxu0 0
        %464 = vmatpush1.bf16.msra.mxu0 0
        %465 = vmatprep.subr.bf16.mxu0 0
        %466 = vmatpush1.bf16.msra.mxu0 0
        %467 = vmatprep.subr.bf16.mxu0 0
        %468 = vmatpush1.bf16.msra.mxu0 0
        %469 = vmatprep.subr.bf16.mxu0 0
        %470 = vmatpush1.bf16.msra.mxu0 0
        %471 = vmatprep.subr.bf16.mxu0 0
        %472 = vmatpush1.bf16.msra.mxu0 0
        %473 = vmatprep.mubr.bf16.mxu0 0
        %474 = vmatmul.mubr.bf16.gmra.mrb[0].mxu0 %v245
        %v475 = vpop.f32.mrb[0].mxu0
        %v476 = vadd.f32 0.0, %v475
        %v477 = vpop.f32.mrb[0].mxu0
        %v478 = vadd.f32 0.0, %v477
        %v479 = vpop.f32.mrb[0].mxu0
        %v480 = vadd.f32 0.0, %v479
        %v481 = vpop.f32.mrb[0].mxu0
        %v482 = vadd.f32 0.0, %v481
        %483 = vdwg.mxu0
        %v484 = vmax.f32 %v416, %v476
        %v485 = vmax.f32 %v418, %v478
        %v486 = vmax.f32 %v420, %v480
        %v487 = vmax.f32 %v422, %v482
        %v488 = vmax.f32 %v360, %v484
        %v489 = vmax.f32 %v361, %v485
        %v490 = vmax.f32 %v362, %v486
        %v491 = vmax.f32 %v363, %v487
        %v492 = vld [vmem:[%s2] sm:$0xff]
        %v493 = vld [vmem:[%s2 + $0x8] sm:$0xff]
        %495 = vset.pattern.permute.xlu0 0
        %496 = vperm.xlu0 %495, %v492
        %v497 = vpop.permute.xlu0 %496
        %500 = vset.pattern.permute.xlu0 0
        %501 = vperm.xlu0 %500, %v493
        %v502 = vpop.permute.xlu0 %501
        %v504 = vadd.f32 %v488, %v497
        %v505 = vadd.f32 %v489, %v497
        %v506 = vadd.f32 %v490, %v502
        %v507 = vadd.f32 %v491, %v502
        %v508 = vmax.f32 %v504, 0.0
        %v509 = vmax.f32 %v505, 0.0
        %v510 = vmax.f32 %v506, 0.0
        %v511 = vmax.f32 %v507, 0.0
        %v512 = vpack.c.bf16 %v510, %v508
        %v513 = vpack.c.bf16 %v511, %v509
        %v516 = vunpack.c.l.b16 %v512
        %v517 = vunpack.c.l.b16 %v513
        %v518 = vunpack.c.h.b16 %v512
        %v519 = vunpack.c.h.b16 %v513
        %v520 = vpack.c.b16 %v517, %v516
        %v521 = vpack.c.b16 %v519, %v518
        %524 = vst [vmem:[%s223] sm:$0xff] %v520
        %525 = vst [vmem:[%s223 + $0x8] sm:$0xff] %v521
        %s526 = smul.u32 2, %s20
        %p527 = scmp.lt.s32.totalorder %s19, 1
        %s528 = scalar_select %p527, %s19, 1
        %p529 = scmp.lt.s32.totalorder %s526, 1
        %s530 = scalar_select %p529, %s526, 1
        %s531 = smul.addr %s528, 4
        %s532 = sadd.s32 %s530, %s531
        %s533 = smul.addr %s532, 4
        %s534 = scalar_lea.vmem %s3, %s533
        // Predicated region
        $region37: #{cnn_multitask_forward.5} parent=31 // pred_check
          %p535 = pneg %p117
        $region38: #{cnn_multitask_forward.5} parent=31 // pred_check_branch
          %537 = sbr.rel (%p535) target = $region40
        $region39: #{cnn_multitask_forward.5} parent=31 // pred_region
          %s538 = smul.u32 2, %s20
        $region40: #{cnn_multitask_forward.5} parent=31 // pred_fallthru
          _
      $region32: #{cnn_multitask_forward.5} parent=5 // pred_fallthru
        _
      %p539 = scmp.le.s32.totalorder 2, %s10
      // Predicated region
      $region41: #{cnn_multitask_forward.5} parent=5 // pred_check
        %p540 = pneg %p539
      $region42: #{cnn_multitask_forward.5} parent=5 // pred_check_branch
        %542 = sbr.rel (%p540) target = $region44
      $region43: #{cnn_multitask_forward.5} parent=5 // pred_region
        %s543 = ssub.s32 %s10, 2
        // Predicated region
        $region45: #{cnn_multitask_forward.5} parent=43 // pred_check
          %p544 = pneg %p123
        $region46: #{cnn_multitask_forward.5} parent=43 // pred_check_branch
          %546 = sbr.rel (%p544) target = $region48
        $region47: #{cnn_multitask_forward.5} parent=43 // pred_region
          %s547 = smul.u32 2, %s22
          %p548 = scmp.lt.s32.totalorder %s21, 1
          %s549 = scalar_select %p548, %s21, 1
          %p550 = scmp.lt.s32.totalorder %s547, 1
          %s551 = scalar_select %p550, %s547, 1
          %s552 = smul.addr %s549, 4
          %s553 = sadd.s32 %s551, %s552
          %s554 = smul.addr %s553, 4
          %s555 = scalar_lea.vmem %s3, %s554
        $region48: #{cnn_multitask_forward.5} parent=43 // pred_fallthru
          _
      $region44: #{cnn_multitask_forward.5} parent=5 // pred_fallthru
        _
    $region6: #{cnn_multitask_forward.5} parent=1 // loop_footer
      %s14 = sadd.s32 1, %s10
    $region7: #{cnn_multitask_forward.5} parent=1 // loop_footer_branch
      %9 = sbr.rel target = $region3
    $region8: #{cnn_multitask_forward.5} parent=1 // loop_exit
      _
    %556 = vsyncpa [#allocation3], 1
    %s557 = scalar_lea.sflag [#allocation3], 1
    %558 = vsyncpa %s557, 1

// kernel: cnn_multitask_forward.6
$region0: #{cnn_multitask_forward.6}
  #allocation0 [shape = 'u32[]', space=smem, size = 0x4, offset = 0x4, fixed_abs, tag = 'smem constant byte address 0x4 - core index']
  #allocation1 [shape = 'u32[144,128]{1,0:T(1,128)}', space=vmem, size = 0x12000, scoped, tag = 'internal scratch']
  %s0 = inlined_call_operand.vmem [shape: bf16[2,4,144,64], index: 0, kind: input, shape index: {}]
  %s1 = inlined_call_operand.vmem [shape: bf16[32,144], index: 1, kind: input, shape index: {}]
  %s2 = inlined_call_operand.vmem [shape: f32[32,1], index: 2, kind: input, shape index: {}]
  %s3 = inlined_call_operand.vmem [shape: bf16[2,32,64], index: 3, kind: output, shape index: {}]
  %s4 = sld [smem:[#allocation0]]
  $region45: #{cnn_multitask_forward.6} parent=0
    _
  %s6 = ssub.s32 1, %s4
  %s7 = scalar_select 0, %s6, %s4
  loop: start=0, step=1, limit=4
  $region2: #{cnn_multitask_forward.6} parent=0 // loop_pre_header
    _
  $region3: #{cnn_multitask_forward.6} parent=0 // loop_header
    %s9 = sphi 0, %s13
    %p10 = scmp.ge.s32.totalorder %s9, 4
    %s16 = sphi 0, %s28
    %s17 = sphi 0, %s24
    %s18 = sphi 0, %s16
    %s19 = sphi 0, %s17
    %s20 = sphi 0, %s18
    %s21 = sphi 0, %s19
    %s33 = sphi 0, %s35
    %s36 = sphi 0, %s33
    %s37 = sphi 0, %s36
    %s53 = sphi 0, %s37
    %s57 = sphi 0, %s57
    %s59 = sphi 0, %s57
    %s60 = sphi 0, %s59
    %s74 = sphi 0, %s60
    %s78 = sphi 0, %s78
    %s80 = sphi 0, %s78
    %s81 = sphi 0, %s80
    %s95 = sphi 0, %s81
    %s103 = sphi 0, %s105
    %s106 = sphi 0, %s103
    %s107 = sphi 0, %s106
    %s123 = sphi 0, %s107
  $region4: #{cnn_multitask_forward.6} parent=0 // loop_header_branch
    %12 = sbr.rel (%p10) target = $region8
  $region5: #{cnn_multitask_forward.6} parent=0 // loop_body
    %s14 = ssub.s32 %s9, 1
    %s15 = ssub.s32 %s9, 2
    %s22 = sadd.s32 1, %s17
    %p23 = scmp.ge.s32.totalorder %s22, 1
    %s24 = scalar_select %p23, 0, %s22
    %s25 = sadd.s32 1, %s16
    %s26 = scalar_select %p23, %s25, %s16
    %p27 = scmp.ge.s32.totalorder %s26, 2
    %s28 = scalar_select %p27, 0, %s26
    %s29 = ssub.s32 %s16, %s28
    %s30 = ssub.s32 %s17, %s24
    %s31 = sor.u32 %s29, %s30
    %p32 = scmp.eq.s32.totalorder %s31, 0
    %s34 = sadd.s32 %s33, 1
    %s35 = scalar_select %p32, %s33, %s34
    %p38 = pneg %p32
    %p39 = scmp.eq.s32.totalorder %s9, 1
    %p40 = por %p38, %p39
    %p41 = scmp.ne.s32.totalorder %s33, %s36
    %p42 = scmp.eq.s32.totalorder %s9, 0
    %p43 = por %p41, %p42
    %p44 = scmp.ne.s32.totalorder %s33, %s36
    %p45 = scmp.eq.s32.totalorder %s14, 1
    %p46 = por %p44, %p45
    %p47 = scmp.ne.s32.totalorder %s36, %s37
    %p48 = scmp.eq.s32.totalorder %s14, 0
    %p49 = por %p47, %p48
    %p50 = scmp.ne.s32.totalorder %s36, %s37
    %p51 = scmp.eq.s32.totalorder %s15, 1
    %p52 = por %p50, %p51
    %p54 = scmp.ne.s32.totalorder %s37, %s53
    %p55 = scmp.eq.s32.totalorder %s15, 0
    %p56 = por %p54, %p55
    %s58 = sadd.s32 %s57, 1
    %p61 = scmp.eq.s32.totalorder %s9, 1
    %p62 = scmp.ne.s32.totalorder %s57, %s59
    %p63 = scmp.eq.s32.totalorder %s9, 0
    %p64 = por %p62, %p63
    %p65 = scmp.ne.s32.totalorder %s57, %s59
    %p66 = scmp.eq.s32.totalorder %s14, 1
    %p67 = por %p65, %p66
    %p68 = scmp.ne.s32.totalorder %s59, %s60
    %p69 = scmp.eq.s32.totalorder %s14, 0
    %p70 = por %p68, %p69
    %p71 = scmp.ne.s32.totalorder %s59, %s60
    %p72 = scmp.eq.s32.totalorder %s15, 1
    %p73 = por %p71, %p72
    %p75 = scmp.ne.s32.totalorder %s60, %s74
    %p76 = scmp.eq.s32.totalorder %s15, 0
    %p77 = por %p75, %p76
    %s79 = sadd.s32 %s78, 1
    %p82 = scmp.eq.s32.totalorder %s9, 1
    %p83 = scmp.ne.s32.totalorder %s78, %s80
    %p84 = scmp.eq.s32.totalorder %s9, 0
    %p85 = por %p83, %p84
    %p86 = scmp.ne.s32.totalorder %s78, %s80
    %p87 = scmp.eq.s32.totalorder %s14, 1
    %p88 = por %p86, %p87
    %p89 = scmp.ne.s32.totalorder %s80, %s81
    %p90 = scmp.eq.s32.totalorder %s14, 0
    %p91 = por %p89, %p90
    %p92 = scmp.ne.s32.totalorder %s80, %s81
    %p93 = scmp.eq.s32.totalorder %s15, 1
    %p94 = por %p92, %p93
    %p96 = scmp.ne.s32.totalorder %s81, %s95
    %p97 = scmp.eq.s32.totalorder %s15, 0
    %p98 = por %p96, %p97
    %s99 = ssub.s32 %s16, %s28
    %s100 = ssub.s32 %s17, %s24
    %s101 = sor.u32 %s99, %s100
    %p102 = scmp.eq.s32.totalorder %s101, 0
    %s104 = sadd.s32 %s103, 1
    %s105 = scalar_select %p102, %s103, %s104
    %p108 = pneg %p102
    %p109 = scmp.eq.s32.totalorder %s9, 1
    %p110 = por %p108, %p109
    %p111 = scmp.ne.s32.totalorder %s103, %s106
    %p112 = scmp.eq.s32.totalorder %s9, 0
    %p113 = por %p111, %p112
    %p114 = scmp.ne.s32.totalorder %s103, %s106
    %p115 = scmp.eq.s32.totalorder %s14, 1
    %p116 = por %p114, %p115
    %p117 = scmp.ne.s32.totalorder %s106, %s107
    %p118 = scmp.eq.s32.totalorder %s14, 0
    %p119 = por %p117, %p118
    %p120 = scmp.ne.s32.totalorder %s106, %s107
    %p121 = scmp.eq.s32.totalorder %s15, 1
    %p122 = por %p120, %p121
    %p124 = scmp.ne.s32.totalorder %s107, %s123
    %p125 = scmp.eq.s32.totalorder %s15, 0
    %p126 = por %p124, %p125
    %p127 = scmp.le.s32.totalorder 1, %s9
    %p128 = scmp.lt.s32.totalorder %s9, 3
    %p129 = pnand %p127, %p128
    %p130 = pneg %p129
    // Predicated region
    $region9: #{cnn_multitask_forward.6} parent=5 // pred_check
      _
    $region10: #{cnn_multitask_forward.6} parent=5 // pred_check_branch
      %132 = sbr.rel (%p129) target = $region12
    $region11: #{cnn_multitask_forward.6} parent=5 // pred_region
      %s133 = ssub.s32 %s9, 1
      // Predicated region
      $region13: #{cnn_multitask_forward.6} parent=11 // pred_check
        %p134 = pneg %p70
      $region14: #{cnn_multitask_forward.6} parent=11 // pred_check_branch
        %136 = sbr.rel (%p134) target = $region16
      $region15: #{cnn_multitask_forward.6} parent=11 // pred_region
        _
      $region16: #{cnn_multitask_forward.6} parent=11 // pred_fallthru
        _
      // Predicated region
      $region17: #{cnn_multitask_forward.6} parent=11 // pred_check
        %p137 = pneg %p91
      $region18: #{cnn_multitask_forward.6} parent=11 // pred_check_branch
        %139 = sbr.rel (%p137) target = $region20
      $region19: #{cnn_multitask_forward.6} parent=11 // pred_region
        _
      $region20: #{cnn_multitask_forward.6} parent=11 // pred_fallthru
        _
    $region12: #{cnn_multitask_forward.6} parent=5 // pred_fallthru
      _
    %p140 = scmp.lt.s32.totalorder %s9, 2
    // Predicated region
    $region21: #{cnn_multitask_forward.6} parent=5 // pred_check
      %p141 = pneg %p140
    $region22: #{cnn_multitask_forward.6} parent=5 // pred_check_branch
      %143 = sbr.rel (%p141) target = $region24
    $region23: #{cnn_multitask_forward.6} parent=5 // pred_region
      // Predicated region
      $region25: #{cnn_multitask_forward.6} parent=23 // pred_check
        %p144 = pneg %p43
      $region26: #{cnn_multitask_forward.6} parent=23 // pred_check_branch
        %146 = sbr.rel (%p144) target = $region28
      $region27: #{cnn_multitask_forward.6} parent=23 // pred_region
        %p147 = scmp.lt.s32.totalorder %s16, 1
        %s148 = scalar_select %p147, %s16, 1
        %p149 = scmp.lt.s32.totalorder %s17, 0
        %s150 = scalar_select %p149, %s17, 0
        %s151 = smul.addr %s148, 72
        %s152 = sadd.s32 %s150, %s151
        %s153 = smul.addr %s152, 4
        %s154 = scalar_lea.vmem %s0, %s153
      $region28: #{cnn_multitask_forward.6} parent=23 // pred_fallthru
        _
    $region24: #{cnn_multitask_forward.6} parent=5 // pred_fallthru
      _
    %p155 = scmp.le.s32.totalorder 1, %s9
    %p156 = scmp.lt.s32.totalorder %s9, 3
    %p157 = pnand %p155, %p156
    %p158 = pneg %p157
    // Predicated region
    $region29: #{cnn_multitask_forward.6} parent=5 // pred_check
      _
    $region30: #{cnn_multitask_forward.6} parent=5 // pred_check_branch
      %160 = sbr.rel (%p157) target = $region32
    $region31: #{cnn_multitask_forward.6} parent=5 // pred_region
      %s161 = ssub.s32 %s9, 1
      %p162 = scmp.lt.s32.totalorder %s18, 1
      %s163 = scalar_select %p162, %s18, 1
      %p164 = scmp.lt.s32.totalorder %s19, 0
      %s165 = scalar_select %p164, %s19, 0
      %s166 = smul.addr %s163, 72
      %s167 = sadd.s32 %s165, %s166
      %s168 = smul.addr %s167, 4
      %s169 = scalar_lea.vmem %s0, %s168
      %p170 = pneg %p49
      %p171 = pneg %p46
      %p172 = pneg %p70
      %p173 = pneg %p67
      %p174 = pneg %p91
      %p175 = pneg %p88
      %p176 = pneg %p119
      %p177 = pneg %p116
      %p178 = scmp.lt.s32.totalorder %s18, 1
      %s179 = scalar_select %p178, %s18, 1
      %p180 = scmp.lt.s32.totalorder %s19, 0
      %s181 = scalar_select %p180, %s19, 0
      %s182 = smul.addr %s179, 4
      %s183 = sadd.s32 %s181, %s182
      %s184 = smul.addr %s183, 4
      %s185 = scalar_lea.vmem %s3, %s184
      %p186 = scmp.lt.s32.totalorder %s18, 1
      %s187 = scalar_select %p186, %s18, 1
      %p188 = scmp.lt.s32.totalorder %s19, 0
      %s189 = scalar_select %p188, %s19, 0
      %s190 = smul.addr %s187, 72
      %s191 = sadd.s32 %s189, %s190
      %s192 = smul.addr %s191, 4
      %s193 = scalar_lea.vmem %s0, %s192
      %p194 = scmp.lt.s32.totalorder %s18, 1
      %s195 = scalar_select %p194, %s18, 1
      %p196 = scmp.lt.s32.totalorder %s19, 0
      %s197 = scalar_select %p196, %s19, 0
      %s198 = smul.addr %s195, 4
      %s199 = sadd.s32 %s197, %s198
      %s200 = smul.addr %s199, 4
      %s201 = scalar_lea.vmem %s3, %s200
      %v203 = vld [vmem:[%s1] sm:$0xff]
      %v204 = vld [vmem:[%s1 + $0x8] sm:$0xff]
      %v205 = vld [vmem:[%s1 + $0x10] sm:$0xff]
      %v206 = vld [vmem:[%s1 + $0x18] sm:$0xff]
      %v207 = vld [vmem:[%s193] sm:$0xf]
      %v208 = vld [vmem:[%s193 + $0x4] sm:$0xf]
      %v209 = vld [vmem:[%s193 + $0x8] sm:$0xf]
      %v210 = vld [vmem:[%s193 + $0xc] sm:$0xf]
      %v211 = vld [vmem:[%s193 + $0x10] sm:$0xf]
      %v212 = vld [vmem:[%s193 + $0x14] sm:$0xf]
      %v213 = vld [vmem:[%s193 + $0x18] sm:$0xf]
      %v214 = vld [vmem:[%s193 + $0x1c] sm:$0xf]
      %v215 = vld [vmem:[%s193 + $0x20] sm:$0xf]
      %v216 = vld [vmem:[%s193 + $0x24] sm:$0xf]
      %v217 = vld [vmem:[%s193 + $0x28] sm:$0xf]
      %v218 = vld [vmem:[%s193 + $0x2c] sm:$0xf]
      %v219 = vld [vmem:[%s193 + $0x30] sm:$0xf]
      %v220 = vld [vmem:[%s193 + $0x34] sm:$0xf]
      %v221 = vld [vmem:[%s193 + $0x38] sm:$0xf]
      %v222 = vld [vmem:[%s193 + $0x3c] sm:$0xf]
      %v223 = vld [vmem:[%s193 + $0x40] sm:$0xf]
      %v224 = vld [vmem:[%s193 + $0x44] sm:$0xf]
      %v229 = vunpack.c.l.b16 %v203
      %v230 = vunpack.c.h.b16 %v203
      %v231 = vunpack.c.l.b16 %v204
      %v232 = vunpack.c.h.b16 %v204
      %v233 = vunpack.c.l.b16 %v205
      %v234 = vunpack.c.h.b16 %v205
      %v235 = vunpack.c.l.b16 %v206
      %v236 = vunpack.c.h.b16 %v206
      %v237 = vpack.c.b16 %v231, %v229
      %v238 = vpack.c.b16 %v232, %v230
      %v239 = vpack.c.b16 %v235, %v233
      %v240 = vpack.c.b16 %v236, %v234
      %v261 = vunpack.c.l.b16 %v207
      %v262 = vunpack.c.l.b16 %v208
      %v263 = vunpack.c.l.b16 %v209
      %v264 = vunpack.c.l.b16 %v210
      %v265 = vunpack.c.l.b16 %v211
      %v266 = vunpack.c.l.b16 %v212
      %v267 = vunpack.c.l.b16 %v213
      %v268 = vunpack.c.l.b16 %v214
      %v269 = vunpack.c.l.b16 %v215
      %v270 = vunpack.c.l.b16 %v216
      %v271 = vunpack.c.l.b16 %v217
      %v272 = vunpack.c.l.b16 %v218
      %v273 = vunpack.c.l.b16 %v219
      %v274 = vunpack.c.l.b16 %v220
      %v275 = vunpack.c.l.b16 %v221
      %v276 = vunpack.c.l.b16 %v222
      %v277 = vunpack.c.l.b16 %v223
      %v278 = vunpack.c.l.b16 %v224
      %v279 = vpack.c.b16 %v262, %v261
      %v280 = vpack.c.b16 %v264, %v263
      %v281 = vpack.c.b16 %v266, %v265
      %v282 = vpack.c.b16 %v268, %v267
      %v283 = vpack.c.b16 %v270, %v269
      %v284 = vpack.c.b16 %v272, %v271
      %v285 = vpack.c.b16 %v274, %v273
      %v286 = vpack.c.b16 %v276, %v275
      %v287 = vpack.c.b16 %v278, %v277
      %vm297 = vcmask 130048
      %v299 = vsel %vm297, %v238, 0
      %v302 = vsel %vm297, %v240, 0
      %304 = vmatprep.subr.bf16.mxu0 0
      %305 = vmatpush1.bf16.msra.mxu0 %v279
      %306 = vmatprep.subr.bf16.mxu0 0
      %307 = vmatpush1.bf16.msra.mxu0 %v280
      %308 = vmatprep.subr.bf16.mxu0 0
      %309 = vmatpush1.bf16.msra.mxu0 %v281
      %310 = vmatprep.subr.bf16.mxu0 0
      %311 = vmatpush1.bf16.msra.mxu0 %v282
      %312 = vmatprep.subr.bf16.mxu0 0
      %313 = vmatpush1.bf16.msra.mxu0 %v283
      %314 = vmatprep.subr.bf16.mxu0 0
      %315 = vmatpush1.bf16.msra.mxu0 %v284
      %316 = vmatprep.subr.bf16.mxu0 0
      %317 = vmatpush1.bf16.msra.mxu0 %v285
      %318 = vmatprep.subr.bf16.mxu0 0
      %319 = vmatpush1.bf16.msra.mxu0 %v286
      %320 = vmatprep.subr.bf16.mxu0 0
      %321 = vmatpush1.bf16.msra.mxu0 %v287
      %322 = vmatprep.subr.bf16.mxu0 0
      %323 = vmatpush1.bf16.msra.mxu0 0
      %324 = vmatprep.subr.bf16.mxu0 0
      %325 = vmatpush1.bf16.msra.mxu0 0
      %326 = vmatprep.subr.bf16.mxu0 0
      %327 = vmatpush1.bf16.msra.mxu0 0
      %328 = vmatprep.subr.bf16.mxu0 0
      %329 = vmatpush1.bf16.msra.mxu0 0
      %330 = vmatprep.subr.bf16.mxu0 0
      %331 = vmatpush1.bf16.msra.mxu0 0
      %332 = vmatprep.subr.bf16.mxu0 0
      %333 = vmatpush1.bf16.msra.mxu0 0
      %334 = vmatprep.subr.bf16.mxu0 0
      %335 = vmatpush1.bf16.msra.mxu0 0
      %336 = vmatprep.mubr.bf16.mxu0 %v299
      %337 = vmatmul.mubr.bf16.gmra.mrb[0].mxu0 %v237
      %v338 = vpop.f32.mrb[0].mxu0
      %v339 = vadd.f32 0.0, %v338
      %v340 = vpop.f32.mrb[0].mxu0
      %v341 = vpop.f32.mrb[0].mxu0
      %v342 = vadd.f32 0.0, %v341
      %v343 = vpop.f32.mrb[0].mxu0
      %344 = vmatprep.mubr.bf16.mxu0 %v302
      %345 = vmatmul.mubr.bf16.gmra.mrb[0].mxu0 %v239
      %v346 = vpop.f32.mrb[0].mxu0
      %v347 = vadd.f32 0.0, %v346
      %v348 = vpop.f32.mrb[0].mxu0
      %v349 = vpop.f32.mrb[0].mxu0
      %v350 = vadd.f32 0.0, %v349
      %v351 = vpop.f32.mrb[0].mxu0
      %352 = vdwg.mxu0
      %s353 = scalar_lea.vmem %s193, 72
      %v354 = vld [vmem:[%s353] sm:$0xf]
      %v355 = vld [vmem:[%s353 + $0x4] sm:$0xf]
      %v356 = vld [vmem:[%s353 + $0x8] sm:$0xf]
      %v357 = vld [vmem:[%s353 + $0xc] sm:$0xf]
      %v358 = vld [vmem:[%s353 + $0x10] sm:$0xf]
      %v359 = vld [vmem:[%s353 + $0x14] sm:$0xf]
      %v360 = vld [vmem:[%s353 + $0x18] sm:$0xf]
      %v361 = vld [vmem:[%s353 + $0x1c] sm:$0xf]
      %v362 = vld [vmem:[%s353 + $0x20] sm:$0xf]
      %v363 = vld [vmem:[%s353 + $0x24] sm:$0xf]
      %v364 = vld [vmem:[%s353 + $0x28] sm:$0xf]
      %v365 = vld [vmem:[%s353 + $0x2c] sm:$0xf]
      %v366 = vld [vmem:[%s353 + $0x30] sm:$0xf]
      %v367 = vld [vmem:[%s353 + $0x34] sm:$0xf]
      %v368 = vld [vmem:[%s353 + $0x38] sm:$0xf]
      %v369 = vld [vmem:[%s353 + $0x3c] sm:$0xf]
      %v370 = vld [vmem:[%s353 + $0x40] sm:$0xf]
      %v371 = vld [vmem:[%s353 + $0x44] sm:$0xf]
      %v390 = vunpack.c.l.b16 %v354
      %v391 = vunpack.c.l.b16 %v355
      %v392 = vunpack.c.l.b16 %v356
      %v393 = vunpack.c.l.b16 %v357
      %v394 = vunpack.c.l.b16 %v358
      %v395 = vunpack.c.l.b16 %v359
      %v396 = vunpack.c.l.b16 %v360
      %v397 = vunpack.c.l.b16 %v361
      %v398 = vunpack.c.l.b16 %v362
      %v399 = vunpack.c.l.b16 %v363
      %v400 = vunpack.c.l.b16 %v364
      %v401 = vunpack.c.l.b16 %v365
      %v402 = vunpack.c.l.b16 %v366
      %v403 = vunpack.c.l.b16 %v367
      %v404 = vunpack.c.l.b16 %v368
      %v405 = vunpack.c.l.b16 %v369
      %v406 = vunpack.c.l.b16 %v370
      %v407 = vunpack.c.l.b16 %v371
      %v408 = vpack.c.b16 %v391, %v390
      %v409 = vpack.c.b16 %v393, %v392
      %v410 = vpack.c.b16 %v395, %v394
      %v411 = vpack.c.b16 %v397, %v396
      %v412 = vpack.c.b16 %v399, %v398
      %v413 = vpack.c.b16 %v401, %v400
      %v414 = vpack.c.b16 %v403, %v402
      %v415 = vpack.c.b16 %v405, %v404
      %v416 = vpack.c.b16 %v407, %v406
      %426 = vmatprep.subr.bf16.mxu0 0
      %427 = vmatpush1.bf16.msra.mxu0 %v408
      %428 = vmatprep.subr.bf16.mxu0 0
      %429 = vmatpush1.bf16.msra.mxu0 %v409
      %430 = vmatprep.subr.bf16.mxu0 0
      %431 = vmatpush1.bf16.msra.mxu0 %v410
      %432 = vmatprep.subr.bf16.mxu0 0
      %433 = vmatpush1.bf16.msra.mxu0 %v411
      %434 = vmatprep.subr.bf16.mxu0 0
      %435 = vmatpush1.bf16.msra.mxu0 %v412
      %436 = vmatprep.subr.bf16.mxu0 0
      %437 = vmatpush1.bf16.msra.mxu0 %v413
      %438 = vmatprep.subr.bf16.mxu0 0
      %439 = vmatpush1.bf16.msra.mxu0 %v414
      %440 = vmatprep.subr.bf16.mxu0 0
      %441 = vmatpush1.bf16.msra.mxu0 %v415
      %442 = vmatprep.subr.bf16.mxu0 0
      %443 = vmatpush1.bf16.msra.mxu0 %v416
      %444 = vmatprep.subr.bf16.mxu0 0
      %445 = vmatpush1.bf16.msra.mxu0 0
      %446 = vmatprep.subr.bf16.mxu0 0
      %447 = vmatpush1.bf16.msra.mxu0 0
      %448 = vmatprep.subr.bf16.mxu0 0
      %449 = vmatpush1.bf16.msra.mxu0 0
      %450 = vmatprep.subr.bf16.mxu0 0
      %451 = vmatpush1.bf16.msra.mxu0 0
      %452 = vmatprep.subr.bf16.mxu0 0
      %453 = vmatpush1.bf16.msra.mxu0 0
      %454 = vmatprep.subr.bf16.mxu0 0
      %455 = vmatpush1.bf16.msra.mxu0 0
      %456 = vmatprep.subr.bf16.mxu0 0
      %457 = vmatpush1.bf16.msra.mxu0 0
      %458 = vmatprep.mubr.bf16.mxu0 %v299
      %459 = vmatmul.mubr.bf16.gmra.mrb[0].mxu0 %v237
      %v460 = vpop.f32.mrb[0].mxu0
      %v461 = vadd.f32 0.0, %v460
      %v462 = vpop.f32.mrb[0].mxu0
      %v463 = vpop.f32.mrb[0].mxu0
      %v464 = vadd.f32 0.0, %v463
      %v465 = vpop.f32.mrb[0].mxu0
      %466 = vmatprep.mubr.bf16.mxu0 %v302
      %467 = vmatmul.mubr.bf16.gmra.mrb[0].mxu0 %v239
      %v468 = vpop.f32.mrb[0].mxu0
      %v469 = vadd.f32 0.0, %v468
      %v470 = vpop.f32.mrb[0].mxu0
      %v471 = vpop.f32.mrb[0].mxu0
      %v472 = vadd.f32 0.0, %v471
      %v473 = vpop.f32.mrb[0].mxu0
      %474 = vdwg.mxu0
      %v475 = vmax.f32 %v339, %v461
      %v476 = vmax.f32 %v342, %v464
      %v477 = vmax.f32 %v347, %v469
      %v478 = vmax.f32 %v350, %v472
      %s479 = scalar_lea.vmem %s193, 144
      %v480 = vld [vmem:[%s479] sm:$0xf]
      %v481 = vld [vmem:[%s479 + $0x4] sm:$0xf]
      %v482 = vld [vmem:[%s479 + $0x8] sm:$0xf]
      %v483 = vld [vmem:[%s479 + $0xc] sm:$0xf]
      %v484 = vld [vmem:[%s479 + $0x10] sm:$0xf]
      %v485 = vld [vmem:[%s479 + $0x14] sm:$0xf]
      %v486 = vld [vmem:[%s479 + $0x18] sm:$0xf]
      %v487 = vld [vmem:[%s479 + $0x1c] sm:$0xf]
      %v488 = vld [vmem:[%s479 + $0x20] sm:$0xf]
      %v489 = vld [vmem:[%s479 + $0x24] sm:$0xf]
      %v490 = vld [vmem:[%s479 + $0x28] sm:$0xf]
      %v491 = vld [vmem:[%s479 + $0x2c] sm:$0xf]
      %v492 = vld [vmem:[%s479 + $0x30] sm:$0xf]
      %v493 = vld [vmem:[%s479 + $0x34] sm:$0xf]
      %v494 = vld [vmem:[%s479 + $0x38] sm:$0xf]
      %v495 = vld [vmem:[%s479 + $0x3c] sm:$0xf]
      %v496 = vld [vmem:[%s479 + $0x40] sm:$0xf]
      %v497 = vld [vmem:[%s479 + $0x44] sm:$0xf]
      %v516 = vunpack.c.l.b16 %v480
      %v517 = vunpack.c.l.b16 %v481
      %v518 = vunpack.c.l.b16 %v482
      %v519 = vunpack.c.l.b16 %v483
      %v520 = vunpack.c.l.b16 %v484
      %v521 = vunpack.c.l.b16 %v485
      %v522 = vunpack.c.l.b16 %v486
      %v523 = vunpack.c.l.b16 %v487
      %v524 = vunpack.c.l.b16 %v488
      %v525 = vunpack.c.l.b16 %v489
      %v526 = vunpack.c.l.b16 %v490
      %v527 = vunpack.c.l.b16 %v491
      %v528 = vunpack.c.l.b16 %v492
      %v529 = vunpack.c.l.b16 %v493
      %v530 = vunpack.c.l.b16 %v494
      %v531 = vunpack.c.l.b16 %v495
      %v532 = vunpack.c.l.b16 %v496
      %v533 = vunpack.c.l.b16 %v497
      %v534 = vpack.c.b16 %v517, %v516
      %v535 = vpack.c.b16 %v519, %v518
      %v536 = vpack.c.b16 %v521, %v520
      %v537 = vpack.c.b16 %v523, %v522
      %v538 = vpack.c.b16 %v525, %v524
      %v539 = vpack.c.b16 %v527, %v526
      %v540 = vpack.c.b16 %v529, %v528
      %v541 = vpack.c.b16 %v531, %v530
      %v542 = vpack.c.b16 %v533, %v532
      %552 = vmatprep.subr.bf16.mxu0 0
      %553 = vmatpush1.bf16.msra.mxu0 %v534
      %554 = vmatprep.subr.bf16.mxu0 0
      %555 = vmatpush1.bf16.msra.mxu0 %v535
      %556 = vmatprep.subr.bf16.mxu0 0
      %557 = vmatpush1.bf16.msra.mxu0 %v536
      %558 = vmatprep.subr.bf16.mxu0 0
      %559 = vmatpush1.bf16.msra.mxu0 %v537
      %560 = vmatprep.subr.bf16.mxu0 0
      %561 = vmatpush1.bf16.msra.mxu0 %v538
      %562 = vmatprep.subr.bf16.mxu0 0
      %563 = vmatpush1.bf16.msra.mxu0 %v539
      %564 = vmatprep.subr.bf16.mxu0 0
      %565 = vmatpush1.bf16.msra.mxu0 %v540
      %566 = vmatprep.subr.bf16.mxu0 0
      %567 = vmatpush1.bf16.msra.mxu0 %v541
      %568 = vmatprep.subr.bf16.mxu0 0
      %569 = vmatpush1.bf16.msra.mxu0 %v542
      %570 = vmatprep.subr.bf16.mxu0 0
      %571 = vmatpush1.bf16.msra.mxu0 0
      %572 = vmatprep.subr.bf16.mxu0 0
      %573 = vmatpush1.bf16.msra.mxu0 0
      %574 = vmatprep.subr.bf16.mxu0 0
      %575 = vmatpush1.bf16.msra.mxu0 0
      %576 = vmatprep.subr.bf16.mxu0 0
      %577 = vmatpush1.bf16.msra.mxu0 0
      %578 = vmatprep.subr.bf16.mxu0 0
      %579 = vmatpush1.bf16.msra.mxu0 0
      %580 = vmatprep.subr.bf16.mxu0 0
      %581 = vmatpush1.bf16.msra.mxu0 0
      %582 = vmatprep.subr.bf16.mxu0 0
      %583 = vmatpush1.bf16.msra.mxu0 0
      %584 = vmatprep.mubr.bf16.mxu0 %v299
      %585 = vmatmul.mubr.bf16.gmra.mrb[0].mxu0 %v237
      %v586 = vpop.f32.mrb[0].mxu0
      %v587 = vadd.f32 0.0, %v586
      %v588 = vpop.f32.mrb[0].mxu0
      %v589 = vpop.f32.mrb[0].mxu0
      %v590 = vadd.f32 0.0, %v589
      %v591 = vpop.f32.mrb[0].mxu0
      %592 = vmatprep.mubr.bf16.mxu0 %v302
      %593 = vmatmul.mubr.bf16.gmra.mrb[0].mxu0 %v239
      %v594 = vpop.f32.mrb[0].mxu0
      %v595 = vadd.f32 0.0, %v594
      %v596 = vpop.f32.mrb[0].mxu0
      %v597 = vpop.f32.mrb[0].mxu0
      %v598 = vadd.f32 0.0, %v597
      %v599 = vpop.f32.mrb[0].mxu0
      %600 = vdwg.mxu0
      %s601 = scalar_lea.vmem %s193, 216
      %v602 = vld [vmem:[%s601] sm:$0xf]
      %v603 = vld [vmem:[%s601 + $0x4] sm:$0xf]
      %v604 = vld [vmem:[%s601 + $0x8] sm:$0xf]
      %v605 = vld [vmem:[%s601 + $0xc] sm:$0xf]
      %v606 = vld [vmem:[%s601 + $0x10] sm:$0xf]
      %v607 = vld [vmem:[%s601 + $0x14] sm:$0xf]
      %v608 = vld [vmem:[%s601 + $0x18] sm:$0xf]
      %v609 = vld [vmem:[%s601 + $0x1c] sm:$0xf]
      %v610 = vld [vmem:[%s601 + $0x20] sm:$0xf]
      %v611 = vld [vmem:[%s601 + $0x24] sm:$0xf]
      %v612 = vld [vmem:[%s601 + $0x28] sm:$0xf]
      %v613 = vld [vmem:[%s601 + $0x2c] sm:$0xf]
      %v614 = vld [vmem:[%s601 + $0x30] sm:$0xf]
      %v615 = vld [vmem:[%s601 + $0x34] sm:$0xf]
      %v616 = vld [vmem:[%s601 + $0x38] sm:$0xf]
      %v617 = vld [vmem:[%s601 + $0x3c] sm:$0xf]
      %v618 = vld [vmem:[%s601 + $0x40] sm:$0xf]
      %v619 = vld [vmem:[%s601 + $0x44] sm:$0xf]
      %v638 = vunpack.c.l.b16 %v602
      %v639 = vunpack.c.l.b16 %v603
      %v640 = vunpack.c.l.b16 %v604
      %v641 = vunpack.c.l.b16 %v605
      %v642 = vunpack.c.l.b16 %v606
      %v643 = vunpack.c.l.b16 %v607
      %v644 = vunpack.c.l.b16 %v608
      %v645 = vunpack.c.l.b16 %v609
      %v646 = vunpack.c.l.b16 %v610
      %v647 = vunpack.c.l.b16 %v611
      %v648 = vunpack.c.l.b16 %v612
      %v649 = vunpack.c.l.b16 %v613
      %v650 = vunpack.c.l.b16 %v614
      %v651 = vunpack.c.l.b16 %v615
      %v652 = vunpack.c.l.b16 %v616
      %v653 = vunpack.c.l.b16 %v617
      %v654 = vunpack.c.l.b16 %v618
      %v655 = vunpack.c.l.b16 %v619
      %v656 = vpack.c.b16 %v639, %v638
      %v657 = vpack.c.b16 %v641, %v640
      %v658 = vpack.c.b16 %v643, %v642
      %v659 = vpack.c.b16 %v645, %v644
      %v660 = vpack.c.b16 %v647, %v646
      %v661 = vpack.c.b16 %v649, %v648
      %v662 = vpack.c.b16 %v651, %v650
      %v663 = vpack.c.b16 %v653, %v652
      %v664 = vpack.c.b16 %v655, %v654
      %674 = vmatprep.subr.bf16.mxu0 0
      %675 = vmatpush1.bf16.msra.mxu0 %v656
      %676 = vmatprep.subr.bf16.mxu0 0
      %677 = vmatpush1.bf16.msra.mxu0 %v657
      %678 = vmatprep.subr.bf16.mxu0 0
      %679 = vmatpush1.bf16.msra.mxu0 %v658
      %680 = vmatprep.subr.bf16.mxu0 0
      %681 = vmatpush1.bf16.msra.mxu0 %v659
      %682 = vmatprep.subr.bf16.mxu0 0
      %683 = vmatpush1.bf16.msra.mxu0 %v660
      %684 = vmatprep.subr.bf16.mxu0 0
      %685 = vmatpush1.bf16.msra.mxu0 %v661
      %686 = vmatprep.subr.bf16.mxu0 0
      %687 = vmatpush1.bf16.msra.mxu0 %v662
      %688 = vmatprep.subr.bf16.mxu0 0
      %689 = vmatpush1.bf16.msra.mxu0 %v663
      %690 = vmatprep.subr.bf16.mxu0 0
      %691 = vmatpush1.bf16.msra.mxu0 %v664
      %692 = vmatprep.subr.bf16.mxu0 0
      %693 = vmatpush1.bf16.msra.mxu0 0
      %694 = vmatprep.subr.bf16.mxu0 0
      %695 = vmatpush1.bf16.msra.mxu0 0
      %696 = vmatprep.subr.bf16.mxu0 0
      %697 = vmatpush1.bf16.msra.mxu0 0
      %698 = vmatprep.subr.bf16.mxu0 0
      %699 = vmatpush1.bf16.msra.mxu0 0
      %700 = vmatprep.subr.bf16.mxu0 0
      %701 = vmatpush1.bf16.msra.mxu0 0
      %702 = vmatprep.subr.bf16.mxu0 0
      %703 = vmatpush1.bf16.msra.mxu0 0
      %704 = vmatprep.subr.bf16.mxu0 0
      %705 = vmatpush1.bf16.msra.mxu0 0
      %706 = vmatprep.mubr.bf16.mxu0 %v299
      %707 = vmatmul.mubr.bf16.gmra.mrb[0].mxu0 %v237
      %v708 = vpop.f32.mrb[0].mxu0
      %v709 = vadd.f32 0.0, %v708
      %v710 = vpop.f32.mrb[0].mxu0
      %v711 = vpop.f32.mrb[0].mxu0
      %v712 = vadd.f32 0.0, %v711
      %v713 = vpop.f32.mrb[0].mxu0
      %714 = vmatprep.mubr.bf16.mxu0 %v302
      %715 = vmatmul.mubr.bf16.gmra.mrb[0].mxu0 %v239
      %v716 = vpop.f32.mrb[0].mxu0
      %v717 = vadd.f32 0.0, %v716
      %v718 = vpop.f32.mrb[0].mxu0
      %v719 = vpop.f32.mrb[0].mxu0
      %v720 = vadd.f32 0.0, %v719
      %v721 = vpop.f32.mrb[0].mxu0
      %722 = vdwg.mxu0
      %v723 = vmax.f32 %v587, %v709
      %v724 = vmax.f32 %v590, %v712
      %v725 = vmax.f32 %v595, %v717
      %v726 = vmax.f32 %v598, %v720
      %v727 = vmax.f32 %v475, %v723
      %v728 = vmax.f32 %v476, %v724
      %v729 = vmax.f32 %v477, %v725
      %v730 = vmax.f32 %v478, %v726
      %v731 = vld [vmem:[%s2] sm:$0xff]
      %v732 = vld [vmem:[%s2 + $0x8] sm:$0xff]
      %v733 = vld [vmem:[%s2 + $0x10] sm:$0xff]
      %v734 = vld [vmem:[%s2 + $0x18] sm:$0xff]
      %736 = vset.pattern.permute.xlu0 0
      %737 = vperm.xlu0 %736, %v731
      %v738 = vpop.permute.xlu0 %737
      %741 = vset.pattern.permute.xlu0 0
      %742 = vperm.xlu0 %741, %v732
      %v743 = vpop.permute.xlu0 %742
      %746 = vset.pattern.permute.xlu0 0
      %747 = vperm.xlu0 %746, %v733
      %v748 = vpop.permute.xlu0 %747
      %751 = vset.pattern.permute.xlu0 0
      %752 = vperm.xlu0 %751, %v734
      %v753 = vpop.permute.xlu0 %752
      %v755 = vadd.f32 %v727, %v738
      %v756 = vadd.f32 %v728, %v743
      %v757 = vadd.f32 %v729, %v748
      %v758 = vadd.f32 %v730, %v753
      %v759 = vmax.f32 %v755, 0.0
      %v760 = vmax.f32 %v756, 0.0
      %v761 = vmax.f32 %v757, 0.0
      %v762 = vmax.f32 %v758, 0.0
      %v763 = vpack.c.bf16 %v760, %v759
      %v764 = vpack.c.bf16 %v762, %v761
      %v767 = vunpack.c.l.b16 %v763
      %v768 = vunpack.c.h.b16 %v763
      %v769 = vunpack.c.l.b16 %v764
      %v770 = vunpack.c.h.b16 %v764
      %v771 = vpack.c.b16 %v767, %v767
      %v772 = vpack.c.b16 %v768, %v768
      %v773 = vpack.c.b16 %v769, %v769
      %v774 = vpack.c.b16 %v770, %v770
      %vm779 = vcmask 519168
      %780 = vst.msk [vmem:[%s201] sm:$0xf] %vm779, %v771
      %781 = vst.msk [vmem:[%s201 + $0x4] sm:$0xf] %vm779, %v772
      %782 = vst.msk [vmem:[%s201 + $0x8] sm:$0xf] %vm779, %v773
      %783 = vst.msk [vmem:[%s201 + $0xc] sm:$0xf] %vm779, %v774
      %p784 = scmp.lt.s32.totalorder %s18, 1
      %s785 = scalar_select %p784, %s18, 1
      %p786 = scmp.lt.s32.totalorder %s19, 0
      %s787 = scalar_select %p786, %s19, 0
      %s788 = smul.addr %s785, 4
      %s789 = sadd.s32 %s787, %s788
      %s790 = smul.addr %s789, 4
      %s791 = scalar_lea.vmem %s3, %s790
      // Predicated region
      $region33: #{cnn_multitask_forward.6} parent=31 // pred_check
        %p792 = pneg %p116
      $region34: #{cnn_multitask_forward.6} parent=31 // pred_check_branch
        %794 = sbr.rel (%p792) target = $region36
      $region35: #{cnn_multitask_forward.6} parent=31 // pred_region
        _
      $region36: #{cnn_multitask_forward.6} parent=31 // pred_fallthru
        _
    $region32: #{cnn_multitask_forward.6} parent=5 // pred_fallthru
      _
    %p795 = scmp.le.s32.totalorder 2, %s9
    // Predicated region
    $region37: #{cnn_multitask_forward.6} parent=5 // pred_check
      %p796 = pneg %p795
    $region38: #{cnn_multitask_forward.6} parent=5 // pred_check_branch
      %798 = sbr.rel (%p796) target = $region40
    $region39: #{cnn_multitask_forward.6} parent=5 // pred_region
      %s799 = ssub.s32 %s9, 2
      // Predicated region
      $region41: #{cnn_multitask_forward.6} parent=39 // pred_check
        %p800 = pneg %p122
      $region42: #{cnn_multitask_forward.6} parent=39 // pred_check_branch
        %802 = sbr.rel (%p800) target = $region44
      $region43: #{cnn_multitask_forward.6} parent=39 // pred_region
        %p803 = scmp.lt.s32.totalorder %s20, 1
        %s804 = scalar_select %p803, %s20, 1
        %p805 = scmp.lt.s32.totalorder %s21, 0
        %s806 = scalar_select %p805, %s21, 0
        %s807 = smul.addr %s804, 4
        %s808 = sadd.s32 %s806, %s807
        %s809 = smul.addr %s808, 4
        %s810 = scalar_lea.vmem %s3, %s809
      $region44: #{cnn_multitask_forward.6} parent=39 // pred_fallthru
        _
    $region40: #{cnn_multitask_forward.6} parent=5 // pred_fallthru
      _
  $region6: #{cnn_multitask_forward.6} parent=0 // loop_footer
    %s13 = sadd.s32 1, %s9
  $region7: #{cnn_multitask_forward.6} parent=0 // loop_footer_branch
    %8 = sbr.rel target = $region3
  $region8: #{cnn_multitask_forward.6} parent=0 // loop_exit
    _

// kernel: cnn_multitask_forward.7
$region0: #{cnn_multitask_forward.7}
  #allocation0 [shape = 'u32[]', space=smem, size = 0x4, offset = 0x4, fixed_abs, tag = 'smem constant byte address 0x4 - core index']
  #allocation1 [shape = 'u32[144,128]{1,0:T(1,128)}', space=vmem, size = 0x12000, scoped, tag = 'internal scratch']
  %s0 = inlined_call_operand.vmem [shape: bf16[2,4,288,16], index: 0, kind: input, shape index: {}]
  %s1 = inlined_call_operand.vmem [shape: bf16[64,288], index: 1, kind: input, shape index: {}]
  %s2 = inlined_call_operand.vmem [shape: f32[64,1], index: 2, kind: input, shape index: {}]
  %s3 = inlined_call_operand.vmem [shape: bf16[2,64,16], index: 3, kind: output, shape index: {}]
  %s4 = sld [smem:[#allocation0]]
  $region45: #{cnn_multitask_forward.7} parent=0
    _
  %s6 = ssub.s32 1, %s4
  %s7 = scalar_select 0, %s6, %s4
  loop: start=0, step=1, limit=4
  $region2: #{cnn_multitask_forward.7} parent=0 // loop_pre_header
    _
  $region3: #{cnn_multitask_forward.7} parent=0 // loop_header
    %s9 = sphi 0, %s13
    %p10 = scmp.ge.s32.totalorder %s9, 4
    %s16 = sphi 0, %s28
    %s17 = sphi 0, %s24
    %s18 = sphi 0, %s16
    %s19 = sphi 0, %s17
    %s20 = sphi 0, %s18
    %s21 = sphi 0, %s19
    %s33 = sphi 0, %s35
    %s36 = sphi 0, %s33
    %s37 = sphi 0, %s36
    %s53 = sphi 0, %s37
    %s57 = sphi 0, %s57
    %s59 = sphi 0, %s57
    %s60 = sphi 0, %s59
    %s74 = sphi 0, %s60
    %s78 = sphi 0, %s78
    %s80 = sphi 0, %s78
    %s81 = sphi 0, %s80
    %s95 = sphi 0, %s81
    %s103 = sphi 0, %s105
    %s106 = sphi 0, %s103
    %s107 = sphi 0, %s106
    %s123 = sphi 0, %s107
  $region4: #{cnn_multitask_forward.7} parent=0 // loop_header_branch
    %12 = sbr.rel (%p10) target = $region8
  $region5: #{cnn_multitask_forward.7} parent=0 // loop_body
    %s14 = ssub.s32 %s9, 1
    %s15 = ssub.s32 %s9, 2
    %s22 = sadd.s32 1, %s17
    %p23 = scmp.ge.s32.totalorder %s22, 1
    %s24 = scalar_select %p23, 0, %s22
    %s25 = sadd.s32 1, %s16
    %s26 = scalar_select %p23, %s25, %s16
    %p27 = scmp.ge.s32.totalorder %s26, 2
    %s28 = scalar_select %p27, 0, %s26
    %s29 = ssub.s32 %s16, %s28
    %s30 = ssub.s32 %s17, %s24
    %s31 = sor.u32 %s29, %s30
    %p32 = scmp.eq.s32.totalorder %s31, 0
    %s34 = sadd.s32 %s33, 1
    %s35 = scalar_select %p32, %s33, %s34
    %p38 = pneg %p32
    %p39 = scmp.eq.s32.totalorder %s9, 1
    %p40 = por %p38, %p39
    %p41 = scmp.ne.s32.totalorder %s33, %s36
    %p42 = scmp.eq.s32.totalorder %s9, 0
    %p43 = por %p41, %p42
    %p44 = scmp.ne.s32.totalorder %s33, %s36
    %p45 = scmp.eq.s32.totalorder %s14, 1
    %p46 = por %p44, %p45
    %p47 = scmp.ne.s32.totalorder %s36, %s37
    %p48 = scmp.eq.s32.totalorder %s14, 0
    %p49 = por %p47, %p48
    %p50 = scmp.ne.s32.totalorder %s36, %s37
    %p51 = scmp.eq.s32.totalorder %s15, 1
    %p52 = por %p50, %p51
    %p54 = scmp.ne.s32.totalorder %s37, %s53
    %p55 = scmp.eq.s32.totalorder %s15, 0
    %p56 = por %p54, %p55
    %s58 = sadd.s32 %s57, 1
    %p61 = scmp.eq.s32.totalorder %s9, 1
    %p62 = scmp.ne.s32.totalorder %s57, %s59
    %p63 = scmp.eq.s32.totalorder %s9, 0
    %p64 = por %p62, %p63
    %p65 = scmp.ne.s32.totalorder %s57, %s59
    %p66 = scmp.eq.s32.totalorder %s14, 1
    %p67 = por %p65, %p66
    %p68 = scmp.ne.s32.totalorder %s59, %s60
    %p69 = scmp.eq.s32.totalorder %s14, 0
    %p70 = por %p68, %p69
    %p71 = scmp.ne.s32.totalorder %s59, %s60
    %p72 = scmp.eq.s32.totalorder %s15, 1
    %p73 = por %p71, %p72
    %p75 = scmp.ne.s32.totalorder %s60, %s74
    %p76 = scmp.eq.s32.totalorder %s15, 0
    %p77 = por %p75, %p76
    %s79 = sadd.s32 %s78, 1
    %p82 = scmp.eq.s32.totalorder %s9, 1
    %p83 = scmp.ne.s32.totalorder %s78, %s80
    %p84 = scmp.eq.s32.totalorder %s9, 0
    %p85 = por %p83, %p84
    %p86 = scmp.ne.s32.totalorder %s78, %s80
    %p87 = scmp.eq.s32.totalorder %s14, 1
    %p88 = por %p86, %p87
    %p89 = scmp.ne.s32.totalorder %s80, %s81
    %p90 = scmp.eq.s32.totalorder %s14, 0
    %p91 = por %p89, %p90
    %p92 = scmp.ne.s32.totalorder %s80, %s81
    %p93 = scmp.eq.s32.totalorder %s15, 1
    %p94 = por %p92, %p93
    %p96 = scmp.ne.s32.totalorder %s81, %s95
    %p97 = scmp.eq.s32.totalorder %s15, 0
    %p98 = por %p96, %p97
    %s99 = ssub.s32 %s16, %s28
    %s100 = ssub.s32 %s17, %s24
    %s101 = sor.u32 %s99, %s100
    %p102 = scmp.eq.s32.totalorder %s101, 0
    %s104 = sadd.s32 %s103, 1
    %s105 = scalar_select %p102, %s103, %s104
    %p108 = pneg %p102
    %p109 = scmp.eq.s32.totalorder %s9, 1
    %p110 = por %p108, %p109
    %p111 = scmp.ne.s32.totalorder %s103, %s106
    %p112 = scmp.eq.s32.totalorder %s9, 0
    %p113 = por %p111, %p112
    %p114 = scmp.ne.s32.totalorder %s103, %s106
    %p115 = scmp.eq.s32.totalorder %s14, 1
    %p116 = por %p114, %p115
    %p117 = scmp.ne.s32.totalorder %s106, %s107
    %p118 = scmp.eq.s32.totalorder %s14, 0
    %p119 = por %p117, %p118
    %p120 = scmp.ne.s32.totalorder %s106, %s107
    %p121 = scmp.eq.s32.totalorder %s15, 1
    %p122 = por %p120, %p121
    %p124 = scmp.ne.s32.totalorder %s107, %s123
    %p125 = scmp.eq.s32.totalorder %s15, 0
    %p126 = por %p124, %p125
    %p127 = scmp.le.s32.totalorder 1, %s9
    %p128 = scmp.lt.s32.totalorder %s9, 3
    %p129 = pnand %p127, %p128
    %p130 = pneg %p129
    // Predicated region
    $region9: #{cnn_multitask_forward.7} parent=5 // pred_check
      _
    $region10: #{cnn_multitask_forward.7} parent=5 // pred_check_branch
      %132 = sbr.rel (%p129) target = $region12
    $region11: #{cnn_multitask_forward.7} parent=5 // pred_region
      %s133 = ssub.s32 %s9, 1
      // Predicated region
      $region13: #{cnn_multitask_forward.7} parent=11 // pred_check
        %p134 = pneg %p70
      $region14: #{cnn_multitask_forward.7} parent=11 // pred_check_branch
        %136 = sbr.rel (%p134) target = $region16
      $region15: #{cnn_multitask_forward.7} parent=11 // pred_region
        _
      $region16: #{cnn_multitask_forward.7} parent=11 // pred_fallthru
        _
      // Predicated region
      $region17: #{cnn_multitask_forward.7} parent=11 // pred_check
        %p137 = pneg %p91
      $region18: #{cnn_multitask_forward.7} parent=11 // pred_check_branch
        %139 = sbr.rel (%p137) target = $region20
      $region19: #{cnn_multitask_forward.7} parent=11 // pred_region
        _
      $region20: #{cnn_multitask_forward.7} parent=11 // pred_fallthru
        _
    $region12: #{cnn_multitask_forward.7} parent=5 // pred_fallthru
      _
    %p140 = scmp.lt.s32.totalorder %s9, 2
    // Predicated region
    $region21: #{cnn_multitask_forward.7} parent=5 // pred_check
      %p141 = pneg %p140
    $region22: #{cnn_multitask_forward.7} parent=5 // pred_check_branch
      %143 = sbr.rel (%p141) target = $region24
    $region23: #{cnn_multitask_forward.7} parent=5 // pred_region
      // Predicated region
      $region25: #{cnn_multitask_forward.7} parent=23 // pred_check
        %p144 = pneg %p43
      $region26: #{cnn_multitask_forward.7} parent=23 // pred_check_branch
        %146 = sbr.rel (%p144) target = $region28
      $region27: #{cnn_multitask_forward.7} parent=23 // pred_region
        %p147 = scmp.lt.s32.totalorder %s16, 1
        %s148 = scalar_select %p147, %s16, 1
        %p149 = scmp.lt.s32.totalorder %s17, 0
        %s150 = scalar_select %p149, %s17, 0
        %s151 = smul.addr %s148, 144
        %s152 = sadd.s32 %s150, %s151
        %s153 = smul.addr %s152, 4
        %s154 = scalar_lea.vmem %s0, %s153
      $region28: #{cnn_multitask_forward.7} parent=23 // pred_fallthru
        _
    $region24: #{cnn_multitask_forward.7} parent=5 // pred_fallthru
      _
    %p155 = scmp.le.s32.totalorder 1, %s9
    %p156 = scmp.lt.s32.totalorder %s9, 3
    %p157 = pnand %p155, %p156
    %p158 = pneg %p157
    // Predicated region
    $region29: #{cnn_multitask_forward.7} parent=5 // pred_check
      _
    $region30: #{cnn_multitask_forward.7} parent=5 // pred_check_branch
      %160 = sbr.rel (%p157) target = $region32
    $region31: #{cnn_multitask_forward.7} parent=5 // pred_region
      %s161 = ssub.s32 %s9, 1
      %p162 = scmp.lt.s32.totalorder %s18, 1
      %s163 = scalar_select %p162, %s18, 1
      %p164 = scmp.lt.s32.totalorder %s19, 0
      %s165 = scalar_select %p164, %s19, 0
      %s166 = smul.addr %s163, 144
      %s167 = sadd.s32 %s165, %s166
      %s168 = smul.addr %s167, 4
      %s169 = scalar_lea.vmem %s0, %s168
      %p170 = pneg %p49
      %p171 = pneg %p46
      %p172 = pneg %p70
      %p173 = pneg %p67
      %p174 = pneg %p91
      %p175 = pneg %p88
      %p176 = pneg %p119
      %p177 = pneg %p116
      %p178 = scmp.lt.s32.totalorder %s18, 1
      %s179 = scalar_select %p178, %s18, 1
      %p180 = scmp.lt.s32.totalorder %s19, 0
      %s181 = scalar_select %p180, %s19, 0
      %s182 = smul.addr %s179, 8
      %s183 = sadd.s32 %s181, %s182
      %s184 = smul.addr %s183, 4
      %s185 = scalar_lea.vmem %s3, %s184
      %p186 = scmp.lt.s32.totalorder %s18, 1
      %s187 = scalar_select %p186, %s18, 1
      %p188 = scmp.lt.s32.totalorder %s19, 0
      %s189 = scalar_select %p188, %s19, 0
      %s190 = smul.addr %s187, 144
      %s191 = sadd.s32 %s189, %s190
      %s192 = smul.addr %s191, 4
      %s193 = scalar_lea.vmem %s0, %s192
      %p194 = scmp.lt.s32.totalorder %s18, 1
      %s195 = scalar_select %p194, %s18, 1
      %p196 = scmp.lt.s32.totalorder %s19, 0
      %s197 = scalar_select %p196, %s19, 0
      %s198 = smul.addr %s195, 8
      %s199 = sadd.s32 %s197, %s198
      %s200 = smul.addr %s199, 4
      %s201 = scalar_lea.vmem %s3, %s200
      %v203 = vld [vmem:[%s1] sm:$0xff]
      %v204 = vld [vmem:[%s1 + $0x8] sm:$0xf]
      %v205 = vld [vmem:[%s1 + $0xc] sm:$0xff]
      %v206 = vld [vmem:[%s1 + $0x14] sm:$0xf]
      %v207 = vld [vmem:[%s1 + $0x18] sm:$0xff]
      %v208 = vld [vmem:[%s1 + $0x20] sm:$0xf]
      %v209 = vld [vmem:[%s1 + $0x24] sm:$0xff]
      %v210 = vld [vmem:[%s1 + $0x2c] sm:$0xf]
      %v211 = vld [vmem:[%s1 + $0x30] sm:$0xff]
      %v212 = vld [vmem:[%s1 + $0x38] sm:$0xf]
      %v213 = vld [vmem:[%s1 + $0x3c] sm:$0xff]
      %v214 = vld [vmem:[%s1 + $0x44] sm:$0xf]
      %v215 = vld [vmem:[%s1 + $0x48] sm:$0xff]
      %v216 = vld [vmem:[%s1 + $0x50] sm:$0xf]
      %v217 = vld [vmem:[%s1 + $0x54] sm:$0xff]
      %v218 = vld [vmem:[%s1 + $0x5c] sm:$0xf]
      %v219 = vld [vmem:[%s193] sm:$0xf]
      %v220 = vld [vmem:[%s193 + $0x4] sm:$0xf]
      %v221 = vld [vmem:[%s193 + $0x8] sm:$0xf]
      %v222 = vld [vmem:[%s193 + $0xc] sm:$0xf]
      %v223 = vld [vmem:[%s193 + $0x10] sm:$0xf]
      %v224 = vld [vmem:[%s193 + $0x14] sm:$0xf]
      %v225 = vld [vmem:[%s193 + $0x18] sm:$0xf]
      %v226 = vld [vmem:[%s193 + $0x1c] sm:$0xf]
      %v227 = vld [vmem:[%s193 + $0x20] sm:$0xf]
      %v228 = vld [vmem:[%s193 + $0x24] sm:$0xf]
      %v229 = vld [vmem:[%s193 + $0x28] sm:$0xf]
      %v230 = vld [vmem:[%s193 + $0x2c] sm:$0xf]
      %v231 = vld [vmem:[%s193 + $0x30] sm:$0xf]
      %v232 = vld [vmem:[%s193 + $0x34] sm:$0xf]
      %v233 = vld [vmem:[%s193 + $0x38] sm:$0xf]
      %v234 = vld [vmem:[%s193 + $0x3c] sm:$0xf]
      %v235 = vld [vmem:[%s193 + $0x40] sm:$0xf]
      %v236 = vld [vmem:[%s193 + $0x44] sm:$0xf]
      %v237 = vld [vmem:[%s193 + $0x48] sm:$0xf]
      %v238 = vld [vmem:[%s193 + $0x4c] sm:$0xf]
      %v239 = vld [vmem:[%s193 + $0x50] sm:$0xf]
      %v240 = vld [vmem:[%s193 + $0x54] sm:$0xf]
      %v241 = vld [vmem:[%s193 + $0x58] sm:$0xf]
      %v242 = vld [vmem:[%s193 + $0x5c] sm:$0xf]
      %v243 = vld [vmem:[%s193 + $0x60] sm:$0xf]
      %v244 = vld [vmem:[%s193 + $0x64] sm:$0xf]
      %v245 = vld [vmem:[%s193 + $0x68] sm:$0xf]
      %v246 = vld [vmem:[%s193 + $0x6c] sm:$0xf]
      %v247 = vld [vmem:[%s193 + $0x70] sm:$0xf]
      %v248 = vld [vmem:[%s193 + $0x74] sm:$0xf]
      %v249 = vld [vmem:[%s193 + $0x78] sm:$0xf]
      %v250 = vld [vmem:[%s193 + $0x7c] sm:$0xf]
      %v251 = vld [vmem:[%s193 + $0x80] sm:$0xf]
      %v252 = vld [vmem:[%s193 + $0x84] sm:$0xf]
      %v253 = vld [vmem:[%s193 + $0x88] sm:$0xf]
      %v254 = vld [vmem:[%s193 + $0x8c] sm:$0xf]
      %v271 = vunpack.c.l.b16 %v203
      %v272 = vunpack.c.h.b16 %v203
      %v273 = vunpack.c.l.b16 %v204
      %v274 = vunpack.c.l.b16 %v205
      %v275 = vunpack.c.h.b16 %v205
      %v276 = vunpack.c.l.b16 %v206
      %v277 = vunpack.c.l.b16 %v207
      %v278 = vunpack.c.h.b16 %v207
      %v279 = vunpack.c.l.b16 %v208
      %v280 = vunpack.c.l.b16 %v209
      %v281 = vunpack.c.h.b16 %v209
      %v282 = vunpack.c.l.b16 %v210
      %v283 = vunpack.c.l.b16 %v211
      %v284 = vunpack.c.h.b16 %v211
      %v285 = vunpack.c.l.b16 %v212
      %v286 = vunpack.c.l.b16 %v213
      %v287 = vunpack.c.h.b16 %v213
      %v288 = vunpack.c.l.b16 %v214
      %v289 = vunpack.c.l.b16 %v215
      %v290 = vunpack.c.h.b16 %v215
      %v291 = vunpack.c.l.b16 %v216
      %v292 = vunpack.c.l.b16 %v217
      %v293 = vunpack.c.h.b16 %v217
      %v294 = vunpack.c.l.b16 %v218
      %v295 = vpack.c.b16 %v274, %v271
      %v296 = vpack.c.b16 %v275, %v272
      %v297 = vpack.c.b16 %v276, %v273
      %v298 = vpack.c.b16 %v280, %v277
      %v299 = vpack.c.b16 %v281, %v278
      %v300 = vpack.c.b16 %v282, %v279
      %v301 = vpack.c.b16 %v286, %v283
      %v302 = vpack.c.b16 %v287, %v284
      %v303 = vpack.c.b16 %v288, %v285
      %v304 = vpack.c.b16 %v292, %v289
      %v305 = vpack.c.b16 %v293, %v290
      %v306 = vpack.c.b16 %v294, %v291
      %v351 = vunpack.c.l.b16 %v219
      %v352 = vunpack.c.l.b16 %v220
      %v353 = vunpack.c.l.b16 %v221
      %v354 = vunpack.c.l.b16 %v222
      %v355 = vunpack.c.l.b16 %v223
      %v356 = vunpack.c.l.b16 %v224
      %v357 = vunpack.c.l.b16 %v225
      %v358 = vunpack.c.l.b16 %v226
      %v359 = vunpack.c.l.b16 %v227
      %v360 = vunpack.c.l.b16 %v228
      %v361 = vunpack.c.l.b16 %v229
      %v362 = vunpack.c.l.b16 %v230
      %v363 = vunpack.c.l.b16 %v231
      %v364 = vunpack.c.l.b16 %v232
      %v365 = vunpack.c.l.b16 %v233
      %v366 = vunpack.c.l.b16 %v234
      %v367 = vunpack.c.l.b16 %v235
      %v368 = vunpack.c.l.b16 %v236
      %v369 = vunpack.c.l.b16 %v237
      %v370 = vunpack.c.l.b16 %v238
      %v371 = vunpack.c.l.b16 %v239
      %v372 = vunpack.c.l.b16 %v240
      %v373 = vunpack.c.l.b16 %v241
      %v374 = vunpack.c.l.b16 %v242
      %v375 = vunpack.c.l.b16 %v243
      %v376 = vunpack.c.l.b16 %v244
      %v377 = vunpack.c.l.b16 %v245
      %v378 = vunpack.c.l.b16 %v246
      %v379 = vunpack.c.l.b16 %v247
      %v380 = vunpack.c.l.b16 %v248
      %v381 = vunpack.c.l.b16 %v249
      %v382 = vunpack.c.l.b16 %v250
      %v383 = vunpack.c.l.b16 %v251
      %v384 = vunpack.c.l.b16 %v252
      %v385 = vunpack.c.l.b16 %v253
      %v386 = vunpack.c.l.b16 %v254
      %v387 = vpack.c.b16 %v352, %v351
      %v388 = vpack.c.b16 %v354, %v353
      %v389 = vpack.c.b16 %v356, %v355
      %v390 = vpack.c.b16 %v358, %v357
      %v391 = vpack.c.b16 %v360, %v359
      %v392 = vpack.c.b16 %v362, %v361
      %v393 = vpack.c.b16 %v364, %v363
      %v394 = vpack.c.b16 %v366, %v365
      %v395 = vpack.c.b16 %v368, %v367
      %v396 = vpack.c.b16 %v370, %v369
      %v397 = vpack.c.b16 %v372, %v371
      %v398 = vpack.c.b16 %v374, %v373
      %v399 = vpack.c.b16 %v376, %v375
      %v400 = vpack.c.b16 %v378, %v377
      %v401 = vpack.c.b16 %v380, %v379
      %v402 = vpack.c.b16 %v382, %v381
      %v403 = vpack.c.b16 %v384, %v383
      %v404 = vpack.c.b16 %v386, %v385
      %vm423 = vcmask 261120
      %v425 = vsel %vm423, %v297, 0
      %v428 = vsel %vm423, %v300, 0
      %v431 = vsel %vm423, %v303, 0
      %v434 = vsel %vm423, %v306, 0
      %436 = vmatprep.subr.bf16.mxu0 0
      %437 = vmatpush1.bf16.msra.mxu0 %v387
      %438 = vmatprep.subr.bf16.mxu0 0
      %439 = vmatpush1.bf16.msra.mxu0 %v388
      %440 = vmatprep.subr.bf16.mxu0 0
      %441 = vmatpush1.bf16.msra.mxu0 %v389
      %442 = vmatprep.subr.bf16.mxu0 0
      %443 = vmatpush1.bf16.msra.mxu0 %v390
      %444 = vmatprep.subr.bf16.mxu0 0
      %445 = vmatpush1.bf16.msra.mxu0 %v391
      %446 = vmatprep.subr.bf16.mxu0 0
      %447 = vmatpush1.bf16.msra.mxu0 %v392
      %448 = vmatprep.subr.bf16.mxu0 0
      %449 = vmatpush1.bf16.msra.mxu0 %v393
      %450 = vmatprep.subr.bf16.mxu0 0
      %451 = vmatpush1.bf16.msra.mxu0 %v394
      %452 = vmatprep.subr.bf16.mxu0 0
      %453 = vmatpush1.bf16.msra.mxu0 %v395
      %454 = vmatprep.subr.bf16.mxu0 0
      %455 = vmatpush1.bf16.msra.mxu0 %v396
      %456 = vmatprep.subr.bf16.mxu0 0
      %457 = vmatpush1.bf16.msra.mxu0 %v397
      %458 = vmatprep.subr.bf16.mxu0 0
      %459 = vmatpush1.bf16.msra.mxu0 %v398
      %460 = vmatprep.subr.bf16.mxu0 0
      %461 = vmatpush1.bf16.msra.mxu0 %v399
      %462 = vmatprep.subr.bf16.mxu0 0
      %463 = vmatpush1.bf16.msra.mxu0 %v400
      %464 = vmatprep.subr.bf16.mxu0 0
      %465 = vmatpush1.bf16.msra.mxu0 %v401
      %466 = vmatprep.subr.bf16.mxu0 0
      %467 = vmatpush1.bf16.msra.mxu0 %v402
      %468 = vmatprep.mubr.bf16.mxu0 %v296
      %469 = vmatmul.mubr.bf16.gmra.mrb[0].mxu0 %v295
      %v470 = vpop.f32.mrb[0].mxu0
      %v471 = vadd.f32 0.0, %v470
      %v472 = vpop.f32.mrb[0].mxu0
      %v473 = vpop.f32.mrb[0].mxu0
      %v474 = vadd.f32 0.0, %v473
      %v475 = vpop.f32.mrb[0].mxu0
      %476 = vmatprep.mubr.bf16.mxu0 %v299
      %477 = vmatmul.mubr.bf16.gmra.mrb[0].mxu0 %v298
      %v478 = vpop.f32.mrb[0].mxu0
      %v479 = vadd.f32 0.0, %v478
      %v480 = vpop.f32.mrb[0].mxu0
      %v481 = vpop.f32.mrb[0].mxu0
      %v482 = vadd.f32 0.0, %v481
      %v483 = vpop.f32.mrb[0].mxu0
      %484 = vmatprep.mubr.bf16.mxu0 %v302
      %485 = vmatmul.mubr.bf16.gmra.mrb[0].mxu0 %v301
      %v486 = vpop.f32.mrb[0].mxu0
      %v487 = vadd.f32 0.0, %v486
      %v488 = vpop.f32.mrb[0].mxu0
      %v489 = vpop.f32.mrb[0].mxu0
      %v490 = vadd.f32 0.0, %v489
      %v491 = vpop.f32.mrb[0].mxu0
      %492 = vmatprep.mubr.bf16.mxu0 %v305
      %493 = vmatmul.mubr.bf16.gmra.mrb[0].mxu0 %v304
      %v494 = vpop.f32.mrb[0].mxu0
      %v495 = vadd.f32 0.0, %v494
      %v496 = vpop.f32.mrb[0].mxu0
      %v497 = vpop.f32.mrb[0].mxu0
      %v498 = vadd.f32 0.0, %v497
      %v499 = vpop.f32.mrb[0].mxu0
      %500 = vdwg.mxu0
      %501 = vmatprep.subr.bf16.mxu0 0
      %502 = vmatpush1.bf16.msra.mxu0 %v403
      %503 = vmatprep.subr.bf16.mxu0 0
      %504 = vmatpush1.bf16.msra.mxu0 %v404
      %505 = vmatprep.subr.bf16.mxu0 0
      %506 = vmatpush1.bf16.msra.mxu0 0
      %507 = vmatprep.subr.bf16.mxu0 0
      %508 = vmatpush1.bf16.msra.mxu0 0
      %509 = vmatprep.subr.bf16.mxu0 0
      %510 = vmatpush1.bf16.msra.mxu0 0
      %511 = vmatprep.subr.bf16.mxu0 0
      %512 = vmatpush1.bf16.msra.mxu0 0
      %513 = vmatprep.subr.bf16.mxu0 0
      %514 = vmatpush1.bf16.msra.mxu0 0
      %515 = vmatprep.subr.bf16.mxu0 0
      %516 = vmatpush1.bf16.msra.mxu0 0
      %517 = vmatprep.subr.bf16.mxu0 0
      %518 = vmatpush1.bf16.msra.mxu0 0
      %519 = vmatprep.subr.bf16.mxu0 0
      %520 = vmatpush1.bf16.msra.mxu0 0
      %521 = vmatprep.subr.bf16.mxu0 0
      %522 = vmatpush1.bf16.msra.mxu0 0
      %523 = vmatprep.subr.bf16.mxu0 0
      %524 = vmatpush1.bf16.msra.mxu0 0
      %525 = vmatprep.subr.bf16.mxu0 0
      %526 = vmatpush1.bf16.msra.mxu0 0
      %527 = vmatprep.subr.bf16.mxu0 0
      %528 = vmatpush1.bf16.msra.mxu0 0
      %529 = vmatprep.subr.bf16.mxu0 0
      %530 = vmatpush1.bf16.msra.mxu0 0
      %531 = vmatprep.subr.bf16.mxu0 0
      %532 = vmatpush1.bf16.msra.mxu0 0
      %533 = vmatprep.mubr.bf16.mxu0 0
      %534 = vmatmul.mubr.bf16.gmra.mrb[0].mxu0 %v425
      %v535 = vpop.f32.mrb[0].mxu0
      %v536 = vadd.f32 %v471, %v535
      %v537 = vpop.f32.mrb[0].mxu0
      %v538 = vpop.f32.mrb[0].mxu0
      %v539 = vadd.f32 %v474, %v538
      %v540 = vpop.f32.mrb[0].mxu0
      %541 = vmatprep.mubr.bf16.mxu0 0
      %542 = vmatmul.mubr.bf16.gmra.mrb[0].mxu0 %v428
      %v543 = vpop.f32.mrb[0].mxu0
      %v544 = vadd.f32 %v479, %v543
      %v545 = vpop.f32.mrb[0].mxu0
      %v546 = vpop.f32.mrb[0].mxu0
      %v547 = vadd.f32 %v482, %v546
      %v548 = vpop.f32.mrb[0].mxu0
      %549 = vmatprep.mubr.bf16.mxu0 0
      %550 = vmatmul.mubr.bf16.gmra.mrb[0].mxu0 %v431
      %v551 = vpop.f32.mrb[0].mxu0
      %v552 = vadd.f32 %v487, %v551
      %v553 = vpop.f32.mrb[0].mxu0
      %v554 = vpop.f32.mrb[0].mxu0
      %v555 = vadd.f32 %v490, %v554
      %v556 = vpop.f32.mrb[0].mxu0
      %557 = vmatprep.mubr.bf16.mxu0 0
      %558 = vmatmul.mubr.bf16.gmra.mrb[0].mxu0 %v434
      %v559 = vpop.f32.mrb[0].mxu0
      %v560 = vadd.f32 %v495, %v559
      %v561 = vpop.f32.mrb[0].mxu0
      %v562 = vpop.f32.mrb[0].mxu0
      %v563 = vadd.f32 %v498, %v562
      %v564 = vpop.f32.mrb[0].mxu0
      %565 = vdwg.mxu0
      %s566 = scalar_lea.vmem %s193, 144
      %v567 = vld [vmem:[%s566] sm:$0xf]
      %v568 = vld [vmem:[%s566 + $0x4] sm:$0xf]
      %v569 = vld [vmem:[%s566 + $0x8] sm:$0xf]
      %v570 = vld [vmem:[%s566 + $0xc] sm:$0xf]
      %v571 = vld [vmem:[%s566 + $0x10] sm:$0xf]
      %v572 = vld [vmem:[%s566 + $0x14] sm:$0xf]
      %v573 = vld [vmem:[%s566 + $0x18] sm:$0xf]
      %v574 = vld [vmem:[%s566 + $0x1c] sm:$0xf]
      %v575 = vld [vmem:[%s566 + $0x20] sm:$0xf]
      %v576 = vld [vmem:[%s566 + $0x24] sm:$0xf]
      %v577 = vld [vmem:[%s566 + $0x28] sm:$0xf]
      %v578 = vld [vmem:[%s566 + $0x2c] sm:$0xf]
      %v579 = vld [vmem:[%s566 + $0x30] sm:$0xf]
      %v580 = vld [vmem:[%s566 + $0x34] sm:$0xf]
      %v581 = vld [vmem:[%s566 + $0x38] sm:$0xf]
      %v582 = vld [vmem:[%s566 + $0x3c] sm:$0xf]
      %v583 = vld [vmem:[%s566 + $0x40] sm:$0xf]
      %v584 = vld [vmem:[%s566 + $0x44] sm:$0xf]
      %v585 = vld [vmem:[%s566 + $0x48] sm:$0xf]
      %v586 = vld [vmem:[%s566 + $0x4c] sm:$0xf]
      %v587 = vld [vmem:[%s566 + $0x50] sm:$0xf]
      %v588 = vld [vmem:[%s566 + $0x54] sm:$0xf]
      %v589 = vld [vmem:[%s566 + $0x58] sm:$0xf]
      %v590 = vld [vmem:[%s566 + $0x5c] sm:$0xf]
      %v591 = vld [vmem:[%s566 + $0x60] sm:$0xf]
      %v592 = vld [vmem:[%s566 + $0x64] sm:$0xf]
      %v593 = vld [vmem:[%s566 + $0x68] sm:$0xf]
      %v594 = vld [vmem:[%s566 + $0x6c] sm:$0xf]
      %v595 = vld [vmem:[%s566 + $0x70] sm:$0xf]
      %v596 = vld [vmem:[%s566 + $0x74] sm:$0xf]
      %v597 = vld [vmem:[%s566 + $0x78] sm:$0xf]
      %v598 = vld [vmem:[%s566 + $0x7c] sm:$0xf]
      %v599 = vld [vmem:[%s566 + $0x80] sm:$0xf]
      %v600 = vld [vmem:[%s566 + $0x84] sm:$0xf]
      %v601 = vld [vmem:[%s566 + $0x88] sm:$0xf]
      %v602 = vld [vmem:[%s566 + $0x8c] sm:$0xf]
      %v639 = vunpack.c.l.b16 %v567
      %v640 = vunpack.c.l.b16 %v568
      %v641 = vunpack.c.l.b16 %v569
      %v642 = vunpack.c.l.b16 %v570
      %v643 = vunpack.c.l.b16 %v571
      %v644 = vunpack.c.l.b16 %v572
      %v645 = vunpack.c.l.b16 %v573
      %v646 = vunpack.c.l.b16 %v574
      %v647 = vunpack.c.l.b16 %v575
      %v648 = vunpack.c.l.b16 %v576
      %v649 = vunpack.c.l.b16 %v577
      %v650 = vunpack.c.l.b16 %v578
      %v651 = vunpack.c.l.b16 %v579
      %v652 = vunpack.c.l.b16 %v580
      %v653 = vunpack.c.l.b16 %v581
      %v654 = vunpack.c.l.b16 %v582
      %v655 = vunpack.c.l.b16 %v583
      %v656 = vunpack.c.l.b16 %v584
      %v657 = vunpack.c.l.b16 %v585
      %v658 = vunpack.c.l.b16 %v586
      %v659 = vunpack.c.l.b16 %v587
      %v660 = vunpack.c.l.b16 %v588
      %v661 = vunpack.c.l.b16 %v589
      %v662 = vunpack.c.l.b16 %v590
      %v663 = vunpack.c.l.b16 %v591
      %v664 = vunpack.c.l.b16 %v592
      %v665 = vunpack.c.l.b16 %v593
      %v666 = vunpack.c.l.b16 %v594
      %v667 = vunpack.c.l.b16 %v595
      %v668 = vunpack.c.l.b16 %v596
      %v669 = vunpack.c.l.b16 %v597
      %v670 = vunpack.c.l.b16 %v598
      %v671 = vunpack.c.l.b16 %v599
      %v672 = vunpack.c.l.b16 %v600
      %v673 = vunpack.c.l.b16 %v601
      %v674 = vunpack.c.l.b16 %v602
      %v675 = vpack.c.b16 %v640, %v639
      %v676 = vpack.c.b16 %v642, %v641
      %v677 = vpack.c.b16 %v644, %v643
      %v678 = vpack.c.b16 %v646, %v645
      %v679 = vpack.c.b16 %v648, %v647
      %v680 = vpack.c.b16 %v650, %v649
      %v681 = vpack.c.b16 %v652, %v651
      %v682 = vpack.c.b16 %v654, %v653
      %v683 = vpack.c.b16 %v656, %v655
      %v684 = vpack.c.b16 %v658, %v657
      %v685 = vpack.c.b16 %v660, %v659
      %v686 = vpack.c.b16 %v662, %v661
      %v687 = vpack.c.b16 %v664, %v663
      %v688 = vpack.c.b16 %v666, %v665
      %v689 = vpack.c.b16 %v668, %v667
      %v690 = vpack.c.b16 %v670, %v669
      %v691 = vpack.c.b16 %v672, %v671
      %v692 = vpack.c.b16 %v674, %v673
      %711 = vmatprep.subr.bf16.mxu0 0
      %712 = vmatpush1.bf16.msra.mxu0 %v675
      %713 = vmatprep.subr.bf16.mxu0 0
      %714 = vmatpush1.bf16.msra.mxu0 %v676
      %715 = vmatprep.subr.bf16.mxu0 0
      %716 = vmatpush1.bf16.msra.mxu0 %v677
      %717 = vmatprep.subr.bf16.mxu0 0
      %718 = vmatpush1.bf16.msra.mxu0 %v678
      %719 = vmatprep.subr.bf16.mxu0 0
      %720 = vmatpush1.bf16.msra.mxu0 %v679
      %721 = vmatprep.subr.bf16.mxu0 0
      %722 = vmatpush1.bf16.msra.mxu0 %v680
      %723 = vmatprep.subr.bf16.mxu0 0
      %724 = vmatpush1.bf16.msra.mxu0 %v681
      %725 = vmatprep.subr.bf16.mxu0 0
      %726 = vmatpush1.bf16.msra.mxu0 %v682
      %727 = vmatprep.subr.bf16.mxu0 0
      %728 = vmatpush1.bf16.msra.mxu0 %v683
      %729 = vmatprep.subr.bf16.mxu0 0
      %730 = vmatpush1.bf16.msra.mxu0 %v684
      %731 = vmatprep.subr.bf16.mxu0 0
      %732 = vmatpush1.bf16.msra.mxu0 %v685
      %733 = vmatprep.subr.bf16.mxu0 0
      %734 = vmatpush1.bf16.msra.mxu0 %v686
      %735 = vmatprep.subr.bf16.mxu0 0
      %736 = vmatpush1.bf16.msra.mxu0 %v687
      %737 = vmatprep.subr.bf16.mxu0 0
      %738 = vmatpush1.bf16.msra.mxu0 %v688
      %739 = vmatprep.subr.bf16.mxu0 0
      %740 = vmatpush1.bf16.msra.mxu0 %v689
      %741 = vmatprep.subr.bf16.mxu0 0
      %742 = vmatpush1.bf16.msra.mxu0 %v690
      %743 = vmatprep.mubr.bf16.mxu0 %v296
      %744 = vmatmul.mubr.bf16.gmra.mrb[0].mxu0 %v295
      %v745 = vpop.f32.mrb[0].mxu0
      %v746 = vadd.f32 0.0, %v745
      %v747 = vpop.f32.mrb[0].mxu0
      %v748 = vpop.f32.mrb[0].mxu0
      %v749 = vadd.f32 0.0, %v748
      %v750 = vpop.f32.mrb[0].mxu0
      %751 = vmatprep.mubr.bf16.mxu0 %v299
      %752 = vmatmul.mubr.bf16.gmra.mrb[0].mxu0 %v298
      %v753 = vpop.f32.mrb[0].mxu0
      %v754 = vadd.f32 0.0, %v753
      %v755 = vpop.f32.mrb[0].mxu0
      %v756 = vpop.f32.mrb[0].mxu0
      %v757 = vadd.f32 0.0, %v756
      %v758 = vpop.f32.mrb[0].mxu0
      %759 = vmatprep.mubr.bf16.mxu0 %v302
      %760 = vmatmul.mubr.bf16.gmra.mrb[0].mxu0 %v301
      %v761 = vpop.f32.mrb[0].mxu0
      %v762 = vadd.f32 0.0, %v761
      %v763 = vpop.f32.mrb[0].mxu0
      %v764 = vpop.f32.mrb[0].mxu0
      %v765 = vadd.f32 0.0, %v764
      %v766 = vpop.f32.mrb[0].mxu0
      %767 = vmatprep.mubr.bf16.mxu0 %v305
      %768 = vmatmul.mubr.bf16.gmra.mrb[0].mxu0 %v304
      %v769 = vpop.f32.mrb[0].mxu0
      %v770 = vadd.f32 0.0, %v769
      %v771 = vpop.f32.mrb[0].mxu0
      %v772 = vpop.f32.mrb[0].mxu0
      %v773 = vadd.f32 0.0, %v772
      %v774 = vpop.f32.mrb[0].mxu0
      %775 = vdwg.mxu0
      %776 = vmatprep.subr.bf16.mxu0 0
      %777 = vmatpush1.bf16.msra.mxu0 %v691
      %778 = vmatprep.subr.bf16.mxu0 0
      %779 = vmatpush1.bf16.msra.mxu0 %v692
      %780 = vmatprep.subr.bf16.mxu0 0
      %781 = vmatpush1.bf16.msra.mxu0 0
      %782 = vmatprep.subr.bf16.mxu0 0
      %783 = vmatpush1.bf16.msra.mxu0 0
      %784 = vmatprep.subr.bf16.mxu0 0
      %785 = vmatpush1.bf16.msra.mxu0 0
      %786 = vmatprep.subr.bf16.mxu0 0
      %787 = vmatpush1.bf16.msra.mxu0 0
      %788 = vmatprep.subr.bf16.mxu0 0
      %789 = vmatpush1.bf16.msra.mxu0 0
      %790 = vmatprep.subr.bf16.mxu0 0
      %791 = vmatpush1.bf16.msra.mxu0 0
      %792 = vmatprep.subr.bf16.mxu0 0
      %793 = vmatpush1.bf16.msra.mxu0 0
      %794 = vmatprep.subr.bf16.mxu0 0
      %795 = vmatpush1.bf16.msra.mxu0 0
      %796 = vmatprep.subr.bf16.mxu0 0
      %797 = vmatpush1.bf16.msra.mxu0 0
      %798 = vmatprep.subr.bf16.mxu0 0
      %799 = vmatpush1.bf16.msra.mxu0 0
      %800 = vmatprep.subr.bf16.mxu0 0
      %801 = vmatpush1.bf16.msra.mxu0 0
      %802 = vmatprep.subr.bf16.mxu0 0
      %803 = vmatpush1.bf16.msra.mxu0 0
      %804 = vmatprep.subr.bf16.mxu0 0
      %805 = vmatpush1.bf16.msra.mxu0 0
      %806 = vmatprep.subr.bf16.mxu0 0
      %807 = vmatpush1.bf16.msra.mxu0 0
      %808 = vmatprep.mubr.bf16.mxu0 0
      %809 = vmatmul.mubr.bf16.gmra.mrb[0].mxu0 %v425
      %v810 = vpop.f32.mrb[0].mxu0
      %v811 = vadd.f32 %v746, %v810
      %v812 = vpop.f32.mrb[0].mxu0
      %v813 = vpop.f32.mrb[0].mxu0
      %v814 = vadd.f32 %v749, %v813
      %v815 = vpop.f32.mrb[0].mxu0
      %816 = vmatprep.mubr.bf16.mxu0 0
      %817 = vmatmul.mubr.bf16.gmra.mrb[0].mxu0 %v428
      %v818 = vpop.f32.mrb[0].mxu0
      %v819 = vadd.f32 %v754, %v818
      %v820 = vpop.f32.mrb[0].mxu0
      %v821 = vpop.f32.mrb[0].mxu0
      %v822 = vadd.f32 %v757, %v821
      %v823 = vpop.f32.mrb[0].mxu0
      %824 = vmatprep.mubr.bf16.mxu0 0
      %825 = vmatmul.mubr.bf16.gmra.mrb[0].mxu0 %v431
      %v826 = vpop.f32.mrb[0].mxu0
      %v827 = vadd.f32 %v762, %v826
      %v828 = vpop.f32.mrb[0].mxu0
      %v829 = vpop.f32.mrb[0].mxu0
      %v830 = vadd.f32 %v765, %v829
      %v831 = vpop.f32.mrb[0].mxu0
      %832 = vmatprep.mubr.bf16.mxu0 0
      %833 = vmatmul.mubr.bf16.gmra.mrb[0].mxu0 %v434
      %v834 = vpop.f32.mrb[0].mxu0
      %v835 = vadd.f32 %v770, %v834
      %v836 = vpop.f32.mrb[0].mxu0
      %v837 = vpop.f32.mrb[0].mxu0
      %v838 = vadd.f32 %v773, %v837
      %v839 = vpop.f32.mrb[0].mxu0
      %840 = vdwg.mxu0
      %v841 = vmax.f32 %v536, %v811
      %v842 = vmax.f32 %v539, %v814
      %v843 = vmax.f32 %v544, %v819
      %v844 = vmax.f32 %v547, %v822
      %v845 = vmax.f32 %v552, %v827
      %v846 = vmax.f32 %v555, %v830
      %v847 = vmax.f32 %v560, %v835
      %v848 = vmax.f32 %v563, %v838
      %s849 = scalar_lea.vmem %s193, 288
      %v850 = vld [vmem:[%s849] sm:$0xf]
      %v851 = vld [vmem:[%s849 + $0x4] sm:$0xf]
      %v852 = vld [vmem:[%s849 + $0x8] sm:$0xf]
      %v853 = vld [vmem:[%s849 + $0xc] sm:$0xf]
      %v854 = vld [vmem:[%s849 + $0x10] sm:$0xf]
      %v855 = vld [vmem:[%s849 + $0x14] sm:$0xf]
      %v856 = vld [vmem:[%s849 + $0x18] sm:$0xf]
      %v857 = vld [vmem:[%s849 + $0x1c] sm:$0xf]
      %v858 = vld [vmem:[%s849 + $0x20] sm:$0xf]
      %v859 = vld [vmem:[%s849 + $0x24] sm:$0xf]
      %v860 = vld [vmem:[%s849 + $0x28] sm:$0xf]
      %v861 = vld [vmem:[%s849 + $0x2c] sm:$0xf]
      %v862 = vld [vmem:[%s849 + $0x30] sm:$0xf]
      %v863 = vld [vmem:[%s849 + $0x34] sm:$0xf]
      %v864 = vld [vmem:[%s849 + $0x38] sm:$0xf]
      %v865 = vld [vmem:[%s849 + $0x3c] sm:$0xf]
      %v866 = vld [vmem:[%s849 + $0x40] sm:$0xf]
      %v867 = vld [vmem:[%s849 + $0x44] sm:$0xf]
      %v868 = vld [vmem:[%s849 + $0x48] sm:$0xf]
      %v869 = vld [vmem:[%s849 + $0x4c] sm:$0xf]
      %v870 = vld [vmem:[%s849 + $0x50] sm:$0xf]
      %v871 = vld [vmem:[%s849 + $0x54] sm:$0xf]
      %v872 = vld [vmem:[%s849 + $0x58] sm:$0xf]
      %v873 = vld [vmem:[%s849 + $0x5c] sm:$0xf]
      %v874 = vld [vmem:[%s849 + $0x60] sm:$0xf]
      %v875 = vld [vmem:[%s849 + $0x64] sm:$0xf]
      %v876 = vld [vmem:[%s849 + $0x68] sm:$0xf]
      %v877 = vld [vmem:[%s849 + $0x6c] sm:$0xf]
      %v878 = vld [vmem:[%s849 + $0x70] sm:$0xf]
      %v879 = vld [vmem:[%s849 + $0x74] sm:$0xf]
      %v880 = vld [vmem:[%s849 + $0x78] sm:$0xf]
      %v881 = vld [vmem:[%s849 + $0x7c] sm:$0xf]
      %v882 = vld [vmem:[%s849 + $0x80] sm:$0xf]
      %v883 = vld [vmem:[%s849 + $0x84] sm:$0xf]
      %v884 = vld [vmem:[%s849 + $0x88] sm:$0xf]
      %v885 = vld [vmem:[%s849 + $0x8c] sm:$0xf]
      %v922 = vunpack.c.l.b16 %v850
      %v923 = vunpack.c.l.b16 %v851
      %v924 = vunpack.c.l.b16 %v852
      %v925 = vunpack.c.l.b16 %v853
      %v926 = vunpack.c.l.b16 %v854
      %v927 = vunpack.c.l.b16 %v855
      %v928 = vunpack.c.l.b16 %v856
      %v929 = vunpack.c.l.b16 %v857
      %v930 = vunpack.c.l.b16 %v858
      %v931 = vunpack.c.l.b16 %v859
      %v932 = vunpack.c.l.b16 %v860
      %v933 = vunpack.c.l.b16 %v861
      %v934 = vunpack.c.l.b16 %v862
      %v935 = vunpack.c.l.b16 %v863
      %v936 = vunpack.c.l.b16 %v864
      %v937 = vunpack.c.l.b16 %v865
      %v938 = vunpack.c.l.b16 %v866
      %v939 = vunpack.c.l.b16 %v867
      %v940 = vunpack.c.l.b16 %v868
      %v941 = vunpack.c.l.b16 %v869
      %v942 = vunpack.c.l.b16 %v870
      %v943 = vunpack.c.l.b16 %v871
      %v944 = vunpack.c.l.b16 %v872
      %v945 = vunpack.c.l.b16 %v873
      %v946 = vunpack.c.l.b16 %v874
      %v947 = vunpack.c.l.b16 %v875
      %v948 = vunpack.c.l.b16 %v876
      %v949 = vunpack.c.l.b16 %v877
      %v950 = vunpack.c.l.b16 %v878
      %v951 = vunpack.c.l.b16 %v879
      %v952 = vunpack.c.l.b16 %v880
      %v953 = vunpack.c.l.b16 %v881
      %v954 = vunpack.c.l.b16 %v882
      %v955 = vunpack.c.l.b16 %v883
      %v956 = vunpack.c.l.b16 %v884
      %v957 = vunpack.c.l.b16 %v885
      %v958 = vpack.c.b16 %v923, %v922
      %v959 = vpack.c.b16 %v925, %v924
      %v960 = vpack.c.b16 %v927, %v926
      %v961 = vpack.c.b16 %v929, %v928
      %v962 = vpack.c.b16 %v931, %v930
      %v963 = vpack.c.b16 %v933, %v932
      %v964 = vpack.c.b16 %v935, %v934
      %v965 = vpack.c.b16 %v937, %v936
      %v966 = vpack.c.b16 %v939, %v938
      %v967 = vpack.c.b16 %v941, %v940
      %v968 = vpack.c.b16 %v943, %v942
      %v969 = vpack.c.b16 %v945, %v944
      %v970 = vpack.c.b16 %v947, %v946
      %v971 = vpack.c.b16 %v949, %v948
      %v972 = vpack.c.b16 %v951, %v950
      %v973 = vpack.c.b16 %v953, %v952
      %v974 = vpack.c.b16 %v955, %v954
      %v975 = vpack.c.b16 %v957, %v956
      %994 = vmatprep.subr.bf16.mxu0 0
      %995 = vmatpush1.bf16.msra.mxu0 %v958
      %996 = vmatprep.subr.bf16.mxu0 0
      %997 = vmatpush1.bf16.msra.mxu0 %v959
      %998 = vmatprep.subr.bf16.mxu0 0
      %999 = vmatpush1.bf16.msra.mxu0 %v960
      %1000 = vmatprep.subr.bf16.mxu0 0
      %1001 = vmatpush1.bf16.msra.mxu0 %v961
      %1002 = vmatprep.subr.bf16.mxu0 0
      %1003 = vmatpush1.bf16.msra.mxu0 %v962
      %1004 = vmatprep.subr.bf16.mxu0 0
      %1005 = vmatpush1.bf16.msra.mxu0 %v963
      %1006 = vmatprep.subr.bf16.mxu0 0
      %1007 = vmatpush1.bf16.msra.mxu0 %v964
      %1008 = vmatprep.subr.bf16.mxu0 0
      %1009 = vmatpush1.bf16.msra.mxu0 %v965
      %1010 = vmatprep.subr.bf16.mxu0 0
      %1011 = vmatpush1.bf16.msra.mxu0 %v966
      %1012 = vmatprep.subr.bf16.mxu0 0
      %1013 = vmatpush1.bf16.msra.mxu0 %v967
      %1014 = vmatprep.subr.bf16.mxu0 0
      %1015 = vmatpush1.bf16.msra.mxu0 %v968
      %1016 = vmatprep.subr.bf16.mxu0 0
      %1017 = vmatpush1.bf16.msra.mxu0 %v969
      %1018 = vmatprep.subr.bf16.mxu0 0
      %1019 = vmatpush1.bf16.msra.mxu0 %v970
      %1020 = vmatprep.subr.bf16.mxu0 0
      %1021 = vmatpush1.bf16.msra.mxu0 %v971
      %1022 = vmatprep.subr.bf16.mxu0 0
      %1023 = vmatpush1.bf16.msra.mxu0 %v972
      %1024 = vmatprep.subr.bf16.mxu0 0
      %1025 = vmatpush1.bf16.msra.mxu0 %v973
      %1026 = vmatprep.mubr.bf16.mxu0 %v296
      %1027 = vmatmul.mubr.bf16.gmra.mrb[0].mxu0 %v295
      %v1028 = vpop.f32.mrb[0].mxu0
      %v1029 = vadd.f32 0.0, %v1028
      %v1030 = vpop.f32.mrb[0].mxu0
      %v1031 = vpop.f32.mrb[0].mxu0
      %v1032 = vadd.f32 0.0, %v1031
      %v1033 = vpop.f32.mrb[0].mxu0
      %1034 = vmatprep.mubr.bf16.mxu0 %v299
      %1035 = vmatmul.mubr.bf16.gmra.mrb[0].mxu0 %v298
      %v1036 = vpop.f32.mrb[0].mxu0
      %v1037 = vadd.f32 0.0, %v1036
      %v1038 = vpop.f32.mrb[0].mxu0
      %v1039 = vpop.f32.mrb[0].mxu0
      %v1040 = vadd.f32 0.0, %v1039
      %v1041 = vpop.f32.mrb[0].mxu0
      %1042 = vmatprep.mubr.bf16.mxu0 %v302
      %1043 = vmatmul.mubr.bf16.gmra.mrb[0].mxu0 %v301
      %v1044 = vpop.f32.mrb[0].mxu0
      %v1045 = vadd.f32 0.0, %v1044
      %v1046 = vpop.f32.mrb[0].mxu0
      %v1047 = vpop.f32.mrb[0].mxu0
      %v1048 = vadd.f32 0.0, %v1047
      %v1049 = vpop.f32.mrb[0].mxu0
      %1050 = vmatprep.mubr.bf16.mxu0 %v305
      %1051 = vmatmul.mubr.bf16.gmra.mrb[0].mxu0 %v304
      %v1052 = vpop.f32.mrb[0].mxu0
      %v1053 = vadd.f32 0.0, %v1052
      %v1054 = vpop.f32.mrb[0].mxu0
      %v1055 = vpop.f32.mrb[0].mxu0
      %v1056 = vadd.f32 0.0, %v1055
      %v1057 = vpop.f32.mrb[0].mxu0
      %1058 = vdwg.mxu0
      %1059 = vmatprep.subr.bf16.mxu0 0
      %1060 = vmatpush1.bf16.msra.mxu0 %v974
      %1061 = vmatprep.subr.bf16.mxu0 0
      %1062 = vmatpush1.bf16.msra.mxu0 %v975
      %1063 = vmatprep.subr.bf16.mxu0 0
      %1064 = vmatpush1.bf16.msra.mxu0 0
      %1065 = vmatprep.subr.bf16.mxu0 0
      %1066 = vmatpush1.bf16.msra.mxu0 0
      %1067 = vmatprep.subr.bf16.mxu0 0
      %1068 = vmatpush1.bf16.msra.mxu0 0
      %1069 = vmatprep.subr.bf16.mxu0 0
      %1070 = vmatpush1.bf16.msra.mxu0 0
      %1071 = vmatprep.subr.bf16.mxu0 0
      %1072 = vmatpush1.bf16.msra.mxu0 0
      %1073 = vmatprep.subr.bf16.mxu0 0
      %1074 = vmatpush1.bf16.msra.mxu0 0
      %1075 = vmatprep.subr.bf16.mxu0 0
      %1076 = vmatpush1.bf16.msra.mxu0 0
      %1077 = vmatprep.subr.bf16.mxu0 0
      %1078 = vmatpush1.bf16.msra.mxu0 0
      %1079 = vmatprep.subr.bf16.mxu0 0
      %1080 = vmatpush1.bf16.msra.mxu0 0
      %1081 = vmatprep.subr.bf16.mxu0 0
      %1082 = vmatpush1.bf16.msra.mxu0 0
      %1083 = vmatprep.subr.bf16.mxu0 0
      %1084 = vmatpush1.bf16.msra.mxu0 0
      %1085 = vmatprep.subr.bf16.mxu0 0
      %1086 = vmatpush1.bf16.msra.mxu0 0
      %1087 = vmatprep.subr.bf16.mxu0 0
      %1088 = vmatpush1.bf16.msra.mxu0 0
      %1089 = vmatprep.subr.bf16.mxu0 0
      %1090 = vmatpush1.bf16.msra.mxu0 0
      %1091 = vmatprep.mubr.bf16.mxu0 0
      %1092 = vmatmul.mubr.bf16.gmra.mrb[0].mxu0 %v425
      %v1093 = vpop.f32.mrb[0].mxu0
      %v1094 = vadd.f32 %v1029, %v1093
      %v1095 = vpop.f32.mrb[0].mxu0
      %v1096 = vpop.f32.mrb[0].mxu0
      %v1097 = vadd.f32 %v1032, %v1096
      %v1098 = vpop.f32.mrb[0].mxu0
      %1099 = vmatprep.mubr.bf16.mxu0 0
      %1100 = vmatmul.mubr.bf16.gmra.mrb[0].mxu0 %v428
      %v1101 = vpop.f32.mrb[0].mxu0
      %v1102 = vadd.f32 %v1037, %v1101
      %v1103 = vpop.f32.mrb[0].mxu0
      %v1104 = vpop.f32.mrb[0].mxu0
      %v1105 = vadd.f32 %v1040, %v1104
      %v1106 = vpop.f32.mrb[0].mxu0
      %1107 = vmatprep.mubr.bf16.mxu0 0
      %1108 = vmatmul.mubr.bf16.gmra.mrb[0].mxu0 %v431
      %v1109 = vpop.f32.mrb[0].mxu0
      %v1110 = vadd.f32 %v1045, %v1109
      %v1111 = vpop.f32.mrb[0].mxu0
      %v1112 = vpop.f32.mrb[0].mxu0
      %v1113 = vadd.f32 %v1048, %v1112
      %v1114 = vpop.f32.mrb[0].mxu0
      %1115 = vmatprep.mubr.bf16.mxu0 0
      %1116 = vmatmul.mubr.bf16.gmra.mrb[0].mxu0 %v434
      %v1117 = vpop.f32.mrb[0].mxu0
      %v1118 = vadd.f32 %v1053, %v1117
      %v1119 = vpop.f32.mrb[0].mxu0
      %v1120 = vpop.f32.mrb[0].mxu0
      %v1121 = vadd.f32 %v1056, %v1120
      %v1122 = vpop.f32.mrb[0].mxu0
      %1123 = vdwg.mxu0
      %s1124 = scalar_lea.vmem %s193, 432
      %v1125 = vld [vmem:[%s1124] sm:$0xf]
      %v1126 = vld [vmem:[%s1124 + $0x4] sm:$0xf]
      %v1127 = vld [vmem:[%s1124 + $0x8] sm:$0xf]
      %v1128 = vld [vmem:[%s1124 + $0xc] sm:$0xf]
      %v1129 = vld [vmem:[%s1124 + $0x10] sm:$0xf]
      %v1130 = vld [vmem:[%s1124 + $0x14] sm:$0xf]
      %v1131 = vld [vmem:[%s1124 + $0x18] sm:$0xf]
      %v1132 = vld [vmem:[%s1124 + $0x1c] sm:$0xf]
      %v1133 = vld [vmem:[%s1124 + $0x20] sm:$0xf]
      %v1134 = vld [vmem:[%s1124 + $0x24] sm:$0xf]
      %v1135 = vld [vmem:[%s1124 + $0x28] sm:$0xf]
      %v1136 = vld [vmem:[%s1124 + $0x2c] sm:$0xf]
      %v1137 = vld [vmem:[%s1124 + $0x30] sm:$0xf]
      %v1138 = vld [vmem:[%s1124 + $0x34] sm:$0xf]
      %v1139 = vld [vmem:[%s1124 + $0x38] sm:$0xf]
      %v1140 = vld [vmem:[%s1124 + $0x3c] sm:$0xf]
      %v1141 = vld [vmem:[%s1124 + $0x40] sm:$0xf]
      %v1142 = vld [vmem:[%s1124 + $0x44] sm:$0xf]
      %v1143 = vld [vmem:[%s1124 + $0x48] sm:$0xf]
      %v1144 = vld [vmem:[%s1124 + $0x4c] sm:$0xf]
      %v1145 = vld [vmem:[%s1124 + $0x50] sm:$0xf]
      %v1146 = vld [vmem:[%s1124 + $0x54] sm:$0xf]
      %v1147 = vld [vmem:[%s1124 + $0x58] sm:$0xf]
      %v1148 = vld [vmem:[%s1124 + $0x5c] sm:$0xf]
      %v1149 = vld [vmem:[%s1124 + $0x60] sm:$0xf]
      %v1150 = vld [vmem:[%s1124 + $0x64] sm:$0xf]
      %v1151 = vld [vmem:[%s1124 + $0x68] sm:$0xf]
      %v1152 = vld [vmem:[%s1124 + $0x6c] sm:$0xf]
      %v1153 = vld [vmem:[%s1124 + $0x70] sm:$0xf]
      %v1154 = vld [vmem:[%s1124 + $0x74] sm:$0xf]
      %v1155 = vld [vmem:[%s1124 + $0x78] sm:$0xf]
      %v1156 = vld [vmem:[%s1124 + $0x7c] sm:$0xf]
      %v1157 = vld [vmem:[%s1124 + $0x80] sm:$0xf]
      %v1158 = vld [vmem:[%s1124 + $0x84] sm:$0xf]
      %v1159 = vld [vmem:[%s1124 + $0x88] sm:$0xf]
      %v1160 = vld [vmem:[%s1124 + $0x8c] sm:$0xf]
      %v1197 = vunpack.c.l.b16 %v1125
      %v1198 = vunpack.c.l.b16 %v1126
      %v1199 = vunpack.c.l.b16 %v1127
      %v1200 = vunpack.c.l.b16 %v1128
      %v1201 = vunpack.c.l.b16 %v1129
      %v1202 = vunpack.c.l.b16 %v1130
      %v1203 = vunpack.c.l.b16 %v1131
      %v1204 = vunpack.c.l.b16 %v1132
      %v1205 = vunpack.c.l.b16 %v1133
      %v1206 = vunpack.c.l.b16 %v1134
      %v1207 = vunpack.c.l.b16 %v1135
      %v1208 = vunpack.c.l.b16 %v1136
      %v1209 = vunpack.c.l.b16 %v1137
      %v1210 = vunpack.c.l.b16 %v1138
      %v1211 = vunpack.c.l.b16 %v1139
      %v1212 = vunpack.c.l.b16 %v1140
      %v1213 = vunpack.c.l.b16 %v1141
      %v1214 = vunpack.c.l.b16 %v1142
      %v1215 = vunpack.c.l.b16 %v1143
      %v1216 = vunpack.c.l.b16 %v1144
      %v1217 = vunpack.c.l.b16 %v1145
      %v1218 = vunpack.c.l.b16 %v1146
      %v1219 = vunpack.c.l.b16 %v1147
      %v1220 = vunpack.c.l.b16 %v1148
      %v1221 = vunpack.c.l.b16 %v1149
      %v1222 = vunpack.c.l.b16 %v1150
      %v1223 = vunpack.c.l.b16 %v1151
      %v1224 = vunpack.c.l.b16 %v1152
      %v1225 = vunpack.c.l.b16 %v1153
      %v1226 = vunpack.c.l.b16 %v1154
      %v1227 = vunpack.c.l.b16 %v1155
      %v1228 = vunpack.c.l.b16 %v1156
      %v1229 = vunpack.c.l.b16 %v1157
      %v1230 = vunpack.c.l.b16 %v1158
      %v1231 = vunpack.c.l.b16 %v1159
      %v1232 = vunpack.c.l.b16 %v1160
      %v1233 = vpack.c.b16 %v1198, %v1197
      %v1234 = vpack.c.b16 %v1200, %v1199
      %v1235 = vpack.c.b16 %v1202, %v1201
      %v1236 = vpack.c.b16 %v1204, %v1203
      %v1237 = vpack.c.b16 %v1206, %v1205
      %v1238 = vpack.c.b16 %v1208, %v1207
      %v1239 = vpack.c.b16 %v1210, %v1209
      %v1240 = vpack.c.b16 %v1212, %v1211
      %v1241 = vpack.c.b16 %v1214, %v1213
      %v1242 = vpack.c.b16 %v1216, %v1215
      %v1243 = vpack.c.b16 %v1218, %v1217
      %v1244 = vpack.c.b16 %v1220, %v1219
      %v1245 = vpack.c.b16 %v1222, %v1221
      %v1246 = vpack.c.b16 %v1224, %v1223
      %v1247 = vpack.c.b16 %v1226, %v1225
      %v1248 = vpack.c.b16 %v1228, %v1227
      %v1249 = vpack.c.b16 %v1230, %v1229
      %v1250 = vpack.c.b16 %v1232, %v1231
      %1269 = vmatprep.subr.bf16.mxu0 0
      %1270 = vmatpush1.bf16.msra.mxu0 %v1233
      %1271 = vmatprep.subr.bf16.mxu0 0
      %1272 = vmatpush1.bf16.msra.mxu0 %v1234
      %1273 = vmatprep.subr.bf16.mxu0 0
      %1274 = vmatpush1.bf16.msra.mxu0 %v1235
      %1275 = vmatprep.subr.bf16.mxu0 0
      %1276 = vmatpush1.bf16.msra.mxu0 %v1236
      %1277 = vmatprep.subr.bf16.mxu0 0
      %1278 = vmatpush1.bf16.msra.mxu0 %v1237
      %1279 = vmatprep.subr.bf16.mxu0 0
      %1280 = vmatpush1.bf16.msra.mxu0 %v1238
      %1281 = vmatprep.subr.bf16.mxu0 0
      %1282 = vmatpush1.bf16.msra.mxu0 %v1239
      %1283 = vmatprep.subr.bf16.mxu0 0
      %1284 = vmatpush1.bf16.msra.mxu0 %v1240
      %1285 = vmatprep.subr.bf16.mxu0 0
      %1286 = vmatpush1.bf16.msra.mxu0 %v1241
      %1287 = vmatprep.subr.bf16.mxu0 0
      %1288 = vmatpush1.bf16.msra.mxu0 %v1242
      %1289 = vmatprep.subr.bf16.mxu0 0
      %1290 = vmatpush1.bf16.msra.mxu0 %v1243
      %1291 = vmatprep.subr.bf16.mxu0 0
      %1292 = vmatpush1.bf16.msra.mxu0 %v1244
      %1293 = vmatprep.subr.bf16.mxu0 0
      %1294 = vmatpush1.bf16.msra.mxu0 %v1245
      %1295 = vmatprep.subr.bf16.mxu0 0
      %1296 = vmatpush1.bf16.msra.mxu0 %v1246
      %1297 = vmatprep.subr.bf16.mxu0 0
      %1298 = vmatpush1.bf16.msra.mxu0 %v1247
      %1299 = vmatprep.subr.bf16.mxu0 0
      %1300 = vmatpush1.bf16.msra.mxu0 %v1248
      %1301 = vmatprep.mubr.bf16.mxu0 %v296
      %1302 = vmatmul.mubr.bf16.gmra.mrb[0].mxu0 %v295
      %v1303 = vpop.f32.mrb[0].mxu0
      %v1304 = vadd.f32 0.0, %v1303
      %v1305 = vpop.f32.mrb[0].mxu0
      %v1306 = vpop.f32.mrb[0].mxu0
      %v1307 = vadd.f32 0.0, %v1306
      %v1308 = vpop.f32.mrb[0].mxu0
      %1309 = vmatprep.mubr.bf16.mxu0 %v299
      %1310 = vmatmul.mubr.bf16.gmra.mrb[0].mxu0 %v298
      %v1311 = vpop.f32.mrb[0].mxu0
      %v1312 = vadd.f32 0.0, %v1311
      %v1313 = vpop.f32.mrb[0].mxu0
      %v1314 = vpop.f32.mrb[0].mxu0
      %v1315 = vadd.f32 0.0, %v1314
      %v1316 = vpop.f32.mrb[0].mxu0
      %1317 = vmatprep.mubr.bf16.mxu0 %v302
      %1318 = vmatmul.mubr.bf16.gmra.mrb[0].mxu0 %v301
      %v1319 = vpop.f32.mrb[0].mxu0
      %v1320 = vadd.f32 0.0, %v1319
      %v1321 = vpop.f32.mrb[0].mxu0
      %v1322 = vpop.f32.mrb[0].mxu0
      %v1323 = vadd.f32 0.0, %v1322
      %v1324 = vpop.f32.mrb[0].mxu0
      %1325 = vmatprep.mubr.bf16.mxu0 %v305
      %1326 = vmatmul.mubr.bf16.gmra.mrb[0].mxu0 %v304
      %v1327 = vpop.f32.mrb[0].mxu0
      %v1328 = vadd.f32 0.0, %v1327
      %v1329 = vpop.f32.mrb[0].mxu0
      %v1330 = vpop.f32.mrb[0].mxu0
      %v1331 = vadd.f32 0.0, %v1330
      %v1332 = vpop.f32.mrb[0].mxu0
      %1333 = vdwg.mxu0
      %1334 = vmatprep.subr.bf16.mxu0 0
      %1335 = vmatpush1.bf16.msra.mxu0 %v1249
      %1336 = vmatprep.subr.bf16.mxu0 0
      %1337 = vmatpush1.bf16.msra.mxu0 %v1250
      %1338 = vmatprep.subr.bf16.mxu0 0
      %1339 = vmatpush1.bf16.msra.mxu0 0
      %1340 = vmatprep.subr.bf16.mxu0 0
      %1341 = vmatpush1.bf16.msra.mxu0 0
      %1342 = vmatprep.subr.bf16.mxu0 0
      %1343 = vmatpush1.bf16.msra.mxu0 0
      %1344 = vmatprep.subr.bf16.mxu0 0
      %1345 = vmatpush1.bf16.msra.mxu0 0
      %1346 = vmatprep.subr.bf16.mxu0 0
      %1347 = vmatpush1.bf16.msra.mxu0 0
      %1348 = vmatprep.subr.bf16.mxu0 0
      %1349 = vmatpush1.bf16.msra.mxu0 0
      %1350 = vmatprep.subr.bf16.mxu0 0
      %1351 = vmatpush1.bf16.msra.mxu0 0
      %1352 = vmatprep.subr.bf16.mxu0 0
      %1353 = vmatpush1.bf16.msra.mxu0 0
      %1354 = vmatprep.subr.bf16.mxu0 0
      %1355 = vmatpush1.bf16.msra.mxu0 0
      %1356 = vmatprep.subr.bf16.mxu0 0
      %1357 = vmatpush1.bf16.msra.mxu0 0
      %1358 = vmatprep.subr.bf16.mxu0 0
      %1359 = vmatpush1.bf16.msra.mxu0 0
      %1360 = vmatprep.subr.bf16.mxu0 0
      %1361 = vmatpush1.bf16.msra.mxu0 0
      %1362 = vmatprep.subr.bf16.mxu0 0
      %1363 = vmatpush1.bf16.msra.mxu0 0
      %1364 = vmatprep.subr.bf16.mxu0 0
      %1365 = vmatpush1.bf16.msra.mxu0 0
      %1366 = vmatprep.mubr.bf16.mxu0 0
      %1367 = vmatmul.mubr.bf16.gmra.mrb[0].mxu0 %v425
      %v1368 = vpop.f32.mrb[0].mxu0
      %v1369 = vadd.f32 %v1304, %v1368
      %v1370 = vpop.f32.mrb[0].mxu0
      %v1371 = vpop.f32.mrb[0].mxu0
      %v1372 = vadd.f32 %v1307, %v1371
      %v1373 = vpop.f32.mrb[0].mxu0
      %1374 = vmatprep.mubr.bf16.mxu0 0
      %1375 = vmatmul.mubr.bf16.gmra.mrb[0].mxu0 %v428
      %v1376 = vpop.f32.mrb[0].mxu0
      %v1377 = vadd.f32 %v1312, %v1376
      %v1378 = vpop.f32.mrb[0].mxu0
      %v1379 = vpop.f32.mrb[0].mxu0
      %v1380 = vadd.f32 %v1315, %v1379
      %v1381 = vpop.f32.mrb[0].mxu0
      %1382 = vmatprep.mubr.bf16.mxu0 0
      %1383 = vmatmul.mubr.bf16.gmra.mrb[0].mxu0 %v431
      %v1384 = vpop.f32.mrb[0].mxu0
      %v1385 = vadd.f32 %v1320, %v1384
      %v1386 = vpop.f32.mrb[0].mxu0
      %v1387 = vpop.f32.mrb[0].mxu0
      %v1388 = vadd.f32 %v1323, %v1387
      %v1389 = vpop.f32.mrb[0].mxu0
      %1390 = vmatprep.mubr.bf16.mxu0 0
      %1391 = vmatmul.mubr.bf16.gmra.mrb[0].mxu0 %v434
      %v1392 = vpop.f32.mrb[0].mxu0
      %v1393 = vadd.f32 %v1328, %v1392
      %v1394 = vpop.f32.mrb[0].mxu0
      %v1395 = vpop.f32.mrb[0].mxu0
      %v1396 = vadd.f32 %v1331, %v1395
      %v1397 = vpop.f32.mrb[0].mxu0
      %1398 = vdwg.mxu0
      %v1399 = vmax.f32 %v1094, %v1369
      %v1400 = vmax.f32 %v1097, %v1372
      %v1401 = vmax.f32 %v1102, %v1377
      %v1402 = vmax.f32 %v1105, %v1380
      %v1403 = vmax.f32 %v1110, %v1385
      %v1404 = vmax.f32 %v1113, %v1388
      %v1405 = vmax.f32 %v1118, %v1393
      %v1406 = vmax.f32 %v1121, %v1396
      %v1407 = vmax.f32 %v841, %v1399
      %v1408 = vmax.f32 %v842, %v1400
      %v1409 = vmax.f32 %v843, %v1401
      %v1410 = vmax.f32 %v844, %v1402
      %v1411 = vmax.f32 %v845, %v1403
      %v1412 = vmax.f32 %v846, %v1404
      %v1413 = vmax.f32 %v847, %v1405
      %v1414 = vmax.f32 %v848, %v1406
      %v1415 = vld [vmem:[%s2] sm:$0xff]
      %v1416 = vld [vmem:[%s2 + $0x8] sm:$0xff]
      %v1417 = vld [vmem:[%s2 + $0x10] sm:$0xff]
      %v1418 = vld [vmem:[%s2 + $0x18] sm:$0xff]
      %v1419 = vld [vmem:[%s2 + $0x20] sm:$0xff]
      %v1420 = vld [vmem:[%s2 + $0x28] sm:$0xff]
      %v1421 = vld [vmem:[%s2 + $0x30] sm:$0xff]
      %v1422 = vld [vmem:[%s2 + $0x38] sm:$0xff]
      %1424 = vset.pattern.permute.xlu0 0
      %1425 = vperm.xlu0 %1424, %v1415
      %v1426 = vpop.permute.xlu0 %1425
      %1429 = vset.pattern.permute.xlu0 0
      %1430 = vperm.xlu0 %1429, %v1416
      %v1431 = vpop.permute.xlu0 %1430
      %1434 = vset.pattern.permute.xlu0 0
      %1435 = vperm.xlu0 %1434, %v1417
      %v1436 = vpop.permute.xlu0 %1435
      %1439 = vset.pattern.permute.xlu0 0
      %1440 = vperm.xlu0 %1439, %v1418
      %v1441 = vpop.permute.xlu0 %1440
      %1444 = vset.pattern.permute.xlu0 0
      %1445 = vperm.xlu0 %1444, %v1419
      %v1446 = vpop.permute.xlu0 %1445
      %1449 = vset.pattern.permute.xlu0 0
      %1450 = vperm.xlu0 %1449, %v1420
      %v1451 = vpop.permute.xlu0 %1450
      %1454 = vset.pattern.permute.xlu0 0
      %1455 = vperm.xlu0 %1454, %v1421
      %v1456 = vpop.permute.xlu0 %1455
      %1459 = vset.pattern.permute.xlu0 0
      %1460 = vperm.xlu0 %1459, %v1422
      %v1461 = vpop.permute.xlu0 %1460
      %v1463 = vadd.f32 %v1407, %v1426
      %v1464 = vadd.f32 %v1408, %v1431
      %v1465 = vadd.f32 %v1409, %v1436
      %v1466 = vadd.f32 %v1410, %v1441
      %v1467 = vadd.f32 %v1411, %v1446
      %v1468 = vadd.f32 %v1412, %v1451
      %v1469 = vadd.f32 %v1413, %v1456
      %v1470 = vadd.f32 %v1414, %v1461
      %v1471 = vmax.f32 %v1463, 0.0
      %v1472 = vmax.f32 %v1464, 0.0
      %v1473 = vmax.f32 %v1465, 0.0
      %v1474 = vmax.f32 %v1466, 0.0
      %v1475 = vmax.f32 %v1467, 0.0
      %v1476 = vmax.f32 %v1468, 0.0
      %v1477 = vmax.f32 %v1469, 0.0
      %v1478 = vmax.f32 %v1470, 0.0
      %v1479 = vpack.c.bf16 %v1472, %v1471
      %v1480 = vpack.c.bf16 %v1474, %v1473
      %v1481 = vpack.c.bf16 %v1476, %v1475
      %v1482 = vpack.c.bf16 %v1478, %v1477
      %v1487 = vunpack.c.l.b16 %v1479
      %v1488 = vunpack.c.h.b16 %v1479
      %v1489 = vunpack.c.l.b16 %v1480
      %v1490 = vunpack.c.h.b16 %v1480
      %v1491 = vunpack.c.l.b16 %v1481
      %v1492 = vunpack.c.h.b16 %v1481
      %v1493 = vunpack.c.l.b16 %v1482
      %v1494 = vunpack.c.h.b16 %v1482
      %v1495 = vpack.c.b16 %v1487, %v1487
      %v1496 = vpack.c.b16 %v1488, %v1488
      %v1497 = vpack.c.b16 %v1489, %v1489
      %v1498 = vpack.c.b16 %v1490, %v1490
      %v1499 = vpack.c.b16 %v1491, %v1491
      %v1500 = vpack.c.b16 %v1492, %v1492
      %v1501 = vpack.c.b16 %v1493, %v1493
      %v1502 = vpack.c.b16 %v1494, %v1494
      %vm1511 = vcmask 125952
      %1512 = vst.msk [vmem:[%s201] sm:$0xf] %vm1511, %v1495
      %1513 = vst.msk [vmem:[%s201 + $0x4] sm:$0xf] %vm1511, %v1496
      %1514 = vst.msk [vmem:[%s201 + $0x8] sm:$0xf] %vm1511, %v1497
      %1515 = vst.msk [vmem:[%s201 + $0xc] sm:$0xf] %vm1511, %v1498
      %1516 = vst.msk [vmem:[%s201 + $0x10] sm:$0xf] %vm1511, %v1499
      %1517 = vst.msk [vmem:[%s201 + $0x14] sm:$0xf] %vm1511, %v1500
      %1518 = vst.msk [vmem:[%s201 + $0x18] sm:$0xf] %vm1511, %v1501
      %1519 = vst.msk [vmem:[%s201 + $0x1c] sm:$0xf] %vm1511, %v1502
      %p1520 = scmp.lt.s32.totalorder %s18, 1
      %s1521 = scalar_select %p1520, %s18, 1
      %p1522 = scmp.lt.s32.totalorder %s19, 0
      %s1523 = scalar_select %p1522, %s19, 0
      %s1524 = smul.addr %s1521, 8
      %s1525 = sadd.s32 %s1523, %s1524
      %s1526 = smul.addr %s1525, 4
      %s1527 = scalar_lea.vmem %s3, %s1526
      // Predicated region
      $region33: #{cnn_multitask_forward.7} parent=31 // pred_check
        %p1528 = pneg %p116
      $region34: #{cnn_multitask_forward.7} parent=31 // pred_check_branch
        %1530 = sbr.rel (%p1528) target = $region36
      $region35: #{cnn_multitask_forward.7} parent=31 // pred_region
        _
      $region36: #{cnn_multitask_forward.7} parent=31 // pred_fallthru
        _
    $region32: #{cnn_multitask_forward.7} parent=5 // pred_fallthru
      _
    %p1531 = scmp.le.s32.totalorder 2, %s9
    // Predicated region
    $region37: #{cnn_multitask_forward.7} parent=5 // pred_check
      %p1532 = pneg %p1531
    $region38: #{cnn_multitask_forward.7} parent=5 // pred_check_branch
      %1534 = sbr.rel (%p1532) target = $region40
    $region39: #{cnn_multitask_forward.7} parent=5 // pred_region
      %s1535 = ssub.s32 %s9, 2
      // Predicated region
      $region41: #{cnn_multitask_forward.7} parent=39 // pred_check
        %p1536 = pneg %p122
      $region42: #{cnn_multitask_forward.7} parent=39 // pred_check_branch
        %1538 = sbr.rel (%p1536) target = $region44
      $region43: #{cnn_multitask_forward.7} parent=39 // pred_region
        %p1539 = scmp.lt.s32.totalorder %s20, 1
        %s1540 = scalar_select %p1539, %s20, 1
        %p1541 = scmp.lt.s32.totalorder %s21, 0
        %s1542 = scalar_select %p1541, %s21, 0
        %s1543 = smul.addr %s1540, 8
        %s1544 = sadd.s32 %s1542, %s1543
        %s1545 = smul.addr %s1544, 4
        %s1546 = scalar_lea.vmem %s3, %s1545
      $region44: #{cnn_multitask_forward.7} parent=39 // pred_fallthru
        _
    $region40: #{cnn_multitask_forward.7} parent=5 // pred_fallthru
      _
  $region6: #{cnn_multitask_forward.7} parent=0 // loop_footer
    %s13 = sadd.s32 1, %s9
  $region7: #{cnn_multitask_forward.7} parent=0 // loop_footer_branch
    %8 = sbr.rel target = $region3
  $region8: #{cnn_multitask_forward.7} parent=0 // loop_exit
    _

// kernel: cnn_multitask_forward.9
$region0: #{cnn_multitask_forward.9}
  #allocation0 [shape = 'u32[]', space=smem, size = 0x4, offset = 0x4, fixed_abs, tag = 'smem constant byte address 0x4 - core index']
  #allocation1 [shape = 'u32[144,128]{1,0:T(1,128)}', space=vmem, size = 0x12000, scoped, tag = 'internal scratch']
  %s0 = inlined_call_operand.vmem [shape: bf16[2,512], index: 0, kind: input, shape index: {}]
  %s1 = inlined_call_operand.vmem [shape: f32[512,256], index: 1, kind: input, shape index: {}]
  %s2 = inlined_call_operand.vmem [shape: f32[1,256], index: 2, kind: input, shape index: {}]
  %s3 = inlined_call_operand.vmem [shape: f32[256,128], index: 3, kind: input, shape index: {}]
  %s4 = inlined_call_operand.vmem [shape: f32[1,128], index: 4, kind: input, shape index: {}]
  %s5 = inlined_call_operand.vmem [shape: f32[128,64], index: 5, kind: input, shape index: {}]
  %s6 = inlined_call_operand.vmem [shape: f32[1,64], index: 6, kind: input, shape index: {}]
  %s7 = inlined_call_operand.vmem [shape: f32[64,32], index: 7, kind: input, shape index: {}]
  %s8 = inlined_call_operand.vmem [shape: f32[1,32], index: 8, kind: input, shape index: {}]
  %s9 = inlined_call_operand.vmem [shape: f32[32,2], index: 9, kind: input, shape index: {}]
  %s10 = inlined_call_operand.vmem [shape: f32[1,2], index: 10, kind: input, shape index: {}]
  %s11 = inlined_call_operand.vmem [shape: f32[256,128], index: 11, kind: input, shape index: {}]
  %s12 = inlined_call_operand.vmem [shape: f32[1,128], index: 12, kind: input, shape index: {}]
  %s13 = inlined_call_operand.vmem [shape: f32[128,5], index: 13, kind: input, shape index: {}]
  %s14 = inlined_call_operand.vmem [shape: f32[1,5], index: 14, kind: input, shape index: {}]
  %s15 = inlined_call_operand.hbm [shape: f32[2,2], index: 15, kind: output, shape index: {0}]
  %s16 = inlined_call_operand.hbm [shape: f32[2,5], index: 16, kind: output, shape index: {1}]
  %s17 = inlined_call_operand.hbm [shape: f32[2,256], index: 17, kind: output, shape index: {2}]
  %18 = xla_tuple %s15, %s16, %s17
  %s19 = sld [smem:[#allocation0]]
  $region86: #{cnn_multitask_forward.9} parent=0
    _
  %s21 = ssub.s32 1, %s19
  %s22 = scalar_select 0, %s21, %s19
  $region1: #{cnn_multitask_forward.9} parent=0
    #allocation2 [shape = 'u8[1024]{0}', space=vmem, size = 0x400, scoped, tag = 'output window, operand 0, single buffered']
    #allocation3 [shape = 's32[1]{0}', space=sflag, size = 0x4, scoped, tag = 'scoped memory for cnn_multitask_forward.9']
    #allocation4 [shape = 'u8[1024]{0}', space=vmem, size = 0x400, scoped, tag = 'output window, operand 1, single buffered']
    #allocation5 [shape = 's32[1]{0}', space=sflag, size = 0x4, scoped, tag = 'scoped memory for cnn_multitask_forward.9']
    #allocation6 [shape = 'u8[2048]{0}', space=vmem, size = 0x800, scoped, tag = 'output window, operand 2, single buffered']
    %23 = vsyncpa [#allocation3], 0
    %24 = vsyncpa [#allocation5], 0
    // Predicated region
    $region2: #{cnn_multitask_forward.9} parent=1 // pred_check
      _
    $region3: #{cnn_multitask_forward.9} parent=1 // pred_check_branch
      %26 = sbr.rel (0) target = $region5
    $region4: #{cnn_multitask_forward.9} parent=1 // pred_region
      _
    $region5: #{cnn_multitask_forward.9} parent=1 // pred_fallthru
      _
    // Predicated region
    $region6: #{cnn_multitask_forward.9} parent=1 // pred_check
      _
    $region7: #{cnn_multitask_forward.9} parent=1 // pred_check_branch
      %28 = sbr.rel (0) target = $region9
    $region8: #{cnn_multitask_forward.9} parent=1 // pred_region
      _
    $region9: #{cnn_multitask_forward.9} parent=1 // pred_fallthru
      _
    // Predicated region
    $region10: #{cnn_multitask_forward.9} parent=1 // pred_check
      _
    $region11: #{cnn_multitask_forward.9} parent=1 // pred_check_branch
      %30 = sbr.rel (0) target = $region13
    $region12: #{cnn_multitask_forward.9} parent=1 // pred_region
      _
    $region13: #{cnn_multitask_forward.9} parent=1 // pred_fallthru
      _
    // Predicated region
    $region14: #{cnn_multitask_forward.9} parent=1 // pred_check
      _
    $region15: #{cnn_multitask_forward.9} parent=1 // pred_check_branch
      %32 = sbr.rel (0) target = $region17
    $region16: #{cnn_multitask_forward.9} parent=1 // pred_region
      _
    $region17: #{cnn_multitask_forward.9} parent=1 // pred_fallthru
      _
    // Predicated region
    $region18: #{cnn_multitask_forward.9} parent=1 // pred_check
      _
    $region19: #{cnn_multitask_forward.9} parent=1 // pred_check_branch
      %34 = sbr.rel (0) target = $region21
    $region20: #{cnn_multitask_forward.9} parent=1 // pred_region
      _
    $region21: #{cnn_multitask_forward.9} parent=1 // pred_fallthru
      _
    // Predicated region
    $region22: #{cnn_multitask_forward.9} parent=1 // pred_check
      _
    $region23: #{cnn_multitask_forward.9} parent=1 // pred_check_branch
      %36 = sbr.rel (0) target = $region25
    $region24: #{cnn_multitask_forward.9} parent=1 // pred_region
      _
    $region25: #{cnn_multitask_forward.9} parent=1 // pred_fallthru
      _
    // Predicated region
    $region26: #{cnn_multitask_forward.9} parent=1 // pred_check
      _
    $region27: #{cnn_multitask_forward.9} parent=1 // pred_check_branch
      %38 = sbr.rel (0) target = $region29
    $region28: #{cnn_multitask_forward.9} parent=1 // pred_region
      _
    $region29: #{cnn_multitask_forward.9} parent=1 // pred_fallthru
      _
    // Predicated region
    $region30: #{cnn_multitask_forward.9} parent=1 // pred_check
      _
    $region31: #{cnn_multitask_forward.9} parent=1 // pred_check_branch
      %40 = sbr.rel (0) target = $region33
    $region32: #{cnn_multitask_forward.9} parent=1 // pred_region
      _
    $region33: #{cnn_multitask_forward.9} parent=1 // pred_fallthru
      _
    // Predicated region
    $region34: #{cnn_multitask_forward.9} parent=1 // pred_check
      _
    $region35: #{cnn_multitask_forward.9} parent=1 // pred_check_branch
      %42 = sbr.rel (0) target = $region37
    $region36: #{cnn_multitask_forward.9} parent=1 // pred_region
      _
    $region37: #{cnn_multitask_forward.9} parent=1 // pred_fallthru
      _
    // Predicated region
    $region38: #{cnn_multitask_forward.9} parent=1 // pred_check
      _
    $region39: #{cnn_multitask_forward.9} parent=1 // pred_check_branch
      %44 = sbr.rel (0) target = $region41
    $region40: #{cnn_multitask_forward.9} parent=1 // pred_region
      _
    $region41: #{cnn_multitask_forward.9} parent=1 // pred_fallthru
      _
    // Predicated region
    $region42: #{cnn_multitask_forward.9} parent=1 // pred_check
      _
    $region43: #{cnn_multitask_forward.9} parent=1 // pred_check_branch
      %46 = sbr.rel (0) target = $region45
    $region44: #{cnn_multitask_forward.9} parent=1 // pred_region
      _
    $region45: #{cnn_multitask_forward.9} parent=1 // pred_fallthru
      _
    // Predicated region
    $region46: #{cnn_multitask_forward.9} parent=1 // pred_check
      _
    $region47: #{cnn_multitask_forward.9} parent=1 // pred_check_branch
      %48 = sbr.rel (0) target = $region49
    $region48: #{cnn_multitask_forward.9} parent=1 // pred_region
      _
    $region49: #{cnn_multitask_forward.9} parent=1 // pred_fallthru
      _
    // Predicated region
    $region50: #{cnn_multitask_forward.9} parent=1 // pred_check
      _
    $region51: #{cnn_multitask_forward.9} parent=1 // pred_check_branch
      %50 = sbr.rel (0) target = $region53
    $region52: #{cnn_multitask_forward.9} parent=1 // pred_region
      _
    $region53: #{cnn_multitask_forward.9} parent=1 // pred_fallthru
      _
    // Predicated region
    $region54: #{cnn_multitask_forward.9} parent=1 // pred_check
      _
    $region55: #{cnn_multitask_forward.9} parent=1 // pred_check_branch
      %52 = sbr.rel (0) target = $region57
    $region56: #{cnn_multitask_forward.9} parent=1 // pred_region
      _
    $region57: #{cnn_multitask_forward.9} parent=1 // pred_fallthru
      _
    // Predicated region
    $region58: #{cnn_multitask_forward.9} parent=1 // pred_check
      _
    $region59: #{cnn_multitask_forward.9} parent=1 // pred_check_branch
      %54 = sbr.rel (0) target = $region61
    $region60: #{cnn_multitask_forward.9} parent=1 // pred_region
      _
    $region61: #{cnn_multitask_forward.9} parent=1 // pred_fallthru
      _
    %v55 = vld [vmem:[%s0] sm:$0xf]
    %v56 = vunpack.c.l.bf16 %v55
    %v57 = vld [vmem:[%s1] sm:$0xff]
    %v58 = vld [vmem:[%s1 + $0x8] sm:$0xff]
    %v59 = vld [vmem:[%s1 + $0x10] sm:$0xff]
    %v60 = vld [vmem:[%s1 + $0x18] sm:$0xff]
    %v61 = vld [vmem:[%s1 + $0x20] sm:$0xff]
    %v62 = vld [vmem:[%s1 + $0x28] sm:$0xff]
    %v63 = vld [vmem:[%s1 + $0x30] sm:$0xff]
    %v64 = vld [vmem:[%s1 + $0x38] sm:$0xff]
    %v65 = vld [vmem:[%s1 + $0x40] sm:$0xff]
    %v66 = vld [vmem:[%s1 + $0x48] sm:$0xff]
    %v67 = vld [vmem:[%s1 + $0x50] sm:$0xff]
    %v68 = vld [vmem:[%s1 + $0x58] sm:$0xff]
    %v69 = vld [vmem:[%s1 + $0x60] sm:$0xff]
    %v70 = vld [vmem:[%s1 + $0x68] sm:$0xff]
    %v71 = vld [vmem:[%s1 + $0x70] sm:$0xff]
    %v72 = vld [vmem:[%s1 + $0x78] sm:$0xff]
    %v73 = vld [vmem:[%s1 + $0x80] sm:$0xff]
    %v74 = vld [vmem:[%s1 + $0x88] sm:$0xff]
    %v75 = vld [vmem:[%s1 + $0x90] sm:$0xff]
    %v76 = vld [vmem:[%s1 + $0x98] sm:$0xff]
    %v77 = vld [vmem:[%s1 + $0xa0] sm:$0xff]
    %v78 = vld [vmem:[%s1 + $0xa8] sm:$0xff]
    %v79 = vld [vmem:[%s1 + $0xb0] sm:$0xff]
    %v80 = vld [vmem:[%s1 + $0xb8] sm:$0xff]
    %v81 = vld [vmem:[%s1 + $0xc0] sm:$0xff]
    %v82 = vld [vmem:[%s1 + $0xc8] sm:$0xff]
    %v83 = vld [vmem:[%s1 + $0xd0] sm:$0xff]
    %v84 = vld [vmem:[%s1 + $0xd8] sm:$0xff]
    %v85 = vld [vmem:[%s1 + $0xe0] sm:$0xff]
    %v86 = vld [vmem:[%s1 + $0xe8] sm:$0xff]
    %v87 = vld [vmem:[%s1 + $0xf0] sm:$0xff]
    %v88 = vld [vmem:[%s1 + $0xf8] sm:$0xff]
    %v89 = vld [vmem:[%s1 + $0x100] sm:$0xff]
    %v90 = vld [vmem:[%s1 + $0x108] sm:$0xff]
    %v91 = vld [vmem:[%s1 + $0x110] sm:$0xff]
    %v92 = vld [vmem:[%s1 + $0x118] sm:$0xff]
    %v93 = vld [vmem:[%s1 + $0x120] sm:$0xff]
    %v94 = vld [vmem:[%s1 + $0x128] sm:$0xff]
    %v95 = vld [vmem:[%s1 + $0x130] sm:$0xff]
    %v96 = vld [vmem:[%s1 + $0x138] sm:$0xff]
    %v97 = vld [vmem:[%s1 + $0x140] sm:$0xff]
    %v98 = vld [vmem:[%s1 + $0x148] sm:$0xff]
    %v99 = vld [vmem:[%s1 + $0x150] sm:$0xff]
    %v100 = vld [vmem:[%s1 + $0x158] sm:$0xff]
    %v101 = vld [vmem:[%s1 + $0x160] sm:$0xff]
    %v102 = vld [vmem:[%s1 + $0x168] sm:$0xff]
    %v103 = vld [vmem:[%s1 + $0x170] sm:$0xff]
    %v104 = vld [vmem:[%s1 + $0x178] sm:$0xff]
    %v105 = vld [vmem:[%s1 + $0x180] sm:$0xff]
    %v106 = vld [vmem:[%s1 + $0x188] sm:$0xff]
    %v107 = vld [vmem:[%s1 + $0x190] sm:$0xff]
    %v108 = vld [vmem:[%s1 + $0x198] sm:$0xff]
    %v109 = vld [vmem:[%s1 + $0x1a0] sm:$0xff]
    %v110 = vld [vmem:[%s1 + $0x1a8] sm:$0xff]
    %v111 = vld [vmem:[%s1 + $0x1b0] sm:$0xff]
    %v112 = vld [vmem:[%s1 + $0x1b8] sm:$0xff]
    %v113 = vld [vmem:[%s1 + $0x1c0] sm:$0xff]
    %v114 = vld [vmem:[%s1 + $0x1c8] sm:$0xff]
    %v115 = vld [vmem:[%s1 + $0x1d0] sm:$0xff]
    %v116 = vld [vmem:[%s1 + $0x1d8] sm:$0xff]
    %v117 = vld [vmem:[%s1 + $0x1e0] sm:$0xff]
    %v118 = vld [vmem:[%s1 + $0x1e8] sm:$0xff]
    %v119 = vld [vmem:[%s1 + $0x1f0] sm:$0xff]
    %v120 = vld [vmem:[%s1 + $0x1f8] sm:$0xff]
    %v121 = vld [vmem:[%s1 + $0x200] sm:$0xff]
    %v122 = vld [vmem:[%s1 + $0x208] sm:$0xff]
    %v123 = vld [vmem:[%s1 + $0x210] sm:$0xff]
    %v124 = vld [vmem:[%s1 + $0x218] sm:$0xff]
    %v125 = vld [vmem:[%s1 + $0x220] sm:$0xff]
    %v126 = vld [vmem:[%s1 + $0x228] sm:$0xff]
    %v127 = vld [vmem:[%s1 + $0x230] sm:$0xff]
    %v128 = vld [vmem:[%s1 + $0x238] sm:$0xff]
    %v129 = vld [vmem:[%s1 + $0x240] sm:$0xff]
    %v130 = vld [vmem:[%s1 + $0x248] sm:$0xff]
    %v131 = vld [vmem:[%s1 + $0x250] sm:$0xff]
    %v132 = vld [vmem:[%s1 + $0x258] sm:$0xff]
    %v133 = vld [vmem:[%s1 + $0x260] sm:$0xff]
    %v134 = vld [vmem:[%s1 + $0x268] sm:$0xff]
    %v135 = vld [vmem:[%s1 + $0x270] sm:$0xff]
    %v136 = vld [vmem:[%s1 + $0x278] sm:$0xff]
    %v137 = vld [vmem:[%s1 + $0x280] sm:$0xff]
    %v138 = vld [vmem:[%s1 + $0x288] sm:$0xff]
    %v139 = vld [vmem:[%s1 + $0x290] sm:$0xff]
    %v140 = vld [vmem:[%s1 + $0x298] sm:$0xff]
    %v141 = vld [vmem:[%s1 + $0x2a0] sm:$0xff]
    %v142 = vld [vmem:[%s1 + $0x2a8] sm:$0xff]
    %v143 = vld [vmem:[%s1 + $0x2b0] sm:$0xff]
    %v144 = vld [vmem:[%s1 + $0x2b8] sm:$0xff]
    %v145 = vld [vmem:[%s1 + $0x2c0] sm:$0xff]
    %v146 = vld [vmem:[%s1 + $0x2c8] sm:$0xff]
    %v147 = vld [vmem:[%s1 + $0x2d0] sm:$0xff]
    %v148 = vld [vmem:[%s1 + $0x2d8] sm:$0xff]
    %v149 = vld [vmem:[%s1 + $0x2e0] sm:$0xff]
    %v150 = vld [vmem:[%s1 + $0x2e8] sm:$0xff]
    %v151 = vld [vmem:[%s1 + $0x2f0] sm:$0xff]
    %v152 = vld [vmem:[%s1 + $0x2f8] sm:$0xff]
    %v153 = vld [vmem:[%s1 + $0x300] sm:$0xff]
    %v154 = vld [vmem:[%s1 + $0x308] sm:$0xff]
    %v155 = vld [vmem:[%s1 + $0x310] sm:$0xff]
    %v156 = vld [vmem:[%s1 + $0x318] sm:$0xff]
    %v157 = vld [vmem:[%s1 + $0x320] sm:$0xff]
    %v158 = vld [vmem:[%s1 + $0x328] sm:$0xff]
    %v159 = vld [vmem:[%s1 + $0x330] sm:$0xff]
    %v160 = vld [vmem:[%s1 + $0x338] sm:$0xff]
    %v161 = vld [vmem:[%s1 + $0x340] sm:$0xff]
    %v162 = vld [vmem:[%s1 + $0x348] sm:$0xff]
    %v163 = vld [vmem:[%s1 + $0x350] sm:$0xff]
    %v164 = vld [vmem:[%s1 + $0x358] sm:$0xff]
    %v165 = vld [vmem:[%s1 + $0x360] sm:$0xff]
    %v166 = vld [vmem:[%s1 + $0x368] sm:$0xff]
    %v167 = vld [vmem:[%s1 + $0x370] sm:$0xff]
    %v168 = vld [vmem:[%s1 + $0x378] sm:$0xff]
    %v169 = vld [vmem:[%s1 + $0x380] sm:$0xff]
    %v170 = vld [vmem:[%s1 + $0x388] sm:$0xff]
    %v171 = vld [vmem:[%s1 + $0x390] sm:$0xff]
    %v172 = vld [vmem:[%s1 + $0x398] sm:$0xff]
    %v173 = vld [vmem:[%s1 + $0x3a0] sm:$0xff]
    %v174 = vld [vmem:[%s1 + $0x3a8] sm:$0xff]
    %v175 = vld [vmem:[%s1 + $0x3b0] sm:$0xff]
    %v176 = vld [vmem:[%s1 + $0x3b8] sm:$0xff]
    %v177 = vld [vmem:[%s1 + $0x3c0] sm:$0xff]
    %v178 = vld [vmem:[%s1 + $0x3c8] sm:$0xff]
    %v179 = vld [vmem:[%s1 + $0x3d0] sm:$0xff]
    %v180 = vld [vmem:[%s1 + $0x3d8] sm:$0xff]
    %v181 = vld [vmem:[%s1 + $0x3e0] sm:$0xff]
    %v182 = vld [vmem:[%s1 + $0x3e8] sm:$0xff]
    %v183 = vld [vmem:[%s1 + $0x3f0] sm:$0xff]
    %v184 = vld [vmem:[%s1 + $0x3f8] sm:$0xff]
    %v185 = vld [vmem:[%s2] sm:$0x3]
    %v187 = vlaneseq
    %v188 = vshrl.u32 %v187, 7
    %v189 = vsub.s32 0, %v188
    %v190 = vrot.slane %v185, %v189
    %v191 = vlaneseq
    %v192 = vshrl.u32 %v191, 7
    %v193 = vsub.s32 1, %v192
    %v194 = vrot.slane %v185, %v193
    %v198 = vcombine.high %v56, %v56
    %v200 = vunpack.c.l.s4 1983009808
    %v201 = vunpack.c.0.s8 %v200
    %v202 = vlaneseq
    %v203 = vshrl.u32 %v202, 7
    %v204 = vsub.s32 %v201, %v203
    %v205 = vrot.slane %v56, %v204
    %v207 = vunpack.c.l.s4 1983009808
    %v208 = vunpack.c.0.s8 %v207
    %v209 = vlaneseq
    %v210 = vshrl.u32 %v209, 7
    %v211 = vsub.s32 %v208, %v210
    %v212 = vrot.slane %v198, %v211
    %v213 = vcombine.high %v205, %v205
    %v214 = vcombine.high %v212, %v212
    %219 = vmatprep.subr.mxu0 %v58
    %220 = vmatpush1.msra.mxu0 %v57
    %221 = vmatprep.subr.mxu0 %v60
    %222 = vmatpush1.msra.mxu0 %v59
    %223 = vmatprep.subr.mxu0 %v62
    %224 = vmatpush1.msra.mxu0 %v61
    %225 = vmatprep.subr.mxu0 %v64
    %226 = vmatpush1.msra.mxu0 %v63
    %227 = vmatprep.subr.mxu0 %v66
    %228 = vmatpush1.msra.mxu0 %v65
    %229 = vmatprep.subr.mxu0 %v68
    %230 = vmatpush1.msra.mxu0 %v67
    %231 = vmatprep.subr.mxu0 %v70
    %232 = vmatpush1.msra.mxu0 %v69
    %233 = vmatprep.subr.mxu0 %v72
    %234 = vmatpush1.msra.mxu0 %v71
    %235 = vmatprep.subr.mxu0 %v74
    %236 = vmatpush1.msra.mxu0 %v73
    %237 = vmatprep.subr.mxu0 %v76
    %238 = vmatpush1.msra.mxu0 %v75
    %239 = vmatprep.subr.mxu0 %v78
    %240 = vmatpush1.msra.mxu0 %v77
    %241 = vmatprep.subr.mxu0 %v80
    %242 = vmatpush1.msra.mxu0 %v79
    %243 = vmatprep.subr.mxu0 %v82
    %244 = vmatpush1.msra.mxu0 %v81
    %245 = vmatprep.subr.mxu0 %v84
    %246 = vmatpush1.msra.mxu0 %v83
    %247 = vmatprep.subr.mxu0 %v86
    %248 = vmatpush1.msra.mxu0 %v85
    %249 = vmatprep.subr.mxu0 %v88
    %250 = vmatpush1.msra.mxu0 %v87
    %251 = vmatprep.subr.mxu0 %v90
    %252 = vmatpush1.msra.mxu0 %v89
    %253 = vmatprep.subr.mxu0 %v92
    %254 = vmatpush1.msra.mxu0 %v91
    %255 = vmatprep.subr.mxu0 %v94
    %256 = vmatpush1.msra.mxu0 %v93
    %257 = vmatprep.subr.mxu0 %v96
    %258 = vmatpush1.msra.mxu0 %v95
    %259 = vmatprep.subr.mxu0 %v98
    %260 = vmatpush1.msra.mxu0 %v97
    %261 = vmatprep.subr.mxu0 %v100
    %262 = vmatpush1.msra.mxu0 %v99
    %263 = vmatprep.subr.mxu0 %v102
    %264 = vmatpush1.msra.mxu0 %v101
    %265 = vmatprep.subr.mxu0 %v104
    %266 = vmatpush1.msra.mxu0 %v103
    %267 = vmatprep.subr.mxu0 %v106
    %268 = vmatpush1.msra.mxu0 %v105
    %269 = vmatprep.subr.mxu0 %v108
    %270 = vmatpush1.msra.mxu0 %v107
    %271 = vmatprep.subr.mxu0 %v110
    %272 = vmatpush1.msra.mxu0 %v109
    %273 = vmatprep.subr.mxu0 %v112
    %274 = vmatpush1.msra.mxu0 %v111
    %275 = vmatprep.subr.mxu0 %v114
    %276 = vmatpush1.msra.mxu0 %v113
    %277 = vmatprep.subr.mxu0 %v116
    %278 = vmatpush1.msra.mxu0 %v115
    %279 = vmatprep.subr.mxu0 %v118
    %280 = vmatpush1.msra.mxu0 %v117
    %281 = vmatprep.subr.mxu0 %v120
    %282 = vmatpush1.msra.mxu0 %v119
    %283 = vmatprep.mubr.f32.mxu0 %v213
    %284 = vmatmul.mubr.f32.gmra.mrb[0].mxu0 %v205
    %v285 = vpop.f32.mrb[0].mxu0
    %v286 = vadd.f32 %v190, %v285
    %v287 = vpop.f32.mrb[0].mxu0
    %v288 = vadd.f32 %v194, %v287
    %289 = vdwg.mxu0
    %290 = vmatprep.subr.mxu0 %v122
    %291 = vmatpush1.msra.mxu0 %v121
    %292 = vmatprep.subr.mxu0 %v124
    %293 = vmatpush1.msra.mxu0 %v123
    %294 = vmatprep.subr.mxu0 %v126
    %295 = vmatpush1.msra.mxu0 %v125
    %296 = vmatprep.subr.mxu0 %v128
    %297 = vmatpush1.msra.mxu0 %v127
    %298 = vmatprep.subr.mxu0 %v130
    %299 = vmatpush1.msra.mxu0 %v129
    %300 = vmatprep.subr.mxu0 %v132
    %301 = vmatpush1.msra.mxu0 %v131
    %302 = vmatprep.subr.mxu0 %v134
    %303 = vmatpush1.msra.mxu0 %v133
    %304 = vmatprep.subr.mxu0 %v136
    %305 = vmatpush1.msra.mxu0 %v135
    %306 = vmatprep.subr.mxu0 %v138
    %307 = vmatpush1.msra.mxu0 %v137
    %308 = vmatprep.subr.mxu0 %v140
    %309 = vmatpush1.msra.mxu0 %v139
    %310 = vmatprep.subr.mxu0 %v142
    %311 = vmatpush1.msra.mxu0 %v141
    %312 = vmatprep.subr.mxu0 %v144
    %313 = vmatpush1.msra.mxu0 %v143
    %314 = vmatprep.subr.mxu0 %v146
    %315 = vmatpush1.msra.mxu0 %v145
    %316 = vmatprep.subr.mxu0 %v148
    %317 = vmatpush1.msra.mxu0 %v147
    %318 = vmatprep.subr.mxu0 %v150
    %319 = vmatpush1.msra.mxu0 %v149
    %320 = vmatprep.subr.mxu0 %v152
    %321 = vmatpush1.msra.mxu0 %v151
    %322 = vmatprep.subr.mxu0 %v154
    %323 = vmatpush1.msra.mxu0 %v153
    %324 = vmatprep.subr.mxu0 %v156
    %325 = vmatpush1.msra.mxu0 %v155
    %326 = vmatprep.subr.mxu0 %v158
    %327 = vmatpush1.msra.mxu0 %v157
    %328 = vmatprep.subr.mxu0 %v160
    %329 = vmatpush1.msra.mxu0 %v159
    %330 = vmatprep.subr.mxu0 %v162
    %331 = vmatpush1.msra.mxu0 %v161
    %332 = vmatprep.subr.mxu0 %v164
    %333 = vmatpush1.msra.mxu0 %v163
    %334 = vmatprep.subr.mxu0 %v166
    %335 = vmatpush1.msra.mxu0 %v165
    %336 = vmatprep.subr.mxu0 %v168
    %337 = vmatpush1.msra.mxu0 %v167
    %338 = vmatprep.subr.mxu0 %v170
    %339 = vmatpush1.msra.mxu0 %v169
    %340 = vmatprep.subr.mxu0 %v172
    %341 = vmatpush1.msra.mxu0 %v171
    %342 = vmatprep.subr.mxu0 %v174
    %343 = vmatpush1.msra.mxu0 %v173
    %344 = vmatprep.subr.mxu0 %v176
    %345 = vmatpush1.msra.mxu0 %v175
    %346 = vmatprep.subr.mxu0 %v178
    %347 = vmatpush1.msra.mxu0 %v177
    %348 = vmatprep.subr.mxu0 %v180
    %349 = vmatpush1.msra.mxu0 %v179
    %350 = vmatprep.subr.mxu0 %v182
    %351 = vmatpush1.msra.mxu0 %v181
    %352 = vmatprep.subr.mxu0 %v184
    %353 = vmatpush1.msra.mxu0 %v183
    %354 = vmatprep.mubr.f32.mxu0 %v214
    %355 = vmatmul.mubr.f32.gmra.mrb[0].mxu0 %v212
    %v356 = vpop.f32.mrb[0].mxu0
    %v357 = vadd.f32 %v286, %v356
    %v358 = vpop.f32.mrb[0].mxu0
    %v359 = vadd.f32 %v288, %v358
    %360 = vdwg.mxu0
    %v361 = vmax.f32 %v357, 0.0
    %v362 = vmax.f32 %v359, 0.0
    %v365 = vcombine.low %v361, %v362
    %v367 = vunpack.c.l.s4 1983009808
    %v368 = vunpack.c.0.s8 %v367
    %v369 = vlaneseq
    %v370 = vshrl.u32 %v369, 7
    %v371 = vsub.s32 %v368, %v370
    %v372 = vrot.slane %v365, %v371
    %374 = vst [vmem:[#allocation6] sm:$0xf] %v372
    %v375 = vld [vmem:[%s3] sm:$0xff]
    %v376 = vld [vmem:[%s3 + $0x8] sm:$0xff]
    %v377 = vld [vmem:[%s3 + $0x10] sm:$0xff]
    %v378 = vld [vmem:[%s3 + $0x18] sm:$0xff]
    %v379 = vld [vmem:[%s3 + $0x20] sm:$0xff]
    %v380 = vld [vmem:[%s3 + $0x28] sm:$0xff]
    %v381 = vld [vmem:[%s3 + $0x30] sm:$0xff]
    %v382 = vld [vmem:[%s3 + $0x38] sm:$0xff]
    %v383 = vld [vmem:[%s3 + $0x40] sm:$0xff]
    %v384 = vld [vmem:[%s3 + $0x48] sm:$0xff]
    %v385 = vld [vmem:[%s3 + $0x50] sm:$0xff]
    %v386 = vld [vmem:[%s3 + $0x58] sm:$0xff]
    %v387 = vld [vmem:[%s3 + $0x60] sm:$0xff]
    %v388 = vld [vmem:[%s3 + $0x68] sm:$0xff]
    %v389 = vld [vmem:[%s3 + $0x70] sm:$0xff]
    %v390 = vld [vmem:[%s3 + $0x78] sm:$0xff]
    %v391 = vld [vmem:[%s3 + $0x80] sm:$0xff]
    %v392 = vld [vmem:[%s3 + $0x88] sm:$0xff]
    %v393 = vld [vmem:[%s3 + $0x90] sm:$0xff]
    %v394 = vld [vmem:[%s3 + $0x98] sm:$0xff]
    %v395 = vld [vmem:[%s3 + $0xa0] sm:$0xff]
    %v396 = vld [vmem:[%s3 + $0xa8] sm:$0xff]
    %v397 = vld [vmem:[%s3 + $0xb0] sm:$0xff]
    %v398 = vld [vmem:[%s3 + $0xb8] sm:$0xff]
    %v399 = vld [vmem:[%s3 + $0xc0] sm:$0xff]
    %v400 = vld [vmem:[%s3 + $0xc8] sm:$0xff]
    %v401 = vld [vmem:[%s3 + $0xd0] sm:$0xff]
    %v402 = vld [vmem:[%s3 + $0xd8] sm:$0xff]
    %v403 = vld [vmem:[%s3 + $0xe0] sm:$0xff]
    %v404 = vld [vmem:[%s3 + $0xe8] sm:$0xff]
    %v405 = vld [vmem:[%s3 + $0xf0] sm:$0xff]
    %v406 = vld [vmem:[%s3 + $0xf8] sm:$0xff]
    %v407 = vld [vmem:[%s4] sm:$0x1]
    %v409 = vlaneseq
    %v410 = vshrl.u32 %v409, 7
    %v411 = vsub.s32 0, %v410
    %v412 = vrot.slane %v407, %v411
    %414 = vmatprep.subr.mxu0 0.0
    %415 = vmatpush1.msra.mxu0 %v375
    %416 = vmatprep.subr.mxu0 0.0
    %417 = vmatpush1.msra.mxu0 %v376
    %418 = vmatprep.subr.mxu0 0.0
    %419 = vmatpush1.msra.mxu0 %v377
    %420 = vmatprep.subr.mxu0 0.0
    %421 = vmatpush1.msra.mxu0 %v378
    %422 = vmatprep.subr.mxu0 0.0
    %423 = vmatpush1.msra.mxu0 %v379
    %424 = vmatprep.subr.mxu0 0.0
    %425 = vmatpush1.msra.mxu0 %v380
    %426 = vmatprep.subr.mxu0 0.0
    %427 = vmatpush1.msra.mxu0 %v381
    %428 = vmatprep.subr.mxu0 0.0
    %429 = vmatpush1.msra.mxu0 %v382
    %430 = vmatprep.subr.mxu0 0.0
    %431 = vmatpush1.msra.mxu0 %v383
    %432 = vmatprep.subr.mxu0 0.0
    %433 = vmatpush1.msra.mxu0 %v384
    %434 = vmatprep.subr.mxu0 0.0
    %435 = vmatpush1.msra.mxu0 %v385
    %436 = vmatprep.subr.mxu0 0.0
    %437 = vmatpush1.msra.mxu0 %v386
    %438 = vmatprep.subr.mxu0 0.0
    %439 = vmatpush1.msra.mxu0 %v387
    %440 = vmatprep.subr.mxu0 0.0
    %441 = vmatpush1.msra.mxu0 %v388
    %442 = vmatprep.subr.mxu0 0.0
    %443 = vmatpush1.msra.mxu0 %v389
    %444 = vmatprep.subr.mxu0 0.0
    %445 = vmatpush1.msra.mxu0 %v390
    %446 = vmatprep.subr.mxu0 0.0
    %447 = vmatpush1.msra.mxu0 %v391
    %448 = vmatprep.subr.mxu0 0.0
    %449 = vmatpush1.msra.mxu0 %v392
    %450 = vmatprep.subr.mxu0 0.0
    %451 = vmatpush1.msra.mxu0 %v393
    %452 = vmatprep.subr.mxu0 0.0
    %453 = vmatpush1.msra.mxu0 %v394
    %454 = vmatprep.subr.mxu0 0.0
    %455 = vmatpush1.msra.mxu0 %v395
    %456 = vmatprep.subr.mxu0 0.0
    %457 = vmatpush1.msra.mxu0 %v396
    %458 = vmatprep.subr.mxu0 0.0
    %459 = vmatpush1.msra.mxu0 %v397
    %460 = vmatprep.subr.mxu0 0.0
    %461 = vmatpush1.msra.mxu0 %v398
    %462 = vmatprep.subr.mxu0 0.0
    %463 = vmatpush1.msra.mxu0 %v399
    %464 = vmatprep.subr.mxu0 0.0
    %465 = vmatpush1.msra.mxu0 %v400
    %466 = vmatprep.subr.mxu0 0.0
    %467 = vmatpush1.msra.mxu0 %v401
    %468 = vmatprep.subr.mxu0 0.0
    %469 = vmatpush1.msra.mxu0 %v402
    %470 = vmatprep.subr.mxu0 0.0
    %471 = vmatpush1.msra.mxu0 %v403
    %472 = vmatprep.subr.mxu0 0.0
    %473 = vmatpush1.msra.mxu0 %v404
    %474 = vmatprep.subr.mxu0 0.0
    %475 = vmatpush1.msra.mxu0 %v405
    %476 = vmatprep.subr.mxu0 0.0
    %477 = vmatpush1.msra.mxu0 %v406
    %478 = vmatprep.mubr.f32.mxu0 %v362
    %479 = vmatmul.mubr.f32.gmra.mrb[0].mxu0 %v361
    %v480 = vpop.f32.mrb[0].mxu0
    %v481 = vadd.f32 %v412, %v480
    %v482 = vpop.f32.mrb[0].mxu0
    %483 = vdwg.mxu0
    %v484 = vmax.f32 %v481, 0.0
    %v485 = vld [vmem:[%s5] sm:$0xff]
    %v486 = vld [vmem:[%s5 + $0x8] sm:$0xff]
    %v487 = vld [vmem:[%s5 + $0x10] sm:$0xff]
    %v488 = vld [vmem:[%s5 + $0x18] sm:$0xff]
    %v489 = vld [vmem:[%s5 + $0x20] sm:$0xff]
    %v490 = vld [vmem:[%s5 + $0x28] sm:$0xff]
    %v491 = vld [vmem:[%s5 + $0x30] sm:$0xff]
    %v492 = vld [vmem:[%s5 + $0x38] sm:$0xff]
    %v493 = vld [vmem:[%s5 + $0x40] sm:$0xff]
    %v494 = vld [vmem:[%s5 + $0x48] sm:$0xff]
    %v495 = vld [vmem:[%s5 + $0x50] sm:$0xff]
    %v496 = vld [vmem:[%s5 + $0x58] sm:$0xff]
    %v497 = vld [vmem:[%s5 + $0x60] sm:$0xff]
    %v498 = vld [vmem:[%s5 + $0x68] sm:$0xff]
    %v499 = vld [vmem:[%s5 + $0x70] sm:$0xff]
    %v500 = vld [vmem:[%s5 + $0x78] sm:$0xff]
    %v501 = vld [vmem:[%s6] sm:$0x1]
    %v503 = vlaneseq
    %v504 = vshrl.u32 %v503, 7
    %v505 = vsub.s32 0, %v504
    %v506 = vrot.slane %v501, %v505
    %508 = vmatprep.subr.mxu0 0.0
    %509 = vmatpush1.msra.mxu0 %v485
    %510 = vmatprep.subr.mxu0 0.0
    %511 = vmatpush1.msra.mxu0 %v486
    %512 = vmatprep.subr.mxu0 0.0
    %513 = vmatpush1.msra.mxu0 %v487
    %514 = vmatprep.subr.mxu0 0.0
    %515 = vmatpush1.msra.mxu0 %v488
    %516 = vmatprep.subr.mxu0 0.0
    %517 = vmatpush1.msra.mxu0 %v489
    %518 = vmatprep.subr.mxu0 0.0
    %519 = vmatpush1.msra.mxu0 %v490
    %520 = vmatprep.subr.mxu0 0.0
    %521 = vmatpush1.msra.mxu0 %v491
    %522 = vmatprep.subr.mxu0 0.0
    %523 = vmatpush1.msra.mxu0 %v492
    %524 = vmatprep.subr.mxu0 0.0
    %525 = vmatpush1.msra.mxu0 %v493
    %526 = vmatprep.subr.mxu0 0.0
    %527 = vmatpush1.msra.mxu0 %v494
    %528 = vmatprep.subr.mxu0 0.0
    %529 = vmatpush1.msra.mxu0 %v495
    %530 = vmatprep.subr.mxu0 0.0
    %531 = vmatpush1.msra.mxu0 %v496
    %532 = vmatprep.subr.mxu0 0.0
    %533 = vmatpush1.msra.mxu0 %v497
    %534 = vmatprep.subr.mxu0 0.0
    %535 = vmatpush1.msra.mxu0 %v498
    %536 = vmatprep.subr.mxu0 0.0
    %537 = vmatpush1.msra.mxu0 %v499
    %538 = vmatprep.subr.mxu0 0.0
    %539 = vmatpush1.msra.mxu0 %v500
    %540 = vmatprep.subr.mxu0 0.0
    %541 = vmatpush1.msra.mxu0 0.0
    %542 = vmatprep.subr.mxu0 0.0
    %543 = vmatpush1.msra.mxu0 0.0
    %544 = vmatprep.subr.mxu0 0.0
    %545 = vmatpush1.msra.mxu0 0.0
    %546 = vmatprep.subr.mxu0 0.0
    %547 = vmatpush1.msra.mxu0 0.0
    %548 = vmatprep.subr.mxu0 0.0
    %549 = vmatpush1.msra.mxu0 0.0
    %550 = vmatprep.subr.mxu0 0.0
    %551 = vmatpush1.msra.mxu0 0.0
    %552 = vmatprep.subr.mxu0 0.0
    %553 = vmatpush1.msra.mxu0 0.0
    %554 = vmatprep.subr.mxu0 0.0
    %555 = vmatpush1.msra.mxu0 0.0
    %556 = vmatprep.subr.mxu0 0.0
    %557 = vmatpush1.msra.mxu0 0.0
    %558 = vmatprep.subr.mxu0 0.0
    %559 = vmatpush1.msra.mxu0 0.0
    %560 = vmatprep.subr.mxu0 0.0
    %561 = vmatpush1.msra.mxu0 0.0
    %562 = vmatprep.subr.mxu0 0.0
    %563 = vmatpush1.msra.mxu0 0.0
    %564 = vmatprep.subr.mxu0 0.0
    %565 = vmatpush1.msra.mxu0 0.0
    %566 = vmatprep.subr.mxu0 0.0
    %567 = vmatpush1.msra.mxu0 0.0
    %568 = vmatprep.subr.mxu0 0.0
    %569 = vmatpush1.msra.mxu0 0.0
    %570 = vmatprep.subr.mxu0 0.0
    %571 = vmatpush1.msra.mxu0 0.0
    %572 = vmatprep.mubr.f32.mxu0 0.0
    %573 = vmatmul.mubr.f32.gmra.mrb[0].mxu0 %v484
    %v574 = vpop.f32.mrb[0].mxu0
    %v575 = vadd.f32 %v506, %v574
    %v576 = vpop.f32.mrb[0].mxu0
    %577 = vdwg.mxu0
    %v578 = vmax.f32 %v575, 0.0
    %v579 = vld [vmem:[%s7] sm:$0xff]
    %v580 = vld [vmem:[%s7 + $0x8] sm:$0xff]
    %v581 = vld [vmem:[%s7 + $0x10] sm:$0xff]
    %v582 = vld [vmem:[%s7 + $0x18] sm:$0xff]
    %v583 = vld [vmem:[%s7 + $0x20] sm:$0xff]
    %v584 = vld [vmem:[%s7 + $0x28] sm:$0xff]
    %v585 = vld [vmem:[%s7 + $0x30] sm:$0xff]
    %v586 = vld [vmem:[%s7 + $0x38] sm:$0xff]
    %v587 = vld [vmem:[%s8] sm:$0x1]
    %v589 = vlaneseq
    %v590 = vshrl.u32 %v589, 7
    %v591 = vsub.s32 0, %v590
    %v592 = vrot.slane %v587, %v591
    %vm594 = vcmask 523264
    %v596 = vsel %vm594, %v578, 0
    %598 = vmatprep.subr.mxu0 0.0
    %599 = vmatpush1.msra.mxu0 %v579
    %600 = vmatprep.subr.mxu0 0.0
    %601 = vmatpush1.msra.mxu0 %v580
    %602 = vmatprep.subr.mxu0 0.0
    %603 = vmatpush1.msra.mxu0 %v581
    %604 = vmatprep.subr.mxu0 0.0
    %605 = vmatpush1.msra.mxu0 %v582
    %606 = vmatprep.subr.mxu0 0.0
    %607 = vmatpush1.msra.mxu0 %v583
    %608 = vmatprep.subr.mxu0 0.0
    %609 = vmatpush1.msra.mxu0 %v584
    %610 = vmatprep.subr.mxu0 0.0
    %611 = vmatpush1.msra.mxu0 %v585
    %612 = vmatprep.subr.mxu0 0.0
    %613 = vmatpush1.msra.mxu0 %v586
    %614 = vmatprep.subr.mxu0 0.0
    %615 = vmatpush1.msra.mxu0 0.0
    %616 = vmatprep.subr.mxu0 0.0
    %617 = vmatpush1.msra.mxu0 0.0
    %618 = vmatprep.subr.mxu0 0.0
    %619 = vmatpush1.msra.mxu0 0.0
    %620 = vmatprep.subr.mxu0 0.0
    %621 = vmatpush1.msra.mxu0 0.0
    %622 = vmatprep.subr.mxu0 0.0
    %623 = vmatpush1.msra.mxu0 0.0
    %624 = vmatprep.subr.mxu0 0.0
    %625 = vmatpush1.msra.mxu0 0.0
    %626 = vmatprep.subr.mxu0 0.0
    %627 = vmatpush1.msra.mxu0 0.0
    %628 = vmatprep.subr.mxu0 0.0
    %629 = vmatpush1.msra.mxu0 0.0
    %630 = vmatprep.subr.mxu0 0.0
    %631 = vmatpush1.msra.mxu0 0.0
    %632 = vmatprep.subr.mxu0 0.0
    %633 = vmatpush1.msra.mxu0 0.0
    %634 = vmatprep.subr.mxu0 0.0
    %635 = vmatpush1.msra.mxu0 0.0
    %636 = vmatprep.subr.mxu0 0.0
    %637 = vmatpush1.msra.mxu0 0.0
    %638 = vmatprep.subr.mxu0 0.0
    %639 = vmatpush1.msra.mxu0 0.0
    %640 = vmatprep.subr.mxu0 0.0
    %641 = vmatpush1.msra.mxu0 0.0
    %642 = vmatprep.subr.mxu0 0.0
    %643 = vmatpush1.msra.mxu0 0.0
    %644 = vmatprep.subr.mxu0 0.0
    %645 = vmatpush1.msra.mxu0 0.0
    %646 = vmatprep.subr.mxu0 0.0
    %647 = vmatpush1.msra.mxu0 0.0
    %648 = vmatprep.subr.mxu0 0.0
    %649 = vmatpush1.msra.mxu0 0.0
    %650 = vmatprep.subr.mxu0 0.0
    %651 = vmatpush1.msra.mxu0 0.0
    %652 = vmatprep.subr.mxu0 0.0
    %653 = vmatpush1.msra.mxu0 0.0
    %654 = vmatprep.subr.mxu0 0.0
    %655 = vmatpush1.msra.mxu0 0.0
    %656 = vmatprep.subr.mxu0 0.0
    %657 = vmatpush1.msra.mxu0 0.0
    %658 = vmatprep.subr.mxu0 0.0
    %659 = vmatpush1.msra.mxu0 0.0
    %660 = vmatprep.subr.mxu0 0.0
    %661 = vmatpush1.msra.mxu0 0.0
    %662 = vmatprep.mubr.f32.mxu0 0.0
    %663 = vmatmul.mubr.f32.gmra.mrb[0].mxu0 %v596
    %v664 = vpop.f32.mrb[0].mxu0
    %v665 = vadd.f32 %v592, %v664
    %v666 = vpop.f32.mrb[0].mxu0
    %667 = vdwg.mxu0
    %v668 = vmax.f32 %v665, 0.0
    %v669 = vld [vmem:[%s9] sm:$0xff]
    %v670 = vld [vmem:[%s9 + $0x8] sm:$0xff]
    %v671 = vld [vmem:[%s9 + $0x10] sm:$0xff]
    %v672 = vld [vmem:[%s9 + $0x18] sm:$0xff]
    %v673 = vld [vmem:[%s10] sm:$0x1]
    %v675 = vlaneseq
    %v676 = vshrl.u32 %v675, 7
    %v677 = vsub.s32 0, %v676
    %v678 = vrot.slane %v673, %v677
    %vm680 = vcmask 261120
    %v682 = vsel %vm680, %v668, 0
    %684 = vmatprep.subr.mxu0 0.0
    %685 = vmatpush1.msra.mxu0 %v669
    %686 = vmatprep.subr.mxu0 0.0
    %687 = vmatpush1.msra.mxu0 %v670
    %688 = vmatprep.subr.mxu0 0.0
    %689 = vmatpush1.msra.mxu0 %v671
    %690 = vmatprep.subr.mxu0 0.0
    %691 = vmatpush1.msra.mxu0 %v672
    %692 = vmatprep.subr.mxu0 0.0
    %693 = vmatpush1.msra.mxu0 0.0
    %694 = vmatprep.subr.mxu0 0.0
    %695 = vmatpush1.msra.mxu0 0.0
    %696 = vmatprep.subr.mxu0 0.0
    %697 = vmatpush1.msra.mxu0 0.0
    %698 = vmatprep.subr.mxu0 0.0
    %699 = vmatpush1.msra.mxu0 0.0
    %700 = vmatprep.subr.mxu0 0.0
    %701 = vmatpush1.msra.mxu0 0.0
    %702 = vmatprep.subr.mxu0 0.0
    %703 = vmatpush1.msra.mxu0 0.0
    %704 = vmatprep.subr.mxu0 0.0
    %705 = vmatpush1.msra.mxu0 0.0
    %706 = vmatprep.subr.mxu0 0.0
    %707 = vmatpush1.msra.mxu0 0.0
    %708 = vmatprep.subr.mxu0 0.0
    %709 = vmatpush1.msra.mxu0 0.0
    %710 = vmatprep.subr.mxu0 0.0
    %711 = vmatpush1.msra.mxu0 0.0
    %712 = vmatprep.subr.mxu0 0.0
    %713 = vmatpush1.msra.mxu0 0.0
    %714 = vmatprep.subr.mxu0 0.0
    %715 = vmatpush1.msra.mxu0 0.0
    %716 = vmatprep.subr.mxu0 0.0
    %717 = vmatpush1.msra.mxu0 0.0
    %718 = vmatprep.subr.mxu0 0.0
    %719 = vmatpush1.msra.mxu0 0.0
    %720 = vmatprep.subr.mxu0 0.0
    %721 = vmatpush1.msra.mxu0 0.0
    %722 = vmatprep.subr.mxu0 0.0
    %723 = vmatpush1.msra.mxu0 0.0
    %724 = vmatprep.subr.mxu0 0.0
    %725 = vmatpush1.msra.mxu0 0.0
    %726 = vmatprep.subr.mxu0 0.0
    %727 = vmatpush1.msra.mxu0 0.0
    %728 = vmatprep.subr.mxu0 0.0
    %729 = vmatpush1.msra.mxu0 0.0
    %730 = vmatprep.subr.mxu0 0.0
    %731 = vmatpush1.msra.mxu0 0.0
    %732 = vmatprep.subr.mxu0 0.0
    %733 = vmatpush1.msra.mxu0 0.0
    %734 = vmatprep.subr.mxu0 0.0
    %735 = vmatpush1.msra.mxu0 0.0
    %736 = vmatprep.subr.mxu0 0.0
    %737 = vmatpush1.msra.mxu0 0.0
    %738 = vmatprep.subr.mxu0 0.0
    %739 = vmatpush1.msra.mxu0 0.0
    %740 = vmatprep.subr.mxu0 0.0
    %741 = vmatpush1.msra.mxu0 0.0
    %742 = vmatprep.subr.mxu0 0.0
    %743 = vmatpush1.msra.mxu0 0.0
    %744 = vmatprep.subr.mxu0 0.0
    %745 = vmatpush1.msra.mxu0 0.0
    %746 = vmatprep.subr.mxu0 0.0
    %747 = vmatpush1.msra.mxu0 0.0
    %748 = vmatprep.mubr.f32.mxu0 0.0
    %749 = vmatmul.mubr.f32.gmra.mrb[0].mxu0 %v682
    %v750 = vpop.f32.mrb[0].mxu0
    %v751 = vadd.f32 %v678, %v750
    %v752 = vpop.f32.mrb[0].mxu0
    %753 = vdwg.mxu0
    %vm754 = vcmask 9216
    %755 = vst.msk [vmem:[#allocation2] sm:$0x3] %vm754, %v751
    %v756 = vld [vmem:[%s11] sm:$0xff]
    %v757 = vld [vmem:[%s11 + $0x8] sm:$0xff]
    %v758 = vld [vmem:[%s11 + $0x10] sm:$0xff]
    %v759 = vld [vmem:[%s11 + $0x18] sm:$0xff]
    %v760 = vld [vmem:[%s11 + $0x20] sm:$0xff]
    %v761 = vld [vmem:[%s11 + $0x28] sm:$0xff]
    %v762 = vld [vmem:[%s11 + $0x30] sm:$0xff]
    %v763 = vld [vmem:[%s11 + $0x38] sm:$0xff]
    %v764 = vld [vmem:[%s11 + $0x40] sm:$0xff]
    %v765 = vld [vmem:[%s11 + $0x48] sm:$0xff]
    %v766 = vld [vmem:[%s11 + $0x50] sm:$0xff]
    %v767 = vld [vmem:[%s11 + $0x58] sm:$0xff]
    %v768 = vld [vmem:[%s11 + $0x60] sm:$0xff]
    %v769 = vld [vmem:[%s11 + $0x68] sm:$0xff]
    %v770 = vld [vmem:[%s11 + $0x70] sm:$0xff]
    %v771 = vld [vmem:[%s11 + $0x78] sm:$0xff]
    %v772 = vld [vmem:[%s11 + $0x80] sm:$0xff]
    %v773 = vld [vmem:[%s11 + $0x88] sm:$0xff]
    %v774 = vld [vmem:[%s11 + $0x90] sm:$0xff]
    %v775 = vld [vmem:[%s11 + $0x98] sm:$0xff]
    %v776 = vld [vmem:[%s11 + $0xa0] sm:$0xff]
    %v777 = vld [vmem:[%s11 + $0xa8] sm:$0xff]
    %v778 = vld [vmem:[%s11 + $0xb0] sm:$0xff]
    %v779 = vld [vmem:[%s11 + $0xb8] sm:$0xff]
    %v780 = vld [vmem:[%s11 + $0xc0] sm:$0xff]
    %v781 = vld [vmem:[%s11 + $0xc8] sm:$0xff]
    %v782 = vld [vmem:[%s11 + $0xd0] sm:$0xff]
    %v783 = vld [vmem:[%s11 + $0xd8] sm:$0xff]
    %v784 = vld [vmem:[%s11 + $0xe0] sm:$0xff]
    %v785 = vld [vmem:[%s11 + $0xe8] sm:$0xff]
    %v786 = vld [vmem:[%s11 + $0xf0] sm:$0xff]
    %v787 = vld [vmem:[%s11 + $0xf8] sm:$0xff]
    %v788 = vld [vmem:[%s12] sm:$0x1]
    %v790 = vlaneseq
    %v791 = vshrl.u32 %v790, 7
    %v792 = vsub.s32 0, %v791
    %v793 = vrot.slane %v788, %v792
    %795 = vmatprep.subr.mxu0 0.0
    %796 = vmatpush1.msra.mxu0 %v756
    %797 = vmatprep.subr.mxu0 0.0
    %798 = vmatpush1.msra.mxu0 %v757
    %799 = vmatprep.subr.mxu0 0.0
    %800 = vmatpush1.msra.mxu0 %v758
    %801 = vmatprep.subr.mxu0 0.0
    %802 = vmatpush1.msra.mxu0 %v759
    %803 = vmatprep.subr.mxu0 0.0
    %804 = vmatpush1.msra.mxu0 %v760
    %805 = vmatprep.subr.mxu0 0.0
    %806 = vmatpush1.msra.mxu0 %v761
    %807 = vmatprep.subr.mxu0 0.0
    %808 = vmatpush1.msra.mxu0 %v762
    %809 = vmatprep.subr.mxu0 0.0
    %810 = vmatpush1.msra.mxu0 %v763
    %811 = vmatprep.subr.mxu0 0.0
    %812 = vmatpush1.msra.mxu0 %v764
    %813 = vmatprep.subr.mxu0 0.0
    %814 = vmatpush1.msra.mxu0 %v765
    %815 = vmatprep.subr.mxu0 0.0
    %816 = vmatpush1.msra.mxu0 %v766
    %817 = vmatprep.subr.mxu0 0.0
    %818 = vmatpush1.msra.mxu0 %v767
    %819 = vmatprep.subr.mxu0 0.0
    %820 = vmatpush1.msra.mxu0 %v768
    %821 = vmatprep.subr.mxu0 0.0
    %822 = vmatpush1.msra.mxu0 %v769
    %823 = vmatprep.subr.mxu0 0.0
    %824 = vmatpush1.msra.mxu0 %v770
    %825 = vmatprep.subr.mxu0 0.0
    %826 = vmatpush1.msra.mxu0 %v771
    %827 = vmatprep.subr.mxu0 0.0
    %828 = vmatpush1.msra.mxu0 %v772
    %829 = vmatprep.subr.mxu0 0.0
    %830 = vmatpush1.msra.mxu0 %v773
    %831 = vmatprep.subr.mxu0 0.0
    %832 = vmatpush1.msra.mxu0 %v774
    %833 = vmatprep.subr.mxu0 0.0
    %834 = vmatpush1.msra.mxu0 %v775
    %835 = vmatprep.subr.mxu0 0.0
    %836 = vmatpush1.msra.mxu0 %v776
    %837 = vmatprep.subr.mxu0 0.0
    %838 = vmatpush1.msra.mxu0 %v777
    %839 = vmatprep.subr.mxu0 0.0
    %840 = vmatpush1.msra.mxu0 %v778
    %841 = vmatprep.subr.mxu0 0.0
    %842 = vmatpush1.msra.mxu0 %v779
    %843 = vmatprep.subr.mxu0 0.0
    %844 = vmatpush1.msra.mxu0 %v780
    %845 = vmatprep.subr.mxu0 0.0
    %846 = vmatpush1.msra.mxu0 %v781
    %847 = vmatprep.subr.mxu0 0.0
    %848 = vmatpush1.msra.mxu0 %v782
    %849 = vmatprep.subr.mxu0 0.0
    %850 = vmatpush1.msra.mxu0 %v783
    %851 = vmatprep.subr.mxu0 0.0
    %852 = vmatpush1.msra.mxu0 %v784
    %853 = vmatprep.subr.mxu0 0.0
    %854 = vmatpush1.msra.mxu0 %v785
    %855 = vmatprep.subr.mxu0 0.0
    %856 = vmatpush1.msra.mxu0 %v786
    %857 = vmatprep.subr.mxu0 0.0
    %858 = vmatpush1.msra.mxu0 %v787
    %859 = vmatprep.mubr.f32.mxu0 %v362
    %860 = vmatmul.mubr.f32.gmra.mrb[0].mxu0 %v361
    %v861 = vpop.f32.mrb[0].mxu0
    %v862 = vadd.f32 %v793, %v861
    %v863 = vpop.f32.mrb[0].mxu0
    %864 = vdwg.mxu0
    %v865 = vmax.f32 %v862, 0.0
    %v866 = vld [vmem:[%s13] sm:$0xff]
    %v867 = vld [vmem:[%s13 + $0x8] sm:$0xff]
    %v868 = vld [vmem:[%s13 + $0x10] sm:$0xff]
    %v869 = vld [vmem:[%s13 + $0x18] sm:$0xff]
    %v870 = vld [vmem:[%s13 + $0x20] sm:$0xff]
    %v871 = vld [vmem:[%s13 + $0x28] sm:$0xff]
    %v872 = vld [vmem:[%s13 + $0x30] sm:$0xff]
    %v873 = vld [vmem:[%s13 + $0x38] sm:$0xff]
    %v874 = vld [vmem:[%s13 + $0x40] sm:$0xff]
    %v875 = vld [vmem:[%s13 + $0x48] sm:$0xff]
    %v876 = vld [vmem:[%s13 + $0x50] sm:$0xff]
    %v877 = vld [vmem:[%s13 + $0x58] sm:$0xff]
    %v878 = vld [vmem:[%s13 + $0x60] sm:$0xff]
    %v879 = vld [vmem:[%s13 + $0x68] sm:$0xff]
    %v880 = vld [vmem:[%s13 + $0x70] sm:$0xff]
    %v881 = vld [vmem:[%s13 + $0x78] sm:$0xff]
    %v882 = vld [vmem:[%s14] sm:$0x1]
    %v884 = vlaneseq
    %v885 = vshrl.u32 %v884, 7
    %v886 = vsub.s32 0, %v885
    %v887 = vrot.slane %v882, %v886
    %889 = vmatprep.subr.mxu0 0.0
    %890 = vmatpush1.msra.mxu0 %v866
    %891 = vmatprep.subr.mxu0 0.0
    %892 = vmatpush1.msra.mxu0 %v867
    %893 = vmatprep.subr.mxu0 0.0
    %894 = vmatpush1.msra.mxu0 %v868
    %895 = vmatprep.subr.mxu0 0.0
    %896 = vmatpush1.msra.mxu0 %v869
    %897 = vmatprep.subr.mxu0 0.0
    %898 = vmatpush1.msra.mxu0 %v870
    %899 = vmatprep.subr.mxu0 0.0
    %900 = vmatpush1.msra.mxu0 %v871
    %901 = vmatprep.subr.mxu0 0.0
    %902 = vmatpush1.msra.mxu0 %v872
    %903 = vmatprep.subr.mxu0 0.0
    %904 = vmatpush1.msra.mxu0 %v873
    %905 = vmatprep.subr.mxu0 0.0
    %906 = vmatpush1.msra.mxu0 %v874
    %907 = vmatprep.subr.mxu0 0.0
    %908 = vmatpush1.msra.mxu0 %v875
    %909 = vmatprep.subr.mxu0 0.0
    %910 = vmatpush1.msra.mxu0 %v876
    %911 = vmatprep.subr.mxu0 0.0
    %912 = vmatpush1.msra.mxu0 %v877
    %913 = vmatprep.subr.mxu0 0.0
    %914 = vmatpush1.msra.mxu0 %v878
    %915 = vmatprep.subr.mxu0 0.0
    %916 = vmatpush1.msra.mxu0 %v879
    %917 = vmatprep.subr.mxu0 0.0
    %918 = vmatpush1.msra.mxu0 %v880
    %919 = vmatprep.subr.mxu0 0.0
    %920 = vmatpush1.msra.mxu0 %v881
    %921 = vmatprep.subr.mxu0 0.0
    %922 = vmatpush1.msra.mxu0 0.0
    %923 = vmatprep.subr.mxu0 0.0
    %924 = vmatpush1.msra.mxu0 0.0
    %925 = vmatprep.subr.mxu0 0.0
    %926 = vmatpush1.msra.mxu0 0.0
    %927 = vmatprep.subr.mxu0 0.0
    %928 = vmatpush1.msra.mxu0 0.0
    %929 = vmatprep.subr.mxu0 0.0
    %930 = vmatpush1.msra.mxu0 0.0
    %931 = vmatprep.subr.mxu0 0.0
    %932 = vmatpush1.msra.mxu0 0.0
    %933 = vmatprep.subr.mxu0 0.0
    %934 = vmatpush1.msra.mxu0 0.0
    %935 = vmatprep.subr.mxu0 0.0
    %936 = vmatpush1.msra.mxu0 0.0
    %937 = vmatprep.subr.mxu0 0.0
    %938 = vmatpush1.msra.mxu0 0.0
    %939 = vmatprep.subr.mxu0 0.0
    %940 = vmatpush1.msra.mxu0 0.0
    %941 = vmatprep.subr.mxu0 0.0
    %942 = vmatpush1.msra.mxu0 0.0
    %943 = vmatprep.subr.mxu0 0.0
    %944 = vmatpush1.msra.mxu0 0.0
    %945 = vmatprep.subr.mxu0 0.0
    %946 = vmatpush1.msra.mxu0 0.0
    %947 = vmatprep.subr.mxu0 0.0
    %948 = vmatpush1.msra.mxu0 0.0
    %949 = vmatprep.subr.mxu0 0.0
    %950 = vmatpush1.msra.mxu0 0.0
    %951 = vmatprep.subr.mxu0 0.0
    %952 = vmatpush1.msra.mxu0 0.0
    %953 = vmatprep.mubr.f32.mxu0 0.0
    %954 = vmatmul.mubr.f32.gmra.mrb[0].mxu0 %v865
    %v955 = vpop.f32.mrb[0].mxu0
    %v956 = vadd.f32 %v887, %v955
    %v957 = vpop.f32.mrb[0].mxu0
    %958 = vdwg.mxu0
    %vm959 = vcmask 33792
    %960 = vst.msk [vmem:[#allocation4] sm:$0x3] %vm959, %v956
    // Predicated region
    $region62: #{cnn_multitask_forward.9} parent=1 // pred_check
      _
    $region63: #{cnn_multitask_forward.9} parent=1 // pred_check_branch
      %962 = sbr.rel (0) target = $region65
    $region64: #{cnn_multitask_forward.9} parent=1 // pred_region
      %s964 = ssub.s32 32, 32
      %965 = vsyncadd [#allocation3], %s964
      %s967 = sshll.u32 [#allocation2], 4
      %s968 = int_to_ptr.vmem [resolvable:$true] %s967
      %970 = dma.vmem_to_hbm [thread:$0]  %s968, 32, %s15, [#allocation3]
    $region65: #{cnn_multitask_forward.9} parent=1 // pred_fallthru
      _
    // Predicated region
    $region66: #{cnn_multitask_forward.9} parent=1 // pred_check
      _
    $region67: #{cnn_multitask_forward.9} parent=1 // pred_check_branch
      %972 = sbr.rel (0) target = $region69
    $region68: #{cnn_multitask_forward.9} parent=1 // pred_region
      %s974 = ssub.s32 32, 32
      %975 = vsyncadd [#allocation5], %s974
      %s977 = sshll.u32 [#allocation4], 4
      %s978 = int_to_ptr.vmem [resolvable:$true] %s977
      %980 = dma.vmem_to_hbm [thread:$0]  %s978, 32, %s16, [#allocation5]
    $region69: #{cnn_multitask_forward.9} parent=1 // pred_fallthru
      _
    // Predicated region
    $region70: #{cnn_multitask_forward.9} parent=1 // pred_check
      _
    $region71: #{cnn_multitask_forward.9} parent=1 // pred_check_branch
      %982 = sbr.rel (0) target = $region73
    $region72: #{cnn_multitask_forward.9} parent=1 // pred_region
      %s984 = ssub.s32 64, 64
      %985 = vsyncadd [#allocation5], %s984
      %s987 = sshll.u32 [#allocation6], 4
      %s988 = int_to_ptr.vmem [resolvable:$true] %s987
      %990 = dma.vmem_to_hbm [thread:$0]  %s988, 64, %s17, [#allocation5]
    $region73: #{cnn_multitask_forward.9} parent=1 // pred_fallthru
      _
    // Predicated region
    $region74: #{cnn_multitask_forward.9} parent=1 // pred_check
      _
    $region75: #{cnn_multitask_forward.9} parent=1 // pred_check_branch
      %992 = sbr.rel (0) target = $region77
    $region76: #{cnn_multitask_forward.9} parent=1 // pred_region
      %993 = dma.done [#allocation3], 32
    $region77: #{cnn_multitask_forward.9} parent=1 // pred_fallthru
      _
    // Predicated region
    $region78: #{cnn_multitask_forward.9} parent=1 // pred_check
      _
    $region79: #{cnn_multitask_forward.9} parent=1 // pred_check_branch
      %995 = sbr.rel (0) target = $region81
    $region80: #{cnn_multitask_forward.9} parent=1 // pred_region
      %996 = dma.done [#allocation5], 32
    $region81: #{cnn_multitask_forward.9} parent=1 // pred_fallthru
      _
    // Predicated region
    $region82: #{cnn_multitask_forward.9} parent=1 // pred_check
      _
    $region83: #{cnn_multitask_forward.9} parent=1 // pred_check_branch
      %998 = sbr.rel (0) target = $region85
    $region84: #{cnn_multitask_forward.9} parent=1 // pred_region
      %999 = dma.done [#allocation5], 64
    $region85: #{cnn_multitask_forward.9} parent=1 // pred_fallthru
      _
    %1000 = vsyncpa [#allocation3], 1
    %1001 = vsyncpa [#allocation5], 1

// kernel: cnn_multitask_forward.8
$region0: #{cnn_multitask_forward.8}
  #allocation0 [shape = 'u32[]', space=smem, size = 0x4, offset = 0x4, fixed_abs, tag = 'smem constant byte address 0x4 - core index']
  #allocation1 [shape = 'u32[144,128]{1,0:T(1,128)}', space=vmem, size = 0x12000, scoped, tag = 'internal scratch']
  %s0 = inlined_call_operand.vmem [shape: bf16[2,4,576,4], index: 0, kind: input, shape index: {}]
  %s1 = inlined_call_operand.vmem [shape: bf16[128,576], index: 1, kind: input, shape index: {}]
  %s2 = inlined_call_operand.vmem [shape: f32[128,1], index: 2, kind: input, shape index: {}]
  %s3 = inlined_call_operand.vmem [shape: bf16[2,128,4], index: 3, kind: output, shape index: {}]
  %s4 = sld [smem:[#allocation0]]
  $region45: #{cnn_multitask_forward.8} parent=0
    _
  %s6 = ssub.s32 1, %s4
  %s7 = scalar_select 0, %s6, %s4
  loop: start=0, step=1, limit=4
  $region2: #{cnn_multitask_forward.8} parent=0 // loop_pre_header
    _
  $region3: #{cnn_multitask_forward.8} parent=0 // loop_header
    %s9 = sphi 0, %s13
    %p10 = scmp.ge.s32.totalorder %s9, 4
    %s16 = sphi 0, %s28
    %s17 = sphi 0, %s24
    %s18 = sphi 0, %s16
    %s19 = sphi 0, %s17
    %s20 = sphi 0, %s18
    %s21 = sphi 0, %s19
    %s33 = sphi 0, %s35
    %s36 = sphi 0, %s33
    %s37 = sphi 0, %s36
    %s53 = sphi 0, %s37
    %s57 = sphi 0, %s57
    %s59 = sphi 0, %s57
    %s60 = sphi 0, %s59
    %s74 = sphi 0, %s60
    %s78 = sphi 0, %s78
    %s80 = sphi 0, %s78
    %s81 = sphi 0, %s80
    %s95 = sphi 0, %s81
    %s103 = sphi 0, %s105
    %s106 = sphi 0, %s103
    %s107 = sphi 0, %s106
    %s123 = sphi 0, %s107
  $region4: #{cnn_multitask_forward.8} parent=0 // loop_header_branch
    %12 = sbr.rel (%p10) target = $region8
  $region5: #{cnn_multitask_forward.8} parent=0 // loop_body
    %s14 = ssub.s32 %s9, 1
    %s15 = ssub.s32 %s9, 2
    %s22 = sadd.s32 1, %s17
    %p23 = scmp.ge.s32.totalorder %s22, 1
    %s24 = scalar_select %p23, 0, %s22
    %s25 = sadd.s32 1, %s16
    %s26 = scalar_select %p23, %s25, %s16
    %p27 = scmp.ge.s32.totalorder %s26, 2
    %s28 = scalar_select %p27, 0, %s26
    %s29 = ssub.s32 %s16, %s28
    %s30 = ssub.s32 %s17, %s24
    %s31 = sor.u32 %s29, %s30
    %p32 = scmp.eq.s32.totalorder %s31, 0
    %s34 = sadd.s32 %s33, 1
    %s35 = scalar_select %p32, %s33, %s34
    %p38 = pneg %p32
    %p39 = scmp.eq.s32.totalorder %s9, 1
    %p40 = por %p38, %p39
    %p41 = scmp.ne.s32.totalorder %s33, %s36
    %p42 = scmp.eq.s32.totalorder %s9, 0
    %p43 = por %p41, %p42
    %p44 = scmp.ne.s32.totalorder %s33, %s36
    %p45 = scmp.eq.s32.totalorder %s14, 1
    %p46 = por %p44, %p45
    %p47 = scmp.ne.s32.totalorder %s36, %s37
    %p48 = scmp.eq.s32.totalorder %s14, 0
    %p49 = por %p47, %p48
    %p50 = scmp.ne.s32.totalorder %s36, %s37
    %p51 = scmp.eq.s32.totalorder %s15, 1
    %p52 = por %p50, %p51
    %p54 = scmp.ne.s32.totalorder %s37, %s53
    %p55 = scmp.eq.s32.totalorder %s15, 0
    %p56 = por %p54, %p55
    %s58 = sadd.s32 %s57, 1
    %p61 = scmp.eq.s32.totalorder %s9, 1
    %p62 = scmp.ne.s32.totalorder %s57, %s59
    %p63 = scmp.eq.s32.totalorder %s9, 0
    %p64 = por %p62, %p63
    %p65 = scmp.ne.s32.totalorder %s57, %s59
    %p66 = scmp.eq.s32.totalorder %s14, 1
    %p67 = por %p65, %p66
    %p68 = scmp.ne.s32.totalorder %s59, %s60
    %p69 = scmp.eq.s32.totalorder %s14, 0
    %p70 = por %p68, %p69
    %p71 = scmp.ne.s32.totalorder %s59, %s60
    %p72 = scmp.eq.s32.totalorder %s15, 1
    %p73 = por %p71, %p72
    %p75 = scmp.ne.s32.totalorder %s60, %s74
    %p76 = scmp.eq.s32.totalorder %s15, 0
    %p77 = por %p75, %p76
    %s79 = sadd.s32 %s78, 1
    %p82 = scmp.eq.s32.totalorder %s9, 1
    %p83 = scmp.ne.s32.totalorder %s78, %s80
    %p84 = scmp.eq.s32.totalorder %s9, 0
    %p85 = por %p83, %p84
    %p86 = scmp.ne.s32.totalorder %s78, %s80
    %p87 = scmp.eq.s32.totalorder %s14, 1
    %p88 = por %p86, %p87
    %p89 = scmp.ne.s32.totalorder %s80, %s81
    %p90 = scmp.eq.s32.totalorder %s14, 0
    %p91 = por %p89, %p90
    %p92 = scmp.ne.s32.totalorder %s80, %s81
    %p93 = scmp.eq.s32.totalorder %s15, 1
    %p94 = por %p92, %p93
    %p96 = scmp.ne.s32.totalorder %s81, %s95
    %p97 = scmp.eq.s32.totalorder %s15, 0
    %p98 = por %p96, %p97
    %s99 = ssub.s32 %s16, %s28
    %s100 = ssub.s32 %s17, %s24
    %s101 = sor.u32 %s99, %s100
    %p102 = scmp.eq.s32.totalorder %s101, 0
    %s104 = sadd.s32 %s103, 1
    %s105 = scalar_select %p102, %s103, %s104
    %p108 = pneg %p102
    %p109 = scmp.eq.s32.totalorder %s9, 1
    %p110 = por %p108, %p109
    %p111 = scmp.ne.s32.totalorder %s103, %s106
    %p112 = scmp.eq.s32.totalorder %s9, 0
    %p113 = por %p111, %p112
    %p114 = scmp.ne.s32.totalorder %s103, %s106
    %p115 = scmp.eq.s32.totalorder %s14, 1
    %p116 = por %p114, %p115
    %p117 = scmp.ne.s32.totalorder %s106, %s107
    %p118 = scmp.eq.s32.totalorder %s14, 0
    %p119 = por %p117, %p118
    %p120 = scmp.ne.s32.totalorder %s106, %s107
    %p121 = scmp.eq.s32.totalorder %s15, 1
    %p122 = por %p120, %p121
    %p124 = scmp.ne.s32.totalorder %s107, %s123
    %p125 = scmp.eq.s32.totalorder %s15, 0
    %p126 = por %p124, %p125
    %p127 = scmp.le.s32.totalorder 1, %s9
    %p128 = scmp.lt.s32.totalorder %s9, 3
    %p129 = pnand %p127, %p128
    %p130 = pneg %p129
    // Predicated region
    $region9: #{cnn_multitask_forward.8} parent=5 // pred_check
      _
    $region10: #{cnn_multitask_forward.8} parent=5 // pred_check_branch
      %132 = sbr.rel (%p129) target = $region12
    $region11: #{cnn_multitask_forward.8} parent=5 // pred_region
      %s133 = ssub.s32 %s9, 1
      // Predicated region
      $region13: #{cnn_multitask_forward.8} parent=11 // pred_check
        %p134 = pneg %p70
      $region14: #{cnn_multitask_forward.8} parent=11 // pred_check_branch
        %136 = sbr.rel (%p134) target = $region16
      $region15: #{cnn_multitask_forward.8} parent=11 // pred_region
        _
      $region16: #{cnn_multitask_forward.8} parent=11 // pred_fallthru
        _
      // Predicated region
      $region17: #{cnn_multitask_forward.8} parent=11 // pred_check
        %p137 = pneg %p91
      $region18: #{cnn_multitask_forward.8} parent=11 // pred_check_branch
        %139 = sbr.rel (%p137) target = $region20
      $region19: #{cnn_multitask_forward.8} parent=11 // pred_region
        _
      $region20: #{cnn_multitask_forward.8} parent=11 // pred_fallthru
        _
    $region12: #{cnn_multitask_forward.8} parent=5 // pred_fallthru
      _
    %p140 = scmp.lt.s32.totalorder %s9, 2
    // Predicated region
    $region21: #{cnn_multitask_forward.8} parent=5 // pred_check
      %p141 = pneg %p140
    $region22: #{cnn_multitask_forward.8} parent=5 // pred_check_branch
      %143 = sbr.rel (%p141) target = $region24
    $region23: #{cnn_multitask_forward.8} parent=5 // pred_region
      // Predicated region
      $region25: #{cnn_multitask_forward.8} parent=23 // pred_check
        %p144 = pneg %p43
      $region26: #{cnn_multitask_forward.8} parent=23 // pred_check_branch
        %146 = sbr.rel (%p144) target = $region28
      $region27: #{cnn_multitask_forward.8} parent=23 // pred_region
        %p147 = scmp.lt.s32.totalorder %s16, 1
        %s148 = scalar_select %p147, %s16, 1
        %p149 = scmp.lt.s32.totalorder %s17, 0
        %s150 = scalar_select %p149, %s17, 0
        %s151 = smul.addr %s148, 288
        %s152 = sadd.s32 %s150, %s151
        %s153 = smul.addr %s152, 4
        %s154 = scalar_lea.vmem %s0, %s153
      $region28: #{cnn_multitask_forward.8} parent=23 // pred_fallthru
        _
    $region24: #{cnn_multitask_forward.8} parent=5 // pred_fallthru
      _
    %p155 = scmp.le.s32.totalorder 1, %s9
    %p156 = scmp.lt.s32.totalorder %s9, 3
    %p157 = pnand %p155, %p156
    %p158 = pneg %p157
    // Predicated region
    $region29: #{cnn_multitask_forward.8} parent=5 // pred_check
      _
    $region30: #{cnn_multitask_forward.8} parent=5 // pred_check_branch
      %160 = sbr.rel (%p157) target = $region32
    $region31: #{cnn_multitask_forward.8} parent=5 // pred_region
      %s161 = ssub.s32 %s9, 1
      %p162 = scmp.lt.s32.totalorder %s18, 1
      %s163 = scalar_select %p162, %s18, 1
      %p164 = scmp.lt.s32.totalorder %s19, 0
      %s165 = scalar_select %p164, %s19, 0
      %s166 = smul.addr %s163, 288
      %s167 = sadd.s32 %s165, %s166
      %s168 = smul.addr %s167, 4
      %s169 = scalar_lea.vmem %s0, %s168
      %p170 = pneg %p49
      %p171 = pneg %p46
      %p172 = pneg %p70
      %p173 = pneg %p67
      %p174 = pneg %p91
      %p175 = pneg %p88
      %p176 = pneg %p119
      %p177 = pneg %p116
      %p178 = scmp.lt.s32.totalorder %s18, 1
      %s179 = scalar_select %p178, %s18, 1
      %p180 = scmp.lt.s32.totalorder %s19, 0
      %s181 = scalar_select %p180, %s19, 0
      %s182 = smul.addr %s179, 16
      %s183 = sadd.s32 %s181, %s182
      %s184 = smul.addr %s183, 4
      %s185 = scalar_lea.vmem %s3, %s184
      %p186 = scmp.lt.s32.totalorder %s18, 1
      %s187 = scalar_select %p186, %s18, 1
      %p188 = scmp.lt.s32.totalorder %s19, 0
      %s189 = scalar_select %p188, %s19, 0
      %s190 = smul.addr %s187, 288
      %s191 = sadd.s32 %s189, %s190
      %s192 = smul.addr %s191, 4
      %s193 = scalar_lea.vmem %s0, %s192
      %p194 = scmp.lt.s32.totalorder %s18, 1
      %s195 = scalar_select %p194, %s18, 1
      %p196 = scmp.lt.s32.totalorder %s19, 0
      %s197 = scalar_select %p196, %s19, 0
      %s198 = smul.addr %s195, 16
      %s199 = sadd.s32 %s197, %s198
      %s200 = smul.addr %s199, 4
      %s201 = scalar_lea.vmem %s3, %s200
      %v203 = vld [vmem:[%s1] sm:$0xff]
      %v204 = vld [vmem:[%s1 + $0x8] sm:$0xff]
      %v205 = vld [vmem:[%s1 + $0x10] sm:$0xf]
      %v206 = vld [vmem:[%s1 + $0x14] sm:$0xff]
      %v207 = vld [vmem:[%s1 + $0x1c] sm:$0xff]
      %v208 = vld [vmem:[%s1 + $0x24] sm:$0xf]
      %v209 = vld [vmem:[%s1 + $0x28] sm:$0xff]
      %v210 = vld [vmem:[%s1 + $0x30] sm:$0xff]
      %v211 = vld [vmem:[%s1 + $0x38] sm:$0xf]
      %v212 = vld [vmem:[%s1 + $0x3c] sm:$0xff]
      %v213 = vld [vmem:[%s1 + $0x44] sm:$0xff]
      %v214 = vld [vmem:[%s1 + $0x4c] sm:$0xf]
      %v215 = vld [vmem:[%s1 + $0x50] sm:$0xff]
      %v216 = vld [vmem:[%s1 + $0x58] sm:$0xff]
      %v217 = vld [vmem:[%s1 + $0x60] sm:$0xf]
      %v218 = vld [vmem:[%s1 + $0x64] sm:$0xff]
      %v219 = vld [vmem:[%s1 + $0x6c] sm:$0xff]
      %v220 = vld [vmem:[%s1 + $0x74] sm:$0xf]
      %v221 = vld [vmem:[%s1 + $0x78] sm:$0xff]
      %v222 = vld [vmem:[%s1 + $0x80] sm:$0xff]
      %v223 = vld [vmem:[%s1 + $0x88] sm:$0xf]
      %v224 = vld [vmem:[%s1 + $0x8c] sm:$0xff]
      %v225 = vld [vmem:[%s1 + $0x94] sm:$0xff]
      %v226 = vld [vmem:[%s1 + $0x9c] sm:$0xf]
      %v227 = vld [vmem:[%s1 + $0xa0] sm:$0xff]
      %v228 = vld [vmem:[%s1 + $0xa8] sm:$0xff]
      %v229 = vld [vmem:[%s1 + $0xb0] sm:$0xf]
      %v230 = vld [vmem:[%s1 + $0xb4] sm:$0xff]
      %v231 = vld [vmem:[%s1 + $0xbc] sm:$0xff]
      %v232 = vld [vmem:[%s1 + $0xc4] sm:$0xf]
      %v233 = vld [vmem:[%s1 + $0xc8] sm:$0xff]
      %v234 = vld [vmem:[%s1 + $0xd0] sm:$0xff]
      %v235 = vld [vmem:[%s1 + $0xd8] sm:$0xf]
      %v236 = vld [vmem:[%s1 + $0xdc] sm:$0xff]
      %v237 = vld [vmem:[%s1 + $0xe4] sm:$0xff]
      %v238 = vld [vmem:[%s1 + $0xec] sm:$0xf]
      %v239 = vld [vmem:[%s1 + $0xf0] sm:$0xff]
      %v240 = vld [vmem:[%s1 + $0xf8] sm:$0xff]
      %v241 = vld [vmem:[%s1 + $0x100] sm:$0xf]
      %v242 = vld [vmem:[%s1 + $0x104] sm:$0xff]
      %v243 = vld [vmem:[%s1 + $0x10c] sm:$0xff]
      %v244 = vld [vmem:[%s1 + $0x114] sm:$0xf]
      %v245 = vld [vmem:[%s1 + $0x118] sm:$0xff]
      %v246 = vld [vmem:[%s1 + $0x120] sm:$0xff]
      %v247 = vld [vmem:[%s1 + $0x128] sm:$0xf]
      %v248 = vld [vmem:[%s1 + $0x12c] sm:$0xff]
      %v249 = vld [vmem:[%s1 + $0x134] sm:$0xff]
      %v250 = vld [vmem:[%s1 + $0x13c] sm:$0xf]
      %v251 = vld [vmem:[%s193] sm:$0xf]
      %v252 = vld [vmem:[%s193 + $0x4] sm:$0xf]
      %v253 = vld [vmem:[%s193 + $0x8] sm:$0xf]
      %v254 = vld [vmem:[%s193 + $0xc] sm:$0xf]
      %v255 = vld [vmem:[%s193 + $0x10] sm:$0xf]
      %v256 = vld [vmem:[%s193 + $0x14] sm:$0xf]
      %v257 = vld [vmem:[%s193 + $0x18] sm:$0xf]
      %v258 = vld [vmem:[%s193 + $0x1c] sm:$0xf]
      %v259 = vld [vmem:[%s193 + $0x20] sm:$0xf]
      %v260 = vld [vmem:[%s193 + $0x24] sm:$0xf]
      %v261 = vld [vmem:[%s193 + $0x28] sm:$0xf]
      %v262 = vld [vmem:[%s193 + $0x2c] sm:$0xf]
      %v263 = vld [vmem:[%s193 + $0x30] sm:$0xf]
      %v264 = vld [vmem:[%s193 + $0x34] sm:$0xf]
      %v265 = vld [vmem:[%s193 + $0x38] sm:$0xf]
      %v266 = vld [vmem:[%s193 + $0x3c] sm:$0xf]
      %v267 = vld [vmem:[%s193 + $0x40] sm:$0xf]
      %v268 = vld [vmem:[%s193 + $0x44] sm:$0xf]
      %v269 = vld [vmem:[%s193 + $0x48] sm:$0xf]
      %v270 = vld [vmem:[%s193 + $0x4c] sm:$0xf]
      %v271 = vld [vmem:[%s193 + $0x50] sm:$0xf]
      %v272 = vld [vmem:[%s193 + $0x54] sm:$0xf]
      %v273 = vld [vmem:[%s193 + $0x58] sm:$0xf]
      %v274 = vld [vmem:[%s193 + $0x5c] sm:$0xf]
      %v275 = vld [vmem:[%s193 + $0x60] sm:$0xf]
      %v276 = vld [vmem:[%s193 + $0x64] sm:$0xf]
      %v277 = vld [vmem:[%s193 + $0x68] sm:$0xf]
      %v278 = vld [vmem:[%s193 + $0x6c] sm:$0xf]
      %v279 = vld [vmem:[%s193 + $0x70] sm:$0xf]
      %v280 = vld [vmem:[%s193 + $0x74] sm:$0xf]
      %v281 = vld [vmem:[%s193 + $0x78] sm:$0xf]
      %v282 = vld [vmem:[%s193 + $0x7c] sm:$0xf]
      %v283 = vld [vmem:[%s193 + $0x80] sm:$0xf]
      %v284 = vld [vmem:[%s193 + $0x84] sm:$0xf]
      %v285 = vld [vmem:[%s193 + $0x88] sm:$0xf]
      %v286 = vld [vmem:[%s193 + $0x8c] sm:$0xf]
      %v287 = vld [vmem:[%s193 + $0x90] sm:$0xf]
      %v288 = vld [vmem:[%s193 + $0x94] sm:$0xf]
      %v289 = vld [vmem:[%s193 + $0x98] sm:$0xf]
      %v290 = vld [vmem:[%s193 + $0x9c] sm:$0xf]
      %v291 = vld [vmem:[%s193 + $0xa0] sm:$0xf]
      %v292 = vld [vmem:[%s193 + $0xa4] sm:$0xf]
      %v293 = vld [vmem:[%s193 + $0xa8] sm:$0xf]
      %v294 = vld [vmem:[%s193 + $0xac] sm:$0xf]
      %v295 = vld [vmem:[%s193 + $0xb0] sm:$0xf]
      %v296 = vld [vmem:[%s193 + $0xb4] sm:$0xf]
      %v297 = vld [vmem:[%s193 + $0xb8] sm:$0xf]
      %v298 = vld [vmem:[%s193 + $0xbc] sm:$0xf]
      %v299 = vld [vmem:[%s193 + $0xc0] sm:$0xf]
      %v300 = vld [vmem:[%s193 + $0xc4] sm:$0xf]
      %v301 = vld [vmem:[%s193 + $0xc8] sm:$0xf]
      %v302 = vld [vmem:[%s193 + $0xcc] sm:$0xf]
      %v303 = vld [vmem:[%s193 + $0xd0] sm:$0xf]
      %v304 = vld [vmem:[%s193 + $0xd4] sm:$0xf]
      %v305 = vld [vmem:[%s193 + $0xd8] sm:$0xf]
      %v306 = vld [vmem:[%s193 + $0xdc] sm:$0xf]
      %v307 = vld [vmem:[%s193 + $0xe0] sm:$0xf]
      %v308 = vld [vmem:[%s193 + $0xe4] sm:$0xf]
      %v309 = vld [vmem:[%s193 + $0xe8] sm:$0xf]
      %v310 = vld [vmem:[%s193 + $0xec] sm:$0xf]
      %v311 = vld [vmem:[%s193 + $0xf0] sm:$0xf]
      %v312 = vld [vmem:[%s193 + $0xf4] sm:$0xf]
      %v313 = vld [vmem:[%s193 + $0xf8] sm:$0xf]
      %v314 = vld [vmem:[%s193 + $0xfc] sm:$0xf]
      %v315 = vld [vmem:[%s193 + $0x100] sm:$0xf]
      %v316 = vld [vmem:[%s193 + $0x104] sm:$0xf]
      %v317 = vld [vmem:[%s193 + $0x108] sm:$0xf]
      %v318 = vld [vmem:[%s193 + $0x10c] sm:$0xf]
      %v319 = vld [vmem:[%s193 + $0x110] sm:$0xf]
      %v320 = vld [vmem:[%s193 + $0x114] sm:$0xf]
      %v321 = vld [vmem:[%s193 + $0x118] sm:$0xf]
      %v322 = vld [vmem:[%s193 + $0x11c] sm:$0xf]
      %v371 = vunpack.c.l.b16 %v203
      %v372 = vunpack.c.h.b16 %v203
      %v373 = vunpack.c.l.b16 %v204
      %v374 = vunpack.c.h.b16 %v204
      %v375 = vunpack.c.l.b16 %v205
      %v376 = vunpack.c.l.b16 %v206
      %v377 = vunpack.c.h.b16 %v206
      %v378 = vunpack.c.l.b16 %v207
      %v379 = vunpack.c.h.b16 %v207
      %v380 = vunpack.c.l.b16 %v208
      %v381 = vunpack.c.l.b16 %v209
      %v382 = vunpack.c.h.b16 %v209
      %v383 = vunpack.c.l.b16 %v210
      %v384 = vunpack.c.h.b16 %v210
      %v385 = vunpack.c.l.b16 %v211
      %v386 = vunpack.c.l.b16 %v212
      %v387 = vunpack.c.h.b16 %v212
      %v388 = vunpack.c.l.b16 %v213
      %v389 = vunpack.c.h.b16 %v213
      %v390 = vunpack.c.l.b16 %v214
      %v391 = vunpack.c.l.b16 %v215
      %v392 = vunpack.c.h.b16 %v215
      %v393 = vunpack.c.l.b16 %v216
      %v394 = vunpack.c.h.b16 %v216
      %v395 = vunpack.c.l.b16 %v217
      %v396 = vunpack.c.l.b16 %v218
      %v397 = vunpack.c.h.b16 %v218
      %v398 = vunpack.c.l.b16 %v219
      %v399 = vunpack.c.h.b16 %v219
      %v400 = vunpack.c.l.b16 %v220
      %v401 = vunpack.c.l.b16 %v221
      %v402 = vunpack.c.h.b16 %v221
      %v403 = vunpack.c.l.b16 %v222
      %v404 = vunpack.c.h.b16 %v222
      %v405 = vunpack.c.l.b16 %v223
      %v406 = vunpack.c.l.b16 %v224
      %v407 = vunpack.c.h.b16 %v224
      %v408 = vunpack.c.l.b16 %v225
      %v409 = vunpack.c.h.b16 %v225
      %v410 = vunpack.c.l.b16 %v226
      %v411 = vunpack.c.l.b16 %v227
      %v412 = vunpack.c.h.b16 %v227
      %v413 = vunpack.c.l.b16 %v228
      %v414 = vunpack.c.h.b16 %v228
      %v415 = vunpack.c.l.b16 %v229
      %v416 = vunpack.c.l.b16 %v230
      %v417 = vunpack.c.h.b16 %v230
      %v418 = vunpack.c.l.b16 %v231
      %v419 = vunpack.c.h.b16 %v231
      %v420 = vunpack.c.l.b16 %v232
      %v421 = vunpack.c.l.b16 %v233
      %v422 = vunpack.c.h.b16 %v233
      %v423 = vunpack.c.l.b16 %v234
      %v424 = vunpack.c.h.b16 %v234
      %v425 = vunpack.c.l.b16 %v235
      %v426 = vunpack.c.l.b16 %v236
      %v427 = vunpack.c.h.b16 %v236
      %v428 = vunpack.c.l.b16 %v237
      %v429 = vunpack.c.h.b16 %v237
      %v430 = vunpack.c.l.b16 %v238
      %v431 = vunpack.c.l.b16 %v239
      %v432 = vunpack.c.h.b16 %v239
      %v433 = vunpack.c.l.b16 %v240
      %v434 = vunpack.c.h.b16 %v240
      %v435 = vunpack.c.l.b16 %v241
      %v436 = vunpack.c.l.b16 %v242
      %v437 = vunpack.c.h.b16 %v242
      %v438 = vunpack.c.l.b16 %v243
      %v439 = vunpack.c.h.b16 %v243
      %v440 = vunpack.c.l.b16 %v244
      %v441 = vunpack.c.l.b16 %v245
      %v442 = vunpack.c.h.b16 %v245
      %v443 = vunpack.c.l.b16 %v246
      %v444 = vunpack.c.h.b16 %v246
      %v445 = vunpack.c.l.b16 %v247
      %v446 = vunpack.c.l.b16 %v248
      %v447 = vunpack.c.h.b16 %v248
      %v448 = vunpack.c.l.b16 %v249
      %v449 = vunpack.c.h.b16 %v249
      %v450 = vunpack.c.l.b16 %v250
      %v451 = vpack.c.b16 %v376, %v371
      %v452 = vpack.c.b16 %v377, %v372
      %v453 = vpack.c.b16 %v378, %v373
      %v454 = vpack.c.b16 %v379, %v374
      %v455 = vpack.c.b16 %v380, %v375
      %v456 = vpack.c.b16 %v386, %v381
      %v457 = vpack.c.b16 %v387, %v382
      %v458 = vpack.c.b16 %v388, %v383
      %v459 = vpack.c.b16 %v389, %v384
      %v460 = vpack.c.b16 %v390, %v385
      %v461 = vpack.c.b16 %v396, %v391
      %v462 = vpack.c.b16 %v397, %v392
      %v463 = vpack.c.b16 %v398, %v393
      %v464 = vpack.c.b16 %v399, %v394
      %v465 = vpack.c.b16 %v400, %v395
      %v466 = vpack.c.b16 %v406, %v401
      %v467 = vpack.c.b16 %v407, %v402
      %v468 = vpack.c.b16 %v408, %v403
      %v469 = vpack.c.b16 %v409, %v404
      %v470 = vpack.c.b16 %v410, %v405
      %v471 = vpack.c.b16 %v416, %v411
      %v472 = vpack.c.b16 %v417, %v412
      %v473 = vpack.c.b16 %v418, %v413
      %v474 = vpack.c.b16 %v419, %v414
      %v475 = vpack.c.b16 %v420, %v415
      %v476 = vpack.c.b16 %v426, %v421
      %v477 = vpack.c.b16 %v427, %v422
      %v478 = vpack.c.b16 %v428, %v423
      %v479 = vpack.c.b16 %v429, %v424
      %v480 = vpack.c.b16 %v430, %v425
      %v481 = vpack.c.b16 %v436, %v431
      %v482 = vpack.c.b16 %v437, %v432
      %v483 = vpack.c.b16 %v438, %v433
      %v484 = vpack.c.b16 %v439, %v434
      %v485 = vpack.c.b16 %v440, %v435
      %v486 = vpack.c.b16 %v446, %v441
      %v487 = vpack.c.b16 %v447, %v442
      %v488 = vpack.c.b16 %v448, %v443
      %v489 = vpack.c.b16 %v449, %v444
      %v490 = vpack.c.b16 %v450, %v445
      %v595 = vunpack.c.l.b16 %v251
      %v596 = vunpack.c.l.b16 %v252
      %v597 = vunpack.c.l.b16 %v253
      %v598 = vunpack.c.l.b16 %v254
      %v599 = vunpack.c.l.b16 %v255
      %v600 = vunpack.c.l.b16 %v256
      %v601 = vunpack.c.l.b16 %v257
      %v602 = vunpack.c.l.b16 %v258
      %v603 = vunpack.c.l.b16 %v259
      %v604 = vunpack.c.l.b16 %v260
      %v605 = vunpack.c.l.b16 %v261
      %v606 = vunpack.c.l.b16 %v262
      %v607 = vunpack.c.l.b16 %v263
      %v608 = vunpack.c.l.b16 %v264
      %v609 = vunpack.c.l.b16 %v265
      %v610 = vunpack.c.l.b16 %v266
      %v611 = vunpack.c.l.b16 %v267
      %v612 = vunpack.c.l.b16 %v268
      %v613 = vunpack.c.l.b16 %v269
      %v614 = vunpack.c.l.b16 %v270
      %v615 = vunpack.c.l.b16 %v271
      %v616 = vunpack.c.l.b16 %v272
      %v617 = vunpack.c.l.b16 %v273
      %v618 = vunpack.c.l.b16 %v274
      %v619 = vunpack.c.l.b16 %v275
      %v620 = vunpack.c.l.b16 %v276
      %v621 = vunpack.c.l.b16 %v277
      %v622 = vunpack.c.l.b16 %v278
      %v623 = vunpack.c.l.b16 %v279
      %v624 = vunpack.c.l.b16 %v280
      %v625 = vunpack.c.l.b16 %v281
      %v626 = vunpack.c.l.b16 %v282
      %v627 = vunpack.c.l.b16 %v283
      %v628 = vunpack.c.l.b16 %v284
      %v629 = vunpack.c.l.b16 %v285
      %v630 = vunpack.c.l.b16 %v286
      %v631 = vunpack.c.l.b16 %v287
      %v632 = vunpack.c.l.b16 %v288
      %v633 = vunpack.c.l.b16 %v289
      %v634 = vunpack.c.l.b16 %v290
      %v635 = vunpack.c.l.b16 %v291
      %v636 = vunpack.c.l.b16 %v292
      %v637 = vunpack.c.l.b16 %v293
      %v638 = vunpack.c.l.b16 %v294
      %v639 = vunpack.c.l.b16 %v295
      %v640 = vunpack.c.l.b16 %v296
      %v641 = vunpack.c.l.b16 %v297
      %v642 = vunpack.c.l.b16 %v298
      %v643 = vunpack.c.l.b16 %v299
      %v644 = vunpack.c.l.b16 %v300
      %v645 = vunpack.c.l.b16 %v301
      %v646 = vunpack.c.l.b16 %v302
      %v647 = vunpack.c.l.b16 %v303
      %v648 = vunpack.c.l.b16 %v304
      %v649 = vunpack.c.l.b16 %v305
      %v650 = vunpack.c.l.b16 %v306
      %v651 = vunpack.c.l.b16 %v307
      %v652 = vunpack.c.l.b16 %v308
      %v653 = vunpack.c.l.b16 %v309
      %v654 = vunpack.c.l.b16 %v310
      %v655 = vunpack.c.l.b16 %v311
      %v656 = vunpack.c.l.b16 %v312
      %v657 = vunpack.c.l.b16 %v313
      %v658 = vunpack.c.l.b16 %v314
      %v659 = vunpack.c.l.b16 %v315
      %v660 = vunpack.c.l.b16 %v316
      %v661 = vunpack.c.l.b16 %v317
      %v662 = vunpack.c.l.b16 %v318
      %v663 = vunpack.c.l.b16 %v319
      %v664 = vunpack.c.l.b16 %v320
      %v665 = vunpack.c.l.b16 %v321
      %v666 = vunpack.c.l.b16 %v322
      %v667 = vpack.c.b16 %v596, %v595
      %v668 = vpack.c.b16 %v598, %v597
      %v669 = vpack.c.b16 %v600, %v599
      %v670 = vpack.c.b16 %v602, %v601
      %v671 = vpack.c.b16 %v604, %v603
      %v672 = vpack.c.b16 %v606, %v605
      %v673 = vpack.c.b16 %v608, %v607
      %v674 = vpack.c.b16 %v610, %v609
      %v675 = vpack.c.b16 %v612, %v611
      %v676 = vpack.c.b16 %v614, %v613
      %v677 = vpack.c.b16 %v616, %v615
      %v678 = vpack.c.b16 %v618, %v617
      %v679 = vpack.c.b16 %v620, %v619
      %v680 = vpack.c.b16 %v622, %v621
      %v681 = vpack.c.b16 %v624, %v623
      %v682 = vpack.c.b16 %v626, %v625
      %v683 = vpack.c.b16 %v628, %v627
      %v684 = vpack.c.b16 %v630, %v629
      %v685 = vpack.c.b16 %v632, %v631
      %v686 = vpack.c.b16 %v634, %v633
      %v687 = vpack.c.b16 %v636, %v635
      %v688 = vpack.c.b16 %v638, %v637
      %v689 = vpack.c.b16 %v640, %v639
      %v690 = vpack.c.b16 %v642, %v641
      %v691 = vpack.c.b16 %v644, %v643
      %v692 = vpack.c.b16 %v646, %v645
      %v693 = vpack.c.b16 %v648, %v647
      %v694 = vpack.c.b16 %v650, %v649
      %v695 = vpack.c.b16 %v652, %v651
      %v696 = vpack.c.b16 %v654, %v653
      %v697 = vpack.c.b16 %v656, %v655
      %v698 = vpack.c.b16 %v658, %v657
      %v699 = vpack.c.b16 %v660, %v659
      %v700 = vpack.c.b16 %v662, %v661
      %v701 = vpack.c.b16 %v664, %v663
      %v702 = vpack.c.b16 %v666, %v665
      %vm739 = vcmask 523264
      %v741 = vsel %vm739, %v455, 0
      %v744 = vsel %vm739, %v460, 0
      %v747 = vsel %vm739, %v465, 0
      %v750 = vsel %vm739, %v470, 0
      %v753 = vsel %vm739, %v475, 0
      %v756 = vsel %vm739, %v480, 0
      %v759 = vsel %vm739, %v485, 0
      %v762 = vsel %vm739, %v490, 0
      %764 = vmatprep.subr.bf16.mxu0 0
      %765 = vmatpush1.bf16.msra.mxu0 %v667
      %766 = vmatprep.subr.bf16.mxu0 0
      %767 = vmatpush1.bf16.msra.mxu0 %v668
      %768 = vmatprep.subr.bf16.mxu0 0
      %769 = vmatpush1.bf16.msra.mxu0 %v669
      %770 = vmatprep.subr.bf16.mxu0 0
      %771 = vmatpush1.bf16.msra.mxu0 %v670
      %772 = vmatprep.subr.bf16.mxu0 0
      %773 = vmatpush1.bf16.msra.mxu0 %v671
      %774 = vmatprep.subr.bf16.mxu0 0
      %775 = vmatpush1.bf16.msra.mxu0 %v672
      %776 = vmatprep.subr.bf16.mxu0 0
      %777 = vmatpush1.bf16.msra.mxu0 %v673
      %778 = vmatprep.subr.bf16.mxu0 0
      %779 = vmatpush1.bf16.msra.mxu0 %v674
      %780 = vmatprep.subr.bf16.mxu0 0
      %781 = vmatpush1.bf16.msra.mxu0 %v675
      %782 = vmatprep.subr.bf16.mxu0 0
      %783 = vmatpush1.bf16.msra.mxu0 %v676
      %784 = vmatprep.subr.bf16.mxu0 0
      %785 = vmatpush1.bf16.msra.mxu0 %v677
      %786 = vmatprep.subr.bf16.mxu0 0
      %787 = vmatpush1.bf16.msra.mxu0 %v678
      %788 = vmatprep.subr.bf16.mxu0 0
      %789 = vmatpush1.bf16.msra.mxu0 %v679
      %790 = vmatprep.subr.bf16.mxu0 0
      %791 = vmatpush1.bf16.msra.mxu0 %v680
      %792 = vmatprep.subr.bf16.mxu0 0
      %793 = vmatpush1.bf16.msra.mxu0 %v681
      %794 = vmatprep.subr.bf16.mxu0 0
      %795 = vmatpush1.bf16.msra.mxu0 %v682
      %796 = vmatprep.mubr.bf16.mxu0 %v452
      %797 = vmatmul.mubr.bf16.gmra.mrb[0].mxu0 %v451
      %v798 = vpop.f32.mrb[0].mxu0
      %v799 = vadd.f32 0.0, %v798
      %v800 = vpop.f32.mrb[0].mxu0
      %v801 = vpop.f32.mrb[0].mxu0
      %v802 = vadd.f32 0.0, %v801
      %v803 = vpop.f32.mrb[0].mxu0
      %804 = vmatprep.mubr.bf16.mxu0 %v457
      %805 = vmatmul.mubr.bf16.gmra.mrb[0].mxu0 %v456
      %v806 = vpop.f32.mrb[0].mxu0
      %v807 = vadd.f32 0.0, %v806
      %v808 = vpop.f32.mrb[0].mxu0
      %v809 = vpop.f32.mrb[0].mxu0
      %v810 = vadd.f32 0.0, %v809
      %v811 = vpop.f32.mrb[0].mxu0
      %812 = vmatprep.mubr.bf16.mxu0 %v462
      %813 = vmatmul.mubr.bf16.gmra.mrb[0].mxu0 %v461
      %v814 = vpop.f32.mrb[0].mxu0
      %v815 = vadd.f32 0.0, %v814
      %v816 = vpop.f32.mrb[0].mxu0
      %v817 = vpop.f32.mrb[0].mxu0
      %v818 = vadd.f32 0.0, %v817
      %v819 = vpop.f32.mrb[0].mxu0
      %820 = vmatprep.mubr.bf16.mxu0 %v467
      %821 = vmatmul.mubr.bf16.gmra.mrb[0].mxu0 %v466
      %v822 = vpop.f32.mrb[0].mxu0
      %v823 = vadd.f32 0.0, %v822
      %v824 = vpop.f32.mrb[0].mxu0
      %v825 = vpop.f32.mrb[0].mxu0
      %v826 = vadd.f32 0.0, %v825
      %v827 = vpop.f32.mrb[0].mxu0
      %828 = vmatprep.mubr.bf16.mxu0 %v472
      %829 = vmatmul.mubr.bf16.gmra.mrb[0].mxu0 %v471
      %v830 = vpop.f32.mrb[0].mxu0
      %v831 = vadd.f32 0.0, %v830
      %v832 = vpop.f32.mrb[0].mxu0
      %v833 = vpop.f32.mrb[0].mxu0
      %v834 = vadd.f32 0.0, %v833
      %v835 = vpop.f32.mrb[0].mxu0
      %836 = vmatprep.mubr.bf16.mxu0 %v477
      %837 = vmatmul.mubr.bf16.gmra.mrb[0].mxu0 %v476
      %v838 = vpop.f32.mrb[0].mxu0
      %v839 = vadd.f32 0.0, %v838
      %v840 = vpop.f32.mrb[0].mxu0
      %v841 = vpop.f32.mrb[0].mxu0
      %v842 = vadd.f32 0.0, %v841
      %v843 = vpop.f32.mrb[0].mxu0
      %844 = vmatprep.mubr.bf16.mxu0 %v482
      %845 = vmatmul.mubr.bf16.gmra.mrb[0].mxu0 %v481
      %v846 = vpop.f32.mrb[0].mxu0
      %v847 = vadd.f32 0.0, %v846
      %v848 = vpop.f32.mrb[0].mxu0
      %v849 = vpop.f32.mrb[0].mxu0
      %v850 = vadd.f32 0.0, %v849
      %v851 = vpop.f32.mrb[0].mxu0
      %852 = vmatprep.mubr.bf16.mxu0 %v487
      %853 = vmatmul.mubr.bf16.gmra.mrb[0].mxu0 %v486
      %v854 = vpop.f32.mrb[0].mxu0
      %v855 = vadd.f32 0.0, %v854
      %v856 = vpop.f32.mrb[0].mxu0
      %v857 = vpop.f32.mrb[0].mxu0
      %v858 = vadd.f32 0.0, %v857
      %v859 = vpop.f32.mrb[0].mxu0
      %860 = vdwg.mxu0
      %861 = vmatprep.subr.bf16.mxu0 0
      %862 = vmatpush1.bf16.msra.mxu0 %v683
      %863 = vmatprep.subr.bf16.mxu0 0
      %864 = vmatpush1.bf16.msra.mxu0 %v684
      %865 = vmatprep.subr.bf16.mxu0 0
      %866 = vmatpush1.bf16.msra.mxu0 %v685
      %867 = vmatprep.subr.bf16.mxu0 0
      %868 = vmatpush1.bf16.msra.mxu0 %v686
      %869 = vmatprep.subr.bf16.mxu0 0
      %870 = vmatpush1.bf16.msra.mxu0 %v687
      %871 = vmatprep.subr.bf16.mxu0 0
      %872 = vmatpush1.bf16.msra.mxu0 %v688
      %873 = vmatprep.subr.bf16.mxu0 0
      %874 = vmatpush1.bf16.msra.mxu0 %v689
      %875 = vmatprep.subr.bf16.mxu0 0
      %876 = vmatpush1.bf16.msra.mxu0 %v690
      %877 = vmatprep.subr.bf16.mxu0 0
      %878 = vmatpush1.bf16.msra.mxu0 %v691
      %879 = vmatprep.subr.bf16.mxu0 0
      %880 = vmatpush1.bf16.msra.mxu0 %v692
      %881 = vmatprep.subr.bf16.mxu0 0
      %882 = vmatpush1.bf16.msra.mxu0 %v693
      %883 = vmatprep.subr.bf16.mxu0 0
      %884 = vmatpush1.bf16.msra.mxu0 %v694
      %885 = vmatprep.subr.bf16.mxu0 0
      %886 = vmatpush1.bf16.msra.mxu0 %v695
      %887 = vmatprep.subr.bf16.mxu0 0
      %888 = vmatpush1.bf16.msra.mxu0 %v696
      %889 = vmatprep.subr.bf16.mxu0 0
      %890 = vmatpush1.bf16.msra.mxu0 %v697
      %891 = vmatprep.subr.bf16.mxu0 0
      %892 = vmatpush1.bf16.msra.mxu0 %v698
      %893 = vmatprep.mubr.bf16.mxu0 %v454
      %894 = vmatmul.mubr.bf16.gmra.mrb[0].mxu0 %v453
      %v895 = vpop.f32.mrb[0].mxu0
      %v896 = vadd.f32 %v799, %v895
      %v897 = vpop.f32.mrb[0].mxu0
      %v898 = vpop.f32.mrb[0].mxu0
      %v899 = vadd.f32 %v802, %v898
      %v900 = vpop.f32.mrb[0].mxu0
      %901 = vmatprep.mubr.bf16.mxu0 %v459
      %902 = vmatmul.mubr.bf16.gmra.mrb[0].mxu0 %v458
      %v903 = vpop.f32.mrb[0].mxu0
      %v904 = vadd.f32 %v807, %v903
      %v905 = vpop.f32.mrb[0].mxu0
      %v906 = vpop.f32.mrb[0].mxu0
      %v907 = vadd.f32 %v810, %v906
      %v908 = vpop.f32.mrb[0].mxu0
      %909 = vmatprep.mubr.bf16.mxu0 %v464
      %910 = vmatmul.mubr.bf16.gmra.mrb[0].mxu0 %v463
      %v911 = vpop.f32.mrb[0].mxu0
      %v912 = vadd.f32 %v815, %v911
      %v913 = vpop.f32.mrb[0].mxu0
      %v914 = vpop.f32.mrb[0].mxu0
      %v915 = vadd.f32 %v818, %v914
      %v916 = vpop.f32.mrb[0].mxu0
      %917 = vmatprep.mubr.bf16.mxu0 %v469
      %918 = vmatmul.mubr.bf16.gmra.mrb[0].mxu0 %v468
      %v919 = vpop.f32.mrb[0].mxu0
      %v920 = vadd.f32 %v823, %v919
      %v921 = vpop.f32.mrb[0].mxu0
      %v922 = vpop.f32.mrb[0].mxu0
      %v923 = vadd.f32 %v826, %v922
      %v924 = vpop.f32.mrb[0].mxu0
      %925 = vmatprep.mubr.bf16.mxu0 %v474
      %926 = vmatmul.mubr.bf16.gmra.mrb[0].mxu0 %v473
      %v927 = vpop.f32.mrb[0].mxu0
      %v928 = vadd.f32 %v831, %v927
      %v929 = vpop.f32.mrb[0].mxu0
      %v930 = vpop.f32.mrb[0].mxu0
      %v931 = vadd.f32 %v834, %v930
      %v932 = vpop.f32.mrb[0].mxu0
      %933 = vmatprep.mubr.bf16.mxu0 %v479
      %934 = vmatmul.mubr.bf16.gmra.mrb[0].mxu0 %v478
      %v935 = vpop.f32.mrb[0].mxu0
      %v936 = vadd.f32 %v839, %v935
      %v937 = vpop.f32.mrb[0].mxu0
      %v938 = vpop.f32.mrb[0].mxu0
      %v939 = vadd.f32 %v842, %v938
      %v940 = vpop.f32.mrb[0].mxu0
      %941 = vmatprep.mubr.bf16.mxu0 %v484
      %942 = vmatmul.mubr.bf16.gmra.mrb[0].mxu0 %v483
      %v943 = vpop.f32.mrb[0].mxu0
      %v944 = vadd.f32 %v847, %v943
      %v945 = vpop.f32.mrb[0].mxu0
      %v946 = vpop.f32.mrb[0].mxu0
      %v947 = vadd.f32 %v850, %v946
      %v948 = vpop.f32.mrb[0].mxu0
      %949 = vmatprep.mubr.bf16.mxu0 %v489
      %950 = vmatmul.mubr.bf16.gmra.mrb[0].mxu0 %v488
      %v951 = vpop.f32.mrb[0].mxu0
      %v952 = vadd.f32 %v855, %v951
      %v953 = vpop.f32.mrb[0].mxu0
      %v954 = vpop.f32.mrb[0].mxu0
      %v955 = vadd.f32 %v858, %v954
      %v956 = vpop.f32.mrb[0].mxu0
      %957 = vdwg.mxu0
      %958 = vmatprep.subr.bf16.mxu0 0
      %959 = vmatpush1.bf16.msra.mxu0 %v699
      %960 = vmatprep.subr.bf16.mxu0 0
      %961 = vmatpush1.bf16.msra.mxu0 %v700
      %962 = vmatprep.subr.bf16.mxu0 0
      %963 = vmatpush1.bf16.msra.mxu0 %v701
      %964 = vmatprep.subr.bf16.mxu0 0
      %965 = vmatpush1.bf16.msra.mxu0 %v702
      %966 = vmatprep.subr.bf16.mxu0 0
      %967 = vmatpush1.bf16.msra.mxu0 0
      %968 = vmatprep.subr.bf16.mxu0 0
      %969 = vmatpush1.bf16.msra.mxu0 0
      %970 = vmatprep.subr.bf16.mxu0 0
      %971 = vmatpush1.bf16.msra.mxu0 0
      %972 = vmatprep.subr.bf16.mxu0 0
      %973 = vmatpush1.bf16.msra.mxu0 0
      %974 = vmatprep.subr.bf16.mxu0 0
      %975 = vmatpush1.bf16.msra.mxu0 0
      %976 = vmatprep.subr.bf16.mxu0 0
      %977 = vmatpush1.bf16.msra.mxu0 0
      %978 = vmatprep.subr.bf16.mxu0 0
      %979 = vmatpush1.bf16.msra.mxu0 0
      %980 = vmatprep.subr.bf16.mxu0 0
      %981 = vmatpush1.bf16.msra.mxu0 0
      %982 = vmatprep.subr.bf16.mxu0 0
      %983 = vmatpush1.bf16.msra.mxu0 0
      %984 = vmatprep.subr.bf16.mxu0 0
      %985 = vmatpush1.bf16.msra.mxu0 0
      %986 = vmatprep.subr.bf16.mxu0 0
      %987 = vmatpush1.bf16.msra.mxu0 0
      %988 = vmatprep.subr.bf16.mxu0 0
      %989 = vmatpush1.bf16.msra.mxu0 0
      %990 = vmatprep.mubr.bf16.mxu0 0
      %991 = vmatmul.mubr.bf16.gmra.mrb[0].mxu0 %v741
      %v992 = vpop.f32.mrb[0].mxu0
      %v993 = vadd.f32 %v896, %v992
      %v994 = vpop.f32.mrb[0].mxu0
      %v995 = vpop.f32.mrb[0].mxu0
      %v996 = vadd.f32 %v899, %v995
      %v997 = vpop.f32.mrb[0].mxu0
      %998 = vmatprep.mubr.bf16.mxu0 0
      %999 = vmatmul.mubr.bf16.gmra.mrb[0].mxu0 %v744
      %v1000 = vpop.f32.mrb[0].mxu0
      %v1001 = vadd.f32 %v904, %v1000
      %v1002 = vpop.f32.mrb[0].mxu0
      %v1003 = vpop.f32.mrb[0].mxu0
      %v1004 = vadd.f32 %v907, %v1003
      %v1005 = vpop.f32.mrb[0].mxu0
      %1006 = vmatprep.mubr.bf16.mxu0 0
      %1007 = vmatmul.mubr.bf16.gmra.mrb[0].mxu0 %v747
      %v1008 = vpop.f32.mrb[0].mxu0
      %v1009 = vadd.f32 %v912, %v1008
      %v1010 = vpop.f32.mrb[0].mxu0
      %v1011 = vpop.f32.mrb[0].mxu0
      %v1012 = vadd.f32 %v915, %v1011
      %v1013 = vpop.f32.mrb[0].mxu0
      %1014 = vmatprep.mubr.bf16.mxu0 0
      %1015 = vmatmul.mubr.bf16.gmra.mrb[0].mxu0 %v750
      %v1016 = vpop.f32.mrb[0].mxu0
      %v1017 = vadd.f32 %v920, %v1016
      %v1018 = vpop.f32.mrb[0].mxu0
      %v1019 = vpop.f32.mrb[0].mxu0
      %v1020 = vadd.f32 %v923, %v1019
      %v1021 = vpop.f32.mrb[0].mxu0
      %1022 = vmatprep.mubr.bf16.mxu0 0
      %1023 = vmatmul.mubr.bf16.gmra.mrb[0].mxu0 %v753
      %v1024 = vpop.f32.mrb[0].mxu0
      %v1025 = vadd.f32 %v928, %v1024
      %v1026 = vpop.f32.mrb[0].mxu0
      %v1027 = vpop.f32.mrb[0].mxu0
      %v1028 = vadd.f32 %v931, %v1027
      %v1029 = vpop.f32.mrb[0].mxu0
      %1030 = vmatprep.mubr.bf16.mxu0 0
      %1031 = vmatmul.mubr.bf16.gmra.mrb[0].mxu0 %v756
      %v1032 = vpop.f32.mrb[0].mxu0
      %v1033 = vadd.f32 %v936, %v1032
      %v1034 = vpop.f32.mrb[0].mxu0
      %v1035 = vpop.f32.mrb[0].mxu0
      %v1036 = vadd.f32 %v939, %v1035
      %v1037 = vpop.f32.mrb[0].mxu0
      %1038 = vmatprep.mubr.bf16.mxu0 0
      %1039 = vmatmul.mubr.bf16.gmra.mrb[0].mxu0 %v759
      %v1040 = vpop.f32.mrb[0].mxu0
      %v1041 = vadd.f32 %v944, %v1040
      %v1042 = vpop.f32.mrb[0].mxu0
      %v1043 = vpop.f32.mrb[0].mxu0
      %v1044 = vadd.f32 %v947, %v1043
      %v1045 = vpop.f32.mrb[0].mxu0
      %1046 = vmatprep.mubr.bf16.mxu0 0
      %1047 = vmatmul.mubr.bf16.gmra.mrb[0].mxu0 %v762
      %v1048 = vpop.f32.mrb[0].mxu0
      %v1049 = vadd.f32 %v952, %v1048
      %v1050 = vpop.f32.mrb[0].mxu0
      %v1051 = vpop.f32.mrb[0].mxu0
      %v1052 = vadd.f32 %v955, %v1051
      %v1053 = vpop.f32.mrb[0].mxu0
      %1054 = vdwg.mxu0
      %s1055 = scalar_lea.vmem %s193, 288
      %v1056 = vld [vmem:[%s1055] sm:$0xf]
      %v1057 = vld [vmem:[%s1055 + $0x4] sm:$0xf]
      %v1058 = vld [vmem:[%s1055 + $0x8] sm:$0xf]
      %v1059 = vld [vmem:[%s1055 + $0xc] sm:$0xf]
      %v1060 = vld [vmem:[%s1055 + $0x10] sm:$0xf]
      %v1061 = vld [vmem:[%s1055 + $0x14] sm:$0xf]
      %v1062 = vld [vmem:[%s1055 + $0x18] sm:$0xf]
      %v1063 = vld [vmem:[%s1055 + $0x1c] sm:$0xf]
      %v1064 = vld [vmem:[%s1055 + $0x20] sm:$0xf]
      %v1065 = vld [vmem:[%s1055 + $0x24] sm:$0xf]
      %v1066 = vld [vmem:[%s1055 + $0x28] sm:$0xf]
      %v1067 = vld [vmem:[%s1055 + $0x2c] sm:$0xf]
      %v1068 = vld [vmem:[%s1055 + $0x30] sm:$0xf]
      %v1069 = vld [vmem:[%s1055 + $0x34] sm:$0xf]
      %v1070 = vld [vmem:[%s1055 + $0x38] sm:$0xf]
      %v1071 = vld [vmem:[%s1055 + $0x3c] sm:$0xf]
      %v1072 = vld [vmem:[%s1055 + $0x40] sm:$0xf]
      %v1073 = vld [vmem:[%s1055 + $0x44] sm:$0xf]
      %v1074 = vld [vmem:[%s1055 + $0x48] sm:$0xf]
      %v1075 = vld [vmem:[%s1055 + $0x4c] sm:$0xf]
      %v1076 = vld [vmem:[%s1055 + $0x50] sm:$0xf]
      %v1077 = vld [vmem:[%s1055 + $0x54] sm:$0xf]
      %v1078 = vld [vmem:[%s1055 + $0x58] sm:$0xf]
      %v1079 = vld [vmem:[%s1055 + $0x5c] sm:$0xf]
      %v1080 = vld [vmem:[%s1055 + $0x60] sm:$0xf]
      %v1081 = vld [vmem:[%s1055 + $0x64] sm:$0xf]
      %v1082 = vld [vmem:[%s1055 + $0x68] sm:$0xf]
      %v1083 = vld [vmem:[%s1055 + $0x6c] sm:$0xf]
      %v1084 = vld [vmem:[%s1055 + $0x70] sm:$0xf]
      %v1085 = vld [vmem:[%s1055 + $0x74] sm:$0xf]
      %v1086 = vld [vmem:[%s1055 + $0x78] sm:$0xf]
      %v1087 = vld [vmem:[%s1055 + $0x7c] sm:$0xf]
      %v1088 = vld [vmem:[%s1055 + $0x80] sm:$0xf]
      %v1089 = vld [vmem:[%s1055 + $0x84] sm:$0xf]
      %v1090 = vld [vmem:[%s1055 + $0x88] sm:$0xf]
      %v1091 = vld [vmem:[%s1055 + $0x8c] sm:$0xf]
      %v1092 = vld [vmem:[%s1055 + $0x90] sm:$0xf]
      %v1093 = vld [vmem:[%s1055 + $0x94] sm:$0xf]
      %v1094 = vld [vmem:[%s1055 + $0x98] sm:$0xf]
      %v1095 = vld [vmem:[%s1055 + $0x9c] sm:$0xf]
      %v1096 = vld [vmem:[%s1055 + $0xa0] sm:$0xf]
      %v1097 = vld [vmem:[%s1055 + $0xa4] sm:$0xf]
      %v1098 = vld [vmem:[%s1055 + $0xa8] sm:$0xf]
      %v1099 = vld [vmem:[%s1055 + $0xac] sm:$0xf]
      %v1100 = vld [vmem:[%s1055 + $0xb0] sm:$0xf]
      %v1101 = vld [vmem:[%s1055 + $0xb4] sm:$0xf]
      %v1102 = vld [vmem:[%s1055 + $0xb8] sm:$0xf]
      %v1103 = vld [vmem:[%s1055 + $0xbc] sm:$0xf]
      %v1104 = vld [vmem:[%s1055 + $0xc0] sm:$0xf]
      %v1105 = vld [vmem:[%s1055 + $0xc4] sm:$0xf]
      %v1106 = vld [vmem:[%s1055 + $0xc8] sm:$0xf]
      %v1107 = vld [vmem:[%s1055 + $0xcc] sm:$0xf]
      %v1108 = vld [vmem:[%s1055 + $0xd0] sm:$0xf]
      %v1109 = vld [vmem:[%s1055 + $0xd4] sm:$0xf]
      %v1110 = vld [vmem:[%s1055 + $0xd8] sm:$0xf]
      %v1111 = vld [vmem:[%s1055 + $0xdc] sm:$0xf]
      %v1112 = vld [vmem:[%s1055 + $0xe0] sm:$0xf]
      %v1113 = vld [vmem:[%s1055 + $0xe4] sm:$0xf]
      %v1114 = vld [vmem:[%s1055 + $0xe8] sm:$0xf]
      %v1115 = vld [vmem:[%s1055 + $0xec] sm:$0xf]
      %v1116 = vld [vmem:[%s1055 + $0xf0] sm:$0xf]
      %v1117 = vld [vmem:[%s1055 + $0xf4] sm:$0xf]
      %v1118 = vld [vmem:[%s1055 + $0xf8] sm:$0xf]
      %v1119 = vld [vmem:[%s1055 + $0xfc] sm:$0xf]
      %v1120 = vld [vmem:[%s1055 + $0x100] sm:$0xf]
      %v1121 = vld [vmem:[%s1055 + $0x104] sm:$0xf]
      %v1122 = vld [vmem:[%s1055 + $0x108] sm:$0xf]
      %v1123 = vld [vmem:[%s1055 + $0x10c] sm:$0xf]
      %v1124 = vld [vmem:[%s1055 + $0x110] sm:$0xf]
      %v1125 = vld [vmem:[%s1055 + $0x114] sm:$0xf]
      %v1126 = vld [vmem:[%s1055 + $0x118] sm:$0xf]
      %v1127 = vld [vmem:[%s1055 + $0x11c] sm:$0xf]
      %v1200 = vunpack.c.l.b16 %v1056
      %v1201 = vunpack.c.l.b16 %v1057
      %v1202 = vunpack.c.l.b16 %v1058
      %v1203 = vunpack.c.l.b16 %v1059
      %v1204 = vunpack.c.l.b16 %v1060
      %v1205 = vunpack.c.l.b16 %v1061
      %v1206 = vunpack.c.l.b16 %v1062
      %v1207 = vunpack.c.l.b16 %v1063
      %v1208 = vunpack.c.l.b16 %v1064
      %v1209 = vunpack.c.l.b16 %v1065
      %v1210 = vunpack.c.l.b16 %v1066
      %v1211 = vunpack.c.l.b16 %v1067
      %v1212 = vunpack.c.l.b16 %v1068
      %v1213 = vunpack.c.l.b16 %v1069
      %v1214 = vunpack.c.l.b16 %v1070
      %v1215 = vunpack.c.l.b16 %v1071
      %v1216 = vunpack.c.l.b16 %v1072
      %v1217 = vunpack.c.l.b16 %v1073
      %v1218 = vunpack.c.l.b16 %v1074
      %v1219 = vunpack.c.l.b16 %v1075
      %v1220 = vunpack.c.l.b16 %v1076
      %v1221 = vunpack.c.l.b16 %v1077
      %v1222 = vunpack.c.l.b16 %v1078
      %v1223 = vunpack.c.l.b16 %v1079
      %v1224 = vunpack.c.l.b16 %v1080
      %v1225 = vunpack.c.l.b16 %v1081
      %v1226 = vunpack.c.l.b16 %v1082
      %v1227 = vunpack.c.l.b16 %v1083
      %v1228 = vunpack.c.l.b16 %v1084
      %v1229 = vunpack.c.l.b16 %v1085
      %v1230 = vunpack.c.l.b16 %v1086
      %v1231 = vunpack.c.l.b16 %v1087
      %v1232 = vunpack.c.l.b16 %v1088
      %v1233 = vunpack.c.l.b16 %v1089
      %v1234 = vunpack.c.l.b16 %v1090
      %v1235 = vunpack.c.l.b16 %v1091
      %v1236 = vunpack.c.l.b16 %v1092
      %v1237 = vunpack.c.l.b16 %v1093
      %v1238 = vunpack.c.l.b16 %v1094
      %v1239 = vunpack.c.l.b16 %v1095
      %v1240 = vunpack.c.l.b16 %v1096
      %v1241 = vunpack.c.l.b16 %v1097
      %v1242 = vunpack.c.l.b16 %v1098
      %v1243 = vunpack.c.l.b16 %v1099
      %v1244 = vunpack.c.l.b16 %v1100
      %v1245 = vunpack.c.l.b16 %v1101
      %v1246 = vunpack.c.l.b16 %v1102
      %v1247 = vunpack.c.l.b16 %v1103
      %v1248 = vunpack.c.l.b16 %v1104
      %v1249 = vunpack.c.l.b16 %v1105
      %v1250 = vunpack.c.l.b16 %v1106
      %v1251 = vunpack.c.l.b16 %v1107
      %v1252 = vunpack.c.l.b16 %v1108
      %v1253 = vunpack.c.l.b16 %v1109
      %v1254 = vunpack.c.l.b16 %v1110
      %v1255 = vunpack.c.l.b16 %v1111
      %v1256 = vunpack.c.l.b16 %v1112
      %v1257 = vunpack.c.l.b16 %v1113
      %v1258 = vunpack.c.l.b16 %v1114
      %v1259 = vunpack.c.l.b16 %v1115
      %v1260 = vunpack.c.l.b16 %v1116
      %v1261 = vunpack.c.l.b16 %v1117
      %v1262 = vunpack.c.l.b16 %v1118
      %v1263 = vunpack.c.l.b16 %v1119
      %v1264 = vunpack.c.l.b16 %v1120
      %v1265 = vunpack.c.l.b16 %v1121
      %v1266 = vunpack.c.l.b16 %v1122
      %v1267 = vunpack.c.l.b16 %v1123
      %v1268 = vunpack.c.l.b16 %v1124
      %v1269 = vunpack.c.l.b16 %v1125
      %v1270 = vunpack.c.l.b16 %v1126
      %v1271 = vunpack.c.l.b16 %v1127
      %v1272 = vpack.c.b16 %v1201, %v1200
      %v1273 = vpack.c.b16 %v1203, %v1202
      %v1274 = vpack.c.b16 %v1205, %v1204
      %v1275 = vpack.c.b16 %v1207, %v1206
      %v1276 = vpack.c.b16 %v1209, %v1208
      %v1277 = vpack.c.b16 %v1211, %v1210
      %v1278 = vpack.c.b16 %v1213, %v1212
      %v1279 = vpack.c.b16 %v1215, %v1214
      %v1280 = vpack.c.b16 %v1217, %v1216
      %v1281 = vpack.c.b16 %v1219, %v1218
      %v1282 = vpack.c.b16 %v1221, %v1220
      %v1283 = vpack.c.b16 %v1223, %v1222
      %v1284 = vpack.c.b16 %v1225, %v1224
      %v1285 = vpack.c.b16 %v1227, %v1226
      %v1286 = vpack.c.b16 %v1229, %v1228
      %v1287 = vpack.c.b16 %v1231, %v1230
      %v1288 = vpack.c.b16 %v1233, %v1232
      %v1289 = vpack.c.b16 %v1235, %v1234
      %v1290 = vpack.c.b16 %v1237, %v1236
      %v1291 = vpack.c.b16 %v1239, %v1238
      %v1292 = vpack.c.b16 %v1241, %v1240
      %v1293 = vpack.c.b16 %v1243, %v1242
      %v1294 = vpack.c.b16 %v1245, %v1244
      %v1295 = vpack.c.b16 %v1247, %v1246
      %v1296 = vpack.c.b16 %v1249, %v1248
      %v1297 = vpack.c.b16 %v1251, %v1250
      %v1298 = vpack.c.b16 %v1253, %v1252
      %v1299 = vpack.c.b16 %v1255, %v1254
      %v1300 = vpack.c.b16 %v1257, %v1256
      %v1301 = vpack.c.b16 %v1259, %v1258
      %v1302 = vpack.c.b16 %v1261, %v1260
      %v1303 = vpack.c.b16 %v1263, %v1262
      %v1304 = vpack.c.b16 %v1265, %v1264
      %v1305 = vpack.c.b16 %v1267, %v1266
      %v1306 = vpack.c.b16 %v1269, %v1268
      %v1307 = vpack.c.b16 %v1271, %v1270
      %1344 = vmatprep.subr.bf16.mxu0 0
      %1345 = vmatpush1.bf16.msra.mxu0 %v1272
      %1346 = vmatprep.subr.bf16.mxu0 0
      %1347 = vmatpush1.bf16.msra.mxu0 %v1273
      %1348 = vmatprep.subr.bf16.mxu0 0
      %1349 = vmatpush1.bf16.msra.mxu0 %v1274
      %1350 = vmatprep.subr.bf16.mxu0 0
      %1351 = vmatpush1.bf16.msra.mxu0 %v1275
      %1352 = vmatprep.subr.bf16.mxu0 0
      %1353 = vmatpush1.bf16.msra.mxu0 %v1276
      %1354 = vmatprep.subr.bf16.mxu0 0
      %1355 = vmatpush1.bf16.msra.mxu0 %v1277
      %1356 = vmatprep.subr.bf16.mxu0 0
      %1357 = vmatpush1.bf16.msra.mxu0 %v1278
      %1358 = vmatprep.subr.bf16.mxu0 0
      %1359 = vmatpush1.bf16.msra.mxu0 %v1279
      %1360 = vmatprep.subr.bf16.mxu0 0
      %1361 = vmatpush1.bf16.msra.mxu0 %v1280
      %1362 = vmatprep.subr.bf16.mxu0 0
      %1363 = vmatpush1.bf16.msra.mxu0 %v1281
      %1364 = vmatprep.subr.bf16.mxu0 0
      %1365 = vmatpush1.bf16.msra.mxu0 %v1282
      %1366 = vmatprep.subr.bf16.mxu0 0
      %1367 = vmatpush1.bf16.msra.mxu0 %v1283
      %1368 = vmatprep.subr.bf16.mxu0 0
      %1369 = vmatpush1.bf16.msra.mxu0 %v1284
      %1370 = vmatprep.subr.bf16.mxu0 0
      %1371 = vmatpush1.bf16.msra.mxu0 %v1285
      %1372 = vmatprep.subr.bf16.mxu0 0
      %1373 = vmatpush1.bf16.msra.mxu0 %v1286
      %1374 = vmatprep.subr.bf16.mxu0 0
      %1375 = vmatpush1.bf16.msra.mxu0 %v1287
      %1376 = vmatprep.mubr.bf16.mxu0 %v452
      %1377 = vmatmul.mubr.bf16.gmra.mrb[0].mxu0 %v451
      %v1378 = vpop.f32.mrb[0].mxu0
      %v1379 = vadd.f32 0.0, %v1378
      %v1380 = vpop.f32.mrb[0].mxu0
      %v1381 = vpop.f32.mrb[0].mxu0
      %v1382 = vadd.f32 0.0, %v1381
      %v1383 = vpop.f32.mrb[0].mxu0
      %1384 = vmatprep.mubr.bf16.mxu0 %v457
      %1385 = vmatmul.mubr.bf16.gmra.mrb[0].mxu0 %v456
      %v1386 = vpop.f32.mrb[0].mxu0
      %v1387 = vadd.f32 0.0, %v1386
      %v1388 = vpop.f32.mrb[0].mxu0
      %v1389 = vpop.f32.mrb[0].mxu0
      %v1390 = vadd.f32 0.0, %v1389
      %v1391 = vpop.f32.mrb[0].mxu0
      %1392 = vmatprep.mubr.bf16.mxu0 %v462
      %1393 = vmatmul.mubr.bf16.gmra.mrb[0].mxu0 %v461
      %v1394 = vpop.f32.mrb[0].mxu0
      %v1395 = vadd.f32 0.0, %v1394
      %v1396 = vpop.f32.mrb[0].mxu0
      %v1397 = vpop.f32.mrb[0].mxu0
      %v1398 = vadd.f32 0.0, %v1397
      %v1399 = vpop.f32.mrb[0].mxu0
      %1400 = vmatprep.mubr.bf16.mxu0 %v467
      %1401 = vmatmul.mubr.bf16.gmra.mrb[0].mxu0 %v466
      %v1402 = vpop.f32.mrb[0].mxu0
      %v1403 = vadd.f32 0.0, %v1402
      %v1404 = vpop.f32.mrb[0].mxu0
      %v1405 = vpop.f32.mrb[0].mxu0
      %v1406 = vadd.f32 0.0, %v1405
      %v1407 = vpop.f32.mrb[0].mxu0
      %1408 = vmatprep.mubr.bf16.mxu0 %v472
      %1409 = vmatmul.mubr.bf16.gmra.mrb[0].mxu0 %v471
      %v1410 = vpop.f32.mrb[0].mxu0
      %v1411 = vadd.f32 0.0, %v1410
      %v1412 = vpop.f32.mrb[0].mxu0
      %v1413 = vpop.f32.mrb[0].mxu0
      %v1414 = vadd.f32 0.0, %v1413
      %v1415 = vpop.f32.mrb[0].mxu0
      %1416 = vmatprep.mubr.bf16.mxu0 %v477
      %1417 = vmatmul.mubr.bf16.gmra.mrb[0].mxu0 %v476
      %v1418 = vpop.f32.mrb[0].mxu0
      %v1419 = vadd.f32 0.0, %v1418
      %v1420 = vpop.f32.mrb[0].mxu0
      %v1421 = vpop.f32.mrb[0].mxu0
      %v1422 = vadd.f32 0.0, %v1421
      %v1423 = vpop.f32.mrb[0].mxu0
      %1424 = vmatprep.mubr.bf16.mxu0 %v482
      %1425 = vmatmul.mubr.bf16.gmra.mrb[0].mxu0 %v481
      %v1426 = vpop.f32.mrb[0].mxu0
      %v1427 = vadd.f32 0.0, %v1426
      %v1428 = vpop.f32.mrb[0].mxu0
      %v1429 = vpop.f32.mrb[0].mxu0
      %v1430 = vadd.f32 0.0, %v1429
      %v1431 = vpop.f32.mrb[0].mxu0
      %1432 = vmatprep.mubr.bf16.mxu0 %v487
      %1433 = vmatmul.mubr.bf16.gmra.mrb[0].mxu0 %v486
      %v1434 = vpop.f32.mrb[0].mxu0
      %v1435 = vadd.f32 0.0, %v1434
      %v1436 = vpop.f32.mrb[0].mxu0
      %v1437 = vpop.f32.mrb[0].mxu0
      %v1438 = vadd.f32 0.0, %v1437
      %v1439 = vpop.f32.mrb[0].mxu0
      %1440 = vdwg.mxu0
      %1441 = vmatprep.subr.bf16.mxu0 0
      %1442 = vmatpush1.bf16.msra.mxu0 %v1288
      %1443 = vmatprep.subr.bf16.mxu0 0
      %1444 = vmatpush1.bf16.msra.mxu0 %v1289
      %1445 = vmatprep.subr.bf16.mxu0 0
      %1446 = vmatpush1.bf16.msra.mxu0 %v1290
      %1447 = vmatprep.subr.bf16.mxu0 0
      %1448 = vmatpush1.bf16.msra.mxu0 %v1291
      %1449 = vmatprep.subr.bf16.mxu0 0
      %1450 = vmatpush1.bf16.msra.mxu0 %v1292
      %1451 = vmatprep.subr.bf16.mxu0 0
      %1452 = vmatpush1.bf16.msra.mxu0 %v1293
      %1453 = vmatprep.subr.bf16.mxu0 0
      %1454 = vmatpush1.bf16.msra.mxu0 %v1294
      %1455 = vmatprep.subr.bf16.mxu0 0
      %1456 = vmatpush1.bf16.msra.mxu0 %v1295
      %1457 = vmatprep.subr.bf16.mxu0 0
      %1458 = vmatpush1.bf16.msra.mxu0 %v1296
      %1459 = vmatprep.subr.bf16.mxu0 0
      %1460 = vmatpush1.bf16.msra.mxu0 %v1297
      %1461 = vmatprep.subr.bf16.mxu0 0
      %1462 = vmatpush1.bf16.msra.mxu0 %v1298
      %1463 = vmatprep.subr.bf16.mxu0 0
      %1464 = vmatpush1.bf16.msra.mxu0 %v1299
      %1465 = vmatprep.subr.bf16.mxu0 0
      %1466 = vmatpush1.bf16.msra.mxu0 %v1300
      %1467 = vmatprep.subr.bf16.mxu0 0
      %1468 = vmatpush1.bf16.msra.mxu0 %v1301
      %1469 = vmatprep.subr.bf16.mxu0 0
      %1470 = vmatpush1.bf16.msra.mxu0 %v1302
      %1471 = vmatprep.subr.bf16.mxu0 0
      %1472 = vmatpush1.bf16.msra.mxu0 %v1303
      %1473 = vmatprep.mubr.bf16.mxu0 %v454
      %1474 = vmatmul.mubr.bf16.gmra.mrb[0].mxu0 %v453
      %v1475 = vpop.f32.mrb[0].mxu0
      %v1476 = vadd.f32 %v1379, %v1475
      %v1477 = vpop.f32.mrb[0].mxu0
      %v1478 = vpop.f32.mrb[0].mxu0
      %v1479 = vadd.f32 %v1382, %v1478
      %v1480 = vpop.f32.mrb[0].mxu0
      %1481 = vmatprep.mubr.bf16.mxu0 %v459
      %1482 = vmatmul.mubr.bf16.gmra.mrb[0].mxu0 %v458
      %v1483 = vpop.f32.mrb[0].mxu0
      %v1484 = vadd.f32 %v1387, %v1483
      %v1485 = vpop.f32.mrb[0].mxu0
      %v1486 = vpop.f32.mrb[0].mxu0
      %v1487 = vadd.f32 %v1390, %v1486
      %v1488 = vpop.f32.mrb[0].mxu0
      %1489 = vmatprep.mubr.bf16.mxu0 %v464
      %1490 = vmatmul.mubr.bf16.gmra.mrb[0].mxu0 %v463
      %v1491 = vpop.f32.mrb[0].mxu0
      %v1492 = vadd.f32 %v1395, %v1491
      %v1493 = vpop.f32.mrb[0].mxu0
      %v1494 = vpop.f32.mrb[0].mxu0
      %v1495 = vadd.f32 %v1398, %v1494
      %v1496 = vpop.f32.mrb[0].mxu0
      %1497 = vmatprep.mubr.bf16.mxu0 %v469
      %1498 = vmatmul.mubr.bf16.gmra.mrb[0].mxu0 %v468
      %v1499 = vpop.f32.mrb[0].mxu0
      %v1500 = vadd.f32 %v1403, %v1499
      %v1501 = vpop.f32.mrb[0].mxu0
      %v1502 = vpop.f32.mrb[0].mxu0
      %v1503 = vadd.f32 %v1406, %v1502
      %v1504 = vpop.f32.mrb[0].mxu0
      %1505 = vmatprep.mubr.bf16.mxu0 %v474
      %1506 = vmatmul.mubr.bf16.gmra.mrb[0].mxu0 %v473
      %v1507 = vpop.f32.mrb[0].mxu0
      %v1508 = vadd.f32 %v1411, %v1507
      %v1509 = vpop.f32.mrb[0].mxu0
      %v1510 = vpop.f32.mrb[0].mxu0
      %v1511 = vadd.f32 %v1414, %v1510
      %v1512 = vpop.f32.mrb[0].mxu0
      %1513 = vmatprep.mubr.bf16.mxu0 %v479
      %1514 = vmatmul.mubr.bf16.gmra.mrb[0].mxu0 %v478
      %v1515 = vpop.f32.mrb[0].mxu0
      %v1516 = vadd.f32 %v1419, %v1515
      %v1517 = vpop.f32.mrb[0].mxu0
      %v1518 = vpop.f32.mrb[0].mxu0
      %v1519 = vadd.f32 %v1422, %v1518
      %v1520 = vpop.f32.mrb[0].mxu0
      %1521 = vmatprep.mubr.bf16.mxu0 %v484
      %1522 = vmatmul.mubr.bf16.gmra.mrb[0].mxu0 %v483
      %v1523 = vpop.f32.mrb[0].mxu0
      %v1524 = vadd.f32 %v1427, %v1523
      %v1525 = vpop.f32.mrb[0].mxu0
      %v1526 = vpop.f32.mrb[0].mxu0
      %v1527 = vadd.f32 %v1430, %v1526
      %v1528 = vpop.f32.mrb[0].mxu0
      %1529 = vmatprep.mubr.bf16.mxu0 %v489
      %1530 = vmatmul.mubr.bf16.gmra.mrb[0].mxu0 %v488
      %v1531 = vpop.f32.mrb[0].mxu0
      %v1532 = vadd.f32 %v1435, %v1531
      %v1533 = vpop.f32.mrb[0].mxu0
      %v1534 = vpop.f32.mrb[0].mxu0
      %v1535 = vadd.f32 %v1438, %v1534
      %v1536 = vpop.f32.mrb[0].mxu0
      %1537 = vdwg.mxu0
      %1538 = vmatprep.subr.bf16.mxu0 0
      %1539 = vmatpush1.bf16.msra.mxu0 %v1304
      %1540 = vmatprep.subr.bf16.mxu0 0
      %1541 = vmatpush1.bf16.msra.mxu0 %v1305
      %1542 = vmatprep.subr.bf16.mxu0 0
      %1543 = vmatpush1.bf16.msra.mxu0 %v1306
      %1544 = vmatprep.subr.bf16.mxu0 0
      %1545 = vmatpush1.bf16.msra.mxu0 %v1307
      %1546 = vmatprep.subr.bf16.mxu0 0
      %1547 = vmatpush1.bf16.msra.mxu0 0
      %1548 = vmatprep.subr.bf16.mxu0 0
      %1549 = vmatpush1.bf16.msra.mxu0 0
      %1550 = vmatprep.subr.bf16.mxu0 0
      %1551 = vmatpush1.bf16.msra.mxu0 0
      %1552 = vmatprep.subr.bf16.mxu0 0
      %1553 = vmatpush1.bf16.msra.mxu0 0
      %1554 = vmatprep.subr.bf16.mxu0 0
      %1555 = vmatpush1.bf16.msra.mxu0 0
      %1556 = vmatprep.subr.bf16.mxu0 0
      %1557 = vmatpush1.bf16.msra.mxu0 0
      %1558 = vmatprep.subr.bf16.mxu0 0
      %1559 = vmatpush1.bf16.msra.mxu0 0
      %1560 = vmatprep.subr.bf16.mxu0 0
      %1561 = vmatpush1.bf16.msra.mxu0 0
      %1562 = vmatprep.subr.bf16.mxu0 0
      %1563 = vmatpush1.bf16.msra.mxu0 0
      %1564 = vmatprep.subr.bf16.mxu0 0
      %1565 = vmatpush1.bf16.msra.mxu0 0
      %1566 = vmatprep.subr.bf16.mxu0 0
      %1567 = vmatpush1.bf16.msra.mxu0 0
      %1568 = vmatprep.subr.bf16.mxu0 0
      %1569 = vmatpush1.bf16.msra.mxu0 0
      %1570 = vmatprep.mubr.bf16.mxu0 0
      %1571 = vmatmul.mubr.bf16.gmra.mrb[0].mxu0 %v741
      %v1572 = vpop.f32.mrb[0].mxu0
      %v1573 = vadd.f32 %v1476, %v1572
      %v1574 = vpop.f32.mrb[0].mxu0
      %v1575 = vpop.f32.mrb[0].mxu0
      %v1576 = vadd.f32 %v1479, %v1575
      %v1577 = vpop.f32.mrb[0].mxu0
      %1578 = vmatprep.mubr.bf16.mxu0 0
      %1579 = vmatmul.mubr.bf16.gmra.mrb[0].mxu0 %v744
      %v1580 = vpop.f32.mrb[0].mxu0
      %v1581 = vadd.f32 %v1484, %v1580
      %v1582 = vpop.f32.mrb[0].mxu0
      %v1583 = vpop.f32.mrb[0].mxu0
      %v1584 = vadd.f32 %v1487, %v1583
      %v1585 = vpop.f32.mrb[0].mxu0
      %1586 = vmatprep.mubr.bf16.mxu0 0
      %1587 = vmatmul.mubr.bf16.gmra.mrb[0].mxu0 %v747
      %v1588 = vpop.f32.mrb[0].mxu0
      %v1589 = vadd.f32 %v1492, %v1588
      %v1590 = vpop.f32.mrb[0].mxu0
      %v1591 = vpop.f32.mrb[0].mxu0
      %v1592 = vadd.f32 %v1495, %v1591
      %v1593 = vpop.f32.mrb[0].mxu0
      %1594 = vmatprep.mubr.bf16.mxu0 0
      %1595 = vmatmul.mubr.bf16.gmra.mrb[0].mxu0 %v750
      %v1596 = vpop.f32.mrb[0].mxu0
      %v1597 = vadd.f32 %v1500, %v1596
      %v1598 = vpop.f32.mrb[0].mxu0
      %v1599 = vpop.f32.mrb[0].mxu0
      %v1600 = vadd.f32 %v1503, %v1599
      %v1601 = vpop.f32.mrb[0].mxu0
      %1602 = vmatprep.mubr.bf16.mxu0 0
      %1603 = vmatmul.mubr.bf16.gmra.mrb[0].mxu0 %v753
      %v1604 = vpop.f32.mrb[0].mxu0
      %v1605 = vadd.f32 %v1508, %v1604
      %v1606 = vpop.f32.mrb[0].mxu0
      %v1607 = vpop.f32.mrb[0].mxu0
      %v1608 = vadd.f32 %v1511, %v1607
      %v1609 = vpop.f32.mrb[0].mxu0
      %1610 = vmatprep.mubr.bf16.mxu0 0
      %1611 = vmatmul.mubr.bf16.gmra.mrb[0].mxu0 %v756
      %v1612 = vpop.f32.mrb[0].mxu0
      %v1613 = vadd.f32 %v1516, %v1612
      %v1614 = vpop.f32.mrb[0].mxu0
      %v1615 = vpop.f32.mrb[0].mxu0
      %v1616 = vadd.f32 %v1519, %v1615
      %v1617 = vpop.f32.mrb[0].mxu0
      %1618 = vmatprep.mubr.bf16.mxu0 0
      %1619 = vmatmul.mubr.bf16.gmra.mrb[0].mxu0 %v759
      %v1620 = vpop.f32.mrb[0].mxu0
      %v1621 = vadd.f32 %v1524, %v1620
      %v1622 = vpop.f32.mrb[0].mxu0
      %v1623 = vpop.f32.mrb[0].mxu0
      %v1624 = vadd.f32 %v1527, %v1623
      %v1625 = vpop.f32.mrb[0].mxu0
      %1626 = vmatprep.mubr.bf16.mxu0 0
      %1627 = vmatmul.mubr.bf16.gmra.mrb[0].mxu0 %v762
      %v1628 = vpop.f32.mrb[0].mxu0
      %v1629 = vadd.f32 %v1532, %v1628
      %v1630 = vpop.f32.mrb[0].mxu0
      %v1631 = vpop.f32.mrb[0].mxu0
      %v1632 = vadd.f32 %v1535, %v1631
      %v1633 = vpop.f32.mrb[0].mxu0
      %1634 = vdwg.mxu0
      %v1635 = vmax.f32 %v993, %v1573
      %v1636 = vmax.f32 %v996, %v1576
      %v1637 = vmax.f32 %v1001, %v1581
      %v1638 = vmax.f32 %v1004, %v1584
      %v1639 = vmax.f32 %v1009, %v1589
      %v1640 = vmax.f32 %v1012, %v1592
      %v1641 = vmax.f32 %v1017, %v1597
      %v1642 = vmax.f32 %v1020, %v1600
      %v1643 = vmax.f32 %v1025, %v1605
      %v1644 = vmax.f32 %v1028, %v1608
      %v1645 = vmax.f32 %v1033, %v1613
      %v1646 = vmax.f32 %v1036, %v1616
      %v1647 = vmax.f32 %v1041, %v1621
      %v1648 = vmax.f32 %v1044, %v1624
      %v1649 = vmax.f32 %v1049, %v1629
      %v1650 = vmax.f32 %v1052, %v1632
      %s1651 = scalar_lea.vmem %s193, 576
      %v1652 = vld [vmem:[%s1651] sm:$0xf]
      %v1653 = vld [vmem:[%s1651 + $0x4] sm:$0xf]
      %v1654 = vld [vmem:[%s1651 + $0x8] sm:$0xf]
      %v1655 = vld [vmem:[%s1651 + $0xc] sm:$0xf]
      %v1656 = vld [vmem:[%s1651 + $0x10] sm:$0xf]
      %v1657 = vld [vmem:[%s1651 + $0x14] sm:$0xf]
      %v1658 = vld [vmem:[%s1651 + $0x18] sm:$0xf]
      %v1659 = vld [vmem:[%s1651 + $0x1c] sm:$0xf]
      %v1660 = vld [vmem:[%s1651 + $0x20] sm:$0xf]
      %v1661 = vld [vmem:[%s1651 + $0x24] sm:$0xf]
      %v1662 = vld [vmem:[%s1651 + $0x28] sm:$0xf]
      %v1663 = vld [vmem:[%s1651 + $0x2c] sm:$0xf]
      %v1664 = vld [vmem:[%s1651 + $0x30] sm:$0xf]
      %v1665 = vld [vmem:[%s1651 + $0x34] sm:$0xf]
      %v1666 = vld [vmem:[%s1651 + $0x38] sm:$0xf]
      %v1667 = vld [vmem:[%s1651 + $0x3c] sm:$0xf]
      %v1668 = vld [vmem:[%s1651 + $0x40] sm:$0xf]
      %v1669 = vld [vmem:[%s1651 + $0x44] sm:$0xf]
      %v1670 = vld [vmem:[%s1651 + $0x48] sm:$0xf]
      %v1671 = vld [vmem:[%s1651 + $0x4c] sm:$0xf]
      %v1672 = vld [vmem:[%s1651 + $0x50] sm:$0xf]
      %v1673 = vld [vmem:[%s1651 + $0x54] sm:$0xf]
      %v1674 = vld [vmem:[%s1651 + $0x58] sm:$0xf]
      %v1675 = vld [vmem:[%s1651 + $0x5c] sm:$0xf]
      %v1676 = vld [vmem:[%s1651 + $0x60] sm:$0xf]
      %v1677 = vld [vmem:[%s1651 + $0x64] sm:$0xf]
      %v1678 = vld [vmem:[%s1651 + $0x68] sm:$0xf]
      %v1679 = vld [vmem:[%s1651 + $0x6c] sm:$0xf]
      %v1680 = vld [vmem:[%s1651 + $0x70] sm:$0xf]
      %v1681 = vld [vmem:[%s1651 + $0x74] sm:$0xf]
      %v1682 = vld [vmem:[%s1651 + $0x78] sm:$0xf]
      %v1683 = vld [vmem:[%s1651 + $0x7c] sm:$0xf]
      %v1684 = vld [vmem:[%s1651 + $0x80] sm:$0xf]
      %v1685 = vld [vmem:[%s1651 + $0x84] sm:$0xf]
      %v1686 = vld [vmem:[%s1651 + $0x88] sm:$0xf]
      %v1687 = vld [vmem:[%s1651 + $0x8c] sm:$0xf]
      %v1688 = vld [vmem:[%s1651 + $0x90] sm:$0xf]
      %v1689 = vld [vmem:[%s1651 + $0x94] sm:$0xf]
      %v1690 = vld [vmem:[%s1651 + $0x98] sm:$0xf]
      %v1691 = vld [vmem:[%s1651 + $0x9c] sm:$0xf]
      %v1692 = vld [vmem:[%s1651 + $0xa0] sm:$0xf]
      %v1693 = vld [vmem:[%s1651 + $0xa4] sm:$0xf]
      %v1694 = vld [vmem:[%s1651 + $0xa8] sm:$0xf]
      %v1695 = vld [vmem:[%s1651 + $0xac] sm:$0xf]
      %v1696 = vld [vmem:[%s1651 + $0xb0] sm:$0xf]
      %v1697 = vld [vmem:[%s1651 + $0xb4] sm:$0xf]
      %v1698 = vld [vmem:[%s1651 + $0xb8] sm:$0xf]
      %v1699 = vld [vmem:[%s1651 + $0xbc] sm:$0xf]
      %v1700 = vld [vmem:[%s1651 + $0xc0] sm:$0xf]
      %v1701 = vld [vmem:[%s1651 + $0xc4] sm:$0xf]
      %v1702 = vld [vmem:[%s1651 + $0xc8] sm:$0xf]
      %v1703 = vld [vmem:[%s1651 + $0xcc] sm:$0xf]
      %v1704 = vld [vmem:[%s1651 + $0xd0] sm:$0xf]
      %v1705 = vld [vmem:[%s1651 + $0xd4] sm:$0xf]
      %v1706 = vld [vmem:[%s1651 + $0xd8] sm:$0xf]
      %v1707 = vld [vmem:[%s1651 + $0xdc] sm:$0xf]
      %v1708 = vld [vmem:[%s1651 + $0xe0] sm:$0xf]
      %v1709 = vld [vmem:[%s1651 + $0xe4] sm:$0xf]
      %v1710 = vld [vmem:[%s1651 + $0xe8] sm:$0xf]
      %v1711 = vld [vmem:[%s1651 + $0xec] sm:$0xf]
      %v1712 = vld [vmem:[%s1651 + $0xf0] sm:$0xf]
      %v1713 = vld [vmem:[%s1651 + $0xf4] sm:$0xf]
      %v1714 = vld [vmem:[%s1651 + $0xf8] sm:$0xf]
      %v1715 = vld [vmem:[%s1651 + $0xfc] sm:$0xf]
      %v1716 = vld [vmem:[%s1651 + $0x100] sm:$0xf]
      %v1717 = vld [vmem:[%s1651 + $0x104] sm:$0xf]
      %v1718 = vld [vmem:[%s1651 + $0x108] sm:$0xf]
      %v1719 = vld [vmem:[%s1651 + $0x10c] sm:$0xf]
      %v1720 = vld [vmem:[%s1651 + $0x110] sm:$0xf]
      %v1721 = vld [vmem:[%s1651 + $0x114] sm:$0xf]
      %v1722 = vld [vmem:[%s1651 + $0x118] sm:$0xf]
      %v1723 = vld [vmem:[%s1651 + $0x11c] sm:$0xf]
      %v1796 = vunpack.c.l.b16 %v1652
      %v1797 = vunpack.c.l.b16 %v1653
      %v1798 = vunpack.c.l.b16 %v1654
      %v1799 = vunpack.c.l.b16 %v1655
      %v1800 = vunpack.c.l.b16 %v1656
      %v1801 = vunpack.c.l.b16 %v1657
      %v1802 = vunpack.c.l.b16 %v1658
      %v1803 = vunpack.c.l.b16 %v1659
      %v1804 = vunpack.c.l.b16 %v1660
      %v1805 = vunpack.c.l.b16 %v1661
      %v1806 = vunpack.c.l.b16 %v1662
      %v1807 = vunpack.c.l.b16 %v1663
      %v1808 = vunpack.c.l.b16 %v1664
      %v1809 = vunpack.c.l.b16 %v1665
      %v1810 = vunpack.c.l.b16 %v1666
      %v1811 = vunpack.c.l.b16 %v1667
      %v1812 = vunpack.c.l.b16 %v1668
      %v1813 = vunpack.c.l.b16 %v1669
      %v1814 = vunpack.c.l.b16 %v1670
      %v1815 = vunpack.c.l.b16 %v1671
      %v1816 = vunpack.c.l.b16 %v1672
      %v1817 = vunpack.c.l.b16 %v1673
      %v1818 = vunpack.c.l.b16 %v1674
      %v1819 = vunpack.c.l.b16 %v1675
      %v1820 = vunpack.c.l.b16 %v1676
      %v1821 = vunpack.c.l.b16 %v1677
      %v1822 = vunpack.c.l.b16 %v1678
      %v1823 = vunpack.c.l.b16 %v1679
      %v1824 = vunpack.c.l.b16 %v1680
      %v1825 = vunpack.c.l.b16 %v1681
      %v1826 = vunpack.c.l.b16 %v1682
      %v1827 = vunpack.c.l.b16 %v1683
      %v1828 = vunpack.c.l.b16 %v1684
      %v1829 = vunpack.c.l.b16 %v1685
      %v1830 = vunpack.c.l.b16 %v1686
      %v1831 = vunpack.c.l.b16 %v1687
      %v1832 = vunpack.c.l.b16 %v1688
      %v1833 = vunpack.c.l.b16 %v1689
      %v1834 = vunpack.c.l.b16 %v1690
      %v1835 = vunpack.c.l.b16 %v1691
      %v1836 = vunpack.c.l.b16 %v1692
      %v1837 = vunpack.c.l.b16 %v1693
      %v1838 = vunpack.c.l.b16 %v1694
      %v1839 = vunpack.c.l.b16 %v1695
      %v1840 = vunpack.c.l.b16 %v1696
      %v1841 = vunpack.c.l.b16 %v1697
      %v1842 = vunpack.c.l.b16 %v1698
      %v1843 = vunpack.c.l.b16 %v1699
      %v1844 = vunpack.c.l.b16 %v1700
      %v1845 = vunpack.c.l.b16 %v1701
      %v1846 = vunpack.c.l.b16 %v1702
      %v1847 = vunpack.c.l.b16 %v1703
      %v1848 = vunpack.c.l.b16 %v1704
      %v1849 = vunpack.c.l.b16 %v1705
      %v1850 = vunpack.c.l.b16 %v1706
      %v1851 = vunpack.c.l.b16 %v1707
      %v1852 = vunpack.c.l.b16 %v1708
      %v1853 = vunpack.c.l.b16 %v1709
      %v1854 = vunpack.c.l.b16 %v1710
      %v1855 = vunpack.c.l.b16 %v1711
      %v1856 = vunpack.c.l.b16 %v1712
      %v1857 = vunpack.c.l.b16 %v1713
      %v1858 = vunpack.c.l.b16 %v1714
      %v1859 = vunpack.c.l.b16 %v1715
      %v1860 = vunpack.c.l.b16 %v1716
      %v1861 = vunpack.c.l.b16 %v1717
      %v1862 = vunpack.c.l.b16 %v1718
      %v1863 = vunpack.c.l.b16 %v1719
      %v1864 = vunpack.c.l.b16 %v1720
      %v1865 = vunpack.c.l.b16 %v1721
      %v1866 = vunpack.c.l.b16 %v1722
      %v1867 = vunpack.c.l.b16 %v1723
      %v1868 = vpack.c.b16 %v1797, %v1796
      %v1869 = vpack.c.b16 %v1799, %v1798
      %v1870 = vpack.c.b16 %v1801, %v1800
      %v1871 = vpack.c.b16 %v1803, %v1802
      %v1872 = vpack.c.b16 %v1805, %v1804
      %v1873 = vpack.c.b16 %v1807, %v1806
      %v1874 = vpack.c.b16 %v1809, %v1808
      %v1875 = vpack.c.b16 %v1811, %v1810
      %v1876 = vpack.c.b16 %v1813, %v1812
      %v1877 = vpack.c.b16 %v1815, %v1814
      %v1878 = vpack.c.b16 %v1817, %v1816
      %v1879 = vpack.c.b16 %v1819, %v1818
      %v1880 = vpack.c.b16 %v1821, %v1820
      %v1881 = vpack.c.b16 %v1823, %v1822
      %v1882 = vpack.c.b16 %v1825, %v1824
      %v1883 = vpack.c.b16 %v1827, %v1826
      %v1884 = vpack.c.b16 %v1829, %v1828
      %v1885 = vpack.c.b16 %v1831, %v1830
      %v1886 = vpack.c.b16 %v1833, %v1832
      %v1887 = vpack.c.b16 %v1835, %v1834
      %v1888 = vpack.c.b16 %v1837, %v1836
      %v1889 = vpack.c.b16 %v1839, %v1838
      %v1890 = vpack.c.b16 %v1841, %v1840
      %v1891 = vpack.c.b16 %v1843, %v1842
      %v1892 = vpack.c.b16 %v1845, %v1844
      %v1893 = vpack.c.b16 %v1847, %v1846
      %v1894 = vpack.c.b16 %v1849, %v1848
      %v1895 = vpack.c.b16 %v1851, %v1850
      %v1896 = vpack.c.b16 %v1853, %v1852
      %v1897 = vpack.c.b16 %v1855, %v1854
      %v1898 = vpack.c.b16 %v1857, %v1856
      %v1899 = vpack.c.b16 %v1859, %v1858
      %v1900 = vpack.c.b16 %v1861, %v1860
      %v1901 = vpack.c.b16 %v1863, %v1862
      %v1902 = vpack.c.b16 %v1865, %v1864
      %v1903 = vpack.c.b16 %v1867, %v1866
      %1940 = vmatprep.subr.bf16.mxu0 0
      %1941 = vmatpush1.bf16.msra.mxu0 %v1868
      %1942 = vmatprep.subr.bf16.mxu0 0
      %1943 = vmatpush1.bf16.msra.mxu0 %v1869
      %1944 = vmatprep.subr.bf16.mxu0 0
      %1945 = vmatpush1.bf16.msra.mxu0 %v1870
      %1946 = vmatprep.subr.bf16.mxu0 0
      %1947 = vmatpush1.bf16.msra.mxu0 %v1871
      %1948 = vmatprep.subr.bf16.mxu0 0
      %1949 = vmatpush1.bf16.msra.mxu0 %v1872
      %1950 = vmatprep.subr.bf16.mxu0 0
      %1951 = vmatpush1.bf16.msra.mxu0 %v1873
      %1952 = vmatprep.subr.bf16.mxu0 0
      %1953 = vmatpush1.bf16.msra.mxu0 %v1874
      %1954 = vmatprep.subr.bf16.mxu0 0
      %1955 = vmatpush1.bf16.msra.mxu0 %v1875
      %1956 = vmatprep.subr.bf16.mxu0 0
      %1957 = vmatpush1.bf16.msra.mxu0 %v1876
      %1958 = vmatprep.subr.bf16.mxu0 0
      %1959 = vmatpush1.bf16.msra.mxu0 %v1877
      %1960 = vmatprep.subr.bf16.mxu0 0
      %1961 = vmatpush1.bf16.msra.mxu0 %v1878
      %1962 = vmatprep.subr.bf16.mxu0 0
      %1963 = vmatpush1.bf16.msra.mxu0 %v1879
      %1964 = vmatprep.subr.bf16.mxu0 0
      %1965 = vmatpush1.bf16.msra.mxu0 %v1880
      %1966 = vmatprep.subr.bf16.mxu0 0
      %1967 = vmatpush1.bf16.msra.mxu0 %v1881
      %1968 = vmatprep.subr.bf16.mxu0 0
      %1969 = vmatpush1.bf16.msra.mxu0 %v1882
      %1970 = vmatprep.subr.bf16.mxu0 0
      %1971 = vmatpush1.bf16.msra.mxu0 %v1883
      %1972 = vmatprep.mubr.bf16.mxu0 %v452
      %1973 = vmatmul.mubr.bf16.gmra.mrb[0].mxu0 %v451
      %v1974 = vpop.f32.mrb[0].mxu0
      %v1975 = vadd.f32 0.0, %v1974
      %v1976 = vpop.f32.mrb[0].mxu0
      %v1977 = vpop.f32.mrb[0].mxu0
      %v1978 = vadd.f32 0.0, %v1977
      %v1979 = vpop.f32.mrb[0].mxu0
      %1980 = vmatprep.mubr.bf16.mxu0 %v457
      %1981 = vmatmul.mubr.bf16.gmra.mrb[0].mxu0 %v456
      %v1982 = vpop.f32.mrb[0].mxu0
      %v1983 = vadd.f32 0.0, %v1982
      %v1984 = vpop.f32.mrb[0].mxu0
      %v1985 = vpop.f32.mrb[0].mxu0
      %v1986 = vadd.f32 0.0, %v1985
      %v1987 = vpop.f32.mrb[0].mxu0
      %1988 = vmatprep.mubr.bf16.mxu0 %v462
      %1989 = vmatmul.mubr.bf16.gmra.mrb[0].mxu0 %v461
      %v1990 = vpop.f32.mrb[0].mxu0
      %v1991 = vadd.f32 0.0, %v1990
      %v1992 = vpop.f32.mrb[0].mxu0
      %v1993 = vpop.f32.mrb[0].mxu0
      %v1994 = vadd.f32 0.0, %v1993
      %v1995 = vpop.f32.mrb[0].mxu0
      %1996 = vmatprep.mubr.bf16.mxu0 %v467
      %1997 = vmatmul.mubr.bf16.gmra.mrb[0].mxu0 %v466
      %v1998 = vpop.f32.mrb[0].mxu0
      %v1999 = vadd.f32 0.0, %v1998
      %v2000 = vpop.f32.mrb[0].mxu0
      %v2001 = vpop.f32.mrb[0].mxu0
      %v2002 = vadd.f32 0.0, %v2001
      %v2003 = vpop.f32.mrb[0].mxu0
      %2004 = vmatprep.mubr.bf16.mxu0 %v472
      %2005 = vmatmul.mubr.bf16.gmra.mrb[0].mxu0 %v471
      %v2006 = vpop.f32.mrb[0].mxu0
      %v2007 = vadd.f32 0.0, %v2006
      %v2008 = vpop.f32.mrb[0].mxu0
      %v2009 = vpop.f32.mrb[0].mxu0
      %v2010 = vadd.f32 0.0, %v2009
      %v2011 = vpop.f32.mrb[0].mxu0
      %2012 = vmatprep.mubr.bf16.mxu0 %v477
      %2013 = vmatmul.mubr.bf16.gmra.mrb[0].mxu0 %v476
      %v2014 = vpop.f32.mrb[0].mxu0
      %v2015 = vadd.f32 0.0, %v2014
      %v2016 = vpop.f32.mrb[0].mxu0
      %v2017 = vpop.f32.mrb[0].mxu0
      %v2018 = vadd.f32 0.0, %v2017
      %v2019 = vpop.f32.mrb[0].mxu0
      %2020 = vmatprep.mubr.bf16.mxu0 %v482
      %2021 = vmatmul.mubr.bf16.gmra.mrb[0].mxu0 %v481
      %v2022 = vpop.f32.mrb[0].mxu0
      %v2023 = vadd.f32 0.0, %v2022
      %v2024 = vpop.f32.mrb[0].mxu0
      %v2025 = vpop.f32.mrb[0].mxu0
      %v2026 = vadd.f32 0.0, %v2025
      %v2027 = vpop.f32.mrb[0].mxu0
      %2028 = vmatprep.mubr.bf16.mxu0 %v487
      %2029 = vmatmul.mubr.bf16.gmra.mrb[0].mxu0 %v486
      %v2030 = vpop.f32.mrb[0].mxu0
      %v2031 = vadd.f32 0.0, %v2030
      %v2032 = vpop.f32.mrb[0].mxu0
      %v2033 = vpop.f32.mrb[0].mxu0
      %v2034 = vadd.f32 0.0, %v2033
      %v2035 = vpop.f32.mrb[0].mxu0
      %2036 = vdwg.mxu0
      %2037 = vmatprep.subr.bf16.mxu0 0
      %2038 = vmatpush1.bf16.msra.mxu0 %v1884
      %2039 = vmatprep.subr.bf16.mxu0 0
      %2040 = vmatpush1.bf16.msra.mxu0 %v1885
      %2041 = vmatprep.subr.bf16.mxu0 0
      %2042 = vmatpush1.bf16.msra.mxu0 %v1886
      %2043 = vmatprep.subr.bf16.mxu0 0
      %2044 = vmatpush1.bf16.msra.mxu0 %v1887
      %2045 = vmatprep.subr.bf16.mxu0 0
      %2046 = vmatpush1.bf16.msra.mxu0 %v1888
      %2047 = vmatprep.subr.bf16.mxu0 0
      %2048 = vmatpush1.bf16.msra.mxu0 %v1889
      %2049 = vmatprep.subr.bf16.mxu0 0
      %2050 = vmatpush1.bf16.msra.mxu0 %v1890
      %2051 = vmatprep.subr.bf16.mxu0 0
      %2052 = vmatpush1.bf16.msra.mxu0 %v1891
      %2053 = vmatprep.subr.bf16.mxu0 0
      %2054 = vmatpush1.bf16.msra.mxu0 %v1892
      %2055 = vmatprep.subr.bf16.mxu0 0
      %2056 = vmatpush1.bf16.msra.mxu0 %v1893
      %2057 = vmatprep.subr.bf16.mxu0 0
      %2058 = vmatpush1.bf16.msra.mxu0 %v1894
      %2059 = vmatprep.subr.bf16.mxu0 0
      %2060 = vmatpush1.bf16.msra.mxu0 %v1895
      %2061 = vmatprep.subr.bf16.mxu0 0
      %2062 = vmatpush1.bf16.msra.mxu0 %v1896
      %2063 = vmatprep.subr.bf16.mxu0 0
      %2064 = vmatpush1.bf16.msra.mxu0 %v1897
      %2065 = vmatprep.subr.bf16.mxu0 0
      %2066 = vmatpush1.bf16.msra.mxu0 %v1898
      %2067 = vmatprep.subr.bf16.mxu0 0
      %2068 = vmatpush1.bf16.msra.mxu0 %v1899
      %2069 = vmatprep.mubr.bf16.mxu0 %v454
      %2070 = vmatmul.mubr.bf16.gmra.mrb[0].mxu0 %v453
      %v2071 = vpop.f32.mrb[0].mxu0
      %v2072 = vadd.f32 %v1975, %v2071
      %v2073 = vpop.f32.mrb[0].mxu0
      %v2074 = vpop.f32.mrb[0].mxu0
      %v2075 = vadd.f32 %v1978, %v2074
      %v2076 = vpop.f32.mrb[0].mxu0
      %2077 = vmatprep.mubr.bf16.mxu0 %v459
      %2078 = vmatmul.mubr.bf16.gmra.mrb[0].mxu0 %v458
      %v2079 = vpop.f32.mrb[0].mxu0
      %v2080 = vadd.f32 %v1983, %v2079
      %v2081 = vpop.f32.mrb[0].mxu0
      %v2082 = vpop.f32.mrb[0].mxu0
      %v2083 = vadd.f32 %v1986, %v2082
      %v2084 = vpop.f32.mrb[0].mxu0
      %2085 = vmatprep.mubr.bf16.mxu0 %v464
      %2086 = vmatmul.mubr.bf16.gmra.mrb[0].mxu0 %v463
      %v2087 = vpop.f32.mrb[0].mxu0
      %v2088 = vadd.f32 %v1991, %v2087
      %v2089 = vpop.f32.mrb[0].mxu0
      %v2090 = vpop.f32.mrb[0].mxu0
      %v2091 = vadd.f32 %v1994, %v2090
      %v2092 = vpop.f32.mrb[0].mxu0
      %2093 = vmatprep.mubr.bf16.mxu0 %v469
      %2094 = vmatmul.mubr.bf16.gmra.mrb[0].mxu0 %v468
      %v2095 = vpop.f32.mrb[0].mxu0
      %v2096 = vadd.f32 %v1999, %v2095
      %v2097 = vpop.f32.mrb[0].mxu0
      %v2098 = vpop.f32.mrb[0].mxu0
      %v2099 = vadd.f32 %v2002, %v2098
      %v2100 = vpop.f32.mrb[0].mxu0
      %2101 = vmatprep.mubr.bf16.mxu0 %v474
      %2102 = vmatmul.mubr.bf16.gmra.mrb[0].mxu0 %v473
      %v2103 = vpop.f32.mrb[0].mxu0
      %v2104 = vadd.f32 %v2007, %v2103
      %v2105 = vpop.f32.mrb[0].mxu0
      %v2106 = vpop.f32.mrb[0].mxu0
      %v2107 = vadd.f32 %v2010, %v2106
      %v2108 = vpop.f32.mrb[0].mxu0
      %2109 = vmatprep.mubr.bf16.mxu0 %v479
      %2110 = vmatmul.mubr.bf16.gmra.mrb[0].mxu0 %v478
      %v2111 = vpop.f32.mrb[0].mxu0
      %v2112 = vadd.f32 %v2015, %v2111
      %v2113 = vpop.f32.mrb[0].mxu0
      %v2114 = vpop.f32.mrb[0].mxu0
      %v2115 = vadd.f32 %v2018, %v2114
      %v2116 = vpop.f32.mrb[0].mxu0
      %2117 = vmatprep.mubr.bf16.mxu0 %v484
      %2118 = vmatmul.mubr.bf16.gmra.mrb[0].mxu0 %v483
      %v2119 = vpop.f32.mrb[0].mxu0
      %v2120 = vadd.f32 %v2023, %v2119
      %v2121 = vpop.f32.mrb[0].mxu0
      %v2122 = vpop.f32.mrb[0].mxu0
      %v2123 = vadd.f32 %v2026, %v2122
      %v2124 = vpop.f32.mrb[0].mxu0
      %2125 = vmatprep.mubr.bf16.mxu0 %v489
      %2126 = vmatmul.mubr.bf16.gmra.mrb[0].mxu0 %v488
      %v2127 = vpop.f32.mrb[0].mxu0
      %v2128 = vadd.f32 %v2031, %v2127
      %v2129 = vpop.f32.mrb[0].mxu0
      %v2130 = vpop.f32.mrb[0].mxu0
      %v2131 = vadd.f32 %v2034, %v2130
      %v2132 = vpop.f32.mrb[0].mxu0
      %2133 = vdwg.mxu0
      %2134 = vmatprep.subr.bf16.mxu0 0
      %2135 = vmatpush1.bf16.msra.mxu0 %v1900
      %2136 = vmatprep.subr.bf16.mxu0 0
      %2137 = vmatpush1.bf16.msra.mxu0 %v1901
      %2138 = vmatprep.subr.bf16.mxu0 0
      %2139 = vmatpush1.bf16.msra.mxu0 %v1902
      %2140 = vmatprep.subr.bf16.mxu0 0
      %2141 = vmatpush1.bf16.msra.mxu0 %v1903
      %2142 = vmatprep.subr.bf16.mxu0 0
      %2143 = vmatpush1.bf16.msra.mxu0 0
      %2144 = vmatprep.subr.bf16.mxu0 0
      %2145 = vmatpush1.bf16.msra.mxu0 0
      %2146 = vmatprep.subr.bf16.mxu0 0
      %2147 = vmatpush1.bf16.msra.mxu0 0
      %2148 = vmatprep.subr.bf16.mxu0 0
      %2149 = vmatpush1.bf16.msra.mxu0 0
      %2150 = vmatprep.subr.bf16.mxu0 0
      %2151 = vmatpush1.bf16.msra.mxu0 0
      %2152 = vmatprep.subr.bf16.mxu0 0
      %2153 = vmatpush1.bf16.msra.mxu0 0
      %2154 = vmatprep.subr.bf16.mxu0 0
      %2155 = vmatpush1.bf16.msra.mxu0 0
      %2156 = vmatprep.subr.bf16.mxu0 0
      %2157 = vmatpush1.bf16.msra.mxu0 0
      %2158 = vmatprep.subr.bf16.mxu0 0
      %2159 = vmatpush1.bf16.msra.mxu0 0
      %2160 = vmatprep.subr.bf16.mxu0 0
      %2161 = vmatpush1.bf16.msra.mxu0 0
      %2162 = vmatprep.subr.bf16.mxu0 0
      %2163 = vmatpush1.bf16.msra.mxu0 0
      %2164 = vmatprep.subr.bf16.mxu0 0
      %2165 = vmatpush1.bf16.msra.mxu0 0
      %2166 = vmatprep.mubr.bf16.mxu0 0
      %2167 = vmatmul.mubr.bf16.gmra.mrb[0].mxu0 %v741
      %v2168 = vpop.f32.mrb[0].mxu0
      %v2169 = vadd.f32 %v2072, %v2168
      %v2170 = vpop.f32.mrb[0].mxu0
      %v2171 = vpop.f32.mrb[0].mxu0
      %v2172 = vadd.f32 %v2075, %v2171
      %v2173 = vpop.f32.mrb[0].mxu0
      %2174 = vmatprep.mubr.bf16.mxu0 0
      %2175 = vmatmul.mubr.bf16.gmra.mrb[0].mxu0 %v744
      %v2176 = vpop.f32.mrb[0].mxu0
      %v2177 = vadd.f32 %v2080, %v2176
      %v2178 = vpop.f32.mrb[0].mxu0
      %v2179 = vpop.f32.mrb[0].mxu0
      %v2180 = vadd.f32 %v2083, %v2179
      %v2181 = vpop.f32.mrb[0].mxu0
      %2182 = vmatprep.mubr.bf16.mxu0 0
      %2183 = vmatmul.mubr.bf16.gmra.mrb[0].mxu0 %v747
      %v2184 = vpop.f32.mrb[0].mxu0
      %v2185 = vadd.f32 %v2088, %v2184
      %v2186 = vpop.f32.mrb[0].mxu0
      %v2187 = vpop.f32.mrb[0].mxu0
      %v2188 = vadd.f32 %v2091, %v2187
      %v2189 = vpop.f32.mrb[0].mxu0
      %2190 = vmatprep.mubr.bf16.mxu0 0
      %2191 = vmatmul.mubr.bf16.gmra.mrb[0].mxu0 %v750
      %v2192 = vpop.f32.mrb[0].mxu0
      %v2193 = vadd.f32 %v2096, %v2192
      %v2194 = vpop.f32.mrb[0].mxu0
      %v2195 = vpop.f32.mrb[0].mxu0
      %v2196 = vadd.f32 %v2099, %v2195
      %v2197 = vpop.f32.mrb[0].mxu0
      %2198 = vmatprep.mubr.bf16.mxu0 0
      %2199 = vmatmul.mubr.bf16.gmra.mrb[0].mxu0 %v753
      %v2200 = vpop.f32.mrb[0].mxu0
      %v2201 = vadd.f32 %v2104, %v2200
      %v2202 = vpop.f32.mrb[0].mxu0
      %v2203 = vpop.f32.mrb[0].mxu0
      %v2204 = vadd.f32 %v2107, %v2203
      %v2205 = vpop.f32.mrb[0].mxu0
      %2206 = vmatprep.mubr.bf16.mxu0 0
      %2207 = vmatmul.mubr.bf16.gmra.mrb[0].mxu0 %v756
      %v2208 = vpop.f32.mrb[0].mxu0
      %v2209 = vadd.f32 %v2112, %v2208
      %v2210 = vpop.f32.mrb[0].mxu0
      %v2211 = vpop.f32.mrb[0].mxu0
      %v2212 = vadd.f32 %v2115, %v2211
      %v2213 = vpop.f32.mrb[0].mxu0
      %2214 = vmatprep.mubr.bf16.mxu0 0
      %2215 = vmatmul.mubr.bf16.gmra.mrb[0].mxu0 %v759
      %v2216 = vpop.f32.mrb[0].mxu0
      %v2217 = vadd.f32 %v2120, %v2216
      %v2218 = vpop.f32.mrb[0].mxu0
      %v2219 = vpop.f32.mrb[0].mxu0
      %v2220 = vadd.f32 %v2123, %v2219
      %v2221 = vpop.f32.mrb[0].mxu0
      %2222 = vmatprep.mubr.bf16.mxu0 0
      %2223 = vmatmul.mubr.bf16.gmra.mrb[0].mxu0 %v762
      %v2224 = vpop.f32.mrb[0].mxu0
      %v2225 = vadd.f32 %v2128, %v2224
      %v2226 = vpop.f32.mrb[0].mxu0
      %v2227 = vpop.f32.mrb[0].mxu0
      %v2228 = vadd.f32 %v2131, %v2227
      %v2229 = vpop.f32.mrb[0].mxu0
      %2230 = vdwg.mxu0
      %s2231 = scalar_lea.vmem %s193, 864
      %v2232 = vld [vmem:[%s2231] sm:$0xf]
      %v2233 = vld [vmem:[%s2231 + $0x4] sm:$0xf]
      %v2234 = vld [vmem:[%s2231 + $0x8] sm:$0xf]
      %v2235 = vld [vmem:[%s2231 + $0xc] sm:$0xf]
      %v2236 = vld [vmem:[%s2231 + $0x10] sm:$0xf]
      %v2237 = vld [vmem:[%s2231 + $0x14] sm:$0xf]
      %v2238 = vld [vmem:[%s2231 + $0x18] sm:$0xf]
      %v2239 = vld [vmem:[%s2231 + $0x1c] sm:$0xf]
      %v2240 = vld [vmem:[%s2231 + $0x20] sm:$0xf]
      %v2241 = vld [vmem:[%s2231 + $0x24] sm:$0xf]
      %v2242 = vld [vmem:[%s2231 + $0x28] sm:$0xf]
      %v2243 = vld [vmem:[%s2231 + $0x2c] sm:$0xf]
      %v2244 = vld [vmem:[%s2231 + $0x30] sm:$0xf]
      %v2245 = vld [vmem:[%s2231 + $0x34] sm:$0xf]
      %v2246 = vld [vmem:[%s2231 + $0x38] sm:$0xf]
      %v2247 = vld [vmem:[%s2231 + $0x3c] sm:$0xf]
      %v2248 = vld [vmem:[%s2231 + $0x40] sm:$0xf]
      %v2249 = vld [vmem:[%s2231 + $0x44] sm:$0xf]
      %v2250 = vld [vmem:[%s2231 + $0x48] sm:$0xf]
      %v2251 = vld [vmem:[%s2231 + $0x4c] sm:$0xf]
      %v2252 = vld [vmem:[%s2231 + $0x50] sm:$0xf]
      %v2253 = vld [vmem:[%s2231 + $0x54] sm:$0xf]
      %v2254 = vld [vmem:[%s2231 + $0x58] sm:$0xf]
      %v2255 = vld [vmem:[%s2231 + $0x5c] sm:$0xf]
      %v2256 = vld [vmem:[%s2231 + $0x60] sm:$0xf]
      %v2257 = vld [vmem:[%s2231 + $0x64] sm:$0xf]
      %v2258 = vld [vmem:[%s2231 + $0x68] sm:$0xf]
      %v2259 = vld [vmem:[%s2231 + $0x6c] sm:$0xf]
      %v2260 = vld [vmem:[%s2231 + $0x70] sm:$0xf]
      %v2261 = vld [vmem:[%s2231 + $0x74] sm:$0xf]
      %v2262 = vld [vmem:[%s2231 + $0x78] sm:$0xf]
      %v2263 = vld [vmem:[%s2231 + $0x7c] sm:$0xf]
      %v2264 = vld [vmem:[%s2231 + $0x80] sm:$0xf]
      %v2265 = vld [vmem:[%s2231 + $0x84] sm:$0xf]
      %v2266 = vld [vmem:[%s2231 + $0x88] sm:$0xf]
      %v2267 = vld [vmem:[%s2231 + $0x8c] sm:$0xf]
      %v2268 = vld [vmem:[%s2231 + $0x90] sm:$0xf]
      %v2269 = vld [vmem:[%s2231 + $0x94] sm:$0xf]
      %v2270 = vld [vmem:[%s2231 + $0x98] sm:$0xf]
      %v2271 = vld [vmem:[%s2231 + $0x9c] sm:$0xf]
      %v2272 = vld [vmem:[%s2231 + $0xa0] sm:$0xf]
      %v2273 = vld [vmem:[%s2231 + $0xa4] sm:$0xf]
      %v2274 = vld [vmem:[%s2231 + $0xa8] sm:$0xf]
      %v2275 = vld [vmem:[%s2231 + $0xac] sm:$0xf]
      %v2276 = vld [vmem:[%s2231 + $0xb0] sm:$0xf]
      %v2277 = vld [vmem:[%s2231 + $0xb4] sm:$0xf]
      %v2278 = vld [vmem:[%s2231 + $0xb8] sm:$0xf]
      %v2279 = vld [vmem:[%s2231 + $0xbc] sm:$0xf]
      %v2280 = vld [vmem:[%s2231 + $0xc0] sm:$0xf]
      %v2281 = vld [vmem:[%s2231 + $0xc4] sm:$0xf]
      %v2282 = vld [vmem:[%s2231 + $0xc8] sm:$0xf]
      %v2283 = vld [vmem:[%s2231 + $0xcc] sm:$0xf]
      %v2284 = vld [vmem:[%s2231 + $0xd0] sm:$0xf]
      %v2285 = vld [vmem:[%s2231 + $0xd4] sm:$0xf]
      %v2286 = vld [vmem:[%s2231 + $0xd8] sm:$0xf]
      %v2287 = vld [vmem:[%s2231 + $0xdc] sm:$0xf]
      %v2288 = vld [vmem:[%s2231 + $0xe0] sm:$0xf]
      %v2289 = vld [vmem:[%s2231 + $0xe4] sm:$0xf]
      %v2290 = vld [vmem:[%s2231 + $0xe8] sm:$0xf]
      %v2291 = vld [vmem:[%s2231 + $0xec] sm:$0xf]
      %v2292 = vld [vmem:[%s2231 + $0xf0] sm:$0xf]
      %v2293 = vld [vmem:[%s2231 + $0xf4] sm:$0xf]
      %v2294 = vld [vmem:[%s2231 + $0xf8] sm:$0xf]
      %v2295 = vld [vmem:[%s2231 + $0xfc] sm:$0xf]
      %v2296 = vld [vmem:[%s2231 + $0x100] sm:$0xf]
      %v2297 = vld [vmem:[%s2231 + $0x104] sm:$0xf]
      %v2298 = vld [vmem:[%s2231 + $0x108] sm:$0xf]
      %v2299 = vld [vmem:[%s2231 + $0x10c] sm:$0xf]
      %v2300 = vld [vmem:[%s2231 + $0x110] sm:$0xf]
      %v2301 = vld [vmem:[%s2231 + $0x114] sm:$0xf]
      %v2302 = vld [vmem:[%s2231 + $0x118] sm:$0xf]
      %v2303 = vld [vmem:[%s2231 + $0x11c] sm:$0xf]
      %v2376 = vunpack.c.l.b16 %v2232
      %v2377 = vunpack.c.l.b16 %v2233
      %v2378 = vunpack.c.l.b16 %v2234
      %v2379 = vunpack.c.l.b16 %v2235
      %v2380 = vunpack.c.l.b16 %v2236
      %v2381 = vunpack.c.l.b16 %v2237
      %v2382 = vunpack.c.l.b16 %v2238
      %v2383 = vunpack.c.l.b16 %v2239
      %v2384 = vunpack.c.l.b16 %v2240
      %v2385 = vunpack.c.l.b16 %v2241
      %v2386 = vunpack.c.l.b16 %v2242
      %v2387 = vunpack.c.l.b16 %v2243
      %v2388 = vunpack.c.l.b16 %v2244
      %v2389 = vunpack.c.l.b16 %v2245
      %v2390 = vunpack.c.l.b16 %v2246
      %v2391 = vunpack.c.l.b16 %v2247
      %v2392 = vunpack.c.l.b16 %v2248
      %v2393 = vunpack.c.l.b16 %v2249
      %v2394 = vunpack.c.l.b16 %v2250
      %v2395 = vunpack.c.l.b16 %v2251
      %v2396 = vunpack.c.l.b16 %v2252
      %v2397 = vunpack.c.l.b16 %v2253
      %v2398 = vunpack.c.l.b16 %v2254
      %v2399 = vunpack.c.l.b16 %v2255
      %v2400 = vunpack.c.l.b16 %v2256
      %v2401 = vunpack.c.l.b16 %v2257
      %v2402 = vunpack.c.l.b16 %v2258
      %v2403 = vunpack.c.l.b16 %v2259
      %v2404 = vunpack.c.l.b16 %v2260
      %v2405 = vunpack.c.l.b16 %v2261
      %v2406 = vunpack.c.l.b16 %v2262
      %v2407 = vunpack.c.l.b16 %v2263
      %v2408 = vunpack.c.l.b16 %v2264
      %v2409 = vunpack.c.l.b16 %v2265
      %v2410 = vunpack.c.l.b16 %v2266
      %v2411 = vunpack.c.l.b16 %v2267
      %v2412 = vunpack.c.l.b16 %v2268
      %v2413 = vunpack.c.l.b16 %v2269
      %v2414 = vunpack.c.l.b16 %v2270
      %v2415 = vunpack.c.l.b16 %v2271
      %v2416 = vunpack.c.l.b16 %v2272
      %v2417 = vunpack.c.l.b16 %v2273
      %v2418 = vunpack.c.l.b16 %v2274
      %v2419 = vunpack.c.l.b16 %v2275
      %v2420 = vunpack.c.l.b16 %v2276
      %v2421 = vunpack.c.l.b16 %v2277
      %v2422 = vunpack.c.l.b16 %v2278
      %v2423 = vunpack.c.l.b16 %v2279
      %v2424 = vunpack.c.l.b16 %v2280
      %v2425 = vunpack.c.l.b16 %v2281
      %v2426 = vunpack.c.l.b16 %v2282
      %v2427 = vunpack.c.l.b16 %v2283
      %v2428 = vunpack.c.l.b16 %v2284
      %v2429 = vunpack.c.l.b16 %v2285
      %v2430 = vunpack.c.l.b16 %v2286
      %v2431 = vunpack.c.l.b16 %v2287
      %v2432 = vunpack.c.l.b16 %v2288
      %v2433 = vunpack.c.l.b16 %v2289
      %v2434 = vunpack.c.l.b16 %v2290
      %v2435 = vunpack.c.l.b16 %v2291
      %v2436 = vunpack.c.l.b16 %v2292
      %v2437 = vunpack.c.l.b16 %v2293
      %v2438 = vunpack.c.l.b16 %v2294
      %v2439 = vunpack.c.l.b16 %v2295
      %v2440 = vunpack.c.l.b16 %v2296
      %v2441 = vunpack.c.l.b16 %v2297
      %v2442 = vunpack.c.l.b16 %v2298
      %v2443 = vunpack.c.l.b16 %v2299
      %v2444 = vunpack.c.l.b16 %v2300
      %v2445 = vunpack.c.l.b16 %v2301
      %v2446 = vunpack.c.l.b16 %v2302
      %v2447 = vunpack.c.l.b16 %v2303
      %v2448 = vpack.c.b16 %v2377, %v2376
      %v2449 = vpack.c.b16 %v2379, %v2378
      %v2450 = vpack.c.b16 %v2381, %v2380
      %v2451 = vpack.c.b16 %v2383, %v2382
      %v2452 = vpack.c.b16 %v2385, %v2384
      %v2453 = vpack.c.b16 %v2387, %v2386
      %v2454 = vpack.c.b16 %v2389, %v2388
      %v2455 = vpack.c.b16 %v2391, %v2390
      %v2456 = vpack.c.b16 %v2393, %v2392
      %v2457 = vpack.c.b16 %v2395, %v2394
      %v2458 = vpack.c.b16 %v2397, %v2396
      %v2459 = vpack.c.b16 %v2399, %v2398
      %v2460 = vpack.c.b16 %v2401, %v2400
      %v2461 = vpack.c.b16 %v2403, %v2402
      %v2462 = vpack.c.b16 %v2405, %v2404
      %v2463 = vpack.c.b16 %v2407, %v2406
      %v2464 = vpack.c.b16 %v2409, %v2408
      %v2465 = vpack.c.b16 %v2411, %v2410
      %v2466 = vpack.c.b16 %v2413, %v2412
      %v2467 = vpack.c.b16 %v2415, %v2414
      %v2468 = vpack.c.b16 %v2417, %v2416
      %v2469 = vpack.c.b16 %v2419, %v2418
      %v2470 = vpack.c.b16 %v2421, %v2420
      %v2471 = vpack.c.b16 %v2423, %v2422
      %v2472 = vpack.c.b16 %v2425, %v2424
      %v2473 = vpack.c.b16 %v2427, %v2426
      %v2474 = vpack.c.b16 %v2429, %v2428
      %v2475 = vpack.c.b16 %v2431, %v2430
      %v2476 = vpack.c.b16 %v2433, %v2432
      %v2477 = vpack.c.b16 %v2435, %v2434
      %v2478 = vpack.c.b16 %v2437, %v2436
      %v2479 = vpack.c.b16 %v2439, %v2438
      %v2480 = vpack.c.b16 %v2441, %v2440
      %v2481 = vpack.c.b16 %v2443, %v2442
      %v2482 = vpack.c.b16 %v2445, %v2444
      %v2483 = vpack.c.b16 %v2447, %v2446
      %2520 = vmatprep.subr.bf16.mxu0 0
      %2521 = vmatpush1.bf16.msra.mxu0 %v2448
      %2522 = vmatprep.subr.bf16.mxu0 0
      %2523 = vmatpush1.bf16.msra.mxu0 %v2449
      %2524 = vmatprep.subr.bf16.mxu0 0
      %2525 = vmatpush1.bf16.msra.mxu0 %v2450
      %2526 = vmatprep.subr.bf16.mxu0 0
      %2527 = vmatpush1.bf16.msra.mxu0 %v2451
      %2528 = vmatprep.subr.bf16.mxu0 0
      %2529 = vmatpush1.bf16.msra.mxu0 %v2452
      %2530 = vmatprep.subr.bf16.mxu0 0
      %2531 = vmatpush1.bf16.msra.mxu0 %v2453
      %2532 = vmatprep.subr.bf16.mxu0 0
      %2533 = vmatpush1.bf16.msra.mxu0 %v2454
      %2534 = vmatprep.subr.bf16.mxu0 0
      %2535 = vmatpush1.bf16.msra.mxu0 %v2455
      %2536 = vmatprep.subr.bf16.mxu0 0
      %2537 = vmatpush1.bf16.msra.mxu0 %v2456
      %2538 = vmatprep.subr.bf16.mxu0 0
      %2539 = vmatpush1.bf16.msra.mxu0 %v2457
      %2540 = vmatprep.subr.bf16.mxu0 0
      %2541 = vmatpush1.bf16.msra.mxu0 %v2458
      %2542 = vmatprep.subr.bf16.mxu0 0
      %2543 = vmatpush1.bf16.msra.mxu0 %v2459
      %2544 = vmatprep.subr.bf16.mxu0 0
      %2545 = vmatpush1.bf16.msra.mxu0 %v2460
      %2546 = vmatprep.subr.bf16.mxu0 0
      %2547 = vmatpush1.bf16.msra.mxu0 %v2461
      %2548 = vmatprep.subr.bf16.mxu0 0
      %2549 = vmatpush1.bf16.msra.mxu0 %v2462
      %2550 = vmatprep.subr.bf16.mxu0 0
      %2551 = vmatpush1.bf16.msra.mxu0 %v2463
      %2552 = vmatprep.mubr.bf16.mxu0 %v452
      %2553 = vmatmul.mubr.bf16.gmra.mrb[0].mxu0 %v451
      %v2554 = vpop.f32.mrb[0].mxu0
      %v2555 = vadd.f32 0.0, %v2554
      %v2556 = vpop.f32.mrb[0].mxu0
      %v2557 = vpop.f32.mrb[0].mxu0
      %v2558 = vadd.f32 0.0, %v2557
      %v2559 = vpop.f32.mrb[0].mxu0
      %2560 = vmatprep.mubr.bf16.mxu0 %v457
      %2561 = vmatmul.mubr.bf16.gmra.mrb[0].mxu0 %v456
      %v2562 = vpop.f32.mrb[0].mxu0
      %v2563 = vadd.f32 0.0, %v2562
      %v2564 = vpop.f32.mrb[0].mxu0
      %v2565 = vpop.f32.mrb[0].mxu0
      %v2566 = vadd.f32 0.0, %v2565
      %v2567 = vpop.f32.mrb[0].mxu0
      %2568 = vmatprep.mubr.bf16.mxu0 %v462
      %2569 = vmatmul.mubr.bf16.gmra.mrb[0].mxu0 %v461
      %v2570 = vpop.f32.mrb[0].mxu0
      %v2571 = vadd.f32 0.0, %v2570
      %v2572 = vpop.f32.mrb[0].mxu0
      %v2573 = vpop.f32.mrb[0].mxu0
      %v2574 = vadd.f32 0.0, %v2573
      %v2575 = vpop.f32.mrb[0].mxu0
      %2576 = vmatprep.mubr.bf16.mxu0 %v467
      %2577 = vmatmul.mubr.bf16.gmra.mrb[0].mxu0 %v466
      %v2578 = vpop.f32.mrb[0].mxu0
      %v2579 = vadd.f32 0.0, %v2578
      %v2580 = vpop.f32.mrb[0].mxu0
      %v2581 = vpop.f32.mrb[0].mxu0
      %v2582 = vadd.f32 0.0, %v2581
      %v2583 = vpop.f32.mrb[0].mxu0
      %2584 = vmatprep.mubr.bf16.mxu0 %v472
      %2585 = vmatmul.mubr.bf16.gmra.mrb[0].mxu0 %v471
      %v2586 = vpop.f32.mrb[0].mxu0
      %v2587 = vadd.f32 0.0, %v2586
      %v2588 = vpop.f32.mrb[0].mxu0
      %v2589 = vpop.f32.mrb[0].mxu0
      %v2590 = vadd.f32 0.0, %v2589
      %v2591 = vpop.f32.mrb[0].mxu0
      %2592 = vmatprep.mubr.bf16.mxu0 %v477
      %2593 = vmatmul.mubr.bf16.gmra.mrb[0].mxu0 %v476
      %v2594 = vpop.f32.mrb[0].mxu0
      %v2595 = vadd.f32 0.0, %v2594
      %v2596 = vpop.f32.mrb[0].mxu0
      %v2597 = vpop.f32.mrb[0].mxu0
      %v2598 = vadd.f32 0.0, %v2597
      %v2599 = vpop.f32.mrb[0].mxu0
      %2600 = vmatprep.mubr.bf16.mxu0 %v482
      %2601 = vmatmul.mubr.bf16.gmra.mrb[0].mxu0 %v481
      %v2602 = vpop.f32.mrb[0].mxu0
      %v2603 = vadd.f32 0.0, %v2602
      %v2604 = vpop.f32.mrb[0].mxu0
      %v2605 = vpop.f32.mrb[0].mxu0
      %v2606 = vadd.f32 0.0, %v2605
      %v2607 = vpop.f32.mrb[0].mxu0
      %2608 = vmatprep.mubr.bf16.mxu0 %v487
      %2609 = vmatmul.mubr.bf16.gmra.mrb[0].mxu0 %v486
      %v2610 = vpop.f32.mrb[0].mxu0
      %v2611 = vadd.f32 0.0, %v2610
      %v2612 = vpop.f32.mrb[0].mxu0
      %v2613 = vpop.f32.mrb[0].mxu0
      %v2614 = vadd.f32 0.0, %v2613
      %v2615 = vpop.f32.mrb[0].mxu0
      %2616 = vdwg.mxu0
      %2617 = vmatprep.subr.bf16.mxu0 0
      %2618 = vmatpush1.bf16.msra.mxu0 %v2464
      %2619 = vmatprep.subr.bf16.mxu0 0
      %2620 = vmatpush1.bf16.msra.mxu0 %v2465
      %2621 = vmatprep.subr.bf16.mxu0 0
      %2622 = vmatpush1.bf16.msra.mxu0 %v2466
      %2623 = vmatprep.subr.bf16.mxu0 0
      %2624 = vmatpush1.bf16.msra.mxu0 %v2467
      %2625 = vmatprep.subr.bf16.mxu0 0
      %2626 = vmatpush1.bf16.msra.mxu0 %v2468
      %2627 = vmatprep.subr.bf16.mxu0 0
      %2628 = vmatpush1.bf16.msra.mxu0 %v2469
      %2629 = vmatprep.subr.bf16.mxu0 0
      %2630 = vmatpush1.bf16.msra.mxu0 %v2470
      %2631 = vmatprep.subr.bf16.mxu0 0
      %2632 = vmatpush1.bf16.msra.mxu0 %v2471
      %2633 = vmatprep.subr.bf16.mxu0 0
      %2634 = vmatpush1.bf16.msra.mxu0 %v2472
      %2635 = vmatprep.subr.bf16.mxu0 0
      %2636 = vmatpush1.bf16.msra.mxu0 %v2473
      %2637 = vmatprep.subr.bf16.mxu0 0
      %2638 = vmatpush1.bf16.msra.mxu0 %v2474
      %2639 = vmatprep.subr.bf16.mxu0 0
      %2640 = vmatpush1.bf16.msra.mxu0 %v2475
      %2641 = vmatprep.subr.bf16.mxu0 0
      %2642 = vmatpush1.bf16.msra.mxu0 %v2476
      %2643 = vmatprep.subr.bf16.mxu0 0
      %2644 = vmatpush1.bf16.msra.mxu0 %v2477
      %2645 = vmatprep.subr.bf16.mxu0 0
      %2646 = vmatpush1.bf16.msra.mxu0 %v2478
      %2647 = vmatprep.subr.bf16.mxu0 0
      %2648 = vmatpush1.bf16.msra.mxu0 %v2479
      %2649 = vmatprep.mubr.bf16.mxu0 %v454
      %2650 = vmatmul.mubr.bf16.gmra.mrb[0].mxu0 %v453
      %v2651 = vpop.f32.mrb[0].mxu0
      %v2652 = vadd.f32 %v2555, %v2651
      %v2653 = vpop.f32.mrb[0].mxu0
      %v2654 = vpop.f32.mrb[0].mxu0
      %v2655 = vadd.f32 %v2558, %v2654
      %v2656 = vpop.f32.mrb[0].mxu0
      %2657 = vmatprep.mubr.bf16.mxu0 %v459
      %2658 = vmatmul.mubr.bf16.gmra.mrb[0].mxu0 %v458
      %v2659 = vpop.f32.mrb[0].mxu0
      %v2660 = vadd.f32 %v2563, %v2659
      %v2661 = vpop.f32.mrb[0].mxu0
      %v2662 = vpop.f32.mrb[0].mxu0
      %v2663 = vadd.f32 %v2566, %v2662
      %v2664 = vpop.f32.mrb[0].mxu0
      %2665 = vmatprep.mubr.bf16.mxu0 %v464
      %2666 = vmatmul.mubr.bf16.gmra.mrb[0].mxu0 %v463
      %v2667 = vpop.f32.mrb[0].mxu0
      %v2668 = vadd.f32 %v2571, %v2667
      %v2669 = vpop.f32.mrb[0].mxu0
      %v2670 = vpop.f32.mrb[0].mxu0
      %v2671 = vadd.f32 %v2574, %v2670
      %v2672 = vpop.f32.mrb[0].mxu0
      %2673 = vmatprep.mubr.bf16.mxu0 %v469
      %2674 = vmatmul.mubr.bf16.gmra.mrb[0].mxu0 %v468
      %v2675 = vpop.f32.mrb[0].mxu0
      %v2676 = vadd.f32 %v2579, %v2675
      %v2677 = vpop.f32.mrb[0].mxu0
      %v2678 = vpop.f32.mrb[0].mxu0
      %v2679 = vadd.f32 %v2582, %v2678
      %v2680 = vpop.f32.mrb[0].mxu0
      %2681 = vmatprep.mubr.bf16.mxu0 %v474
      %2682 = vmatmul.mubr.bf16.gmra.mrb[0].mxu0 %v473
      %v2683 = vpop.f32.mrb[0].mxu0
      %v2684 = vadd.f32 %v2587, %v2683
      %v2685 = vpop.f32.mrb[0].mxu0
      %v2686 = vpop.f32.mrb[0].mxu0
      %v2687 = vadd.f32 %v2590, %v2686
      %v2688 = vpop.f32.mrb[0].mxu0
      %2689 = vmatprep.mubr.bf16.mxu0 %v479
      %2690 = vmatmul.mubr.bf16.gmra.mrb[0].mxu0 %v478
      %v2691 = vpop.f32.mrb[0].mxu0
      %v2692 = vadd.f32 %v2595, %v2691
      %v2693 = vpop.f32.mrb[0].mxu0
      %v2694 = vpop.f32.mrb[0].mxu0
      %v2695 = vadd.f32 %v2598, %v2694
      %v2696 = vpop.f32.mrb[0].mxu0
      %2697 = vmatprep.mubr.bf16.mxu0 %v484
      %2698 = vmatmul.mubr.bf16.gmra.mrb[0].mxu0 %v483
      %v2699 = vpop.f32.mrb[0].mxu0
      %v2700 = vadd.f32 %v2603, %v2699
      %v2701 = vpop.f32.mrb[0].mxu0
      %v2702 = vpop.f32.mrb[0].mxu0
      %v2703 = vadd.f32 %v2606, %v2702
      %v2704 = vpop.f32.mrb[0].mxu0
      %2705 = vmatprep.mubr.bf16.mxu0 %v489
      %2706 = vmatmul.mubr.bf16.gmra.mrb[0].mxu0 %v488
      %v2707 = vpop.f32.mrb[0].mxu0
      %v2708 = vadd.f32 %v2611, %v2707
      %v2709 = vpop.f32.mrb[0].mxu0
      %v2710 = vpop.f32.mrb[0].mxu0
      %v2711 = vadd.f32 %v2614, %v2710
      %v2712 = vpop.f32.mrb[0].mxu0
      %2713 = vdwg.mxu0
      %2714 = vmatprep.subr.bf16.mxu0 0
      %2715 = vmatpush1.bf16.msra.mxu0 %v2480
      %2716 = vmatprep.subr.bf16.mxu0 0
      %2717 = vmatpush1.bf16.msra.mxu0 %v2481
      %2718 = vmatprep.subr.bf16.mxu0 0
      %2719 = vmatpush1.bf16.msra.mxu0 %v2482
      %2720 = vmatprep.subr.bf16.mxu0 0
      %2721 = vmatpush1.bf16.msra.mxu0 %v2483
      %2722 = vmatprep.subr.bf16.mxu0 0
      %2723 = vmatpush1.bf16.msra.mxu0 0
      %2724 = vmatprep.subr.bf16.mxu0 0
      %2725 = vmatpush1.bf16.msra.mxu0 0
      %2726 = vmatprep.subr.bf16.mxu0 0
      %2727 = vmatpush1.bf16.msra.mxu0 0
      %2728 = vmatprep.subr.bf16.mxu0 0
      %2729 = vmatpush1.bf16.msra.mxu0 0
      %2730 = vmatprep.subr.bf16.mxu0 0
      %2731 = vmatpush1.bf16.msra.mxu0 0
      %2732 = vmatprep.subr.bf16.mxu0 0
      %2733 = vmatpush1.bf16.msra.mxu0 0
      %2734 = vmatprep.subr.bf16.mxu0 0
      %2735 = vmatpush1.bf16.msra.mxu0 0
      %2736 = vmatprep.subr.bf16.mxu0 0
      %2737 = vmatpush1.bf16.msra.mxu0 0
      %2738 = vmatprep.subr.bf16.mxu0 0
      %2739 = vmatpush1.bf16.msra.mxu0 0
      %2740 = vmatprep.subr.bf16.mxu0 0
      %2741 = vmatpush1.bf16.msra.mxu0 0
      %2742 = vmatprep.subr.bf16.mxu0 0
      %2743 = vmatpush1.bf16.msra.mxu0 0
      %2744 = vmatprep.subr.bf16.mxu0 0
      %2745 = vmatpush1.bf16.msra.mxu0 0
      %2746 = vmatprep.mubr.bf16.mxu0 0
      %2747 = vmatmul.mubr.bf16.gmra.mrb[0].mxu0 %v741
      %v2748 = vpop.f32.mrb[0].mxu0
      %v2749 = vadd.f32 %v2652, %v2748
      %v2750 = vpop.f32.mrb[0].mxu0
      %v2751 = vpop.f32.mrb[0].mxu0
      %v2752 = vadd.f32 %v2655, %v2751
      %v2753 = vpop.f32.mrb[0].mxu0
      %2754 = vmatprep.mubr.bf16.mxu0 0
      %2755 = vmatmul.mubr.bf16.gmra.mrb[0].mxu0 %v744
      %v2756 = vpop.f32.mrb[0].mxu0
      %v2757 = vadd.f32 %v2660, %v2756
      %v2758 = vpop.f32.mrb[0].mxu0
      %v2759 = vpop.f32.mrb[0].mxu0
      %v2760 = vadd.f32 %v2663, %v2759
      %v2761 = vpop.f32.mrb[0].mxu0
      %2762 = vmatprep.mubr.bf16.mxu0 0
      %2763 = vmatmul.mubr.bf16.gmra.mrb[0].mxu0 %v747
      %v2764 = vpop.f32.mrb[0].mxu0
      %v2765 = vadd.f32 %v2668, %v2764
      %v2766 = vpop.f32.mrb[0].mxu0
      %v2767 = vpop.f32.mrb[0].mxu0
      %v2768 = vadd.f32 %v2671, %v2767
      %v2769 = vpop.f32.mrb[0].mxu0
      %2770 = vmatprep.mubr.bf16.mxu0 0
      %2771 = vmatmul.mubr.bf16.gmra.mrb[0].mxu0 %v750
      %v2772 = vpop.f32.mrb[0].mxu0
      %v2773 = vadd.f32 %v2676, %v2772
      %v2774 = vpop.f32.mrb[0].mxu0
      %v2775 = vpop.f32.mrb[0].mxu0
      %v2776 = vadd.f32 %v2679, %v2775
      %v2777 = vpop.f32.mrb[0].mxu0
      %2778 = vmatprep.mubr.bf16.mxu0 0
      %2779 = vmatmul.mubr.bf16.gmra.mrb[0].mxu0 %v753
      %v2780 = vpop.f32.mrb[0].mxu0
      %v2781 = vadd.f32 %v2684, %v2780
      %v2782 = vpop.f32.mrb[0].mxu0
      %v2783 = vpop.f32.mrb[0].mxu0
      %v2784 = vadd.f32 %v2687, %v2783
      %v2785 = vpop.f32.mrb[0].mxu0
      %2786 = vmatprep.mubr.bf16.mxu0 0
      %2787 = vmatmul.mubr.bf16.gmra.mrb[0].mxu0 %v756
      %v2788 = vpop.f32.mrb[0].mxu0
      %v2789 = vadd.f32 %v2692, %v2788
      %v2790 = vpop.f32.mrb[0].mxu0
      %v2791 = vpop.f32.mrb[0].mxu0
      %v2792 = vadd.f32 %v2695, %v2791
      %v2793 = vpop.f32.mrb[0].mxu0
      %2794 = vmatprep.mubr.bf16.mxu0 0
      %2795 = vmatmul.mubr.bf16.gmra.mrb[0].mxu0 %v759
      %v2796 = vpop.f32.mrb[0].mxu0
      %v2797 = vadd.f32 %v2700, %v2796
      %v2798 = vpop.f32.mrb[0].mxu0
      %v2799 = vpop.f32.mrb[0].mxu0
      %v2800 = vadd.f32 %v2703, %v2799
      %v2801 = vpop.f32.mrb[0].mxu0
      %2802 = vmatprep.mubr.bf16.mxu0 0
      %2803 = vmatmul.mubr.bf16.gmra.mrb[0].mxu0 %v762
      %v2804 = vpop.f32.mrb[0].mxu0
      %v2805 = vadd.f32 %v2708, %v2804
      %v2806 = vpop.f32.mrb[0].mxu0
      %v2807 = vpop.f32.mrb[0].mxu0
      %v2808 = vadd.f32 %v2711, %v2807
      %v2809 = vpop.f32.mrb[0].mxu0
      %2810 = vdwg.mxu0
      %v2811 = vmax.f32 %v2169, %v2749
      %v2812 = vmax.f32 %v2172, %v2752
      %v2813 = vmax.f32 %v2177, %v2757
      %v2814 = vmax.f32 %v2180, %v2760
      %v2815 = vmax.f32 %v2185, %v2765
      %v2816 = vmax.f32 %v2188, %v2768
      %v2817 = vmax.f32 %v2193, %v2773
      %v2818 = vmax.f32 %v2196, %v2776
      %v2819 = vmax.f32 %v2201, %v2781
      %v2820 = vmax.f32 %v2204, %v2784
      %v2821 = vmax.f32 %v2209, %v2789
      %v2822 = vmax.f32 %v2212, %v2792
      %v2823 = vmax.f32 %v2217, %v2797
      %v2824 = vmax.f32 %v2220, %v2800
      %v2825 = vmax.f32 %v2225, %v2805
      %v2826 = vmax.f32 %v2228, %v2808
      %v2827 = vmax.f32 %v1635, %v2811
      %v2828 = vmax.f32 %v1636, %v2812
      %v2829 = vmax.f32 %v1637, %v2813
      %v2830 = vmax.f32 %v1638, %v2814
      %v2831 = vmax.f32 %v1639, %v2815
      %v2832 = vmax.f32 %v1640, %v2816
      %v2833 = vmax.f32 %v1641, %v2817
      %v2834 = vmax.f32 %v1642, %v2818
      %v2835 = vmax.f32 %v1643, %v2819
      %v2836 = vmax.f32 %v1644, %v2820
      %v2837 = vmax.f32 %v1645, %v2821
      %v2838 = vmax.f32 %v1646, %v2822
      %v2839 = vmax.f32 %v1647, %v2823
      %v2840 = vmax.f32 %v1648, %v2824
      %v2841 = vmax.f32 %v1649, %v2825
      %v2842 = vmax.f32 %v1650, %v2826
      %v2843 = vld [vmem:[%s2] sm:$0xff]
      %v2844 = vld [vmem:[%s2 + $0x8] sm:$0xff]
      %v2845 = vld [vmem:[%s2 + $0x10] sm:$0xff]
      %v2846 = vld [vmem:[%s2 + $0x18] sm:$0xff]
      %v2847 = vld [vmem:[%s2 + $0x20] sm:$0xff]
      %v2848 = vld [vmem:[%s2 + $0x28] sm:$0xff]
      %v2849 = vld [vmem:[%s2 + $0x30] sm:$0xff]
      %v2850 = vld [vmem:[%s2 + $0x38] sm:$0xff]
      %v2851 = vld [vmem:[%s2 + $0x40] sm:$0xff]
      %v2852 = vld [vmem:[%s2 + $0x48] sm:$0xff]
      %v2853 = vld [vmem:[%s2 + $0x50] sm:$0xff]
      %v2854 = vld [vmem:[%s2 + $0x58] sm:$0xff]
      %v2855 = vld [vmem:[%s2 + $0x60] sm:$0xff]
      %v2856 = vld [vmem:[%s2 + $0x68] sm:$0xff]
      %v2857 = vld [vmem:[%s2 + $0x70] sm:$0xff]
      %v2858 = vld [vmem:[%s2 + $0x78] sm:$0xff]
      %2860 = vset.pattern.permute.xlu0 0
      %2861 = vperm.xlu0 %2860, %v2843
      %v2862 = vpop.permute.xlu0 %2861
      %2865 = vset.pattern.permute.xlu0 0
      %2866 = vperm.xlu0 %2865, %v2844
      %v2867 = vpop.permute.xlu0 %2866
      %2870 = vset.pattern.permute.xlu0 0
      %2871 = vperm.xlu0 %2870, %v2845
      %v2872 = vpop.permute.xlu0 %2871
      %2875 = vset.pattern.permute.xlu0 0
      %2876 = vperm.xlu0 %2875, %v2846
      %v2877 = vpop.permute.xlu0 %2876
      %2880 = vset.pattern.permute.xlu0 0
      %2881 = vperm.xlu0 %2880, %v2847
      %v2882 = vpop.permute.xlu0 %2881
      %2885 = vset.pattern.permute.xlu0 0
      %2886 = vperm.xlu0 %2885, %v2848
      %v2887 = vpop.permute.xlu0 %2886
      %2890 = vset.pattern.permute.xlu0 0
      %2891 = vperm.xlu0 %2890, %v2849
      %v2892 = vpop.permute.xlu0 %2891
      %2895 = vset.pattern.permute.xlu0 0
      %2896 = vperm.xlu0 %2895, %v2850
      %v2897 = vpop.permute.xlu0 %2896
      %2900 = vset.pattern.permute.xlu0 0
      %2901 = vperm.xlu0 %2900, %v2851
      %v2902 = vpop.permute.xlu0 %2901
      %2905 = vset.pattern.permute.xlu0 0
      %2906 = vperm.xlu0 %2905, %v2852
      %v2907 = vpop.permute.xlu0 %2906
      %2910 = vset.pattern.permute.xlu0 0
      %2911 = vperm.xlu0 %2910, %v2853
      %v2912 = vpop.permute.xlu0 %2911
      %2915 = vset.pattern.permute.xlu0 0
      %2916 = vperm.xlu0 %2915, %v2854
      %v2917 = vpop.permute.xlu0 %2916
      %2920 = vset.pattern.permute.xlu0 0
      %2921 = vperm.xlu0 %2920, %v2855
      %v2922 = vpop.permute.xlu0 %2921
      %2925 = vset.pattern.permute.xlu0 0
      %2926 = vperm.xlu0 %2925, %v2856
      %v2927 = vpop.permute.xlu0 %2926
      %2930 = vset.pattern.permute.xlu0 0
      %2931 = vperm.xlu0 %2930, %v2857
      %v2932 = vpop.permute.xlu0 %2931
      %2935 = vset.pattern.permute.xlu0 0
      %2936 = vperm.xlu0 %2935, %v2858
      %v2937 = vpop.permute.xlu0 %2936
      %v2939 = vadd.f32 %v2827, %v2862
      %v2940 = vadd.f32 %v2828, %v2867
      %v2941 = vadd.f32 %v2829, %v2872
      %v2942 = vadd.f32 %v2830, %v2877
      %v2943 = vadd.f32 %v2831, %v2882
      %v2944 = vadd.f32 %v2832, %v2887
      %v2945 = vadd.f32 %v2833, %v2892
      %v2946 = vadd.f32 %v2834, %v2897
      %v2947 = vadd.f32 %v2835, %v2902
      %v2948 = vadd.f32 %v2836, %v2907
      %v2949 = vadd.f32 %v2837, %v2912
      %v2950 = vadd.f32 %v2838, %v2917
      %v2951 = vadd.f32 %v2839, %v2922
      %v2952 = vadd.f32 %v2840, %v2927
      %v2953 = vadd.f32 %v2841, %v2932
      %v2954 = vadd.f32 %v2842, %v2937
      %v2955 = vmax.f32 %v2939, 0.0
      %v2956 = vmax.f32 %v2940, 0.0
      %v2957 = vmax.f32 %v2941, 0.0
      %v2958 = vmax.f32 %v2942, 0.0
      %v2959 = vmax.f32 %v2943, 0.0
      %v2960 = vmax.f32 %v2944, 0.0
      %v2961 = vmax.f32 %v2945, 0.0
      %v2962 = vmax.f32 %v2946, 0.0
      %v2963 = vmax.f32 %v2947, 0.0
      %v2964 = vmax.f32 %v2948, 0.0
      %v2965 = vmax.f32 %v2949, 0.0
      %v2966 = vmax.f32 %v2950, 0.0
      %v2967 = vmax.f32 %v2951, 0.0
      %v2968 = vmax.f32 %v2952, 0.0
      %v2969 = vmax.f32 %v2953, 0.0
      %v2970 = vmax.f32 %v2954, 0.0
      %v2971 = vpack.c.bf16 %v2956, %v2955
      %v2972 = vpack.c.bf16 %v2958, %v2957
      %v2973 = vpack.c.bf16 %v2960, %v2959
      %v2974 = vpack.c.bf16 %v2962, %v2961
      %v2975 = vpack.c.bf16 %v2964, %v2963
      %v2976 = vpack.c.bf16 %v2966, %v2965
      %v2977 = vpack.c.bf16 %v2968, %v2967
      %v2978 = vpack.c.bf16 %v2970, %v2969
      %v2987 = vunpack.c.l.b16 %v2971
      %v2988 = vunpack.c.h.b16 %v2971
      %v2989 = vunpack.c.l.b16 %v2972
      %v2990 = vunpack.c.h.b16 %v2972
      %v2991 = vunpack.c.l.b16 %v2973
      %v2992 = vunpack.c.h.b16 %v2973
      %v2993 = vunpack.c.l.b16 %v2974
      %v2994 = vunpack.c.h.b16 %v2974
      %v2995 = vunpack.c.l.b16 %v2975
      %v2996 = vunpack.c.h.b16 %v2975
      %v2997 = vunpack.c.l.b16 %v2976
      %v2998 = vunpack.c.h.b16 %v2976
      %v2999 = vunpack.c.l.b16 %v2977
      %v3000 = vunpack.c.h.b16 %v2977
      %v3001 = vunpack.c.l.b16 %v2978
      %v3002 = vunpack.c.h.b16 %v2978
      %v3003 = vpack.c.b16 %v2987, %v2987
      %v3004 = vpack.c.b16 %v2988, %v2988
      %v3005 = vpack.c.b16 %v2989, %v2989
      %v3006 = vpack.c.b16 %v2990, %v2990
      %v3007 = vpack.c.b16 %v2991, %v2991
      %v3008 = vpack.c.b16 %v2992, %v2992
      %v3009 = vpack.c.b16 %v2993, %v2993
      %v3010 = vpack.c.b16 %v2994, %v2994
      %v3011 = vpack.c.b16 %v2995, %v2995
      %v3012 = vpack.c.b16 %v2996, %v2996
      %v3013 = vpack.c.b16 %v2997, %v2997
      %v3014 = vpack.c.b16 %v2998, %v2998
      %v3015 = vpack.c.b16 %v2999, %v2999
      %v3016 = vpack.c.b16 %v3000, %v3000
      %v3017 = vpack.c.b16 %v3001, %v3001
      %v3018 = vpack.c.b16 %v3002, %v3002
      %vm3035 = vcmask 27648
      %3036 = vst.msk [vmem:[%s201] sm:$0xf] %vm3035, %v3003
      %3037 = vst.msk [vmem:[%s201 + $0x4] sm:$0xf] %vm3035, %v3004
      %3038 = vst.msk [vmem:[%s201 + $0x8] sm:$0xf] %vm3035, %v3005
      %3039 = vst.msk [vmem:[%s201 + $0xc] sm:$0xf] %vm3035, %v3006
      %3040 = vst.msk [vmem:[%s201 + $0x10] sm:$0xf] %vm3035, %v3007
      %3041 = vst.msk [vmem:[%s201 + $0x14] sm:$0xf] %vm3035, %v3008
      %3042 = vst.msk [vmem:[%s201 + $0x18] sm:$0xf] %vm3035, %v3009
      %3043 = vst.msk [vmem:[%s201 + $0x1c] sm:$0xf] %vm3035, %v3010
      %3044 = vst.msk [vmem:[%s201 + $0x20] sm:$0xf] %vm3035, %v3011
      %3045 = vst.msk [vmem:[%s201 + $0x24] sm:$0xf] %vm3035, %v3012
      %3046 = vst.msk [vmem:[%s201 + $0x28] sm:$0xf] %vm3035, %v3013
      %3047 = vst.msk [vmem:[%s201 + $0x2c] sm:$0xf] %vm3035, %v3014
      %3048 = vst.msk [vmem:[%s201 + $0x30] sm:$0xf] %vm3035, %v3015
      %3049 = vst.msk [vmem:[%s201 + $0x34] sm:$0xf] %vm3035, %v3016
      %3050 = vst.msk [vmem:[%s201 + $0x38] sm:$0xf] %vm3035, %v3017
      %3051 = vst.msk [vmem:[%s201 + $0x3c] sm:$0xf] %vm3035, %v3018
      %p3052 = scmp.lt.s32.totalorder %s18, 1
      %s3053 = scalar_select %p3052, %s18, 1
      %p3054 = scmp.lt.s32.totalorder %s19, 0
      %s3055 = scalar_select %p3054, %s19, 0
      %s3056 = smul.addr %s3053, 16
      %s3057 = sadd.s32 %s3055, %s3056
      %s3058 = smul.addr %s3057, 4
      %s3059 = scalar_lea.vmem %s3, %s3058
      // Predicated region
      $region33: #{cnn_multitask_forward.8} parent=31 // pred_check
        %p3060 = pneg %p116
      $region34: #{cnn_multitask_forward.8} parent=31 // pred_check_branch
        %3062 = sbr.rel (%p3060) target = $region36
      $region35: #{cnn_multitask_forward.8} parent=31 // pred_region
        _
      $region36: #{cnn_multitask_forward.8} parent=31 // pred_fallthru
        _
    $region32: #{cnn_multitask_forward.8} parent=5 // pred_fallthru
      _
    %p3063 = scmp.le.s32.totalorder 2, %s9
    // Predicated region
    $region37: #{cnn_multitask_forward.8} parent=5 // pred_check
      %p3064 = pneg %p3063
    $region38: #{cnn_multitask_forward.8} parent=5 // pred_check_branch
      %3066 = sbr.rel (%p3064) target = $region40
    $region39: #{cnn_multitask_forward.8} parent=5 // pred_region
      %s3067 = ssub.s32 %s9, 2
      // Predicated region
      $region41: #{cnn_multitask_forward.8} parent=39 // pred_check
        %p3068 = pneg %p122
      $region42: #{cnn_multitask_forward.8} parent=39 // pred_check_branch
        %3070 = sbr.rel (%p3068) target = $region44
      $region43: #{cnn_multitask_forward.8} parent=39 // pred_region
        %p3071 = scmp.lt.s32.totalorder %s20, 1
        %s3072 = scalar_select %p3071, %s20, 1
        %p3073 = scmp.lt.s32.totalorder %s21, 0
        %s3074 = scalar_select %p3073, %s21, 0
        %s3075 = smul.addr %s3072, 16
        %s3076 = sadd.s32 %s3074, %s3075
        %s3077 = smul.addr %s3076, 4
        %s3078 = scalar_lea.vmem %s3, %s3077
      $region44: #{cnn_multitask_forward.8} parent=39 // pred_fallthru
        _
    $region40: #{cnn_multitask_forward.8} parent=5 // pred_fallthru
      _
  $region6: #{cnn_multitask_forward.8} parent=0 // loop_footer
    %s13 = sadd.s32 1, %s9
  $region7: #{cnn_multitask_forward.8} parent=0 // loop_footer_branch
    %8 = sbr.rel target = $region3
  $region8: #{cnn_multitask_forward.8} parent=0 // loop_exit
    _

</llo_original>
